<compile_context>
chip_gen: v6e
topology: v6e:2x2x1
jax: 0.10.0
libtpu: 0.0.40
codegen_flags: <defaults>
</compile_context>

<pallas_src>
import numpy as np
import jax
import jax.numpy as jnp
from jax.experimental import pallas as pl
from jax.experimental.pallas import tpu as pltpu

# ---------------- synthetic GridNet configuration ----------------
PATCH_SHAPE = (3, 8, 8)    # (C_in, PH, PW)  -> patch_classifier input shape
GRID_SHAPE = (8, 8)        # (GH, GW)
N_CLASSES = 8
KSIZES = (3, 5, 5, 3)      # corrector conv kernel sizes (pad = k//2, "same")
USE_BN = True
BN_EPS = 1e-5

_KKMAX = max(KSIZES) ** 2              # 25 taps for the largest (5x5) kernel
_PMAX = 8                              # halo offset inside the padded scratch
                                       # (multiple of 8 -> sublane-aligned writes)
_HIGH = jax.lax.Precision.HIGHEST


# ---------------- fused Pallas kernel ----------------
def _gridnet_fused_kernel(x_ref, cw_ref, cb_ref, w_ref, sc_ref, sh_ref,
                          o_ref, act_ref, cols_ref):
    # x_ref   : (1, GH*GW, D)      flattened patches for one batch element
    # cw_ref  : (D, C)             patch-classifier weights
    # cb_ref  : (1, C)             patch-classifier bias
    # w_ref   : (L, KKMAX*C, C)    im2col conv weights (zero-padded rows)
    # sc_ref  : (L, C)             folded BN scale  (gamma * rsqrt(var+eps), or 1)
    # sh_ref  : (L, C)             folded bias+BN shift
    # o_ref   : (1, C, GH*GW)      transposed (channel-major) output
    # act_ref : (APAD, APAD, C)    zero-bordered activation scratch (VMEM)
    # cols_ref: (GH*GW, KKMAX*C)   im2col staging scratch (VMEM)
    GH, GW = GRID_SHAPE
    C = N_CLASSES
    HW = GH * GW
    n_layers = len(KSIZES)

    # Zero the scratches once per grid step.  Only the interior
    # [PMAX:PMAX+GH, PMAX:PMAX+GW] of act_ref is ever rewritten, so its zero
    # border implements "same" zero padding for every conv layer.
    act_ref[...] = jnp.zeros_like(act_ref)
    cols_ref[...] = jnp.zeros_like(cols_ref)

    # ---- patch classifier: (GH*GW, D) @ (D, C) + b ----
    h = jnp.dot(x_ref[0], cw_ref[...], precision=_HIGH,
                preferred_element_type=jnp.float32) + cb_ref[...]

    scales = sc_ref[...]        # (L, C)
    shifts = sh_ref[...]        # (L, C)

    # ---- corrector: Conv -> (BN) -> ReLU  x3, then Conv ----
    for i, ks in enumerate(KSIZES):
        p = ks // 2
        # Current NHWC activation into the zero-bordered scratch.
        act_ref[_PMAX:_PMAX + GH, _PMAX:_PMAX + GW, :] = h.reshape(GH, GW, C)

        # im2col: pack the ks*ks shifted windows side by side on the lane axis.
        for t in range(ks * ks):
            kh, kw = divmod(t, ks)
            r0 = _PMAX - p + kh
            c0 = _PMAX - p + kw
            cols_ref[:, t * C:(t + 1) * C] = (
                act_ref[r0:r0 + GH, c0:c0 + GW, :].reshape(HW, C))

        # One MXU matmul per layer: (HW, KKMAX*C) @ (KKMAX*C, C).
        # Weight rows beyond ks*ks*C are zero, so stale/unused cols lanes are inert.
        h = jnp.dot(cols_ref[...], w_ref[i], precision=_HIGH,
                    preferred_element_type=jnp.float32)

        # Folded conv-bias + eval-mode BatchNorm: y = h * scale + shift.
        h = h * scales[i:i + 1, :] + shifts[i:i + 1, :]
        if i < n_layers - 1:
            h = jnp.maximum(h, 0.0)

    # Store transposed (C, GH*GW): lane width 64 instead of 8, and the wrapper
    # only needs a reshape (no transpose) to produce NCHW.
    o_ref[0] = h.T


# ---------------- parameter folding for the kernel ----------------
def _fold_params_for_kernel(params):
    """Flatten+pad conv weights to a common im2col layout and fold conv bias +
    eval-mode BN into a per-channel (scale, shift)."""
    C = N_CLASSES
    w_rows, scales, shifts = [], [], []
    for i, cp in enumerate(params["convs"]):
        ks = KSIZES[i]
        # HWIO (ks, ks, C, C) -> rows ordered (kh, kw, cin), zero-padded to KKMAX*C.
        w_flat = cp["w"].reshape(ks * ks * C, C)
        w_flat = jnp.pad(w_flat, ((0, _KKMAX * C - ks * ks * C), (0, 0)))
        w_rows.append(w_flat)
        if USE_BN and i < len(KSIZES) - 1:
            scale = cp["gamma"] * jax.lax.rsqrt(cp["var"] + BN_EPS)
            shift = cp["beta"] + (cp["b"] - cp["mean"]) * scale
        else:
            scale = jnp.ones_like(cp["b"])
            shift = cp["b"]
        scales.append(scale)
        shifts.append(shift)
    return (jnp.stack(w_rows, axis=0),           # (L, KKMAX*C, C)
            jnp.concatenate(scales, axis=0),      # (L, C)
            jnp.concatenate(shifts, axis=0))      # (L, C)


# ---------------- GridNet forward (single fused pallas_call) ----------------
def gridnet_forward(x, params):
    # x: (B, GH, GW, C_in, PH, PW) float32  ->  (B, n_classes, GH, GW)
    B = x.shape[0]
    GH, GW = GRID_SHAPE
    C = N_CLASSES
    D = int(np.prod(PATCH_SHAPE))
    L = len(KSIZES)

    # torch.reshape(x, (-1,) + patch_shape) + flatten -> (B, GH*GW, D) rows.
    x2 = x.reshape(B, GH * GW, D)
    w_all, scales, shifts = _fold_params_for_kernel(params)
    apad = GH + 2 * _PMAX

    out_t = pl.pallas_call(
        _gridnet_fused_kernel,
        out_shape=jax.ShapeDtypeStruct((B, C, GH * GW), jnp.float32),
        grid_spec=pltpu.PrefetchScalarGridSpec(
            num_scalar_prefetch=0,
            grid=(B,),                                  # one fused step per batch elem
            in_specs=[
                pl.BlockSpec((1, GH * GW, D), lambda b: (b, 0, 0)),
                pl.BlockSpec((D, C), lambda b: (0, 0)),
                pl.BlockSpec((1, C), lambda b: (0, 0)),
                pl.BlockSpec((L, _KKMAX * C, C), lambda b: (0, 0, 0)),
                pl.BlockSpec((L, C), lambda b: (0, 0)),
                pl.BlockSpec((L, C), lambda b: (0, 0)),
            ],
            out_specs=pl.BlockSpec((1, C, GH * GW), lambda b: (b, 0, 0)),
            scratch_shapes=[
                pltpu.VMEM((apad, apad, C), jnp.float32),        # halo'd activation
                pltpu.VMEM((GH * GW, _KKMAX * C), jnp.float32),  # im2col columns
            ],
        ),
        compiler_params=pltpu.CompilerParams(
            dimension_semantics=("parallel",)),         # v7x: batch across both TCs
    )(x2, params["cls_w"], params["cls_b"], w_all, scales, shifts)

    # (B, C, GH*GW) -> NCHW (B, C, GH, GW): reshape only, matches PyTorch output.
    return out_t.reshape(B, C, GH, GW)


# ---------------- parameters (deterministic, synthetic) ----------------
def init_params(key):
    C_in, PH, PW = PATCH_SHAPE
    D = C_in * PH * PW
    C = N_CLASSES
    keys = iter(jax.random.split(key, 64))
    params = {}
    # synthetic patch classifier: Linear(D -> n_classes)
    params["cls_w"] = jax.random.normal(next(keys), (D, C), jnp.float32) / np.sqrt(D)
    params["cls_b"] = 0.01 * jax.random.normal(next(keys), (1, C), jnp.float32)
    # corrector: Conv3 -> BN -> ReLU -> Conv5 -> BN -> ReLU -> Conv5 -> BN -> ReLU -> Conv3
    convs = []
    for i, ks in enumerate(KSIZES):
        fan_in = C * ks * ks
        w = jax.random.normal(next(keys), (ks, ks, C, C), jnp.float32) / np.sqrt(fan_in)  # HWIO
        b = 0.01 * jax.random.normal(next(keys), (1, C), jnp.float32)
        if USE_BN and i < len(KSIZES) - 1:
            gamma = 1.0 + 0.1 * jax.random.normal(next(keys), (1, C), jnp.float32)
            beta = 0.1 * jax.random.normal(next(keys), (1, C), jnp.float32)
            mean = 0.1 * jax.random.normal(next(keys), (1, C), jnp.float32)
            var = 1.0 + 0.1 * jnp.abs(jax.random.normal(next(keys), (1, C), jnp.float32))
        else:
            gamma = jnp.ones((1, C), jnp.float32)
            beta = jnp.zeros((1, C), jnp.float32)
            mean = jnp.zeros((1, C), jnp.float32)
            var = jnp.ones((1, C), jnp.float32)
        convs.append(dict(w=w, b=b, gamma=gamma, beta=beta, mean=mean, var=var))
    params["convs"] = convs
    return params


# ---------------- pure-JAX reference (sanity check) ----------------
def gridnet_reference(x, params):
    B = x.shape[0]
    GH, GW = GRID_SHAPE
    C = N_CLASSES
    D = int(np.prod(PATCH_SHAPE))
    patches = x.reshape(-1, D)
    preds = jnp.dot(patches, params["cls_w"], precision=_HIGH) + params["cls_b"]
    h = preds.reshape(B, GH, GW, C)
    for i, cp in enumerate(params["convs"]):
        h = jax.lax.conv_general_dilated(
            h, cp["w"], window_strides=(1, 1), padding="SAME",
            dimension_numbers=("NHWC", "HWIO", "NHWC"), precision=_HIGH)
        h = h + cp["b"].reshape(1, 1, 1, C)
        if USE_BN and i < len(KSIZES) - 1:
            inv = jax.lax.rsqrt(cp["var"] + BN_EPS).reshape(1, 1, 1, C)
            h = (h - cp["mean"].reshape(1, 1, 1, C)) * inv \
                * cp["gamma"].reshape(1, 1, 1, C) + cp["beta"].reshape(1, 1, 1, C)
        if i < len(KSIZES) - 1:
            h = jnp.maximum(h, 0.0)
    return jnp.transpose(h, (0, 3, 1, 2))


if __name__ == "__main__":
    key = jax.random.PRNGKey(0)
    pkey, xkey = jax.random.split(key)
    params = init_params(pkey)

    B = 2
    GH, GW = GRID_SHAPE
    x = jax.random.normal(xkey, (B, GH, GW) + PATCH_SHAPE, jnp.float32)

    out = jax.jit(gridnet_forward)(x, params)
    out = jax.block_until_ready(out)

    assert out.shape == (B, N_CLASSES, GH, GW), out.shape
    ref = gridnet_reference(x, params)
    err = float(jnp.max(jnp.abs(out - ref)))
    if not np.isfinite(err) or err > 1e-3:
        raise AssertionError(f"mismatch vs reference: max abs err = {err}")

    print("KERNEL_OK")
</pallas_src>

<mosaic_0001>
module attributes {stable_mosaic.version = 11 : i64} {
  func.func @_gridnet_fused_kernel(%arg0: i32, %arg1: memref<1x64x192xf32, #tpu.memory_space<vmem>>, %arg2: memref<192x8xf32, #tpu.memory_space<vmem>>, %arg3: memref<1x8xf32, #tpu.memory_space<vmem>>, %arg4: memref<4x200x8xf32, #tpu.memory_space<vmem>>, %arg5: memref<4x8xf32, #tpu.memory_space<vmem>>, %arg6: memref<4x8xf32, #tpu.memory_space<vmem>>, %arg7: memref<1x8x64xf32, #tpu.memory_space<vmem>>, %arg8: memref<24x24x8xf32, #tpu.memory_space<vmem>>, %arg9: memref<64x200xf32, #tpu.memory_space<vmem>>) attributes {dimension_semantics = [#tpu.dimension_semantics<parallel>], iteration_bounds = array<i64: 2>, scalar_prefetch = 0 : i64, scratch_operands = 2 : i64, tpu.core_type = #tpu.core_type<tc>, window_params = [{transform_indices = @transform_0, window_bounds = array<i64: 1, 64, 192>}, {pipeline_mode = #tpu.pipeline_mode<synchronous>, transform_indices = @transform_1, window_bounds = array<i64: 192, 8>}, {pipeline_mode = #tpu.pipeline_mode<synchronous>, transform_indices = @transform_2, window_bounds = array<i64: 1, 8>}, {pipeline_mode = #tpu.pipeline_mode<synchronous>, transform_indices = @transform_3, window_bounds = array<i64: 4, 200, 8>}, {pipeline_mode = #tpu.pipeline_mode<synchronous>, transform_indices = @transform_4, window_bounds = array<i64: 4, 8>}, {pipeline_mode = #tpu.pipeline_mode<synchronous>, transform_indices = @transform_5, window_bounds = array<i64: 4, 8>}, {transform_indices = @transform_6, window_bounds = array<i64: 1, 8, 64>}]} {
    %cst = arith.constant 0.000000e+00 : f32
    %0 = vector.broadcast %cst : f32 to vector<24x24x8xf32>
    %c0 = arith.constant 0 : index
    %c0_0 = arith.constant 0 : index
    %c0_1 = arith.constant 0 : index
    %1 = vector.load %arg8[%c0, %c0_0, %c0_1] : memref<24x24x8xf32, #tpu.memory_space<vmem>>, vector<24x24x8xf32>
    tpu.vector_store %arg8[%c0, %c0_0, %c0_1], %0 {strides = array<i32>} : memref<24x24x8xf32, #tpu.memory_space<vmem>>, vector<24x24x8xf32>,
    %cst_2 = arith.constant 0.000000e+00 : f32
    %2 = vector.broadcast %cst_2 : f32 to vector<64x200xf32>
    %c0_3 = arith.constant 0 : index
    %c0_4 = arith.constant 0 : index
    %3 = vector.load %arg9[%c0_3, %c0_4] : memref<64x200xf32, #tpu.memory_space<vmem>>, vector<64x200xf32>
    tpu.vector_store %arg9[%c0_3, %c0_4], %2 {strides = array<i32>} : memref<64x200xf32, #tpu.memory_space<vmem>>, vector<64x200xf32>,
    %c0_5 = arith.constant 0 : index
    %c0_6 = arith.constant 0 : index
    %c0_7 = arith.constant 0 : index
    %4 = vector.load %arg1[%c0_5, %c0_6, %c0_7] : memref<1x64x192xf32, #tpu.memory_space<vmem>>, vector<1x64x192xf32>
    %5 = vector.shape_cast %4 : vector<1x64x192xf32> to vector<64x192xf32>
    %c0_8 = arith.constant 0 : index
    %c0_9 = arith.constant 0 : index
    %6 = vector.load %arg2[%c0_8, %c0_9] : memref<192x8xf32, #tpu.memory_space<vmem>>, vector<192x8xf32>
    %cst_10 = arith.constant dense<0.000000e+00> : vector<64x8xf32>
    %7 = tpu.matmul %5, %6, %cst_10 {dimension_numbers = #tpu.dot_dimension_numbers<[1], [0], [0], [1], [0, 0, 1, 1], [], []>, precision = #tpu.contract_precision<fp32>} : vector<64x192xf32>, vector<192x8xf32>, vector<64x8xf32> -> vector<64x8xf32>
    %c0_11 = arith.constant 0 : index
    %c0_12 = arith.constant 0 : index
    %8 = vector.load %arg3[%c0_11, %c0_12] : memref<1x8xf32, #tpu.memory_space<vmem>>, vector<1x8xf32>
    %9 = vector.broadcast %8 : vector<1x8xf32> to vector<64x8xf32>
    %10 = arith.addf %7, %9 : vector<64x8xf32>
    %c0_13 = arith.constant 0 : index
    %c0_14 = arith.constant 0 : index
    %11 = vector.load %arg5[%c0_13, %c0_14] : memref<4x8xf32, #tpu.memory_space<vmem>>, vector<4x8xf32>
    %c0_15 = arith.constant 0 : index
    %c0_16 = arith.constant 0 : index
    %12 = vector.load %arg6[%c0_15, %c0_16] : memref<4x8xf32, #tpu.memory_space<vmem>>, vector<4x8xf32>
    %13 = vector.shape_cast %10 : vector<64x8xf32> to vector<8x8x8xf32>
    %c8 = arith.constant 8 : index
    %c8_17 = arith.constant 8 : index
    %c0_18 = arith.constant 0 : index
    %14 = vector.load %arg8[%c8, %c8_17, %c0_18] : memref<24x24x8xf32, #tpu.memory_space<vmem>>, vector<8x8x8xf32>
    tpu.vector_store %arg8[%c8, %c8_17, %c0_18], %13 {strides = array<i32>} : memref<24x24x8xf32, #tpu.memory_space<vmem>>, vector<8x8x8xf32>,
    %c7 = arith.constant 7 : index
    %c7_19 = arith.constant 7 : index
    %c0_20 = arith.constant 0 : index
    %15 = vector.load %arg8[%c7, %c7_19, %c0_20] : memref<24x24x8xf32, #tpu.memory_space<vmem>>, vector<8x8x8xf32>
    %16 = vector.shape_cast %15 : vector<8x8x8xf32> to vector<64x8xf32>
    %c0_21 = arith.constant 0 : index
    %c0_22 = arith.constant 0 : index
    %17 = vector.load %arg9[%c0_21, %c0_22] : memref<64x200xf32, #tpu.memory_space<vmem>>, vector<64x8xf32>
    tpu.vector_store %arg9[%c0_21, %c0_22], %16 {strides = array<i32>} : memref<64x200xf32, #tpu.memory_space<vmem>>, vector<64x8xf32>,
    %c7_23 = arith.constant 7 : index
    %c8_24 = arith.constant 8 : index
    %c0_25 = arith.constant 0 : index
    %18 = vector.load %arg8[%c7_23, %c8_24, %c0_25] : memref<24x24x8xf32, #tpu.memory_space<vmem>>, vector<8x8x8xf32>
    %19 = vector.shape_cast %18 : vector<8x8x8xf32> to vector<64x8xf32>
    %c0_26 = arith.constant 0 : index
    %c8_27 = arith.constant 8 : index
    %20 = vector.load %arg9[%c0_26, %c8_27] : memref<64x200xf32, #tpu.memory_space<vmem>>, vector<64x8xf32>
    tpu.vector_store %arg9[%c0_26, %c8_27], %19 {strides = array<i32>} : memref<64x200xf32, #tpu.memory_space<vmem>>, vector<64x8xf32>,
    %c7_28 = arith.constant 7 : index
    %c9 = arith.constant 9 : index
    %c0_29 = arith.constant 0 : index
    %21 = vector.load %arg8[%c7_28, %c9, %c0_29] : memref<24x24x8xf32, #tpu.memory_space<vmem>>, vector<8x8x8xf32>
    %22 = vector.shape_cast %21 : vector<8x8x8xf32> to vector<64x8xf32>
    %c0_30 = arith.constant 0 : index
    %c16 = arith.constant 16 : index
    %23 = vector.load %arg9[%c0_30, %c16] : memref<64x200xf32, #tpu.memory_space<vmem>>, vector<64x8xf32>
    tpu.vector_store %arg9[%c0_30, %c16], %22 {strides = array<i32>} : memref<64x200xf32, #tpu.memory_space<vmem>>, vector<64x8xf32>,
    %c8_31 = arith.constant 8 : index
    %c7_32 = arith.constant 7 : index
    %c0_33 = arith.constant 0 : index
    %24 = vector.load %arg8[%c8_31, %c7_32, %c0_33] : memref<24x24x8xf32, #tpu.memory_space<vmem>>, vector<8x8x8xf32>
    %25 = vector.shape_cast %24 : vector<8x8x8xf32> to vector<64x8xf32>
    %c0_34 = arith.constant 0 : index
    %c24 = arith.constant 24 : index
    %26 = vector.load %arg9[%c0_34, %c24] : memref<64x200xf32, #tpu.memory_space<vmem>>, vector<64x8xf32>
    tpu.vector_store %arg9[%c0_34, %c24], %25 {strides = array<i32>} : memref<64x200xf32, #tpu.memory_space<vmem>>, vector<64x8xf32>,
    %c8_35 = arith.constant 8 : index
    %c8_36 = arith.constant 8 : index
    %c0_37 = arith.constant 0 : index
    %27 = vector.load %arg8[%c8_35, %c8_36, %c0_37] : memref<24x24x8xf32, #tpu.memory_space<vmem>>, vector<8x8x8xf32>
    %28 = vector.shape_cast %27 : vector<8x8x8xf32> to vector<64x8xf32>
    %c0_38 = arith.constant 0 : index
    %c32 = arith.constant 32 : index
    %29 = vector.load %arg9[%c0_38, %c32] : memref<64x200xf32, #tpu.memory_space<vmem>>, vector<64x8xf32>
    tpu.vector_store %arg9[%c0_38, %c32], %28 {strides = array<i32>} : memref<64x200xf32, #tpu.memory_space<vmem>>, vector<64x8xf32>,
    %c8_39 = arith.constant 8 : index
    %c9_40 = arith.constant 9 : index
    %c0_41 = arith.constant 0 : index
    %30 = vector.load %arg8[%c8_39, %c9_40, %c0_41] : memref<24x24x8xf32, #tpu.memory_space<vmem>>, vector<8x8x8xf32>
    %31 = vector.shape_cast %30 : vector<8x8x8xf32> to vector<64x8xf32>
    %c0_42 = arith.constant 0 : index
    %c40 = arith.constant 40 : index
    %32 = vector.load %arg9[%c0_42, %c40] : memref<64x200xf32, #tpu.memory_space<vmem>>, vector<64x8xf32>
    tpu.vector_store %arg9[%c0_42, %c40], %31 {strides = array<i32>} : memref<64x200xf32, #tpu.memory_space<vmem>>, vector<64x8xf32>,
    %c9_43 = arith.constant 9 : index
    %c7_44 = arith.constant 7 : index
    %c0_45 = arith.constant 0 : index
    %33 = vector.load %arg8[%c9_43, %c7_44, %c0_45] : memref<24x24x8xf32, #tpu.memory_space<vmem>>, vector<8x8x8xf32>
    %34 = vector.shape_cast %33 : vector<8x8x8xf32> to vector<64x8xf32>
    %c0_46 = arith.constant 0 : index
    %c48 = arith.constant 48 : index
    %35 = vector.load %arg9[%c0_46, %c48] : memref<64x200xf32, #tpu.memory_space<vmem>>, vector<64x8xf32>
    tpu.vector_store %arg9[%c0_46, %c48], %34 {strides = array<i32>} : memref<64x200xf32, #tpu.memory_space<vmem>>, vector<64x8xf32>,
    %c9_47 = arith.constant 9 : index
    %c8_48 = arith.constant 8 : index
    %c0_49 = arith.constant 0 : index
    %36 = vector.load %arg8[%c9_47, %c8_48, %c0_49] : memref<24x24x8xf32, #tpu.memory_space<vmem>>, vector<8x8x8xf32>
    %37 = vector.shape_cast %36 : vector<8x8x8xf32> to vector<64x8xf32>
    %c0_50 = arith.constant 0 : index
    %c56 = arith.constant 56 : index
    %38 = vector.load %arg9[%c0_50, %c56] : memref<64x200xf32, #tpu.memory_space<vmem>>, vector<64x8xf32>
    tpu.vector_store %arg9[%c0_50, %c56], %37 {strides = array<i32>} : memref<64x200xf32, #tpu.memory_space<vmem>>, vector<64x8xf32>,
    %c9_51 = arith.constant 9 : index
    %c9_52 = arith.constant 9 : index
    %c0_53 = arith.constant 0 : index
    %39 = vector.load %arg8[%c9_51, %c9_52, %c0_53] : memref<24x24x8xf32, #tpu.memory_space<vmem>>, vector<8x8x8xf32>
    %40 = vector.shape_cast %39 : vector<8x8x8xf32> to vector<64x8xf32>
    %c0_54 = arith.constant 0 : index
    %c64 = arith.constant 64 : index
    %41 = vector.load %arg9[%c0_54, %c64] : memref<64x200xf32, #tpu.memory_space<vmem>>, vector<64x8xf32>
    tpu.vector_store %arg9[%c0_54, %c64], %40 {strides = array<i32>} : memref<64x200xf32, #tpu.memory_space<vmem>>, vector<64x8xf32>,
    %c0_55 = arith.constant 0 : index
    %c0_56 = arith.constant 0 : index
    %42 = vector.load %arg9[%c0_55, %c0_56] : memref<64x200xf32, #tpu.memory_space<vmem>>, vector<64x200xf32>
    %c0_57 = arith.constant 0 : index
    %c0_58 = arith.constant 0 : index
    %c0_59 = arith.constant 0 : index
    %43 = vector.load %arg4[%c0_57, %c0_58, %c0_59] : memref<4x200x8xf32, #tpu.memory_space<vmem>>, vector<1x200x8xf32>
    %44 = vector.shape_cast %43 : vector<1x200x8xf32> to vector<200x8xf32>
    %cst_60 = arith.constant dense<0.000000e+00> : vector<64x8xf32>
    %45 = tpu.matmul %42, %44, %cst_60 {dimension_numbers = #tpu.dot_dimension_numbers<[1], [0], [0], [1], [0, 0, 1, 1], [], []>, precision = #tpu.contract_precision<fp32>} : vector<64x200xf32>, vector<200x8xf32>, vector<64x8xf32> -> vector<64x8xf32>
    %46 = vector.extract_strided_slice %11 {offsets = [0, 0], sizes = [1, 8], strides = [1, 1]} : vector<4x8xf32> to vector<1x8xf32>
    %47 = vector.broadcast %46 : vector<1x8xf32> to vector<64x8xf32>
    %48 = arith.mulf %45, %47 : vector<64x8xf32>
    %49 = vector.extract_strided_slice %12 {offsets = [0, 0], sizes = [1, 8], strides = [1, 1]} : vector<4x8xf32> to vector<1x8xf32>
    %50 = vector.broadcast %49 : vector<1x8xf32> to vector<64x8xf32>
    %51 = arith.addf %48, %50 : vector<64x8xf32>
    %cst_61 = arith.constant 0.000000e+00 : f32
    %52 = vector.broadcast %cst_61 : f32 to vector<64x8xf32>
    %53 = arith.maximumf %51, %52 : vector<64x8xf32>
    %54 = vector.shape_cast %53 : vector<64x8xf32> to vector<8x8x8xf32>
    %c8_62 = arith.constant 8 : index
    %c8_63 = arith.constant 8 : index
    %c0_64 = arith.constant 0 : index
    %55 = vector.load %arg8[%c8_62, %c8_63, %c0_64] : memref<24x24x8xf32, #tpu.memory_space<vmem>>, vector<8x8x8xf32>
    tpu.vector_store %arg8[%c8_62, %c8_63, %c0_64], %54 {strides = array<i32>} : memref<24x24x8xf32, #tpu.memory_space<vmem>>, vector<8x8x8xf32>,
    %c6 = arith.constant 6 : index
    %c6_65 = arith.constant 6 : index
    %c0_66 = arith.constant 0 : index
    %56 = vector.load %arg8[%c6, %c6_65, %c0_66] : memref<24x24x8xf32, #tpu.memory_space<vmem>>, vector<8x8x8xf32>
    %57 = vector.shape_cast %56 : vector<8x8x8xf32> to vector<64x8xf32>
    %c0_67 = arith.constant 0 : index
    %c0_68 = arith.constant 0 : index
    %58 = vector.load %arg9[%c0_67, %c0_68] : memref<64x200xf32, #tpu.memory_space<vmem>>, vector<64x8xf32>
    tpu.vector_store %arg9[%c0_67, %c0_68], %57 {strides = array<i32>} : memref<64x200xf32, #tpu.memory_space<vmem>>, vector<64x8xf32>,
    %c6_69 = arith.constant 6 : index
    %c7_70 = arith.constant 7 : index
    %c0_71 = arith.constant 0 : index
    %59 = vector.load %arg8[%c6_69, %c7_70, %c0_71] : memref<24x24x8xf32, #tpu.memory_space<vmem>>, vector<8x8x8xf32>
    %60 = vector.shape_cast %59 : vector<8x8x8xf32> to vector<64x8xf32>
    %c0_72 = arith.constant 0 : index
    %c8_73 = arith.constant 8 : index
    %61 = vector.load %arg9[%c0_72, %c8_73] : memref<64x200xf32, #tpu.memory_space<vmem>>, vector<64x8xf32>
    tpu.vector_store %arg9[%c0_72, %c8_73], %60 {strides = array<i32>} : memref<64x200xf32, #tpu.memory_space<vmem>>, vector<64x8xf32>,
    %c6_74 = arith.constant 6 : index
    %c8_75 = arith.constant 8 : index
    %c0_76 = arith.constant 0 : index
    %62 = vector.load %arg8[%c6_74, %c8_75, %c0_76] : memref<24x24x8xf32, #tpu.memory_space<vmem>>, vector<8x8x8xf32>
    %63 = vector.shape_cast %62 : vector<8x8x8xf32> to vector<64x8xf32>
    %c0_77 = arith.constant 0 : index
    %c16_78 = arith.constant 16 : index
    %64 = vector.load %arg9[%c0_77, %c16_78] : memref<64x200xf32, #tpu.memory_space<vmem>>, vector<64x8xf32>
    tpu.vector_store %arg9[%c0_77, %c16_78], %63 {strides = array<i32>} : memref<64x200xf32, #tpu.memory_space<vmem>>, vector<64x8xf32>,
    %c6_79 = arith.constant 6 : index
    %c9_80 = arith.constant 9 : index
    %c0_81 = arith.constant 0 : index
    %65 = vector.load %arg8[%c6_79, %c9_80, %c0_81] : memref<24x24x8xf32, #tpu.memory_space<vmem>>, vector<8x8x8xf32>
    %66 = vector.shape_cast %65 : vector<8x8x8xf32> to vector<64x8xf32>
    %c0_82 = arith.constant 0 : index
    %c24_83 = arith.constant 24 : index
    %67 = vector.load %arg9[%c0_82, %c24_83] : memref<64x200xf32, #tpu.memory_space<vmem>>, vector<64x8xf32>
    tpu.vector_store %arg9[%c0_82, %c24_83], %66 {strides = array<i32>} : memref<64x200xf32, #tpu.memory_space<vmem>>, vector<64x8xf32>,
    %c6_84 = arith.constant 6 : index
    %c10 = arith.constant 10 : index
    %c0_85 = arith.constant 0 : index
    %68 = vector.load %arg8[%c6_84, %c10, %c0_85] : memref<24x24x8xf32, #tpu.memory_space<vmem>>, vector<8x8x8xf32>
    %69 = vector.shape_cast %68 : vector<8x8x8xf32> to vector<64x8xf32>
    %c0_86 = arith.constant 0 : index
    %c32_87 = arith.constant 32 : index
    %70 = vector.load %arg9[%c0_86, %c32_87] : memref<64x200xf32, #tpu.memory_space<vmem>>, vector<64x8xf32>
    tpu.vector_store %arg9[%c0_86, %c32_87], %69 {strides = array<i32>} : memref<64x200xf32, #tpu.memory_space<vmem>>, vector<64x8xf32>,
    %c7_88 = arith.constant 7 : index
    %c6_89 = arith.constant 6 : index
    %c0_90 = arith.constant 0 : index
    %71 = vector.load %arg8[%c7_88, %c6_89, %c0_90] : memref<24x24x8xf32, #tpu.memory_space<vmem>>, vector<8x8x8xf32>
    %72 = vector.shape_cast %71 : vector<8x8x8xf32> to vector<64x8xf32>
    %c0_91 = arith.constant 0 : index
    %c40_92 = arith.constant 40 : index
    %73 = vector.load %arg9[%c0_91, %c40_92] : memref<64x200xf32, #tpu.memory_space<vmem>>, vector<64x8xf32>
    tpu.vector_store %arg9[%c0_91, %c40_92], %72 {strides = array<i32>} : memref<64x200xf32, #tpu.memory_space<vmem>>, vector<64x8xf32>,
    %c7_93 = arith.constant 7 : index
    %c7_94 = arith.constant 7 : index
    %c0_95 = arith.constant 0 : index
    %74 = vector.load %arg8[%c7_93, %c7_94, %c0_95] : memref<24x24x8xf32, #tpu.memory_space<vmem>>, vector<8x8x8xf32>
    %75 = vector.shape_cast %74 : vector<8x8x8xf32> to vector<64x8xf32>
    %c0_96 = arith.constant 0 : index
    %c48_97 = arith.constant 48 : index
    %76 = vector.load %arg9[%c0_96, %c48_97] : memref<64x200xf32, #tpu.memory_space<vmem>>, vector<64x8xf32>
    tpu.vector_store %arg9[%c0_96, %c48_97], %75 {strides = array<i32>} : memref<64x200xf32, #tpu.memory_space<vmem>>, vector<64x8xf32>,
    %c7_98 = arith.constant 7 : index
    %c8_99 = arith.constant 8 : index
    %c0_100 = arith.constant 0 : index
    %77 = vector.load %arg8[%c7_98, %c8_99, %c0_100] : memref<24x24x8xf32, #tpu.memory_space<vmem>>, vector<8x8x8xf32>
    %78 = vector.shape_cast %77 : vector<8x8x8xf32> to vector<64x8xf32>
    %c0_101 = arith.constant 0 : index
    %c56_102 = arith.constant 56 : index
    %79 = vector.load %arg9[%c0_101, %c56_102] : memref<64x200xf32, #tpu.memory_space<vmem>>, vector<64x8xf32>
    tpu.vector_store %arg9[%c0_101, %c56_102], %78 {strides = array<i32>} : memref<64x200xf32, #tpu.memory_space<vmem>>, vector<64x8xf32>,
    %c7_103 = arith.constant 7 : index
    %c9_104 = arith.constant 9 : index
    %c0_105 = arith.constant 0 : index
    %80 = vector.load %arg8[%c7_103, %c9_104, %c0_105] : memref<24x24x8xf32, #tpu.memory_space<vmem>>, vector<8x8x8xf32>
    %81 = vector.shape_cast %80 : vector<8x8x8xf32> to vector<64x8xf32>
    %c0_106 = arith.constant 0 : index
    %c64_107 = arith.constant 64 : index
    %82 = vector.load %arg9[%c0_106, %c64_107] : memref<64x200xf32, #tpu.memory_space<vmem>>, vector<64x8xf32>
    tpu.vector_store %arg9[%c0_106, %c64_107], %81 {strides = array<i32>} : memref<64x200xf32, #tpu.memory_space<vmem>>, vector<64x8xf32>,
    %c7_108 = arith.constant 7 : index
    %c10_109 = arith.constant 10 : index
    %c0_110 = arith.constant 0 : index
    %83 = vector.load %arg8[%c7_108, %c10_109, %c0_110] : memref<24x24x8xf32, #tpu.memory_space<vmem>>, vector<8x8x8xf32>
    %84 = vector.shape_cast %83 : vector<8x8x8xf32> to vector<64x8xf32>
    %c0_111 = arith.constant 0 : index
    %c72 = arith.constant 72 : index
    %85 = vector.load %arg9[%c0_111, %c72] : memref<64x200xf32, #tpu.memory_space<vmem>>, vector<64x8xf32>
    tpu.vector_store %arg9[%c0_111, %c72], %84 {strides = array<i32>} : memref<64x200xf32, #tpu.memory_space<vmem>>, vector<64x8xf32>,
    %c8_112 = arith.constant 8 : index
    %c6_113 = arith.constant 6 : index
    %c0_114 = arith.constant 0 : index
    %86 = vector.load %arg8[%c8_112, %c6_113, %c0_114] : memref<24x24x8xf32, #tpu.memory_space<vmem>>, vector<8x8x8xf32>
    %87 = vector.shape_cast %86 : vector<8x8x8xf32> to vector<64x8xf32>
    %c0_115 = arith.constant 0 : index
    %c80 = arith.constant 80 : index
    %88 = vector.load %arg9[%c0_115, %c80] : memref<64x200xf32, #tpu.memory_space<vmem>>, vector<64x8xf32>
    tpu.vector_store %arg9[%c0_115, %c80], %87 {strides = array<i32>} : memref<64x200xf32, #tpu.memory_space<vmem>>, vector<64x8xf32>,
    %c8_116 = arith.constant 8 : index
    %c7_117 = arith.constant 7 : index
    %c0_118 = arith.constant 0 : index
    %89 = vector.load %arg8[%c8_116, %c7_117, %c0_118] : memref<24x24x8xf32, #tpu.memory_space<vmem>>, vector<8x8x8xf32>
    %90 = vector.shape_cast %89 : vector<8x8x8xf32> to vector<64x8xf32>
    %c0_119 = arith.constant 0 : index
    %c88 = arith.constant 88 : index
    %91 = vector.load %arg9[%c0_119, %c88] : memref<64x200xf32, #tpu.memory_space<vmem>>, vector<64x8xf32>
    tpu.vector_store %arg9[%c0_119, %c88], %90 {strides = array<i32>} : memref<64x200xf32, #tpu.memory_space<vmem>>, vector<64x8xf32>,
    %c8_120 = arith.constant 8 : index
    %c8_121 = arith.constant 8 : index
    %c0_122 = arith.constant 0 : index
    %92 = vector.load %arg8[%c8_120, %c8_121, %c0_122] : memref<24x24x8xf32, #tpu.memory_space<vmem>>, vector<8x8x8xf32>
    %93 = vector.shape_cast %92 : vector<8x8x8xf32> to vector<64x8xf32>
    %c0_123 = arith.constant 0 : index
    %c96 = arith.constant 96 : index
    %94 = vector.load %arg9[%c0_123, %c96] : memref<64x200xf32, #tpu.memory_space<vmem>>, vector<64x8xf32>
    tpu.vector_store %arg9[%c0_123, %c96], %93 {strides = array<i32>} : memref<64x200xf32, #tpu.memory_space<vmem>>, vector<64x8xf32>,
    %c8_124 = arith.constant 8 : index
    %c9_125 = arith.constant 9 : index
    %c0_126 = arith.constant 0 : index
    %95 = vector.load %arg8[%c8_124, %c9_125, %c0_126] : memref<24x24x8xf32, #tpu.memory_space<vmem>>, vector<8x8x8xf32>
    %96 = vector.shape_cast %95 : vector<8x8x8xf32> to vector<64x8xf32>
    %c0_127 = arith.constant 0 : index
    %c104 = arith.constant 104 : index
    %97 = vector.load %arg9[%c0_127, %c104] : memref<64x200xf32, #tpu.memory_space<vmem>>, vector<64x8xf32>
    tpu.vector_store %arg9[%c0_127, %c104], %96 {strides = array<i32>} : memref<64x200xf32, #tpu.memory_space<vmem>>, vector<64x8xf32>,
    %c8_128 = arith.constant 8 : index
    %c10_129 = arith.constant 10 : index
    %c0_130 = arith.constant 0 : index
    %98 = vector.load %arg8[%c8_128, %c10_129, %c0_130] : memref<24x24x8xf32, #tpu.memory_space<vmem>>, vector<8x8x8xf32>
    %99 = vector.shape_cast %98 : vector<8x8x8xf32> to vector<64x8xf32>
    %c0_131 = arith.constant 0 : index
    %c112 = arith.constant 112 : index
    %100 = vector.load %arg9[%c0_131, %c112] : memref<64x200xf32, #tpu.memory_space<vmem>>, vector<64x8xf32>
    tpu.vector_store %arg9[%c0_131, %c112], %99 {strides = array<i32>} : memref<64x200xf32, #tpu.memory_space<vmem>>, vector<64x8xf32>,
    %c9_132 = arith.constant 9 : index
    %c6_133 = arith.constant 6 : index
    %c0_134 = arith.constant 0 : index
    %101 = vector.load %arg8[%c9_132, %c6_133, %c0_134] : memref<24x24x8xf32, #tpu.memory_space<vmem>>, vector<8x8x8xf32>
    %102 = vector.shape_cast %101 : vector<8x8x8xf32> to vector<64x8xf32>
    %c0_135 = arith.constant 0 : index
    %c120 = arith.constant 120 : index
    %103 = vector.load %arg9[%c0_135, %c120] : memref<64x200xf32, #tpu.memory_space<vmem>>, vector<64x8xf32>
    tpu.vector_store %arg9[%c0_135, %c120], %102 {strides = array<i32>} : memref<64x200xf32, #tpu.memory_space<vmem>>, vector<64x8xf32>,
    %c9_136 = arith.constant 9 : index
    %c7_137 = arith.constant 7 : index
    %c0_138 = arith.constant 0 : index
    %104 = vector.load %arg8[%c9_136, %c7_137, %c0_138] : memref<24x24x8xf32, #tpu.memory_space<vmem>>, vector<8x8x8xf32>
    %105 = vector.shape_cast %104 : vector<8x8x8xf32> to vector<64x8xf32>
    %c0_139 = arith.constant 0 : index
    %c128 = arith.constant 128 : index
    %106 = vector.load %arg9[%c0_139, %c128] : memref<64x200xf32, #tpu.memory_space<vmem>>, vector<64x8xf32>
    tpu.vector_store %arg9[%c0_139, %c128], %105 {strides = array<i32>} : memref<64x200xf32, #tpu.memory_space<vmem>>, vector<64x8xf32>,
    %c9_140 = arith.constant 9 : index
    %c8_141 = arith.constant 8 : index
    %c0_142 = arith.constant 0 : index
    %107 = vector.load %arg8[%c9_140, %c8_141, %c0_142] : memref<24x24x8xf32, #tpu.memory_space<vmem>>, vector<8x8x8xf32>
    %108 = vector.shape_cast %107 : vector<8x8x8xf32> to vector<64x8xf32>
    %c0_143 = arith.constant 0 : index
    %c136 = arith.constant 136 : index
    %109 = vector.load %arg9[%c0_143, %c136] : memref<64x200xf32, #tpu.memory_space<vmem>>, vector<64x8xf32>
    tpu.vector_store %arg9[%c0_143, %c136], %108 {strides = array<i32>} : memref<64x200xf32, #tpu.memory_space<vmem>>, vector<64x8xf32>,
    %c9_144 = arith.constant 9 : index
    %c9_145 = arith.constant 9 : index
    %c0_146 = arith.constant 0 : index
    %110 = vector.load %arg8[%c9_144, %c9_145, %c0_146] : memref<24x24x8xf32, #tpu.memory_space<vmem>>, vector<8x8x8xf32>
    %111 = vector.shape_cast %110 : vector<8x8x8xf32> to vector<64x8xf32>
    %c0_147 = arith.constant 0 : index
    %c144 = arith.constant 144 : index
    %112 = vector.load %arg9[%c0_147, %c144] : memref<64x200xf32, #tpu.memory_space<vmem>>, vector<64x8xf32>
    tpu.vector_store %arg9[%c0_147, %c144], %111 {strides = array<i32>} : memref<64x200xf32, #tpu.memory_space<vmem>>, vector<64x8xf32>,
    %c9_148 = arith.constant 9 : index
    %c10_149 = arith.constant 10 : index
    %c0_150 = arith.constant 0 : index
    %113 = vector.load %arg8[%c9_148, %c10_149, %c0_150] : memref<24x24x8xf32, #tpu.memory_space<vmem>>, vector<8x8x8xf32>
    %114 = vector.shape_cast %113 : vector<8x8x8xf32> to vector<64x8xf32>
    %c0_151 = arith.constant 0 : index
    %c152 = arith.constant 152 : index
    %115 = vector.load %arg9[%c0_151, %c152] : memref<64x200xf32, #tpu.memory_space<vmem>>, vector<64x8xf32>
    tpu.vector_store %arg9[%c0_151, %c152], %114 {strides = array<i32>} : memref<64x200xf32, #tpu.memory_space<vmem>>, vector<64x8xf32>,
    %c10_152 = arith.constant 10 : index
    %c6_153 = arith.constant 6 : index
    %c0_154 = arith.constant 0 : index
    %116 = vector.load %arg8[%c10_152, %c6_153, %c0_154] : memref<24x24x8xf32, #tpu.memory_space<vmem>>, vector<8x8x8xf32>
    %117 = vector.shape_cast %116 : vector<8x8x8xf32> to vector<64x8xf32>
    %c0_155 = arith.constant 0 : index
    %c160 = arith.constant 160 : index
    %118 = vector.load %arg9[%c0_155, %c160] : memref<64x200xf32, #tpu.memory_space<vmem>>, vector<64x8xf32>
    tpu.vector_store %arg9[%c0_155, %c160], %117 {strides = array<i32>} : memref<64x200xf32, #tpu.memory_space<vmem>>, vector<64x8xf32>,
    %c10_156 = arith.constant 10 : index
    %c7_157 = arith.constant 7 : index
    %c0_158 = arith.constant 0 : index
    %119 = vector.load %arg8[%c10_156, %c7_157, %c0_158] : memref<24x24x8xf32, #tpu.memory_space<vmem>>, vector<8x8x8xf32>
    %120 = vector.shape_cast %119 : vector<8x8x8xf32> to vector<64x8xf32>
    %c0_159 = arith.constant 0 : index
    %c168 = arith.constant 168 : index
    %121 = vector.load %arg9[%c0_159, %c168] : memref<64x200xf32, #tpu.memory_space<vmem>>, vector<64x8xf32>
    tpu.vector_store %arg9[%c0_159, %c168], %120 {strides = array<i32>} : memref<64x200xf32, #tpu.memory_space<vmem>>, vector<64x8xf32>,
    %c10_160 = arith.constant 10 : index
    %c8_161 = arith.constant 8 : index
    %c0_162 = arith.constant 0 : index
    %122 = vector.load %arg8[%c10_160, %c8_161, %c0_162] : memref<24x24x8xf32, #tpu.memory_space<vmem>>, vector<8x8x8xf32>
    %123 = vector.shape_cast %122 : vector<8x8x8xf32> to vector<64x8xf32>
    %c0_163 = arith.constant 0 : index
    %c176 = arith.constant 176 : index
    %124 = vector.load %arg9[%c0_163, %c176] : memref<64x200xf32, #tpu.memory_space<vmem>>, vector<64x8xf32>
    tpu.vector_store %arg9[%c0_163, %c176], %123 {strides = array<i32>} : memref<64x200xf32, #tpu.memory_space<vmem>>, vector<64x8xf32>,
    %c10_164 = arith.constant 10 : index
    %c9_165 = arith.constant 9 : index
    %c0_166 = arith.constant 0 : index
    %125 = vector.load %arg8[%c10_164, %c9_165, %c0_166] : memref<24x24x8xf32, #tpu.memory_space<vmem>>, vector<8x8x8xf32>
    %126 = vector.shape_cast %125 : vector<8x8x8xf32> to vector<64x8xf32>
    %c0_167 = arith.constant 0 : index
    %c184 = arith.constant 184 : index
    %127 = vector.load %arg9[%c0_167, %c184] : memref<64x200xf32, #tpu.memory_space<vmem>>, vector<64x8xf32>
    tpu.vector_store %arg9[%c0_167, %c184], %126 {strides = array<i32>} : memref<64x200xf32, #tpu.memory_space<vmem>>, vector<64x8xf32>,
    %c10_168 = arith.constant 10 : index
    %c10_169 = arith.constant 10 : index
    %c0_170 = arith.constant 0 : index
    %128 = vector.load %arg8[%c10_168, %c10_169, %c0_170] : memref<24x24x8xf32, #tpu.memory_space<vmem>>, vector<8x8x8xf32>
    %129 = vector.shape_cast %128 : vector<8x8x8xf32> to vector<64x8xf32>
    %c0_171 = arith.constant 0 : index
    %c192 = arith.constant 192 : index
    %130 = vector.load %arg9[%c0_171, %c192] : memref<64x200xf32, #tpu.memory_space<vmem>>, vector<64x8xf32>
    tpu.vector_store %arg9[%c0_171, %c192], %129 {strides = array<i32>} : memref<64x200xf32, #tpu.memory_space<vmem>>, vector<64x8xf32>,
    %c0_172 = arith.constant 0 : index
    %c0_173 = arith.constant 0 : index
    %131 = vector.load %arg9[%c0_172, %c0_173] : memref<64x200xf32, #tpu.memory_space<vmem>>, vector<64x200xf32>
    %c1 = arith.constant 1 : index
    %c0_174 = arith.constant 0 : index
    %c0_175 = arith.constant 0 : index
    %132 = vector.load %arg4[%c1, %c0_174, %c0_175] : memref<4x200x8xf32, #tpu.memory_space<vmem>>, vector<1x200x8xf32>
    %133 = vector.shape_cast %132 : vector<1x200x8xf32> to vector<200x8xf32>
    %cst_176 = arith.constant dense<0.000000e+00> : vector<64x8xf32>
    %134 = tpu.matmul %131, %133, %cst_176 {dimension_numbers = #tpu.dot_dimension_numbers<[1], [0], [0], [1], [0, 0, 1, 1], [], []>, precision = #tpu.contract_precision<fp32>} : vector<64x200xf32>, vector<200x8xf32>, vector<64x8xf32> -> vector<64x8xf32>
    %135 = vector.extract_strided_slice %11 {offsets = [1, 0], sizes = [1, 8], strides = [1, 1]} : vector<4x8xf32> to vector<1x8xf32>
    %136 = vector.broadcast %135 : vector<1x8xf32> to vector<64x8xf32>
    %137 = arith.mulf %134, %136 : vector<64x8xf32>
    %138 = vector.extract_strided_slice %12 {offsets = [1, 0], sizes = [1, 8], strides = [1, 1]} : vector<4x8xf32> to vector<1x8xf32>
    %139 = vector.broadcast %138 : vector<1x8xf32> to vector<64x8xf32>
    %140 = arith.addf %137, %139 : vector<64x8xf32>
    %cst_177 = arith.constant 0.000000e+00 : f32
    %141 = vector.broadcast %cst_177 : f32 to vector<64x8xf32>
    %142 = arith.maximumf %140, %141 : vector<64x8xf32>
    %143 = vector.shape_cast %142 : vector<64x8xf32> to vector<8x8x8xf32>
    %c8_178 = arith.constant 8 : index
    %c8_179 = arith.constant 8 : index
    %c0_180 = arith.constant 0 : index
    %144 = vector.load %arg8[%c8_178, %c8_179, %c0_180] : memref<24x24x8xf32, #tpu.memory_space<vmem>>, vector<8x8x8xf32>
    tpu.vector_store %arg8[%c8_178, %c8_179, %c0_180], %143 {strides = array<i32>} : memref<24x24x8xf32, #tpu.memory_space<vmem>>, vector<8x8x8xf32>,
    %c6_181 = arith.constant 6 : index
    %c6_182 = arith.constant 6 : index
    %c0_183 = arith.constant 0 : index
    %145 = vector.load %arg8[%c6_181, %c6_182, %c0_183] : memref<24x24x8xf32, #tpu.memory_space<vmem>>, vector<8x8x8xf32>
    %146 = vector.shape_cast %145 : vector<8x8x8xf32> to vector<64x8xf32>
    %c0_184 = arith.constant 0 : index
    %c0_185 = arith.constant 0 : index
    %147 = vector.load %arg9[%c0_184, %c0_185] : memref<64x200xf32, #tpu.memory_space<vmem>>, vector<64x8xf32>
    tpu.vector_store %arg9[%c0_184, %c0_185], %146 {strides = array<i32>} : memref<64x200xf32, #tpu.memory_space<vmem>>, vector<64x8xf32>,
    %c6_186 = arith.constant 6 : index
    %c7_187 = arith.constant 7 : index
    %c0_188 = arith.constant 0 : index
    %148 = vector.load %arg8[%c6_186, %c7_187, %c0_188] : memref<24x24x8xf32, #tpu.memory_space<vmem>>, vector<8x8x8xf32>
    %149 = vector.shape_cast %148 : vector<8x8x8xf32> to vector<64x8xf32>
    %c0_189 = arith.constant 0 : index
    %c8_190 = arith.constant 8 : index
    %150 = vector.load %arg9[%c0_189, %c8_190] : memref<64x200xf32, #tpu.memory_space<vmem>>, vector<64x8xf32>
    tpu.vector_store %arg9[%c0_189, %c8_190], %149 {strides = array<i32>} : memref<64x200xf32, #tpu.memory_space<vmem>>, vector<64x8xf32>,
    %c6_191 = arith.constant 6 : index
    %c8_192 = arith.constant 8 : index
    %c0_193 = arith.constant 0 : index
    %151 = vector.load %arg8[%c6_191, %c8_192, %c0_193] : memref<24x24x8xf32, #tpu.memory_space<vmem>>, vector<8x8x8xf32>
    %152 = vector.shape_cast %151 : vector<8x8x8xf32> to vector<64x8xf32>
    %c0_194 = arith.constant 0 : index
    %c16_195 = arith.constant 16 : index
    %153 = vector.load %arg9[%c0_194, %c16_195] : memref<64x200xf32, #tpu.memory_space<vmem>>, vector<64x8xf32>
    tpu.vector_store %arg9[%c0_194, %c16_195], %152 {strides = array<i32>} : memref<64x200xf32, #tpu.memory_space<vmem>>, vector<64x8xf32>,
    %c6_196 = arith.constant 6 : index
    %c9_197 = arith.constant 9 : index
    %c0_198 = arith.constant 0 : index
    %154 = vector.load %arg8[%c6_196, %c9_197, %c0_198] : memref<24x24x8xf32, #tpu.memory_space<vmem>>, vector<8x8x8xf32>
    %155 = vector.shape_cast %154 : vector<8x8x8xf32> to vector<64x8xf32>
    %c0_199 = arith.constant 0 : index
    %c24_200 = arith.constant 24 : index
    %156 = vector.load %arg9[%c0_199, %c24_200] : memref<64x200xf32, #tpu.memory_space<vmem>>, vector<64x8xf32>
    tpu.vector_store %arg9[%c0_199, %c24_200], %155 {strides = array<i32>} : memref<64x200xf32, #tpu.memory_space<vmem>>, vector<64x8xf32>,
    %c6_201 = arith.constant 6 : index
    %c10_202 = arith.constant 10 : index
    %c0_203 = arith.constant 0 : index
    %157 = vector.load %arg8[%c6_201, %c10_202, %c0_203] : memref<24x24x8xf32, #tpu.memory_space<vmem>>, vector<8x8x8xf32>
    %158 = vector.shape_cast %157 : vector<8x8x8xf32> to vector<64x8xf32>
    %c0_204 = arith.constant 0 : index
    %c32_205 = arith.constant 32 : index
    %159 = vector.load %arg9[%c0_204, %c32_205] : memref<64x200xf32, #tpu.memory_space<vmem>>, vector<64x8xf32>
    tpu.vector_store %arg9[%c0_204, %c32_205], %158 {strides = array<i32>} : memref<64x200xf32, #tpu.memory_space<vmem>>, vector<64x8xf32>,
    %c7_206 = arith.constant 7 : index
    %c6_207 = arith.constant 6 : index
    %c0_208 = arith.constant 0 : index
    %160 = vector.load %arg8[%c7_206, %c6_207, %c0_208] : memref<24x24x8xf32, #tpu.memory_space<vmem>>, vector<8x8x8xf32>
    %161 = vector.shape_cast %160 : vector<8x8x8xf32> to vector<64x8xf32>
    %c0_209 = arith.constant 0 : index
    %c40_210 = arith.constant 40 : index
    %162 = vector.load %arg9[%c0_209, %c40_210] : memref<64x200xf32, #tpu.memory_space<vmem>>, vector<64x8xf32>
    tpu.vector_store %arg9[%c0_209, %c40_210], %161 {strides = array<i32>} : memref<64x200xf32, #tpu.memory_space<vmem>>, vector<64x8xf32>,
    %c7_211 = arith.constant 7 : index
    %c7_212 = arith.constant 7 : index
    %c0_213 = arith.constant 0 : index
    %163 = vector.load %arg8[%c7_211, %c7_212, %c0_213] : memref<24x24x8xf32, #tpu.memory_space<vmem>>, vector<8x8x8xf32>
    %164 = vector.shape_cast %163 : vector<8x8x8xf32> to vector<64x8xf32>
    %c0_214 = arith.constant 0 : index
    %c48_215 = arith.constant 48 : index
    %165 = vector.load %arg9[%c0_214, %c48_215] : memref<64x200xf32, #tpu.memory_space<vmem>>, vector<64x8xf32>
    tpu.vector_store %arg9[%c0_214, %c48_215], %164 {strides = array<i32>} : memref<64x200xf32, #tpu.memory_space<vmem>>, vector<64x8xf32>,
    %c7_216 = arith.constant 7 : index
    %c8_217 = arith.constant 8 : index
    %c0_218 = arith.constant 0 : index
    %166 = vector.load %arg8[%c7_216, %c8_217, %c0_218] : memref<24x24x8xf32, #tpu.memory_space<vmem>>, vector<8x8x8xf32>
    %167 = vector.shape_cast %166 : vector<8x8x8xf32> to vector<64x8xf32>
    %c0_219 = arith.constant 0 : index
    %c56_220 = arith.constant 56 : index
    %168 = vector.load %arg9[%c0_219, %c56_220] : memref<64x200xf32, #tpu.memory_space<vmem>>, vector<64x8xf32>
    tpu.vector_store %arg9[%c0_219, %c56_220], %167 {strides = array<i32>} : memref<64x200xf32, #tpu.memory_space<vmem>>, vector<64x8xf32>,
    %c7_221 = arith.constant 7 : index
    %c9_222 = arith.constant 9 : index
    %c0_223 = arith.constant 0 : index
    %169 = vector.load %arg8[%c7_221, %c9_222, %c0_223] : memref<24x24x8xf32, #tpu.memory_space<vmem>>, vector<8x8x8xf32>
    %170 = vector.shape_cast %169 : vector<8x8x8xf32> to vector<64x8xf32>
    %c0_224 = arith.constant 0 : index
    %c64_225 = arith.constant 64 : index
    %171 = vector.load %arg9[%c0_224, %c64_225] : memref<64x200xf32, #tpu.memory_space<vmem>>, vector<64x8xf32>
    tpu.vector_store %arg9[%c0_224, %c64_225], %170 {strides = array<i32>} : memref<64x200xf32, #tpu.memory_space<vmem>>, vector<64x8xf32>,
    %c7_226 = arith.constant 7 : index
    %c10_227 = arith.constant 10 : index
    %c0_228 = arith.constant 0 : index
    %172 = vector.load %arg8[%c7_226, %c10_227, %c0_228] : memref<24x24x8xf32, #tpu.memory_space<vmem>>, vector<8x8x8xf32>
    %173 = vector.shape_cast %172 : vector<8x8x8xf32> to vector<64x8xf32>
    %c0_229 = arith.constant 0 : index
    %c72_230 = arith.constant 72 : index
    %174 = vector.load %arg9[%c0_229, %c72_230] : memref<64x200xf32, #tpu.memory_space<vmem>>, vector<64x8xf32>
    tpu.vector_store %arg9[%c0_229, %c72_230], %173 {strides = array<i32>} : memref<64x200xf32, #tpu.memory_space<vmem>>, vector<64x8xf32>,
    %c8_231 = arith.constant 8 : index
    %c6_232 = arith.constant 6 : index
    %c0_233 = arith.constant 0 : index
    %175 = vector.load %arg8[%c8_231, %c6_232, %c0_233] : memref<24x24x8xf32, #tpu.memory_space<vmem>>, vector<8x8x8xf32>
    %176 = vector.shape_cast %175 : vector<8x8x8xf32> to vector<64x8xf32>
    %c0_234 = arith.constant 0 : index
    %c80_235 = arith.constant 80 : index
    %177 = vector.load %arg9[%c0_234, %c80_235] : memref<64x200xf32, #tpu.memory_space<vmem>>, vector<64x8xf32>
    tpu.vector_store %arg9[%c0_234, %c80_235], %176 {strides = array<i32>} : memref<64x200xf32, #tpu.memory_space<vmem>>, vector<64x8xf32>,
    %c8_236 = arith.constant 8 : index
    %c7_237 = arith.constant 7 : index
    %c0_238 = arith.constant 0 : index
    %178 = vector.load %arg8[%c8_236, %c7_237, %c0_238] : memref<24x24x8xf32, #tpu.memory_space<vmem>>, vector<8x8x8xf32>
    %179 = vector.shape_cast %178 : vector<8x8x8xf32> to vector<64x8xf32>
    %c0_239 = arith.constant 0 : index
    %c88_240 = arith.constant 88 : index
    %180 = vector.load %arg9[%c0_239, %c88_240] : memref<64x200xf32, #tpu.memory_space<vmem>>, vector<64x8xf32>
    tpu.vector_store %arg9[%c0_239, %c88_240], %179 {strides = array<i32>} : memref<64x200xf32, #tpu.memory_space<vmem>>, vector<64x8xf32>,
    %c8_241 = arith.constant 8 : index
    %c8_242 = arith.constant 8 : index
    %c0_243 = arith.constant 0 : index
    %181 = vector.load %arg8[%c8_241, %c8_242, %c0_243] : memref<24x24x8xf32, #tpu.memory_space<vmem>>, vector<8x8x8xf32>
    %182 = vector.shape_cast %181 : vector<8x8x8xf32> to vector<64x8xf32>
    %c0_244 = arith.constant 0 : index
    %c96_245 = arith.constant 96 : index
    %183 = vector.load %arg9[%c0_244, %c96_245] : memref<64x200xf32, #tpu.memory_space<vmem>>, vector<64x8xf32>
    tpu.vector_store %arg9[%c0_244, %c96_245], %182 {strides = array<i32>} : memref<64x200xf32, #tpu.memory_space<vmem>>, vector<64x8xf32>,
    %c8_246 = arith.constant 8 : index
    %c9_247 = arith.constant 9 : index
    %c0_248 = arith.constant 0 : index
    %184 = vector.load %arg8[%c8_246, %c9_247, %c0_248] : memref<24x24x8xf32, #tpu.memory_space<vmem>>, vector<8x8x8xf32>
    %185 = vector.shape_cast %184 : vector<8x8x8xf32> to vector<64x8xf32>
    %c0_249 = arith.constant 0 : index
    %c104_250 = arith.constant 104 : index
    %186 = vector.load %arg9[%c0_249, %c104_250] : memref<64x200xf32, #tpu.memory_space<vmem>>, vector<64x8xf32>
    tpu.vector_store %arg9[%c0_249, %c104_250], %185 {strides = array<i32>} : memref<64x200xf32, #tpu.memory_space<vmem>>, vector<64x8xf32>,
    %c8_251 = arith.constant 8 : index
    %c10_252 = arith.constant 10 : index
    %c0_253 = arith.constant 0 : index
    %187 = vector.load %arg8[%c8_251, %c10_252, %c0_253] : memref<24x24x8xf32, #tpu.memory_space<vmem>>, vector<8x8x8xf32>
    %188 = vector.shape_cast %187 : vector<8x8x8xf32> to vector<64x8xf32>
    %c0_254 = arith.constant 0 : index
    %c112_255 = arith.constant 112 : index
    %189 = vector.load %arg9[%c0_254, %c112_255] : memref<64x200xf32, #tpu.memory_space<vmem>>, vector<64x8xf32>
    tpu.vector_store %arg9[%c0_254, %c112_255], %188 {strides = array<i32>} : memref<64x200xf32, #tpu.memory_space<vmem>>, vector<64x8xf32>,
    %c9_256 = arith.constant 9 : index
    %c6_257 = arith.constant 6 : index
    %c0_258 = arith.constant 0 : index
    %190 = vector.load %arg8[%c9_256, %c6_257, %c0_258] : memref<24x24x8xf32, #tpu.memory_space<vmem>>, vector<8x8x8xf32>
    %191 = vector.shape_cast %190 : vector<8x8x8xf32> to vector<64x8xf32>
    %c0_259 = arith.constant 0 : index
    %c120_260 = arith.constant 120 : index
    %192 = vector.load %arg9[%c0_259, %c120_260] : memref<64x200xf32, #tpu.memory_space<vmem>>, vector<64x8xf32>
    tpu.vector_store %arg9[%c0_259, %c120_260], %191 {strides = array<i32>} : memref<64x200xf32, #tpu.memory_space<vmem>>, vector<64x8xf32>,
    %c9_261 = arith.constant 9 : index
    %c7_262 = arith.constant 7 : index
    %c0_263 = arith.constant 0 : index
    %193 = vector.load %arg8[%c9_261, %c7_262, %c0_263] : memref<24x24x8xf32, #tpu.memory_space<vmem>>, vector<8x8x8xf32>
    %194 = vector.shape_cast %193 : vector<8x8x8xf32> to vector<64x8xf32>
    %c0_264 = arith.constant 0 : index
    %c128_265 = arith.constant 128 : index
    %195 = vector.load %arg9[%c0_264, %c128_265] : memref<64x200xf32, #tpu.memory_space<vmem>>, vector<64x8xf32>
    tpu.vector_store %arg9[%c0_264, %c128_265], %194 {strides = array<i32>} : memref<64x200xf32, #tpu.memory_space<vmem>>, vector<64x8xf32>,
    %c9_266 = arith.constant 9 : index
    %c8_267 = arith.constant 8 : index
    %c0_268 = arith.constant 0 : index
    %196 = vector.load %arg8[%c9_266, %c8_267, %c0_268] : memref<24x24x8xf32, #tpu.memory_space<vmem>>, vector<8x8x8xf32>
    %197 = vector.shape_cast %196 : vector<8x8x8xf32> to vector<64x8xf32>
    %c0_269 = arith.constant 0 : index
    %c136_270 = arith.constant 136 : index
    %198 = vector.load %arg9[%c0_269, %c136_270] : memref<64x200xf32, #tpu.memory_space<vmem>>, vector<64x8xf32>
    tpu.vector_store %arg9[%c0_269, %c136_270], %197 {strides = array<i32>} : memref<64x200xf32, #tpu.memory_space<vmem>>, vector<64x8xf32>,
    %c9_271 = arith.constant 9 : index
    %c9_272 = arith.constant 9 : index
    %c0_273 = arith.constant 0 : index
    %199 = vector.load %arg8[%c9_271, %c9_272, %c0_273] : memref<24x24x8xf32, #tpu.memory_space<vmem>>, vector<8x8x8xf32>
    %200 = vector.shape_cast %199 : vector<8x8x8xf32> to vector<64x8xf32>
    %c0_274 = arith.constant 0 : index
    %c144_275 = arith.constant 144 : index
    %201 = vector.load %arg9[%c0_274, %c144_275] : memref<64x200xf32, #tpu.memory_space<vmem>>, vector<64x8xf32>
    tpu.vector_store %arg9[%c0_274, %c144_275], %200 {strides = array<i32>} : memref<64x200xf32, #tpu.memory_space<vmem>>, vector<64x8xf32>,
    %c9_276 = arith.constant 9 : index
    %c10_277 = arith.constant 10 : index
    %c0_278 = arith.constant 0 : index
    %202 = vector.load %arg8[%c9_276, %c10_277, %c0_278] : memref<24x24x8xf32, #tpu.memory_space<vmem>>, vector<8x8x8xf32>
    %203 = vector.shape_cast %202 : vector<8x8x8xf32> to vector<64x8xf32>
    %c0_279 = arith.constant 0 : index
    %c152_280 = arith.constant 152 : index
    %204 = vector.load %arg9[%c0_279, %c152_280] : memref<64x200xf32, #tpu.memory_space<vmem>>, vector<64x8xf32>
    tpu.vector_store %arg9[%c0_279, %c152_280], %203 {strides = array<i32>} : memref<64x200xf32, #tpu.memory_space<vmem>>, vector<64x8xf32>,
    %c10_281 = arith.constant 10 : index
    %c6_282 = arith.constant 6 : index
    %c0_283 = arith.constant 0 : index
    %205 = vector.load %arg8[%c10_281, %c6_282, %c0_283] : memref<24x24x8xf32, #tpu.memory_space<vmem>>, vector<8x8x8xf32>
    %206 = vector.shape_cast %205 : vector<8x8x8xf32> to vector<64x8xf32>
    %c0_284 = arith.constant 0 : index
    %c160_285 = arith.constant 160 : index
    %207 = vector.load %arg9[%c0_284, %c160_285] : memref<64x200xf32, #tpu.memory_space<vmem>>, vector<64x8xf32>
    tpu.vector_store %arg9[%c0_284, %c160_285], %206 {strides = array<i32>} : memref<64x200xf32, #tpu.memory_space<vmem>>, vector<64x8xf32>,
    %c10_286 = arith.constant 10 : index
    %c7_287 = arith.constant 7 : index
    %c0_288 = arith.constant 0 : index
    %208 = vector.load %arg8[%c10_286, %c7_287, %c0_288] : memref<24x24x8xf32, #tpu.memory_space<vmem>>, vector<8x8x8xf32>
    %209 = vector.shape_cast %208 : vector<8x8x8xf32> to vector<64x8xf32>
    %c0_289 = arith.constant 0 : index
    %c168_290 = arith.constant 168 : index
    %210 = vector.load %arg9[%c0_289, %c168_290] : memref<64x200xf32, #tpu.memory_space<vmem>>, vector<64x8xf32>
    tpu.vector_store %arg9[%c0_289, %c168_290], %209 {strides = array<i32>} : memref<64x200xf32, #tpu.memory_space<vmem>>, vector<64x8xf32>,
    %c10_291 = arith.constant 10 : index
    %c8_292 = arith.constant 8 : index
    %c0_293 = arith.constant 0 : index
    %211 = vector.load %arg8[%c10_291, %c8_292, %c0_293] : memref<24x24x8xf32, #tpu.memory_space<vmem>>, vector<8x8x8xf32>
    %212 = vector.shape_cast %211 : vector<8x8x8xf32> to vector<64x8xf32>
    %c0_294 = arith.constant 0 : index
    %c176_295 = arith.constant 176 : index
    %213 = vector.load %arg9[%c0_294, %c176_295] : memref<64x200xf32, #tpu.memory_space<vmem>>, vector<64x8xf32>
    tpu.vector_store %arg9[%c0_294, %c176_295], %212 {strides = array<i32>} : memref<64x200xf32, #tpu.memory_space<vmem>>, vector<64x8xf32>,
    %c10_296 = arith.constant 10 : index
    %c9_297 = arith.constant 9 : index
    %c0_298 = arith.constant 0 : index
    %214 = vector.load %arg8[%c10_296, %c9_297, %c0_298] : memref<24x24x8xf32, #tpu.memory_space<vmem>>, vector<8x8x8xf32>
    %215 = vector.shape_cast %214 : vector<8x8x8xf32> to vector<64x8xf32>
    %c0_299 = arith.constant 0 : index
    %c184_300 = arith.constant 184 : index
    %216 = vector.load %arg9[%c0_299, %c184_300] : memref<64x200xf32, #tpu.memory_space<vmem>>, vector<64x8xf32>
    tpu.vector_store %arg9[%c0_299, %c184_300], %215 {strides = array<i32>} : memref<64x200xf32, #tpu.memory_space<vmem>>, vector<64x8xf32>,
    %c10_301 = arith.constant 10 : index
    %c10_302 = arith.constant 10 : index
    %c0_303 = arith.constant 0 : index
    %217 = vector.load %arg8[%c10_301, %c10_302, %c0_303] : memref<24x24x8xf32, #tpu.memory_space<vmem>>, vector<8x8x8xf32>
    %218 = vector.shape_cast %217 : vector<8x8x8xf32> to vector<64x8xf32>
    %c0_304 = arith.constant 0 : index
    %c192_305 = arith.constant 192 : index
    %219 = vector.load %arg9[%c0_304, %c192_305] : memref<64x200xf32, #tpu.memory_space<vmem>>, vector<64x8xf32>
    tpu.vector_store %arg9[%c0_304, %c192_305], %218 {strides = array<i32>} : memref<64x200xf32, #tpu.memory_space<vmem>>, vector<64x8xf32>,
    %c0_306 = arith.constant 0 : index
    %c0_307 = arith.constant 0 : index
    %220 = vector.load %arg9[%c0_306, %c0_307] : memref<64x200xf32, #tpu.memory_space<vmem>>, vector<64x200xf32>
    %c2 = arith.constant 2 : index
    %c0_308 = arith.constant 0 : index
    %c0_309 = arith.constant 0 : index
    %221 = vector.load %arg4[%c2, %c0_308, %c0_309] : memref<4x200x8xf32, #tpu.memory_space<vmem>>, vector<1x200x8xf32>
    %222 = vector.shape_cast %221 : vector<1x200x8xf32> to vector<200x8xf32>
    %cst_310 = arith.constant dense<0.000000e+00> : vector<64x8xf32>
    %223 = tpu.matmul %220, %222, %cst_310 {dimension_numbers = #tpu.dot_dimension_numbers<[1], [0], [0], [1], [0, 0, 1, 1], [], []>, precision = #tpu.contract_precision<fp32>} : vector<64x200xf32>, vector<200x8xf32>, vector<64x8xf32> -> vector<64x8xf32>
    %224 = vector.extract_strided_slice %11 {offsets = [2, 0], sizes = [1, 8], strides = [1, 1]} : vector<4x8xf32> to vector<1x8xf32>
    %225 = vector.broadcast %224 : vector<1x8xf32> to vector<64x8xf32>
    %226 = arith.mulf %223, %225 : vector<64x8xf32>
    %227 = vector.extract_strided_slice %12 {offsets = [2, 0], sizes = [1, 8], strides = [1, 1]} : vector<4x8xf32> to vector<1x8xf32>
    %228 = vector.broadcast %227 : vector<1x8xf32> to vector<64x8xf32>
    %229 = arith.addf %226, %228 : vector<64x8xf32>
    %cst_311 = arith.constant 0.000000e+00 : f32
    %230 = vector.broadcast %cst_311 : f32 to vector<64x8xf32>
    %231 = arith.maximumf %229, %230 : vector<64x8xf32>
    %232 = vector.shape_cast %231 : vector<64x8xf32> to vector<8x8x8xf32>
    %c8_312 = arith.constant 8 : index
    %c8_313 = arith.constant 8 : index
    %c0_314 = arith.constant 0 : index
    %233 = vector.load %arg8[%c8_312, %c8_313, %c0_314] : memref<24x24x8xf32, #tpu.memory_space<vmem>>, vector<8x8x8xf32>
    tpu.vector_store %arg8[%c8_312, %c8_313, %c0_314], %232 {strides = array<i32>} : memref<24x24x8xf32, #tpu.memory_space<vmem>>, vector<8x8x8xf32>,
    %c7_315 = arith.constant 7 : index
    %c7_316 = arith.constant 7 : index
    %c0_317 = arith.constant 0 : index
    %234 = vector.load %arg8[%c7_315, %c7_316, %c0_317] : memref<24x24x8xf32, #tpu.memory_space<vmem>>, vector<8x8x8xf32>
    %235 = vector.shape_cast %234 : vector<8x8x8xf32> to vector<64x8xf32>
    %c0_318 = arith.constant 0 : index
    %c0_319 = arith.constant 0 : index
    %236 = vector.load %arg9[%c0_318, %c0_319] : memref<64x200xf32, #tpu.memory_space<vmem>>, vector<64x8xf32>
    tpu.vector_store %arg9[%c0_318, %c0_319], %235 {strides = array<i32>} : memref<64x200xf32, #tpu.memory_space<vmem>>, vector<64x8xf32>,
    %c7_320 = arith.constant 7 : index
    %c8_321 = arith.constant 8 : index
    %c0_322 = arith.constant 0 : index
    %237 = vector.load %arg8[%c7_320, %c8_321, %c0_322] : memref<24x24x8xf32, #tpu.memory_space<vmem>>, vector<8x8x8xf32>
    %238 = vector.shape_cast %237 : vector<8x8x8xf32> to vector<64x8xf32>
    %c0_323 = arith.constant 0 : index
    %c8_324 = arith.constant 8 : index
    %239 = vector.load %arg9[%c0_323, %c8_324] : memref<64x200xf32, #tpu.memory_space<vmem>>, vector<64x8xf32>
    tpu.vector_store %arg9[%c0_323, %c8_324], %238 {strides = array<i32>} : memref<64x200xf32, #tpu.memory_space<vmem>>, vector<64x8xf32>,
    %c7_325 = arith.constant 7 : index
    %c9_326 = arith.constant 9 : index
    %c0_327 = arith.constant 0 : index
    %240 = vector.load %arg8[%c7_325, %c9_326, %c0_327] : memref<24x24x8xf32, #tpu.memory_space<vmem>>, vector<8x8x8xf32>
    %241 = vector.shape_cast %240 : vector<8x8x8xf32> to vector<64x8xf32>
    %c0_328 = arith.constant 0 : index
    %c16_329 = arith.constant 16 : index
    %242 = vector.load %arg9[%c0_328, %c16_329] : memref<64x200xf32, #tpu.memory_space<vmem>>, vector<64x8xf32>
    tpu.vector_store %arg9[%c0_328, %c16_329], %241 {strides = array<i32>} : memref<64x200xf32, #tpu.memory_space<vmem>>, vector<64x8xf32>,
    %c8_330 = arith.constant 8 : index
    %c7_331 = arith.constant 7 : index
    %c0_332 = arith.constant 0 : index
    %243 = vector.load %arg8[%c8_330, %c7_331, %c0_332] : memref<24x24x8xf32, #tpu.memory_space<vmem>>, vector<8x8x8xf32>
    %244 = vector.shape_cast %243 : vector<8x8x8xf32> to vector<64x8xf32>
    %c0_333 = arith.constant 0 : index
    %c24_334 = arith.constant 24 : index
    %245 = vector.load %arg9[%c0_333, %c24_334] : memref<64x200xf32, #tpu.memory_space<vmem>>, vector<64x8xf32>
    tpu.vector_store %arg9[%c0_333, %c24_334], %244 {strides = array<i32>} : memref<64x200xf32, #tpu.memory_space<vmem>>, vector<64x8xf32>,
    %c8_335 = arith.constant 8 : index
    %c8_336 = arith.constant 8 : index
    %c0_337 = arith.constant 0 : index
    %246 = vector.load %arg8[%c8_335, %c8_336, %c0_337] : memref<24x24x8xf32, #tpu.memory_space<vmem>>, vector<8x8x8xf32>
    %247 = vector.shape_cast %246 : vector<8x8x8xf32> to vector<64x8xf32>
    %c0_338 = arith.constant 0 : index
    %c32_339 = arith.constant 32 : index
    %248 = vector.load %arg9[%c0_338, %c32_339] : memref<64x200xf32, #tpu.memory_space<vmem>>, vector<64x8xf32>
    tpu.vector_store %arg9[%c0_338, %c32_339], %247 {strides = array<i32>} : memref<64x200xf32, #tpu.memory_space<vmem>>, vector<64x8xf32>,
    %c8_340 = arith.constant 8 : index
    %c9_341 = arith.constant 9 : index
    %c0_342 = arith.constant 0 : index
    %249 = vector.load %arg8[%c8_340, %c9_341, %c0_342] : memref<24x24x8xf32, #tpu.memory_space<vmem>>, vector<8x8x8xf32>
    %250 = vector.shape_cast %249 : vector<8x8x8xf32> to vector<64x8xf32>
    %c0_343 = arith.constant 0 : index
    %c40_344 = arith.constant 40 : index
    %251 = vector.load %arg9[%c0_343, %c40_344] : memref<64x200xf32, #tpu.memory_space<vmem>>, vector<64x8xf32>
    tpu.vector_store %arg9[%c0_343, %c40_344], %250 {strides = array<i32>} : memref<64x200xf32, #tpu.memory_space<vmem>>, vector<64x8xf32>,
    %c9_345 = arith.constant 9 : index
    %c7_346 = arith.constant 7 : index
    %c0_347 = arith.constant 0 : index
    %252 = vector.load %arg8[%c9_345, %c7_346, %c0_347] : memref<24x24x8xf32, #tpu.memory_space<vmem>>, vector<8x8x8xf32>
    %253 = vector.shape_cast %252 : vector<8x8x8xf32> to vector<64x8xf32>
    %c0_348 = arith.constant 0 : index
    %c48_349 = arith.constant 48 : index
    %254 = vector.load %arg9[%c0_348, %c48_349] : memref<64x200xf32, #tpu.memory_space<vmem>>, vector<64x8xf32>
    tpu.vector_store %arg9[%c0_348, %c48_349], %253 {strides = array<i32>} : memref<64x200xf32, #tpu.memory_space<vmem>>, vector<64x8xf32>,
    %c9_350 = arith.constant 9 : index
    %c8_351 = arith.constant 8 : index
    %c0_352 = arith.constant 0 : index
    %255 = vector.load %arg8[%c9_350, %c8_351, %c0_352] : memref<24x24x8xf32, #tpu.memory_space<vmem>>, vector<8x8x8xf32>
    %256 = vector.shape_cast %255 : vector<8x8x8xf32> to vector<64x8xf32>
    %c0_353 = arith.constant 0 : index
    %c56_354 = arith.constant 56 : index
    %257 = vector.load %arg9[%c0_353, %c56_354] : memref<64x200xf32, #tpu.memory_space<vmem>>, vector<64x8xf32>
    tpu.vector_store %arg9[%c0_353, %c56_354], %256 {strides = array<i32>} : memref<64x200xf32, #tpu.memory_space<vmem>>, vector<64x8xf32>,
    %c9_355 = arith.constant 9 : index
    %c9_356 = arith.constant 9 : index
    %c0_357 = arith.constant 0 : index
    %258 = vector.load %arg8[%c9_355, %c9_356, %c0_357] : memref<24x24x8xf32, #tpu.memory_space<vmem>>, vector<8x8x8xf32>
    %259 = vector.shape_cast %258 : vector<8x8x8xf32> to vector<64x8xf32>
    %c0_358 = arith.constant 0 : index
    %c64_359 = arith.constant 64 : index
    %260 = vector.load %arg9[%c0_358, %c64_359] : memref<64x200xf32, #tpu.memory_space<vmem>>, vector<64x8xf32>
    tpu.vector_store %arg9[%c0_358, %c64_359], %259 {strides = array<i32>} : memref<64x200xf32, #tpu.memory_space<vmem>>, vector<64x8xf32>,
    %c0_360 = arith.constant 0 : index
    %c0_361 = arith.constant 0 : index
    %261 = vector.load %arg9[%c0_360, %c0_361] : memref<64x200xf32, #tpu.memory_space<vmem>>, vector<64x200xf32>
    %c3 = arith.constant 3 : index
    %c0_362 = arith.constant 0 : index
    %c0_363 = arith.constant 0 : index
    %262 = vector.load %arg4[%c3, %c0_362, %c0_363] : memref<4x200x8xf32, #tpu.memory_space<vmem>>, vector<1x200x8xf32>
    %263 = vector.shape_cast %262 : vector<1x200x8xf32> to vector<200x8xf32>
    %cst_364 = arith.constant dense<0.000000e+00> : vector<64x8xf32>
    %264 = tpu.matmul %261, %263, %cst_364 {dimension_numbers = #tpu.dot_dimension_numbers<[1], [0], [0], [1], [0, 0, 1, 1], [], []>, precision = #tpu.contract_precision<fp32>} : vector<64x200xf32>, vector<200x8xf32>, vector<64x8xf32> -> vector<64x8xf32>
    %265 = vector.extract_strided_slice %11 {offsets = [3, 0], sizes = [1, 8], strides = [1, 1]} : vector<4x8xf32> to vector<1x8xf32>
    %266 = vector.broadcast %265 : vector<1x8xf32> to vector<64x8xf32>
    %267 = arith.mulf %264, %266 : vector<64x8xf32>
    %268 = vector.extract_strided_slice %12 {offsets = [3, 0], sizes = [1, 8], strides = [1, 1]} : vector<4x8xf32> to vector<1x8xf32>
    %269 = vector.broadcast %268 : vector<1x8xf32> to vector<64x8xf32>
    %270 = arith.addf %267, %269 : vector<64x8xf32>
    %271 = tpu.transpose %270, [1, 0] : vector<64x8xf32> -> vector<8x64xf32>
    %c0_365 = arith.constant 0 : index
    %c0_366 = arith.constant 0 : index
    %c0_367 = arith.constant 0 : index
    %272 = vector.load %arg7[%c0_365, %c0_366, %c0_367] : memref<1x8x64xf32, #tpu.memory_space<vmem>>, vector<1x8x64xf32>
    %273 = vector.shape_cast %272 : vector<1x8x64xf32> to vector<8x64xf32>
    %274 = vector.shape_cast %271 : vector<8x64xf32> to vector<1x8x64xf32>
    tpu.vector_store %arg7[%c0_365, %c0_366, %c0_367], %274 {strides = array<i32>} : memref<1x8x64xf32, #tpu.memory_space<vmem>>, vector<1x8x64xf32>,
    return
  }
  func.func @transform_0(%arg0: i32) -> (i32, i32, i32) {
    %c0_i32 = arith.constant 0 : i32
    %c0_i32_0 = arith.constant 0 : i32
    %c0_i32_1 = arith.constant 0 : i32
    return %arg0, %c0_i32, %c0_i32_0 : i32, i32, i32
  }
  func.func @transform_1(%arg0: i32) -> (i32, i32) {
    %c0_i32 = arith.constant 0 : i32
    %c0_i32_0 = arith.constant 0 : i32
    %c0_i32_1 = arith.constant 0 : i32
    return %c0_i32, %c0_i32_0 : i32, i32
  }
  func.func @transform_2(%arg0: i32) -> (i32, i32) {
    %c0_i32 = arith.constant 0 : i32
    %c0_i32_0 = arith.constant 0 : i32
    %c0_i32_1 = arith.constant 0 : i32
    return %c0_i32, %c0_i32_0 : i32, i32
  }
  func.func @transform_3(%arg0: i32) -> (i32, i32, i32) {
    %c0_i32 = arith.constant 0 : i32
    %c0_i32_0 = arith.constant 0 : i32
    %c0_i32_1 = arith.constant 0 : i32
    %c0_i32_2 = arith.constant 0 : i32
    return %c0_i32, %c0_i32_0, %c0_i32_1 : i32, i32, i32
  }
  func.func @transform_4(%arg0: i32) -> (i32, i32) {
    %c0_i32 = arith.constant 0 : i32
    %c0_i32_0 = arith.constant 0 : i32
    %c0_i32_1 = arith.constant 0 : i32
    return %c0_i32, %c0_i32_0 : i32, i32
  }
  func.func @transform_5(%arg0: i32) -> (i32, i32) {
    %c0_i32 = arith.constant 0 : i32
    %c0_i32_0 = arith.constant 0 : i32
    %c0_i32_1 = arith.constant 0 : i32
    return %c0_i32, %c0_i32_0 : i32, i32
  }
  func.func @transform_6(%arg0: i32) -> (i32, i32, i32) {
    %c0_i32 = arith.constant 0 : i32
    %c0_i32_0 = arith.constant 0 : i32
    %c0_i32_1 = arith.constant 0 : i32
    return %arg0, %c0_i32, %c0_i32_0 : i32, i32, i32
  }
}

</mosaic_0001>

<llo_original>
// kernel: gridnet_forward.1
$region0: #{gridnet_forward.1}
  #allocation0 [shape = 'u32[]', space=smem, size = 0x4, offset = 0x4, fixed_abs, tag = 'smem constant byte address 0x4 - core index']
  #allocation1 [shape = 'u32[144,128]{1,0:T(1,128)}', space=vmem, size = 0x12000, scoped, tag = 'internal scratch']
  #allocation2 [shape = 'f32[24,24,8]{2,1,0:T(8,128)}', space=vmem, size = 0x48000, scoped, tag = 'scratch operand']
  #allocation3 [shape = 'f32[64,200]{1,0:T(8,128)}', space=vmem, size = 0x10000, scoped, tag = 'scratch operand']
  %s0 = inlined_call_operand.vmem [shape: f32[2,64,192], index: 0, kind: input, shape index: {}]
  %s1 = inlined_call_operand.vmem [shape: f32[192,8], index: 1, kind: input, shape index: {}]
  %s2 = inlined_call_operand.vmem [shape: f32[1,8], index: 2, kind: input, shape index: {}]
  %s3 = inlined_call_operand.vmem [shape: f32[4,200,8], index: 3, kind: input, shape index: {}]
  %s4 = inlined_call_operand.vmem [shape: f32[4,8], index: 4, kind: input, shape index: {}]
  %s5 = inlined_call_operand.vmem [shape: f32[4,8], index: 5, kind: input, shape index: {}]
  %s6 = inlined_call_operand.vmem [shape: f32[2,8,64], index: 6, kind: output, shape index: {}]
  %s7 = sld [smem:[#allocation0]]
  $region57: #{gridnet_forward.1} parent=0
    _
  %s9 = ssub.s32 1, %s7
  %s10 = scalar_select 0, %s9, %s7
  loop: start=0, step=1, limit=4
  $region2: #{gridnet_forward.1} parent=0 // loop_pre_header
    _
  $region3: #{gridnet_forward.1} parent=0 // loop_header
    %s12 = sphi 0, %s16
    %p13 = scmp.ge.s32.totalorder %s12, 4
    %s22 = sphi 0, %s24
    %s25 = sphi 0, %s22
    %s26 = sphi 0, %s25
    %s42 = sphi 0, %s26
    %s46 = sphi 0, %s46
    %s48 = sphi 0, %s46
    %s49 = sphi 0, %s48
    %s63 = sphi 0, %s49
    %s67 = sphi 0, %s67
    %s69 = sphi 0, %s67
    %s70 = sphi 0, %s69
    %s84 = sphi 0, %s70
    %s88 = sphi 0, %s88
    %s90 = sphi 0, %s88
    %s91 = sphi 0, %s90
    %s105 = sphi 0, %s91
    %s109 = sphi 0, %s109
    %s111 = sphi 0, %s109
    %s112 = sphi 0, %s111
    %s126 = sphi 0, %s112
    %s130 = sphi 0, %s130
    %s132 = sphi 0, %s130
    %s133 = sphi 0, %s132
    %s147 = sphi 0, %s133
    %s153 = sphi 0, %s155
    %s156 = sphi 0, %s153
    %s157 = sphi 0, %s156
    %s173 = sphi 0, %s157
  $region4: #{gridnet_forward.1} parent=0 // loop_header_branch
    %15 = sbr.rel (%p13) target = $region8
  $region5: #{gridnet_forward.1} parent=0 // loop_body
    %s17 = ssub.s32 %s12, 1
    %s18 = ssub.s32 %s12, 2
    %s19 = sadd.s32 %s12, 1
    %s20 = ssub.s32 %s12, %s19
    %p21 = scmp.eq.s32.totalorder %s20, 0
    %s23 = sadd.s32 %s22, 1
    %s24 = scalar_select %p21, %s22, %s23
    %p27 = pneg %p21
    %p28 = scmp.eq.s32.totalorder %s12, 1
    %p29 = por %p27, %p28
    %p30 = scmp.ne.s32.totalorder %s22, %s25
    %p31 = scmp.eq.s32.totalorder %s12, 0
    %p32 = por %p30, %p31
    %p33 = scmp.ne.s32.totalorder %s22, %s25
    %p34 = scmp.eq.s32.totalorder %s17, 1
    %p35 = por %p33, %p34
    %p36 = scmp.ne.s32.totalorder %s25, %s26
    %p37 = scmp.eq.s32.totalorder %s17, 0
    %p38 = por %p36, %p37
    %p39 = scmp.ne.s32.totalorder %s25, %s26
    %p40 = scmp.eq.s32.totalorder %s18, 1
    %p41 = por %p39, %p40
    %p43 = scmp.ne.s32.totalorder %s26, %s42
    %p44 = scmp.eq.s32.totalorder %s18, 0
    %p45 = por %p43, %p44
    %s47 = sadd.s32 %s46, 1
    %p50 = scmp.eq.s32.totalorder %s12, 1
    %p51 = scmp.ne.s32.totalorder %s46, %s48
    %p52 = scmp.eq.s32.totalorder %s12, 0
    %p53 = por %p51, %p52
    %p54 = scmp.ne.s32.totalorder %s46, %s48
    %p55 = scmp.eq.s32.totalorder %s17, 1
    %p56 = por %p54, %p55
    %p57 = scmp.ne.s32.totalorder %s48, %s49
    %p58 = scmp.eq.s32.totalorder %s17, 0
    %p59 = por %p57, %p58
    %p60 = scmp.ne.s32.totalorder %s48, %s49
    %p61 = scmp.eq.s32.totalorder %s18, 1
    %p62 = por %p60, %p61
    %p64 = scmp.ne.s32.totalorder %s49, %s63
    %p65 = scmp.eq.s32.totalorder %s18, 0
    %p66 = por %p64, %p65
    %s68 = sadd.s32 %s67, 1
    %p71 = scmp.eq.s32.totalorder %s12, 1
    %p72 = scmp.ne.s32.totalorder %s67, %s69
    %p73 = scmp.eq.s32.totalorder %s12, 0
    %p74 = por %p72, %p73
    %p75 = scmp.ne.s32.totalorder %s67, %s69
    %p76 = scmp.eq.s32.totalorder %s17, 1
    %p77 = por %p75, %p76
    %p78 = scmp.ne.s32.totalorder %s69, %s70
    %p79 = scmp.eq.s32.totalorder %s17, 0
    %p80 = por %p78, %p79
    %p81 = scmp.ne.s32.totalorder %s69, %s70
    %p82 = scmp.eq.s32.totalorder %s18, 1
    %p83 = por %p81, %p82
    %p85 = scmp.ne.s32.totalorder %s70, %s84
    %p86 = scmp.eq.s32.totalorder %s18, 0
    %p87 = por %p85, %p86
    %s89 = sadd.s32 %s88, 1
    %p92 = scmp.eq.s32.totalorder %s12, 1
    %p93 = scmp.ne.s32.totalorder %s88, %s90
    %p94 = scmp.eq.s32.totalorder %s12, 0
    %p95 = por %p93, %p94
    %p96 = scmp.ne.s32.totalorder %s88, %s90
    %p97 = scmp.eq.s32.totalorder %s17, 1
    %p98 = por %p96, %p97
    %p99 = scmp.ne.s32.totalorder %s90, %s91
    %p100 = scmp.eq.s32.totalorder %s17, 0
    %p101 = por %p99, %p100
    %p102 = scmp.ne.s32.totalorder %s90, %s91
    %p103 = scmp.eq.s32.totalorder %s18, 1
    %p104 = por %p102, %p103
    %p106 = scmp.ne.s32.totalorder %s91, %s105
    %p107 = scmp.eq.s32.totalorder %s18, 0
    %p108 = por %p106, %p107
    %s110 = sadd.s32 %s109, 1
    %p113 = scmp.eq.s32.totalorder %s12, 1
    %p114 = scmp.ne.s32.totalorder %s109, %s111
    %p115 = scmp.eq.s32.totalorder %s12, 0
    %p116 = por %p114, %p115
    %p117 = scmp.ne.s32.totalorder %s109, %s111
    %p118 = scmp.eq.s32.totalorder %s17, 1
    %p119 = por %p117, %p118
    %p120 = scmp.ne.s32.totalorder %s111, %s112
    %p121 = scmp.eq.s32.totalorder %s17, 0
    %p122 = por %p120, %p121
    %p123 = scmp.ne.s32.totalorder %s111, %s112
    %p124 = scmp.eq.s32.totalorder %s18, 1
    %p125 = por %p123, %p124
    %p127 = scmp.ne.s32.totalorder %s112, %s126
    %p128 = scmp.eq.s32.totalorder %s18, 0
    %p129 = por %p127, %p128
    %s131 = sadd.s32 %s130, 1
    %p134 = scmp.eq.s32.totalorder %s12, 1
    %p135 = scmp.ne.s32.totalorder %s130, %s132
    %p136 = scmp.eq.s32.totalorder %s12, 0
    %p137 = por %p135, %p136
    %p138 = scmp.ne.s32.totalorder %s130, %s132
    %p139 = scmp.eq.s32.totalorder %s17, 1
    %p140 = por %p138, %p139
    %p141 = scmp.ne.s32.totalorder %s132, %s133
    %p142 = scmp.eq.s32.totalorder %s17, 0
    %p143 = por %p141, %p142
    %p144 = scmp.ne.s32.totalorder %s132, %s133
    %p145 = scmp.eq.s32.totalorder %s18, 1
    %p146 = por %p144, %p145
    %p148 = scmp.ne.s32.totalorder %s133, %s147
    %p149 = scmp.eq.s32.totalorder %s18, 0
    %p150 = por %p148, %p149
    %s151 = ssub.s32 %s12, %s19
    %p152 = scmp.eq.s32.totalorder %s151, 0
    %s154 = sadd.s32 %s153, 1
    %s155 = scalar_select %p152, %s153, %s154
    %p158 = pneg %p152
    %p159 = scmp.eq.s32.totalorder %s12, 1
    %p160 = por %p158, %p159
    %p161 = scmp.ne.s32.totalorder %s153, %s156
    %p162 = scmp.eq.s32.totalorder %s12, 0
    %p163 = por %p161, %p162
    %p164 = scmp.ne.s32.totalorder %s153, %s156
    %p165 = scmp.eq.s32.totalorder %s17, 1
    %p166 = por %p164, %p165
    %p167 = scmp.ne.s32.totalorder %s156, %s157
    %p168 = scmp.eq.s32.totalorder %s17, 0
    %p169 = por %p167, %p168
    %p170 = scmp.ne.s32.totalorder %s156, %s157
    %p171 = scmp.eq.s32.totalorder %s18, 1
    %p172 = por %p170, %p171
    %p174 = scmp.ne.s32.totalorder %s157, %s173
    %p175 = scmp.eq.s32.totalorder %s18, 0
    %p176 = por %p174, %p175
    %p177 = scmp.le.s32.totalorder 1, %s12
    %p178 = scmp.lt.s32.totalorder %s12, 3
    %p179 = pnand %p177, %p178
    %p180 = pneg %p179
    // Predicated region
    $region9: #{gridnet_forward.1} parent=5 // pred_check
      _
    $region10: #{gridnet_forward.1} parent=5 // pred_check_branch
      %182 = sbr.rel (%p179) target = $region12
    $region11: #{gridnet_forward.1} parent=5 // pred_region
      %s183 = ssub.s32 %s12, 1
      // Predicated region
      $region13: #{gridnet_forward.1} parent=11 // pred_check
        %p184 = pneg %p59
      $region14: #{gridnet_forward.1} parent=11 // pred_check_branch
        %186 = sbr.rel (%p184) target = $region16
      $region15: #{gridnet_forward.1} parent=11 // pred_region
        _
      $region16: #{gridnet_forward.1} parent=11 // pred_fallthru
        _
      // Predicated region
      $region17: #{gridnet_forward.1} parent=11 // pred_check
        %p187 = pneg %p80
      $region18: #{gridnet_forward.1} parent=11 // pred_check_branch
        %189 = sbr.rel (%p187) target = $region20
      $region19: #{gridnet_forward.1} parent=11 // pred_region
        _
      $region20: #{gridnet_forward.1} parent=11 // pred_fallthru
        _
      // Predicated region
      $region21: #{gridnet_forward.1} parent=11 // pred_check
        %p190 = pneg %p101
      $region22: #{gridnet_forward.1} parent=11 // pred_check_branch
        %192 = sbr.rel (%p190) target = $region24
      $region23: #{gridnet_forward.1} parent=11 // pred_region
        _
      $region24: #{gridnet_forward.1} parent=11 // pred_fallthru
        _
      // Predicated region
      $region25: #{gridnet_forward.1} parent=11 // pred_check
        %p193 = pneg %p122
      $region26: #{gridnet_forward.1} parent=11 // pred_check_branch
        %195 = sbr.rel (%p193) target = $region28
      $region27: #{gridnet_forward.1} parent=11 // pred_region
        _
      $region28: #{gridnet_forward.1} parent=11 // pred_fallthru
        _
      // Predicated region
      $region29: #{gridnet_forward.1} parent=11 // pred_check
        %p196 = pneg %p143
      $region30: #{gridnet_forward.1} parent=11 // pred_check_branch
        %198 = sbr.rel (%p196) target = $region32
      $region31: #{gridnet_forward.1} parent=11 // pred_region
        _
      $region32: #{gridnet_forward.1} parent=11 // pred_fallthru
        _
    $region12: #{gridnet_forward.1} parent=5 // pred_fallthru
      _
    %p199 = scmp.lt.s32.totalorder %s12, 2
    // Predicated region
    $region33: #{gridnet_forward.1} parent=5 // pred_check
      %p200 = pneg %p199
    $region34: #{gridnet_forward.1} parent=5 // pred_check_branch
      %202 = sbr.rel (%p200) target = $region36
    $region35: #{gridnet_forward.1} parent=5 // pred_region
      // Predicated region
      $region37: #{gridnet_forward.1} parent=35 // pred_check
        %p203 = pneg %p32
      $region38: #{gridnet_forward.1} parent=35 // pred_check_branch
        %205 = sbr.rel (%p203) target = $region40
      $region39: #{gridnet_forward.1} parent=35 // pred_region
        %p206 = scmp.lt.s32.totalorder %s12, 1
        %s207 = scalar_select %p206, %s12, 1
        %s208 = smul.addr %s207, 16
        %s209 = smul.addr %s208, 8
        %s210 = scalar_lea.vmem %s0, %s209
      $region40: #{gridnet_forward.1} parent=35 // pred_fallthru
        _
    $region36: #{gridnet_forward.1} parent=5 // pred_fallthru
      _
    %p211 = scmp.le.s32.totalorder 1, %s12
    %p212 = scmp.lt.s32.totalorder %s12, 3
    %p213 = pnand %p211, %p212
    %p214 = pneg %p213
    // Predicated region
    $region41: #{gridnet_forward.1} parent=5 // pred_check
      _
    $region42: #{gridnet_forward.1} parent=5 // pred_check_branch
      %216 = sbr.rel (%p213) target = $region44
    $region43: #{gridnet_forward.1} parent=5 // pred_region
      %s217 = ssub.s32 %s12, 1
      %p218 = scmp.lt.s32.totalorder %s17, 1
      %s219 = scalar_select %p218, %s17, 1
      %s220 = smul.addr %s219, 16
      %s221 = smul.addr %s220, 8
      %s222 = scalar_lea.vmem %s0, %s221
      %p223 = pneg %p38
      %p224 = pneg %p35
      %p225 = pneg %p59
      %p226 = pneg %p56
      %p227 = pneg %p80
      %p228 = pneg %p77
      %p229 = pneg %p101
      %p230 = pneg %p98
      %p231 = pneg %p122
      %p232 = pneg %p119
      %p233 = pneg %p143
      %p234 = pneg %p140
      %p235 = pneg %p169
      %p236 = pneg %p166
      %p237 = scmp.lt.s32.totalorder %s17, 1
      %s238 = scalar_select %p237, %s17, 1
      %s239 = smul.addr %s238, 8
      %s240 = scalar_lea.vmem %s6, %s239
      %p241 = scmp.lt.s32.totalorder %s17, 1
      %s242 = scalar_select %p241, %s17, 1
      %s243 = smul.addr %s242, 16
      %s244 = smul.addr %s243, 8
      %s245 = scalar_lea.vmem %s0, %s244
      %p246 = scmp.lt.s32.totalorder %s17, 1
      %s247 = scalar_select %p246, %s17, 1
      %s248 = smul.addr %s247, 8
      %s249 = scalar_lea.vmem %s6, %s248
      %vm250 = vcmask 64512
      %251 = vst.msk [vmem:[#allocation2] sm:$0xff] %vm250, 0.0
      %252 = vst.msk [vmem:[#allocation2 + $0x8] sm:$0xff] %vm250, 0.0
      %253 = vst.msk [vmem:[#allocation2 + $0x10] sm:$0xff] %vm250, 0.0
      %254 = vst.msk [vmem:[#allocation2 + $0x18] sm:$0xff] %vm250, 0.0
      %255 = vst.msk [vmem:[#allocation2 + $0x20] sm:$0xff] %vm250, 0.0
      %256 = vst.msk [vmem:[#allocation2 + $0x28] sm:$0xff] %vm250, 0.0
      %257 = vst.msk [vmem:[#allocation2 + $0x30] sm:$0xff] %vm250, 0.0
      %258 = vst.msk [vmem:[#allocation2 + $0x38] sm:$0xff] %vm250, 0.0
      %259 = vst.msk [vmem:[#allocation2 + $0x40] sm:$0xff] %vm250, 0.0
      %260 = vst.msk [vmem:[#allocation2 + $0x48] sm:$0xff] %vm250, 0.0
      %261 = vst.msk [vmem:[#allocation2 + $0x50] sm:$0xff] %vm250, 0.0
      %262 = vst.msk [vmem:[#allocation2 + $0x58] sm:$0xff] %vm250, 0.0
      %263 = vst.msk [vmem:[#allocation2 + $0x60] sm:$0xff] %vm250, 0.0
      %264 = vst.msk [vmem:[#allocation2 + $0x68] sm:$0xff] %vm250, 0.0
      %265 = vst.msk [vmem:[#allocation2 + $0x70] sm:$0xff] %vm250, 0.0
      %266 = vst.msk [vmem:[#allocation2 + $0x78] sm:$0xff] %vm250, 0.0
      %267 = vst.msk [vmem:[#allocation2 + $0x80] sm:$0xff] %vm250, 0.0
      %268 = vst.msk [vmem:[#allocation2 + $0x88] sm:$0xff] %vm250, 0.0
      %269 = vst.msk [vmem:[#allocation2 + $0x90] sm:$0xff] %vm250, 0.0
      %270 = vst.msk [vmem:[#allocation2 + $0x98] sm:$0xff] %vm250, 0.0
      %271 = vst.msk [vmem:[#allocation2 + $0xa0] sm:$0xff] %vm250, 0.0
      %272 = vst.msk [vmem:[#allocation2 + $0xa8] sm:$0xff] %vm250, 0.0
      %273 = vst.msk [vmem:[#allocation2 + $0xb0] sm:$0xff] %vm250, 0.0
      %274 = vst.msk [vmem:[#allocation2 + $0xb8] sm:$0xff] %vm250, 0.0
      %275 = vst.msk [vmem:[#allocation2 + $0xc0] sm:$0xff] %vm250, 0.0
      %276 = vst.msk [vmem:[#allocation2 + $0xc8] sm:$0xff] %vm250, 0.0
      %277 = vst.msk [vmem:[#allocation2 + $0xd0] sm:$0xff] %vm250, 0.0
      %278 = vst.msk [vmem:[#allocation2 + $0xd8] sm:$0xff] %vm250, 0.0
      %279 = vst.msk [vmem:[#allocation2 + $0xe0] sm:$0xff] %vm250, 0.0
      %280 = vst.msk [vmem:[#allocation2 + $0xe8] sm:$0xff] %vm250, 0.0
      %281 = vst.msk [vmem:[#allocation2 + $0xf0] sm:$0xff] %vm250, 0.0
      %282 = vst.msk [vmem:[#allocation2 + $0xf8] sm:$0xff] %vm250, 0.0
      %283 = vst.msk [vmem:[#allocation2 + $0x100] sm:$0xff] %vm250, 0.0
      %284 = vst.msk [vmem:[#allocation2 + $0x108] sm:$0xff] %vm250, 0.0
      %285 = vst.msk [vmem:[#allocation2 + $0x110] sm:$0xff] %vm250, 0.0
      %286 = vst.msk [vmem:[#allocation2 + $0x118] sm:$0xff] %vm250, 0.0
      %287 = vst.msk [vmem:[#allocation2 + $0x120] sm:$0xff] %vm250, 0.0
      %288 = vst.msk [vmem:[#allocation2 + $0x128] sm:$0xff] %vm250, 0.0
      %289 = vst.msk [vmem:[#allocation2 + $0x130] sm:$0xff] %vm250, 0.0
      %290 = vst.msk [vmem:[#allocation2 + $0x138] sm:$0xff] %vm250, 0.0
      %291 = vst.msk [vmem:[#allocation2 + $0x140] sm:$0xff] %vm250, 0.0
      %292 = vst.msk [vmem:[#allocation2 + $0x148] sm:$0xff] %vm250, 0.0
      %293 = vst.msk [vmem:[#allocation2 + $0x150] sm:$0xff] %vm250, 0.0
      %294 = vst.msk [vmem:[#allocation2 + $0x158] sm:$0xff] %vm250, 0.0
      %295 = vst.msk [vmem:[#allocation2 + $0x160] sm:$0xff] %vm250, 0.0
      %296 = vst.msk [vmem:[#allocation2 + $0x168] sm:$0xff] %vm250, 0.0
      %297 = vst.msk [vmem:[#allocation2 + $0x170] sm:$0xff] %vm250, 0.0
      %298 = vst.msk [vmem:[#allocation2 + $0x178] sm:$0xff] %vm250, 0.0
      %299 = vst.msk [vmem:[#allocation2 + $0x180] sm:$0xff] %vm250, 0.0
      %300 = vst.msk [vmem:[#allocation2 + $0x188] sm:$0xff] %vm250, 0.0
      %301 = vst.msk [vmem:[#allocation2 + $0x190] sm:$0xff] %vm250, 0.0
      %302 = vst.msk [vmem:[#allocation2 + $0x198] sm:$0xff] %vm250, 0.0
      %303 = vst.msk [vmem:[#allocation2 + $0x1a0] sm:$0xff] %vm250, 0.0
      %304 = vst.msk [vmem:[#allocation2 + $0x1a8] sm:$0xff] %vm250, 0.0
      %305 = vst.msk [vmem:[#allocation2 + $0x1b0] sm:$0xff] %vm250, 0.0
      %306 = vst.msk [vmem:[#allocation2 + $0x1b8] sm:$0xff] %vm250, 0.0
      %307 = vst.msk [vmem:[#allocation2 + $0x1c0] sm:$0xff] %vm250, 0.0
      %308 = vst.msk [vmem:[#allocation2 + $0x1c8] sm:$0xff] %vm250, 0.0
      %309 = vst.msk [vmem:[#allocation2 + $0x1d0] sm:$0xff] %vm250, 0.0
      %310 = vst.msk [vmem:[#allocation2 + $0x1d8] sm:$0xff] %vm250, 0.0
      %311 = vst.msk [vmem:[#allocation2 + $0x1e0] sm:$0xff] %vm250, 0.0
      %312 = vst.msk [vmem:[#allocation2 + $0x1e8] sm:$0xff] %vm250, 0.0
      %313 = vst.msk [vmem:[#allocation2 + $0x1f0] sm:$0xff] %vm250, 0.0
      %314 = vst.msk [vmem:[#allocation2 + $0x1f8] sm:$0xff] %vm250, 0.0
      %315 = vst.msk [vmem:[#allocation2 + $0x200] sm:$0xff] %vm250, 0.0
      %316 = vst.msk [vmem:[#allocation2 + $0x208] sm:$0xff] %vm250, 0.0
      %317 = vst.msk [vmem:[#allocation2 + $0x210] sm:$0xff] %vm250, 0.0
      %318 = vst.msk [vmem:[#allocation2 + $0x218] sm:$0xff] %vm250, 0.0
      %319 = vst.msk [vmem:[#allocation2 + $0x220] sm:$0xff] %vm250, 0.0
      %320 = vst.msk [vmem:[#allocation2 + $0x228] sm:$0xff] %vm250, 0.0
      %321 = vst.msk [vmem:[#allocation2 + $0x230] sm:$0xff] %vm250, 0.0
      %322 = vst.msk [vmem:[#allocation2 + $0x238] sm:$0xff] %vm250, 0.0
      %323 = vst [vmem:[#allocation3] sm:$0xff] 0.0
      %vm324 = vcmask 588800
      %325 = vst.msk [vmem:[#allocation3 + $0x8] sm:$0xff] %vm324, 0.0
      %326 = vst [vmem:[#allocation3 + $0x10] sm:$0xff] 0.0
      %327 = vst.msk [vmem:[#allocation3 + $0x18] sm:$0xff] %vm324, 0.0
      %328 = vst [vmem:[#allocation3 + $0x20] sm:$0xff] 0.0
      %329 = vst.msk [vmem:[#allocation3 + $0x28] sm:$0xff] %vm324, 0.0
      %330 = vst [vmem:[#allocation3 + $0x30] sm:$0xff] 0.0
      %331 = vst.msk [vmem:[#allocation3 + $0x38] sm:$0xff] %vm324, 0.0
      %332 = vst [vmem:[#allocation3 + $0x40] sm:$0xff] 0.0
      %333 = vst.msk [vmem:[#allocation3 + $0x48] sm:$0xff] %vm324, 0.0
      %334 = vst [vmem:[#allocation3 + $0x50] sm:$0xff] 0.0
      %335 = vst.msk [vmem:[#allocation3 + $0x58] sm:$0xff] %vm324, 0.0
      %336 = vst [vmem:[#allocation3 + $0x60] sm:$0xff] 0.0
      %337 = vst.msk [vmem:[#allocation3 + $0x68] sm:$0xff] %vm324, 0.0
      %338 = vst [vmem:[#allocation3 + $0x70] sm:$0xff] 0.0
      %339 = vst.msk [vmem:[#allocation3 + $0x78] sm:$0xff] %vm324, 0.0
      %v340 = vld [vmem:[%s245] sm:$0xff]
      %v341 = vld [vmem:[%s245 + $0x8] sm:$0xff]
      %v342 = vld [vmem:[%s245 + $0x10] sm:$0xff]
      %v343 = vld [vmem:[%s245 + $0x18] sm:$0xff]
      %v344 = vld [vmem:[%s245 + $0x20] sm:$0xff]
      %v345 = vld [vmem:[%s245 + $0x28] sm:$0xff]
      %v346 = vld [vmem:[%s245 + $0x30] sm:$0xff]
      %v347 = vld [vmem:[%s245 + $0x38] sm:$0xff]
      %v348 = vld [vmem:[%s245 + $0x40] sm:$0xff]
      %v349 = vld [vmem:[%s245 + $0x48] sm:$0xff]
      %v350 = vld [vmem:[%s245 + $0x50] sm:$0xff]
      %v351 = vld [vmem:[%s245 + $0x58] sm:$0xff]
      %v352 = vld [vmem:[%s245 + $0x60] sm:$0xff]
      %v353 = vld [vmem:[%s245 + $0x68] sm:$0xff]
      %v354 = vld [vmem:[%s245 + $0x70] sm:$0xff]
      %v355 = vld [vmem:[%s245 + $0x78] sm:$0xff]
      %v356 = vld [vmem:[%s1] sm:$0xff]
      %v357 = vld [vmem:[%s1 + $0x8] sm:$0xff]
      %v358 = vld [vmem:[%s1 + $0x10] sm:$0xff]
      %v359 = vld [vmem:[%s1 + $0x18] sm:$0xff]
      %v360 = vld [vmem:[%s1 + $0x20] sm:$0xff]
      %v361 = vld [vmem:[%s1 + $0x28] sm:$0xff]
      %v362 = vld [vmem:[%s1 + $0x30] sm:$0xff]
      %v363 = vld [vmem:[%s1 + $0x38] sm:$0xff]
      %v364 = vld [vmem:[%s1 + $0x40] sm:$0xff]
      %v365 = vld [vmem:[%s1 + $0x48] sm:$0xff]
      %v366 = vld [vmem:[%s1 + $0x50] sm:$0xff]
      %v367 = vld [vmem:[%s1 + $0x58] sm:$0xff]
      %v368 = vld [vmem:[%s1 + $0x60] sm:$0xff]
      %v369 = vld [vmem:[%s1 + $0x68] sm:$0xff]
      %v370 = vld [vmem:[%s1 + $0x70] sm:$0xff]
      %v371 = vld [vmem:[%s1 + $0x78] sm:$0xff]
      %v372 = vld [vmem:[%s1 + $0x80] sm:$0xff]
      %v373 = vld [vmem:[%s1 + $0x88] sm:$0xff]
      %v374 = vld [vmem:[%s1 + $0x90] sm:$0xff]
      %v375 = vld [vmem:[%s1 + $0x98] sm:$0xff]
      %v376 = vld [vmem:[%s1 + $0xa0] sm:$0xff]
      %v377 = vld [vmem:[%s1 + $0xa8] sm:$0xff]
      %v378 = vld [vmem:[%s1 + $0xb0] sm:$0xff]
      %v379 = vld [vmem:[%s1 + $0xb8] sm:$0xff]
      %v380 = vld [vmem:[%s2] sm:$0x1]
      %v382 = vlaneseq
      %v383 = vshrl.u32 %v382, 7
      %v384 = vsub.s32 0, %v383
      %v385 = vrot.slane %v380, %v384
      %vm387 = vcmask 523264
      %v389 = vsel %vm387, %v341, 0
      %v392 = vsel %vm387, %v343, 0
      %v395 = vsel %vm387, %v345, 0
      %v398 = vsel %vm387, %v347, 0
      %v401 = vsel %vm387, %v349, 0
      %v404 = vsel %vm387, %v351, 0
      %v407 = vsel %vm387, %v353, 0
      %v410 = vsel %vm387, %v355, 0
      %412 = vmatprep.subr.mxu0 0.0
      %v413 = vand.u32 %v371, 4294901760
      %414 = vmatpush1.msra.mxu0 %v413
      %415 = vmatprep.subr.mxu0 0.0
      %v416 = vand.u32 %v370, 4294901760
      %417 = vmatpush1.msra.mxu0 %v416
      %418 = vmatprep.subr.mxu0 0.0
      %v419 = vand.u32 %v369, 4294901760
      %420 = vmatpush1.msra.mxu0 %v419
      %421 = vmatprep.subr.mxu0 0.0
      %v422 = vand.u32 %v368, 4294901760
      %423 = vmatpush1.msra.mxu0 %v422
      %424 = vmatprep.subr.mxu0 0.0
      %v425 = vand.u32 %v367, 4294901760
      %426 = vmatpush1.msra.mxu0 %v425
      %427 = vmatprep.subr.mxu0 0.0
      %v428 = vand.u32 %v366, 4294901760
      %429 = vmatpush1.msra.mxu0 %v428
      %430 = vmatprep.subr.mxu0 0.0
      %v431 = vand.u32 %v365, 4294901760
      %432 = vmatpush1.msra.mxu0 %v431
      %433 = vmatprep.subr.mxu0 0.0
      %v434 = vand.u32 %v364, 4294901760
      %435 = vmatpush1.msra.mxu0 %v434
      %436 = vmatprep.subr.mxu0 0.0
      %v437 = vand.u32 %v363, 4294901760
      %438 = vmatpush1.msra.mxu0 %v437
      %439 = vmatprep.subr.mxu0 0.0
      %v440 = vand.u32 %v362, 4294901760
      %441 = vmatpush1.msra.mxu0 %v440
      %442 = vmatprep.subr.mxu0 0.0
      %v443 = vand.u32 %v361, 4294901760
      %444 = vmatpush1.msra.mxu0 %v443
      %445 = vmatprep.subr.mxu0 0.0
      %v446 = vand.u32 %v360, 4294901760
      %447 = vmatpush1.msra.mxu0 %v446
      %448 = vmatprep.subr.mxu0 0.0
      %v449 = vand.u32 %v359, 4294901760
      %450 = vmatpush1.msra.mxu0 %v449
      %451 = vmatprep.subr.mxu0 0.0
      %v452 = vand.u32 %v358, 4294901760
      %453 = vmatpush1.msra.mxu0 %v452
      %454 = vmatprep.subr.mxu0 0.0
      %v455 = vand.u32 %v357, 4294901760
      %456 = vmatpush1.msra.mxu0 %v455
      %457 = vmatprep.subr.mxu0 0.0
      %v458 = vand.u32 %v356, 4294901760
      %459 = vmatpush1.msra.mxu0 %v458
      %460 = vmatprep.subr.mxu0 0.0
      %461 = vmatpush2.msra.mxu0 0.0
      %462 = vmatprep.subr.mxu0 0.0
      %463 = vmatpush2.msra.mxu0 0.0
      %464 = vmatprep.subr.mxu0 0.0
      %465 = vmatpush2.msra.mxu0 0.0
      %466 = vmatprep.subr.mxu0 0.0
      %467 = vmatpush2.msra.mxu0 0.0
      %468 = vmatprep.subr.mxu0 0.0
      %469 = vmatpush2.msra.mxu0 0.0
      %470 = vmatprep.subr.mxu0 0.0
      %471 = vmatpush2.msra.mxu0 0.0
      %472 = vmatprep.subr.mxu0 0.0
      %473 = vmatpush2.msra.mxu0 0.0
      %474 = vmatprep.subr.mxu0 0.0
      %475 = vmatpush2.msra.mxu0 0.0
      %476 = vmatprep.subr.mxu0 0.0
      %v477 = vand.u32 %v379, 4294901760
      %478 = vmatpush2.msra.mxu0 %v477
      %479 = vmatprep.subr.mxu0 0.0
      %v480 = vand.u32 %v378, 4294901760
      %481 = vmatpush2.msra.mxu0 %v480
      %482 = vmatprep.subr.mxu0 0.0
      %v483 = vand.u32 %v377, 4294901760
      %484 = vmatpush2.msra.mxu0 %v483
      %485 = vmatprep.subr.mxu0 0.0
      %v486 = vand.u32 %v376, 4294901760
      %487 = vmatpush2.msra.mxu0 %v486
      %488 = vmatprep.subr.mxu0 0.0
      %v489 = vand.u32 %v375, 4294901760
      %490 = vmatpush2.msra.mxu0 %v489
      %491 = vmatprep.subr.mxu0 0.0
      %v492 = vand.u32 %v374, 4294901760
      %493 = vmatpush2.msra.mxu0 %v492
      %494 = vmatprep.subr.mxu0 0.0
      %v495 = vand.u32 %v373, 4294901760
      %496 = vmatpush2.msra.mxu0 %v495
      %497 = vmatprep.subr.mxu0 0.0
      %v498 = vand.u32 %v372, 4294901760
      %499 = vmatpush2.msra.mxu0 %v498
      %v500 = vand.u32 %v389, 4294901760
      %v501 = vsub.f32 %v389, %v500
      %v502 = vand.u32 %v501, 4294901760
      %v503 = vsub.f32 %v501, %v502
      %v504 = vand.u32 %v503, 4294901760
      %505 = vmatprep.mubr.f32.mxu0 %v504
      %v506 = vand.u32 %v340, 4294901760
      %v507 = vsub.f32 %v340, %v506
      %v508 = vand.u32 %v507, 4294901760
      %v509 = vsub.f32 %v507, %v508
      %v510 = vand.u32 %v509, 4294901760
      %511 = vmatmul.mubr.f32.gmra.mxu0 %v510
      %v512 = vpop.f32.mrf.mxu0
      %v513 = vadd.f32 %v385, %v512
      %v514 = vpop.f32.mrf.mxu0
      %v515 = vand.u32 %v392, 4294901760
      %v516 = vsub.f32 %v392, %v515
      %v517 = vand.u32 %v516, 4294901760
      %v518 = vsub.f32 %v516, %v517
      %v519 = vand.u32 %v518, 4294901760
      %520 = vmatprep.mubr.f32.mxu0 %v519
      %v521 = vand.u32 %v342, 4294901760
      %v522 = vsub.f32 %v342, %v521
      %v523 = vand.u32 %v522, 4294901760
      %v524 = vsub.f32 %v522, %v523
      %v525 = vand.u32 %v524, 4294901760
      %526 = vmatmul.mubr.f32.gmra.mxu0 %v525
      %v527 = vpop.f32.mrf.mxu0
      %v528 = vadd.f32 %v385, %v527
      %v529 = vpop.f32.mrf.mxu0
      %v530 = vand.u32 %v395, 4294901760
      %v531 = vsub.f32 %v395, %v530
      %v532 = vand.u32 %v531, 4294901760
      %v533 = vsub.f32 %v531, %v532
      %v534 = vand.u32 %v533, 4294901760
      %535 = vmatprep.mubr.f32.mxu0 %v534
      %v536 = vand.u32 %v344, 4294901760
      %v537 = vsub.f32 %v344, %v536
      %v538 = vand.u32 %v537, 4294901760
      %v539 = vsub.f32 %v537, %v538
      %v540 = vand.u32 %v539, 4294901760
      %541 = vmatmul.mubr.f32.gmra.mxu0 %v540
      %v542 = vpop.f32.mrf.mxu0
      %v543 = vadd.f32 %v385, %v542
      %v544 = vpop.f32.mrf.mxu0
      %v545 = vand.u32 %v398, 4294901760
      %v546 = vsub.f32 %v398, %v545
      %v547 = vand.u32 %v546, 4294901760
      %v548 = vsub.f32 %v546, %v547
      %v549 = vand.u32 %v548, 4294901760
      %550 = vmatprep.mubr.f32.mxu0 %v549
      %v551 = vand.u32 %v346, 4294901760
      %v552 = vsub.f32 %v346, %v551
      %v553 = vand.u32 %v552, 4294901760
      %v554 = vsub.f32 %v552, %v553
      %v555 = vand.u32 %v554, 4294901760
      %556 = vmatmul.mubr.f32.gmra.mxu0 %v555
      %v557 = vpop.f32.mrf.mxu0
      %v558 = vadd.f32 %v385, %v557
      %v559 = vpop.f32.mrf.mxu0
      %v560 = vand.u32 %v401, 4294901760
      %v561 = vsub.f32 %v401, %v560
      %v562 = vand.u32 %v561, 4294901760
      %v563 = vsub.f32 %v561, %v562
      %v564 = vand.u32 %v563, 4294901760
      %565 = vmatprep.mubr.f32.mxu0 %v564
      %v566 = vand.u32 %v348, 4294901760
      %v567 = vsub.f32 %v348, %v566
      %v568 = vand.u32 %v567, 4294901760
      %v569 = vsub.f32 %v567, %v568
      %v570 = vand.u32 %v569, 4294901760
      %571 = vmatmul.mubr.f32.gmra.mxu0 %v570
      %v572 = vpop.f32.mrf.mxu0
      %v573 = vadd.f32 %v385, %v572
      %v574 = vpop.f32.mrf.mxu0
      %v575 = vand.u32 %v404, 4294901760
      %v576 = vsub.f32 %v404, %v575
      %v577 = vand.u32 %v576, 4294901760
      %v578 = vsub.f32 %v576, %v577
      %v579 = vand.u32 %v578, 4294901760
      %580 = vmatprep.mubr.f32.mxu0 %v579
      %v581 = vand.u32 %v350, 4294901760
      %v582 = vsub.f32 %v350, %v581
      %v583 = vand.u32 %v582, 4294901760
      %v584 = vsub.f32 %v582, %v583
      %v585 = vand.u32 %v584, 4294901760
      %586 = vmatmul.mubr.f32.gmra.mxu0 %v585
      %v587 = vpop.f32.mrf.mxu0
      %v588 = vadd.f32 %v385, %v587
      %v589 = vpop.f32.mrf.mxu0
      %v590 = vand.u32 %v407, 4294901760
      %v591 = vsub.f32 %v407, %v590
      %v592 = vand.u32 %v591, 4294901760
      %v593 = vsub.f32 %v591, %v592
      %v594 = vand.u32 %v593, 4294901760
      %595 = vmatprep.mubr.f32.mxu0 %v594
      %v596 = vand.u32 %v352, 4294901760
      %v597 = vsub.f32 %v352, %v596
      %v598 = vand.u32 %v597, 4294901760
      %v599 = vsub.f32 %v597, %v598
      %v600 = vand.u32 %v599, 4294901760
      %601 = vmatmul.mubr.f32.gmra.mxu0 %v600
      %v602 = vpop.f32.mrf.mxu0
      %v603 = vadd.f32 %v385, %v602
      %v604 = vpop.f32.mrf.mxu0
      %v605 = vand.u32 %v410, 4294901760
      %v606 = vsub.f32 %v410, %v605
      %v607 = vand.u32 %v606, 4294901760
      %v608 = vsub.f32 %v606, %v607
      %v609 = vand.u32 %v608, 4294901760
      %610 = vmatprep.mubr.f32.mxu0 %v609
      %v611 = vand.u32 %v354, 4294901760
      %v612 = vsub.f32 %v354, %v611
      %v613 = vand.u32 %v612, 4294901760
      %v614 = vsub.f32 %v612, %v613
      %v615 = vand.u32 %v614, 4294901760
      %616 = vmatmul.mubr.f32.gmra.mxu0 %v615
      %v617 = vpop.f32.mrf.mxu0
      %v618 = vadd.f32 %v385, %v617
      %v619 = vpop.f32.mrf.mxu0
      %620 = vdwg.mxu0
      %621 = vmatprep.subr.mxu0 0.0
      %v622 = vand.u32 %v371, 4294901760
      %v623 = vsub.f32 %v371, %v622
      %v624 = vand.u32 %v623, 4294901760
      %v625 = vsub.f32 %v623, %v624
      %v626 = vand.u32 %v625, 4294901760
      %627 = vmatpush1.msra.mxu0 %v626
      %628 = vmatprep.subr.mxu0 0.0
      %v629 = vand.u32 %v370, 4294901760
      %v630 = vsub.f32 %v370, %v629
      %v631 = vand.u32 %v630, 4294901760
      %v632 = vsub.f32 %v630, %v631
      %v633 = vand.u32 %v632, 4294901760
      %634 = vmatpush1.msra.mxu0 %v633
      %635 = vmatprep.subr.mxu0 0.0
      %v636 = vand.u32 %v369, 4294901760
      %v637 = vsub.f32 %v369, %v636
      %v638 = vand.u32 %v637, 4294901760
      %v639 = vsub.f32 %v637, %v638
      %v640 = vand.u32 %v639, 4294901760
      %641 = vmatpush1.msra.mxu0 %v640
      %642 = vmatprep.subr.mxu0 0.0
      %v643 = vand.u32 %v368, 4294901760
      %v644 = vsub.f32 %v368, %v643
      %v645 = vand.u32 %v644, 4294901760
      %v646 = vsub.f32 %v644, %v645
      %v647 = vand.u32 %v646, 4294901760
      %648 = vmatpush1.msra.mxu0 %v647
      %649 = vmatprep.subr.mxu0 0.0
      %v650 = vand.u32 %v367, 4294901760
      %v651 = vsub.f32 %v367, %v650
      %v652 = vand.u32 %v651, 4294901760
      %v653 = vsub.f32 %v651, %v652
      %v654 = vand.u32 %v653, 4294901760
      %655 = vmatpush1.msra.mxu0 %v654
      %656 = vmatprep.subr.mxu0 0.0
      %v657 = vand.u32 %v366, 4294901760
      %v658 = vsub.f32 %v366, %v657
      %v659 = vand.u32 %v658, 4294901760
      %v660 = vsub.f32 %v658, %v659
      %v661 = vand.u32 %v660, 4294901760
      %662 = vmatpush1.msra.mxu0 %v661
      %663 = vmatprep.subr.mxu0 0.0
      %v664 = vand.u32 %v365, 4294901760
      %v665 = vsub.f32 %v365, %v664
      %v666 = vand.u32 %v665, 4294901760
      %v667 = vsub.f32 %v665, %v666
      %v668 = vand.u32 %v667, 4294901760
      %669 = vmatpush1.msra.mxu0 %v668
      %670 = vmatprep.subr.mxu0 0.0
      %v671 = vand.u32 %v364, 4294901760
      %v672 = vsub.f32 %v364, %v671
      %v673 = vand.u32 %v672, 4294901760
      %v674 = vsub.f32 %v672, %v673
      %v675 = vand.u32 %v674, 4294901760
      %676 = vmatpush1.msra.mxu0 %v675
      %677 = vmatprep.subr.mxu0 0.0
      %v678 = vand.u32 %v363, 4294901760
      %v679 = vsub.f32 %v363, %v678
      %v680 = vand.u32 %v679, 4294901760
      %v681 = vsub.f32 %v679, %v680
      %v682 = vand.u32 %v681, 4294901760
      %683 = vmatpush1.msra.mxu0 %v682
      %684 = vmatprep.subr.mxu0 0.0
      %v685 = vand.u32 %v362, 4294901760
      %v686 = vsub.f32 %v362, %v685
      %v687 = vand.u32 %v686, 4294901760
      %v688 = vsub.f32 %v686, %v687
      %v689 = vand.u32 %v688, 4294901760
      %690 = vmatpush1.msra.mxu0 %v689
      %691 = vmatprep.subr.mxu0 0.0
      %v692 = vand.u32 %v361, 4294901760
      %v693 = vsub.f32 %v361, %v692
      %v694 = vand.u32 %v693, 4294901760
      %v695 = vsub.f32 %v693, %v694
      %v696 = vand.u32 %v695, 4294901760
      %697 = vmatpush1.msra.mxu0 %v696
      %698 = vmatprep.subr.mxu0 0.0
      %v699 = vand.u32 %v360, 4294901760
      %v700 = vsub.f32 %v360, %v699
      %v701 = vand.u32 %v700, 4294901760
      %v702 = vsub.f32 %v700, %v701
      %v703 = vand.u32 %v702, 4294901760
      %704 = vmatpush1.msra.mxu0 %v703
      %705 = vmatprep.subr.mxu0 0.0
      %v706 = vand.u32 %v359, 4294901760
      %v707 = vsub.f32 %v359, %v706
      %v708 = vand.u32 %v707, 4294901760
      %v709 = vsub.f32 %v707, %v708
      %v710 = vand.u32 %v709, 4294901760
      %711 = vmatpush1.msra.mxu0 %v710
      %712 = vmatprep.subr.mxu0 0.0
      %v713 = vand.u32 %v358, 4294901760
      %v714 = vsub.f32 %v358, %v713
      %v715 = vand.u32 %v714, 4294901760
      %v716 = vsub.f32 %v714, %v715
      %v717 = vand.u32 %v716, 4294901760
      %718 = vmatpush1.msra.mxu0 %v717
      %719 = vmatprep.subr.mxu0 0.0
      %v720 = vand.u32 %v357, 4294901760
      %v721 = vsub.f32 %v357, %v720
      %v722 = vand.u32 %v721, 4294901760
      %v723 = vsub.f32 %v721, %v722
      %v724 = vand.u32 %v723, 4294901760
      %725 = vmatpush1.msra.mxu0 %v724
      %726 = vmatprep.subr.mxu0 0.0
      %v727 = vand.u32 %v356, 4294901760
      %v728 = vsub.f32 %v356, %v727
      %v729 = vand.u32 %v728, 4294901760
      %v730 = vsub.f32 %v728, %v729
      %v731 = vand.u32 %v730, 4294901760
      %732 = vmatpush1.msra.mxu0 %v731
      %733 = vmatprep.subr.mxu0 0.0
      %734 = vmatpush2.msra.mxu0 0.0
      %735 = vmatprep.subr.mxu0 0.0
      %736 = vmatpush2.msra.mxu0 0.0
      %737 = vmatprep.subr.mxu0 0.0
      %738 = vmatpush2.msra.mxu0 0.0
      %739 = vmatprep.subr.mxu0 0.0
      %740 = vmatpush2.msra.mxu0 0.0
      %741 = vmatprep.subr.mxu0 0.0
      %742 = vmatpush2.msra.mxu0 0.0
      %743 = vmatprep.subr.mxu0 0.0
      %744 = vmatpush2.msra.mxu0 0.0
      %745 = vmatprep.subr.mxu0 0.0
      %746 = vmatpush2.msra.mxu0 0.0
      %747 = vmatprep.subr.mxu0 0.0
      %748 = vmatpush2.msra.mxu0 0.0
      %749 = vmatprep.subr.mxu0 0.0
      %v750 = vand.u32 %v379, 4294901760
      %v751 = vsub.f32 %v379, %v750
      %v752 = vand.u32 %v751, 4294901760
      %v753 = vsub.f32 %v751, %v752
      %v754 = vand.u32 %v753, 4294901760
      %755 = vmatpush2.msra.mxu0 %v754
      %756 = vmatprep.subr.mxu0 0.0
      %v757 = vand.u32 %v378, 4294901760
      %v758 = vsub.f32 %v378, %v757
      %v759 = vand.u32 %v758, 4294901760
      %v760 = vsub.f32 %v758, %v759
      %v761 = vand.u32 %v760, 4294901760
      %762 = vmatpush2.msra.mxu0 %v761
      %763 = vmatprep.subr.mxu0 0.0
      %v764 = vand.u32 %v377, 4294901760
      %v765 = vsub.f32 %v377, %v764
      %v766 = vand.u32 %v765, 4294901760
      %v767 = vsub.f32 %v765, %v766
      %v768 = vand.u32 %v767, 4294901760
      %769 = vmatpush2.msra.mxu0 %v768
      %770 = vmatprep.subr.mxu0 0.0
      %v771 = vand.u32 %v376, 4294901760
      %v772 = vsub.f32 %v376, %v771
      %v773 = vand.u32 %v772, 4294901760
      %v774 = vsub.f32 %v772, %v773
      %v775 = vand.u32 %v774, 4294901760
      %776 = vmatpush2.msra.mxu0 %v775
      %777 = vmatprep.subr.mxu0 0.0
      %v778 = vand.u32 %v375, 4294901760
      %v779 = vsub.f32 %v375, %v778
      %v780 = vand.u32 %v779, 4294901760
      %v781 = vsub.f32 %v779, %v780
      %v782 = vand.u32 %v781, 4294901760
      %783 = vmatpush2.msra.mxu0 %v782
      %784 = vmatprep.subr.mxu0 0.0
      %v785 = vand.u32 %v374, 4294901760
      %v786 = vsub.f32 %v374, %v785
      %v787 = vand.u32 %v786, 4294901760
      %v788 = vsub.f32 %v786, %v787
      %v789 = vand.u32 %v788, 4294901760
      %790 = vmatpush2.msra.mxu0 %v789
      %791 = vmatprep.subr.mxu0 0.0
      %v792 = vand.u32 %v373, 4294901760
      %v793 = vsub.f32 %v373, %v792
      %v794 = vand.u32 %v793, 4294901760
      %v795 = vsub.f32 %v793, %v794
      %v796 = vand.u32 %v795, 4294901760
      %797 = vmatpush2.msra.mxu0 %v796
      %798 = vmatprep.subr.mxu0 0.0
      %v799 = vand.u32 %v372, 4294901760
      %v800 = vsub.f32 %v372, %v799
      %v801 = vand.u32 %v800, 4294901760
      %v802 = vsub.f32 %v800, %v801
      %v803 = vand.u32 %v802, 4294901760
      %804 = vmatpush2.msra.mxu0 %v803
      %v805 = vand.u32 %v389, 4294901760
      %806 = vmatprep.mubr.f32.mxu0 %v805
      %v807 = vand.u32 %v340, 4294901760
      %808 = vmatmul.mubr.f32.gmra.mxu0 %v807
      %v809 = vpop.f32.mrf.mxu0
      %v810 = vadd.f32 %v513, %v809
      %v811 = vpop.f32.mrf.mxu0
      %v812 = vand.u32 %v392, 4294901760
      %813 = vmatprep.mubr.f32.mxu0 %v812
      %v814 = vand.u32 %v342, 4294901760
      %815 = vmatmul.mubr.f32.gmra.mxu0 %v814
      %v816 = vpop.f32.mrf.mxu0
      %v817 = vadd.f32 %v528, %v816
      %v818 = vpop.f32.mrf.mxu0
      %v819 = vand.u32 %v395, 4294901760
      %820 = vmatprep.mubr.f32.mxu0 %v819
      %v821 = vand.u32 %v344, 4294901760
      %822 = vmatmul.mubr.f32.gmra.mxu0 %v821
      %v823 = vpop.f32.mrf.mxu0
      %v824 = vadd.f32 %v543, %v823
      %v825 = vpop.f32.mrf.mxu0
      %v826 = vand.u32 %v398, 4294901760
      %827 = vmatprep.mubr.f32.mxu0 %v826
      %v828 = vand.u32 %v346, 4294901760
      %829 = vmatmul.mubr.f32.gmra.mxu0 %v828
      %v830 = vpop.f32.mrf.mxu0
      %v831 = vadd.f32 %v558, %v830
      %v832 = vpop.f32.mrf.mxu0
      %v833 = vand.u32 %v401, 4294901760
      %834 = vmatprep.mubr.f32.mxu0 %v833
      %v835 = vand.u32 %v348, 4294901760
      %836 = vmatmul.mubr.f32.gmra.mxu0 %v835
      %v837 = vpop.f32.mrf.mxu0
      %v838 = vadd.f32 %v573, %v837
      %v839 = vpop.f32.mrf.mxu0
      %v840 = vand.u32 %v404, 4294901760
      %841 = vmatprep.mubr.f32.mxu0 %v840
      %v842 = vand.u32 %v350, 4294901760
      %843 = vmatmul.mubr.f32.gmra.mxu0 %v842
      %v844 = vpop.f32.mrf.mxu0
      %v845 = vadd.f32 %v588, %v844
      %v846 = vpop.f32.mrf.mxu0
      %v847 = vand.u32 %v407, 4294901760
      %848 = vmatprep.mubr.f32.mxu0 %v847
      %v849 = vand.u32 %v352, 4294901760
      %850 = vmatmul.mubr.f32.gmra.mxu0 %v849
      %v851 = vpop.f32.mrf.mxu0
      %v852 = vadd.f32 %v603, %v851
      %v853 = vpop.f32.mrf.mxu0
      %v854 = vand.u32 %v410, 4294901760
      %855 = vmatprep.mubr.f32.mxu0 %v854
      %v856 = vand.u32 %v354, 4294901760
      %857 = vmatmul.mubr.f32.gmra.mxu0 %v856
      %v858 = vpop.f32.mrf.mxu0
      %v859 = vadd.f32 %v618, %v858
      %v860 = vpop.f32.mrf.mxu0
      %861 = vdwg.mxu0
      %862 = vmatprep.subr.mxu0 0.0
      %v863 = vand.u32 %v371, 4294901760
      %v864 = vsub.f32 %v371, %v863
      %865 = vmatpush1.msra.mxu0 %v864
      %866 = vmatprep.subr.mxu0 0.0
      %v867 = vand.u32 %v370, 4294901760
      %v868 = vsub.f32 %v370, %v867
      %869 = vmatpush1.msra.mxu0 %v868
      %870 = vmatprep.subr.mxu0 0.0
      %v871 = vand.u32 %v369, 4294901760
      %v872 = vsub.f32 %v369, %v871
      %873 = vmatpush1.msra.mxu0 %v872
      %874 = vmatprep.subr.mxu0 0.0
      %v875 = vand.u32 %v368, 4294901760
      %v876 = vsub.f32 %v368, %v875
      %877 = vmatpush1.msra.mxu0 %v876
      %878 = vmatprep.subr.mxu0 0.0
      %v879 = vand.u32 %v367, 4294901760
      %v880 = vsub.f32 %v367, %v879
      %881 = vmatpush1.msra.mxu0 %v880
      %882 = vmatprep.subr.mxu0 0.0
      %v883 = vand.u32 %v366, 4294901760
      %v884 = vsub.f32 %v366, %v883
      %885 = vmatpush1.msra.mxu0 %v884
      %886 = vmatprep.subr.mxu0 0.0
      %v887 = vand.u32 %v365, 4294901760
      %v888 = vsub.f32 %v365, %v887
      %889 = vmatpush1.msra.mxu0 %v888
      %890 = vmatprep.subr.mxu0 0.0
      %v891 = vand.u32 %v364, 4294901760
      %v892 = vsub.f32 %v364, %v891
      %893 = vmatpush1.msra.mxu0 %v892
      %894 = vmatprep.subr.mxu0 0.0
      %v895 = vand.u32 %v363, 4294901760
      %v896 = vsub.f32 %v363, %v895
      %897 = vmatpush1.msra.mxu0 %v896
      %898 = vmatprep.subr.mxu0 0.0
      %v899 = vand.u32 %v362, 4294901760
      %v900 = vsub.f32 %v362, %v899
      %901 = vmatpush1.msra.mxu0 %v900
      %902 = vmatprep.subr.mxu0 0.0
      %v903 = vand.u32 %v361, 4294901760
      %v904 = vsub.f32 %v361, %v903
      %905 = vmatpush1.msra.mxu0 %v904
      %906 = vmatprep.subr.mxu0 0.0
      %v907 = vand.u32 %v360, 4294901760
      %v908 = vsub.f32 %v360, %v907
      %909 = vmatpush1.msra.mxu0 %v908
      %910 = vmatprep.subr.mxu0 0.0
      %v911 = vand.u32 %v359, 4294901760
      %v912 = vsub.f32 %v359, %v911
      %913 = vmatpush1.msra.mxu0 %v912
      %914 = vmatprep.subr.mxu0 0.0
      %v915 = vand.u32 %v358, 4294901760
      %v916 = vsub.f32 %v358, %v915
      %917 = vmatpush1.msra.mxu0 %v916
      %918 = vmatprep.subr.mxu0 0.0
      %v919 = vand.u32 %v357, 4294901760
      %v920 = vsub.f32 %v357, %v919
      %921 = vmatpush1.msra.mxu0 %v920
      %922 = vmatprep.subr.mxu0 0.0
      %v923 = vand.u32 %v356, 4294901760
      %v924 = vsub.f32 %v356, %v923
      %925 = vmatpush1.msra.mxu0 %v924
      %926 = vmatprep.subr.mxu0 0.0
      %927 = vmatpush2.msra.mxu0 0.0
      %928 = vmatprep.subr.mxu0 0.0
      %929 = vmatpush2.msra.mxu0 0.0
      %930 = vmatprep.subr.mxu0 0.0
      %931 = vmatpush2.msra.mxu0 0.0
      %932 = vmatprep.subr.mxu0 0.0
      %933 = vmatpush2.msra.mxu0 0.0
      %934 = vmatprep.subr.mxu0 0.0
      %935 = vmatpush2.msra.mxu0 0.0
      %936 = vmatprep.subr.mxu0 0.0
      %937 = vmatpush2.msra.mxu0 0.0
      %938 = vmatprep.subr.mxu0 0.0
      %939 = vmatpush2.msra.mxu0 0.0
      %940 = vmatprep.subr.mxu0 0.0
      %941 = vmatpush2.msra.mxu0 0.0
      %942 = vmatprep.subr.mxu0 0.0
      %v943 = vand.u32 %v379, 4294901760
      %v944 = vsub.f32 %v379, %v943
      %945 = vmatpush2.msra.mxu0 %v944
      %946 = vmatprep.subr.mxu0 0.0
      %v947 = vand.u32 %v378, 4294901760
      %v948 = vsub.f32 %v378, %v947
      %949 = vmatpush2.msra.mxu0 %v948
      %950 = vmatprep.subr.mxu0 0.0
      %v951 = vand.u32 %v377, 4294901760
      %v952 = vsub.f32 %v377, %v951
      %953 = vmatpush2.msra.mxu0 %v952
      %954 = vmatprep.subr.mxu0 0.0
      %v955 = vand.u32 %v376, 4294901760
      %v956 = vsub.f32 %v376, %v955
      %957 = vmatpush2.msra.mxu0 %v956
      %958 = vmatprep.subr.mxu0 0.0
      %v959 = vand.u32 %v375, 4294901760
      %v960 = vsub.f32 %v375, %v959
      %961 = vmatpush2.msra.mxu0 %v960
      %962 = vmatprep.subr.mxu0 0.0
      %v963 = vand.u32 %v374, 4294901760
      %v964 = vsub.f32 %v374, %v963
      %965 = vmatpush2.msra.mxu0 %v964
      %966 = vmatprep.subr.mxu0 0.0
      %v967 = vand.u32 %v373, 4294901760
      %v968 = vsub.f32 %v373, %v967
      %969 = vmatpush2.msra.mxu0 %v968
      %970 = vmatprep.subr.mxu0 0.0
      %v971 = vand.u32 %v372, 4294901760
      %v972 = vsub.f32 %v372, %v971
      %973 = vmatpush2.msra.mxu0 %v972
      %v974 = vand.u32 %v389, 4294901760
      %v975 = vsub.f32 %v389, %v974
      %976 = vmatprep.mubr.f32.mxu0 %v975
      %v977 = vand.u32 %v340, 4294901760
      %v978 = vsub.f32 %v340, %v977
      %979 = vmatmul.mubr.f32.gmra.mxu0 %v978
      %v980 = vpop.f32.mrf.mxu0
      %v981 = vadd.f32 %v810, %v980
      %v982 = vpop.f32.mrf.mxu0
      %v983 = vand.u32 %v392, 4294901760
      %v984 = vsub.f32 %v392, %v983
      %985 = vmatprep.mubr.f32.mxu0 %v984
      %v986 = vand.u32 %v342, 4294901760
      %v987 = vsub.f32 %v342, %v986
      %988 = vmatmul.mubr.f32.gmra.mxu0 %v987
      %v989 = vpop.f32.mrf.mxu0
      %v990 = vadd.f32 %v817, %v989
      %v991 = vpop.f32.mrf.mxu0
      %v992 = vand.u32 %v395, 4294901760
      %v993 = vsub.f32 %v395, %v992
      %994 = vmatprep.mubr.f32.mxu0 %v993
      %v995 = vand.u32 %v344, 4294901760
      %v996 = vsub.f32 %v344, %v995
      %997 = vmatmul.mubr.f32.gmra.mxu0 %v996
      %v998 = vpop.f32.mrf.mxu0
      %v999 = vadd.f32 %v824, %v998
      %v1000 = vpop.f32.mrf.mxu0
      %v1001 = vand.u32 %v398, 4294901760
      %v1002 = vsub.f32 %v398, %v1001
      %1003 = vmatprep.mubr.f32.mxu0 %v1002
      %v1004 = vand.u32 %v346, 4294901760
      %v1005 = vsub.f32 %v346, %v1004
      %1006 = vmatmul.mubr.f32.gmra.mxu0 %v1005
      %v1007 = vpop.f32.mrf.mxu0
      %v1008 = vadd.f32 %v831, %v1007
      %v1009 = vpop.f32.mrf.mxu0
      %v1010 = vand.u32 %v401, 4294901760
      %v1011 = vsub.f32 %v401, %v1010
      %1012 = vmatprep.mubr.f32.mxu0 %v1011
      %v1013 = vand.u32 %v348, 4294901760
      %v1014 = vsub.f32 %v348, %v1013
      %1015 = vmatmul.mubr.f32.gmra.mxu0 %v1014
      %v1016 = vpop.f32.mrf.mxu0
      %v1017 = vadd.f32 %v838, %v1016
      %v1018 = vpop.f32.mrf.mxu0
      %v1019 = vand.u32 %v404, 4294901760
      %v1020 = vsub.f32 %v404, %v1019
      %1021 = vmatprep.mubr.f32.mxu0 %v1020
      %v1022 = vand.u32 %v350, 4294901760
      %v1023 = vsub.f32 %v350, %v1022
      %1024 = vmatmul.mubr.f32.gmra.mxu0 %v1023
      %v1025 = vpop.f32.mrf.mxu0
      %v1026 = vadd.f32 %v845, %v1025
      %v1027 = vpop.f32.mrf.mxu0
      %v1028 = vand.u32 %v407, 4294901760
      %v1029 = vsub.f32 %v407, %v1028
      %1030 = vmatprep.mubr.f32.mxu0 %v1029
      %v1031 = vand.u32 %v352, 4294901760
      %v1032 = vsub.f32 %v352, %v1031
      %1033 = vmatmul.mubr.f32.gmra.mxu0 %v1032
      %v1034 = vpop.f32.mrf.mxu0
      %v1035 = vadd.f32 %v852, %v1034
      %v1036 = vpop.f32.mrf.mxu0
      %v1037 = vand.u32 %v410, 4294901760
      %v1038 = vsub.f32 %v410, %v1037
      %1039 = vmatprep.mubr.f32.mxu0 %v1038
      %v1040 = vand.u32 %v354, 4294901760
      %v1041 = vsub.f32 %v354, %v1040
      %1042 = vmatmul.mubr.f32.gmra.mxu0 %v1041
      %v1043 = vpop.f32.mrf.mxu0
      %v1044 = vadd.f32 %v859, %v1043
      %v1045 = vpop.f32.mrf.mxu0
      %1046 = vdwg.mxu0
      %1047 = vmatprep.subr.mxu0 0.0
      %v1048 = vand.u32 %v371, 4294901760
      %1049 = vmatpush1.msra.mxu0 %v1048
      %1050 = vmatprep.subr.mxu0 0.0
      %v1051 = vand.u32 %v370, 4294901760
      %1052 = vmatpush1.msra.mxu0 %v1051
      %1053 = vmatprep.subr.mxu0 0.0
      %v1054 = vand.u32 %v369, 4294901760
      %1055 = vmatpush1.msra.mxu0 %v1054
      %1056 = vmatprep.subr.mxu0 0.0
      %v1057 = vand.u32 %v368, 4294901760
      %1058 = vmatpush1.msra.mxu0 %v1057
      %1059 = vmatprep.subr.mxu0 0.0
      %v1060 = vand.u32 %v367, 4294901760
      %1061 = vmatpush1.msra.mxu0 %v1060
      %1062 = vmatprep.subr.mxu0 0.0
      %v1063 = vand.u32 %v366, 4294901760
      %1064 = vmatpush1.msra.mxu0 %v1063
      %1065 = vmatprep.subr.mxu0 0.0
      %v1066 = vand.u32 %v365, 4294901760
      %1067 = vmatpush1.msra.mxu0 %v1066
      %1068 = vmatprep.subr.mxu0 0.0
      %v1069 = vand.u32 %v364, 4294901760
      %1070 = vmatpush1.msra.mxu0 %v1069
      %1071 = vmatprep.subr.mxu0 0.0
      %v1072 = vand.u32 %v363, 4294901760
      %1073 = vmatpush1.msra.mxu0 %v1072
      %1074 = vmatprep.subr.mxu0 0.0
      %v1075 = vand.u32 %v362, 4294901760
      %1076 = vmatpush1.msra.mxu0 %v1075
      %1077 = vmatprep.subr.mxu0 0.0
      %v1078 = vand.u32 %v361, 4294901760
      %1079 = vmatpush1.msra.mxu0 %v1078
      %1080 = vmatprep.subr.mxu0 0.0
      %v1081 = vand.u32 %v360, 4294901760
      %1082 = vmatpush1.msra.mxu0 %v1081
      %1083 = vmatprep.subr.mxu0 0.0
      %v1084 = vand.u32 %v359, 4294901760
      %1085 = vmatpush1.msra.mxu0 %v1084
      %1086 = vmatprep.subr.mxu0 0.0
      %v1087 = vand.u32 %v358, 4294901760
      %1088 = vmatpush1.msra.mxu0 %v1087
      %1089 = vmatprep.subr.mxu0 0.0
      %v1090 = vand.u32 %v357, 4294901760
      %1091 = vmatpush1.msra.mxu0 %v1090
      %1092 = vmatprep.subr.mxu0 0.0
      %v1093 = vand.u32 %v356, 4294901760
      %1094 = vmatpush1.msra.mxu0 %v1093
      %1095 = vmatprep.subr.mxu0 0.0
      %1096 = vmatpush2.msra.mxu0 0.0
      %1097 = vmatprep.subr.mxu0 0.0
      %1098 = vmatpush2.msra.mxu0 0.0
      %1099 = vmatprep.subr.mxu0 0.0
      %1100 = vmatpush2.msra.mxu0 0.0
      %1101 = vmatprep.subr.mxu0 0.0
      %1102 = vmatpush2.msra.mxu0 0.0
      %1103 = vmatprep.subr.mxu0 0.0
      %1104 = vmatpush2.msra.mxu0 0.0
      %1105 = vmatprep.subr.mxu0 0.0
      %1106 = vmatpush2.msra.mxu0 0.0
      %1107 = vmatprep.subr.mxu0 0.0
      %1108 = vmatpush2.msra.mxu0 0.0
      %1109 = vmatprep.subr.mxu0 0.0
      %1110 = vmatpush2.msra.mxu0 0.0
      %1111 = vmatprep.subr.mxu0 0.0
      %v1112 = vand.u32 %v379, 4294901760
      %1113 = vmatpush2.msra.mxu0 %v1112
      %1114 = vmatprep.subr.mxu0 0.0
      %v1115 = vand.u32 %v378, 4294901760
      %1116 = vmatpush2.msra.mxu0 %v1115
      %1117 = vmatprep.subr.mxu0 0.0
      %v1118 = vand.u32 %v377, 4294901760
      %1119 = vmatpush2.msra.mxu0 %v1118
      %1120 = vmatprep.subr.mxu0 0.0
      %v1121 = vand.u32 %v376, 4294901760
      %1122 = vmatpush2.msra.mxu0 %v1121
      %1123 = vmatprep.subr.mxu0 0.0
      %v1124 = vand.u32 %v375, 4294901760
      %1125 = vmatpush2.msra.mxu0 %v1124
      %1126 = vmatprep.subr.mxu0 0.0
      %v1127 = vand.u32 %v374, 4294901760
      %1128 = vmatpush2.msra.mxu0 %v1127
      %1129 = vmatprep.subr.mxu0 0.0
      %v1130 = vand.u32 %v373, 4294901760
      %1131 = vmatpush2.msra.mxu0 %v1130
      %1132 = vmatprep.subr.mxu0 0.0
      %v1133 = vand.u32 %v372, 4294901760
      %1134 = vmatpush2.msra.mxu0 %v1133
      %v1135 = vand.u32 %v389, 4294901760
      %v1136 = vsub.f32 %v389, %v1135
      %v1137 = vand.u32 %v1136, 4294901760
      %1138 = vmatprep.mubr.f32.mxu0 %v1137
      %v1139 = vand.u32 %v340, 4294901760
      %v1140 = vsub.f32 %v340, %v1139
      %v1141 = vand.u32 %v1140, 4294901760
      %1142 = vmatmul.mubr.f32.gmra.mxu0 %v1141
      %v1143 = vpop.f32.mrf.mxu0
      %v1144 = vadd.f32 %v981, %v1143
      %v1145 = vpop.f32.mrf.mxu0
      %v1146 = vand.u32 %v392, 4294901760
      %v1147 = vsub.f32 %v392, %v1146
      %v1148 = vand.u32 %v1147, 4294901760
      %1149 = vmatprep.mubr.f32.mxu0 %v1148
      %v1150 = vand.u32 %v342, 4294901760
      %v1151 = vsub.f32 %v342, %v1150
      %v1152 = vand.u32 %v1151, 4294901760
      %1153 = vmatmul.mubr.f32.gmra.mxu0 %v1152
      %v1154 = vpop.f32.mrf.mxu0
      %v1155 = vadd.f32 %v990, %v1154
      %v1156 = vpop.f32.mrf.mxu0
      %v1157 = vand.u32 %v395, 4294901760
      %v1158 = vsub.f32 %v395, %v1157
      %v1159 = vand.u32 %v1158, 4294901760
      %1160 = vmatprep.mubr.f32.mxu0 %v1159
      %v1161 = vand.u32 %v344, 4294901760
      %v1162 = vsub.f32 %v344, %v1161
      %v1163 = vand.u32 %v1162, 4294901760
      %1164 = vmatmul.mubr.f32.gmra.mxu0 %v1163
      %v1165 = vpop.f32.mrf.mxu0
      %v1166 = vadd.f32 %v999, %v1165
      %v1167 = vpop.f32.mrf.mxu0
      %v1168 = vand.u32 %v398, 4294901760
      %v1169 = vsub.f32 %v398, %v1168
      %v1170 = vand.u32 %v1169, 4294901760
      %1171 = vmatprep.mubr.f32.mxu0 %v1170
      %v1172 = vand.u32 %v346, 4294901760
      %v1173 = vsub.f32 %v346, %v1172
      %v1174 = vand.u32 %v1173, 4294901760
      %1175 = vmatmul.mubr.f32.gmra.mxu0 %v1174
      %v1176 = vpop.f32.mrf.mxu0
      %v1177 = vadd.f32 %v1008, %v1176
      %v1178 = vpop.f32.mrf.mxu0
      %v1179 = vand.u32 %v401, 4294901760
      %v1180 = vsub.f32 %v401, %v1179
      %v1181 = vand.u32 %v1180, 4294901760
      %1182 = vmatprep.mubr.f32.mxu0 %v1181
      %v1183 = vand.u32 %v348, 4294901760
      %v1184 = vsub.f32 %v348, %v1183
      %v1185 = vand.u32 %v1184, 4294901760
      %1186 = vmatmul.mubr.f32.gmra.mxu0 %v1185
      %v1187 = vpop.f32.mrf.mxu0
      %v1188 = vadd.f32 %v1017, %v1187
      %v1189 = vpop.f32.mrf.mxu0
      %v1190 = vand.u32 %v404, 4294901760
      %v1191 = vsub.f32 %v404, %v1190
      %v1192 = vand.u32 %v1191, 4294901760
      %1193 = vmatprep.mubr.f32.mxu0 %v1192
      %v1194 = vand.u32 %v350, 4294901760
      %v1195 = vsub.f32 %v350, %v1194
      %v1196 = vand.u32 %v1195, 4294901760
      %1197 = vmatmul.mubr.f32.gmra.mxu0 %v1196
      %v1198 = vpop.f32.mrf.mxu0
      %v1199 = vadd.f32 %v1026, %v1198
      %v1200 = vpop.f32.mrf.mxu0
      %v1201 = vand.u32 %v407, 4294901760
      %v1202 = vsub.f32 %v407, %v1201
      %v1203 = vand.u32 %v1202, 4294901760
      %1204 = vmatprep.mubr.f32.mxu0 %v1203
      %v1205 = vand.u32 %v352, 4294901760
      %v1206 = vsub.f32 %v352, %v1205
      %v1207 = vand.u32 %v1206, 4294901760
      %1208 = vmatmul.mubr.f32.gmra.mxu0 %v1207
      %v1209 = vpop.f32.mrf.mxu0
      %v1210 = vadd.f32 %v1035, %v1209
      %v1211 = vpop.f32.mrf.mxu0
      %v1212 = vand.u32 %v410, 4294901760
      %v1213 = vsub.f32 %v410, %v1212
      %v1214 = vand.u32 %v1213, 4294901760
      %1215 = vmatprep.mubr.f32.mxu0 %v1214
      %v1216 = vand.u32 %v354, 4294901760
      %v1217 = vsub.f32 %v354, %v1216
      %v1218 = vand.u32 %v1217, 4294901760
      %1219 = vmatmul.mubr.f32.gmra.mxu0 %v1218
      %v1220 = vpop.f32.mrf.mxu0
      %v1221 = vadd.f32 %v1044, %v1220
      %v1222 = vpop.f32.mrf.mxu0
      %1223 = vdwg.mxu0
      %1224 = vmatprep.subr.mxu0 0.0
      %v1225 = vand.u32 %v371, 4294901760
      %v1226 = vsub.f32 %v371, %v1225
      %v1227 = vand.u32 %v1226, 4294901760
      %1228 = vmatpush1.msra.mxu0 %v1227
      %1229 = vmatprep.subr.mxu0 0.0
      %v1230 = vand.u32 %v370, 4294901760
      %v1231 = vsub.f32 %v370, %v1230
      %v1232 = vand.u32 %v1231, 4294901760
      %1233 = vmatpush1.msra.mxu0 %v1232
      %1234 = vmatprep.subr.mxu0 0.0
      %v1235 = vand.u32 %v369, 4294901760
      %v1236 = vsub.f32 %v369, %v1235
      %v1237 = vand.u32 %v1236, 4294901760
      %1238 = vmatpush1.msra.mxu0 %v1237
      %1239 = vmatprep.subr.mxu0 0.0
      %v1240 = vand.u32 %v368, 4294901760
      %v1241 = vsub.f32 %v368, %v1240
      %v1242 = vand.u32 %v1241, 4294901760
      %1243 = vmatpush1.msra.mxu0 %v1242
      %1244 = vmatprep.subr.mxu0 0.0
      %v1245 = vand.u32 %v367, 4294901760
      %v1246 = vsub.f32 %v367, %v1245
      %v1247 = vand.u32 %v1246, 4294901760
      %1248 = vmatpush1.msra.mxu0 %v1247
      %1249 = vmatprep.subr.mxu0 0.0
      %v1250 = vand.u32 %v366, 4294901760
      %v1251 = vsub.f32 %v366, %v1250
      %v1252 = vand.u32 %v1251, 4294901760
      %1253 = vmatpush1.msra.mxu0 %v1252
      %1254 = vmatprep.subr.mxu0 0.0
      %v1255 = vand.u32 %v365, 4294901760
      %v1256 = vsub.f32 %v365, %v1255
      %v1257 = vand.u32 %v1256, 4294901760
      %1258 = vmatpush1.msra.mxu0 %v1257
      %1259 = vmatprep.subr.mxu0 0.0
      %v1260 = vand.u32 %v364, 4294901760
      %v1261 = vsub.f32 %v364, %v1260
      %v1262 = vand.u32 %v1261, 4294901760
      %1263 = vmatpush1.msra.mxu0 %v1262
      %1264 = vmatprep.subr.mxu0 0.0
      %v1265 = vand.u32 %v363, 4294901760
      %v1266 = vsub.f32 %v363, %v1265
      %v1267 = vand.u32 %v1266, 4294901760
      %1268 = vmatpush1.msra.mxu0 %v1267
      %1269 = vmatprep.subr.mxu0 0.0
      %v1270 = vand.u32 %v362, 4294901760
      %v1271 = vsub.f32 %v362, %v1270
      %v1272 = vand.u32 %v1271, 4294901760
      %1273 = vmatpush1.msra.mxu0 %v1272
      %1274 = vmatprep.subr.mxu0 0.0
      %v1275 = vand.u32 %v361, 4294901760
      %v1276 = vsub.f32 %v361, %v1275
      %v1277 = vand.u32 %v1276, 4294901760
      %1278 = vmatpush1.msra.mxu0 %v1277
      %1279 = vmatprep.subr.mxu0 0.0
      %v1280 = vand.u32 %v360, 4294901760
      %v1281 = vsub.f32 %v360, %v1280
      %v1282 = vand.u32 %v1281, 4294901760
      %1283 = vmatpush1.msra.mxu0 %v1282
      %1284 = vmatprep.subr.mxu0 0.0
      %v1285 = vand.u32 %v359, 4294901760
      %v1286 = vsub.f32 %v359, %v1285
      %v1287 = vand.u32 %v1286, 4294901760
      %1288 = vmatpush1.msra.mxu0 %v1287
      %1289 = vmatprep.subr.mxu0 0.0
      %v1290 = vand.u32 %v358, 4294901760
      %v1291 = vsub.f32 %v358, %v1290
      %v1292 = vand.u32 %v1291, 4294901760
      %1293 = vmatpush1.msra.mxu0 %v1292
      %1294 = vmatprep.subr.mxu0 0.0
      %v1295 = vand.u32 %v357, 4294901760
      %v1296 = vsub.f32 %v357, %v1295
      %v1297 = vand.u32 %v1296, 4294901760
      %1298 = vmatpush1.msra.mxu0 %v1297
      %1299 = vmatprep.subr.mxu0 0.0
      %v1300 = vand.u32 %v356, 4294901760
      %v1301 = vsub.f32 %v356, %v1300
      %v1302 = vand.u32 %v1301, 4294901760
      %1303 = vmatpush1.msra.mxu0 %v1302
      %1304 = vmatprep.subr.mxu0 0.0
      %1305 = vmatpush2.msra.mxu0 0.0
      %1306 = vmatprep.subr.mxu0 0.0
      %1307 = vmatpush2.msra.mxu0 0.0
      %1308 = vmatprep.subr.mxu0 0.0
      %1309 = vmatpush2.msra.mxu0 0.0
      %1310 = vmatprep.subr.mxu0 0.0
      %1311 = vmatpush2.msra.mxu0 0.0
      %1312 = vmatprep.subr.mxu0 0.0
      %1313 = vmatpush2.msra.mxu0 0.0
      %1314 = vmatprep.subr.mxu0 0.0
      %1315 = vmatpush2.msra.mxu0 0.0
      %1316 = vmatprep.subr.mxu0 0.0
      %1317 = vmatpush2.msra.mxu0 0.0
      %1318 = vmatprep.subr.mxu0 0.0
      %1319 = vmatpush2.msra.mxu0 0.0
      %1320 = vmatprep.subr.mxu0 0.0
      %v1321 = vand.u32 %v379, 4294901760
      %v1322 = vsub.f32 %v379, %v1321
      %v1323 = vand.u32 %v1322, 4294901760
      %1324 = vmatpush2.msra.mxu0 %v1323
      %1325 = vmatprep.subr.mxu0 0.0
      %v1326 = vand.u32 %v378, 4294901760
      %v1327 = vsub.f32 %v378, %v1326
      %v1328 = vand.u32 %v1327, 4294901760
      %1329 = vmatpush2.msra.mxu0 %v1328
      %1330 = vmatprep.subr.mxu0 0.0
      %v1331 = vand.u32 %v377, 4294901760
      %v1332 = vsub.f32 %v377, %v1331
      %v1333 = vand.u32 %v1332, 4294901760
      %1334 = vmatpush2.msra.mxu0 %v1333
      %1335 = vmatprep.subr.mxu0 0.0
      %v1336 = vand.u32 %v376, 4294901760
      %v1337 = vsub.f32 %v376, %v1336
      %v1338 = vand.u32 %v1337, 4294901760
      %1339 = vmatpush2.msra.mxu0 %v1338
      %1340 = vmatprep.subr.mxu0 0.0
      %v1341 = vand.u32 %v375, 4294901760
      %v1342 = vsub.f32 %v375, %v1341
      %v1343 = vand.u32 %v1342, 4294901760
      %1344 = vmatpush2.msra.mxu0 %v1343
      %1345 = vmatprep.subr.mxu0 0.0
      %v1346 = vand.u32 %v374, 4294901760
      %v1347 = vsub.f32 %v374, %v1346
      %v1348 = vand.u32 %v1347, 4294901760
      %1349 = vmatpush2.msra.mxu0 %v1348
      %1350 = vmatprep.subr.mxu0 0.0
      %v1351 = vand.u32 %v373, 4294901760
      %v1352 = vsub.f32 %v373, %v1351
      %v1353 = vand.u32 %v1352, 4294901760
      %1354 = vmatpush2.msra.mxu0 %v1353
      %1355 = vmatprep.subr.mxu0 0.0
      %v1356 = vand.u32 %v372, 4294901760
      %v1357 = vsub.f32 %v372, %v1356
      %v1358 = vand.u32 %v1357, 4294901760
      %1359 = vmatpush2.msra.mxu0 %v1358
      %v1360 = vand.u32 %v389, 4294901760
      %1361 = vmatprep.mubr.f32.mxu0 %v1360
      %v1362 = vand.u32 %v340, 4294901760
      %1363 = vmatmul.mubr.f32.gmra.mxu0 %v1362
      %v1364 = vpop.f32.mrf.mxu0
      %v1365 = vadd.f32 %v1144, %v1364
      %v1366 = vpop.f32.mrf.mxu0
      %v1367 = vand.u32 %v392, 4294901760
      %1368 = vmatprep.mubr.f32.mxu0 %v1367
      %v1369 = vand.u32 %v342, 4294901760
      %1370 = vmatmul.mubr.f32.gmra.mxu0 %v1369
      %v1371 = vpop.f32.mrf.mxu0
      %v1372 = vadd.f32 %v1155, %v1371
      %v1373 = vpop.f32.mrf.mxu0
      %v1374 = vand.u32 %v395, 4294901760
      %1375 = vmatprep.mubr.f32.mxu0 %v1374
      %v1376 = vand.u32 %v344, 4294901760
      %1377 = vmatmul.mubr.f32.gmra.mxu0 %v1376
      %v1378 = vpop.f32.mrf.mxu0
      %v1379 = vadd.f32 %v1166, %v1378
      %v1380 = vpop.f32.mrf.mxu0
      %v1381 = vand.u32 %v398, 4294901760
      %1382 = vmatprep.mubr.f32.mxu0 %v1381
      %v1383 = vand.u32 %v346, 4294901760
      %1384 = vmatmul.mubr.f32.gmra.mxu0 %v1383
      %v1385 = vpop.f32.mrf.mxu0
      %v1386 = vadd.f32 %v1177, %v1385
      %v1387 = vpop.f32.mrf.mxu0
      %v1388 = vand.u32 %v401, 4294901760
      %1389 = vmatprep.mubr.f32.mxu0 %v1388
      %v1390 = vand.u32 %v348, 4294901760
      %1391 = vmatmul.mubr.f32.gmra.mxu0 %v1390
      %v1392 = vpop.f32.mrf.mxu0
      %v1393 = vadd.f32 %v1188, %v1392
      %v1394 = vpop.f32.mrf.mxu0
      %v1395 = vand.u32 %v404, 4294901760
      %1396 = vmatprep.mubr.f32.mxu0 %v1395
      %v1397 = vand.u32 %v350, 4294901760
      %1398 = vmatmul.mubr.f32.gmra.mxu0 %v1397
      %v1399 = vpop.f32.mrf.mxu0
      %v1400 = vadd.f32 %v1199, %v1399
      %v1401 = vpop.f32.mrf.mxu0
      %v1402 = vand.u32 %v407, 4294901760
      %1403 = vmatprep.mubr.f32.mxu0 %v1402
      %v1404 = vand.u32 %v352, 4294901760
      %1405 = vmatmul.mubr.f32.gmra.mxu0 %v1404
      %v1406 = vpop.f32.mrf.mxu0
      %v1407 = vadd.f32 %v1210, %v1406
      %v1408 = vpop.f32.mrf.mxu0
      %v1409 = vand.u32 %v410, 4294901760
      %1410 = vmatprep.mubr.f32.mxu0 %v1409
      %v1411 = vand.u32 %v354, 4294901760
      %1412 = vmatmul.mubr.f32.gmra.mxu0 %v1411
      %v1413 = vpop.f32.mrf.mxu0
      %v1414 = vadd.f32 %v1221, %v1413
      %v1415 = vpop.f32.mrf.mxu0
      %1416 = vdwg.mxu0
      %1417 = vmatprep.subr.mxu0 0.0
      %v1418 = vand.u32 %v371, 4294901760
      %1419 = vmatpush1.msra.mxu0 %v1418
      %1420 = vmatprep.subr.mxu0 0.0
      %v1421 = vand.u32 %v370, 4294901760
      %1422 = vmatpush1.msra.mxu0 %v1421
      %1423 = vmatprep.subr.mxu0 0.0
      %v1424 = vand.u32 %v369, 4294901760
      %1425 = vmatpush1.msra.mxu0 %v1424
      %1426 = vmatprep.subr.mxu0 0.0
      %v1427 = vand.u32 %v368, 4294901760
      %1428 = vmatpush1.msra.mxu0 %v1427
      %1429 = vmatprep.subr.mxu0 0.0
      %v1430 = vand.u32 %v367, 4294901760
      %1431 = vmatpush1.msra.mxu0 %v1430
      %1432 = vmatprep.subr.mxu0 0.0
      %v1433 = vand.u32 %v366, 4294901760
      %1434 = vmatpush1.msra.mxu0 %v1433
      %1435 = vmatprep.subr.mxu0 0.0
      %v1436 = vand.u32 %v365, 4294901760
      %1437 = vmatpush1.msra.mxu0 %v1436
      %1438 = vmatprep.subr.mxu0 0.0
      %v1439 = vand.u32 %v364, 4294901760
      %1440 = vmatpush1.msra.mxu0 %v1439
      %1441 = vmatprep.subr.mxu0 0.0
      %v1442 = vand.u32 %v363, 4294901760
      %1443 = vmatpush1.msra.mxu0 %v1442
      %1444 = vmatprep.subr.mxu0 0.0
      %v1445 = vand.u32 %v362, 4294901760
      %1446 = vmatpush1.msra.mxu0 %v1445
      %1447 = vmatprep.subr.mxu0 0.0
      %v1448 = vand.u32 %v361, 4294901760
      %1449 = vmatpush1.msra.mxu0 %v1448
      %1450 = vmatprep.subr.mxu0 0.0
      %v1451 = vand.u32 %v360, 4294901760
      %1452 = vmatpush1.msra.mxu0 %v1451
      %1453 = vmatprep.subr.mxu0 0.0
      %v1454 = vand.u32 %v359, 4294901760
      %1455 = vmatpush1.msra.mxu0 %v1454
      %1456 = vmatprep.subr.mxu0 0.0
      %v1457 = vand.u32 %v358, 4294901760
      %1458 = vmatpush1.msra.mxu0 %v1457
      %1459 = vmatprep.subr.mxu0 0.0
      %v1460 = vand.u32 %v357, 4294901760
      %1461 = vmatpush1.msra.mxu0 %v1460
      %1462 = vmatprep.subr.mxu0 0.0
      %v1463 = vand.u32 %v356, 4294901760
      %1464 = vmatpush1.msra.mxu0 %v1463
      %1465 = vmatprep.subr.mxu0 0.0
      %1466 = vmatpush2.msra.mxu0 0.0
      %1467 = vmatprep.subr.mxu0 0.0
      %1468 = vmatpush2.msra.mxu0 0.0
      %1469 = vmatprep.subr.mxu0 0.0
      %1470 = vmatpush2.msra.mxu0 0.0
      %1471 = vmatprep.subr.mxu0 0.0
      %1472 = vmatpush2.msra.mxu0 0.0
      %1473 = vmatprep.subr.mxu0 0.0
      %1474 = vmatpush2.msra.mxu0 0.0
      %1475 = vmatprep.subr.mxu0 0.0
      %1476 = vmatpush2.msra.mxu0 0.0
      %1477 = vmatprep.subr.mxu0 0.0
      %1478 = vmatpush2.msra.mxu0 0.0
      %1479 = vmatprep.subr.mxu0 0.0
      %1480 = vmatpush2.msra.mxu0 0.0
      %1481 = vmatprep.subr.mxu0 0.0
      %v1482 = vand.u32 %v379, 4294901760
      %1483 = vmatpush2.msra.mxu0 %v1482
      %1484 = vmatprep.subr.mxu0 0.0
      %v1485 = vand.u32 %v378, 4294901760
      %1486 = vmatpush2.msra.mxu0 %v1485
      %1487 = vmatprep.subr.mxu0 0.0
      %v1488 = vand.u32 %v377, 4294901760
      %1489 = vmatpush2.msra.mxu0 %v1488
      %1490 = vmatprep.subr.mxu0 0.0
      %v1491 = vand.u32 %v376, 4294901760
      %1492 = vmatpush2.msra.mxu0 %v1491
      %1493 = vmatprep.subr.mxu0 0.0
      %v1494 = vand.u32 %v375, 4294901760
      %1495 = vmatpush2.msra.mxu0 %v1494
      %1496 = vmatprep.subr.mxu0 0.0
      %v1497 = vand.u32 %v374, 4294901760
      %1498 = vmatpush2.msra.mxu0 %v1497
      %1499 = vmatprep.subr.mxu0 0.0
      %v1500 = vand.u32 %v373, 4294901760
      %1501 = vmatpush2.msra.mxu0 %v1500
      %1502 = vmatprep.subr.mxu0 0.0
      %v1503 = vand.u32 %v372, 4294901760
      %1504 = vmatpush2.msra.mxu0 %v1503
      %v1505 = vand.u32 %v389, 4294901760
      %1506 = vmatprep.mubr.f32.mxu0 %v1505
      %v1507 = vand.u32 %v340, 4294901760
      %1508 = vmatmul.mubr.f32.gmra.mxu0 %v1507
      %v1509 = vpop.f32.mrf.mxu0
      %v1510 = vadd.f32 %v1365, %v1509
      %v1511 = vpop.f32.mrf.mxu0
      %v1512 = vand.u32 %v392, 4294901760
      %1513 = vmatprep.mubr.f32.mxu0 %v1512
      %v1514 = vand.u32 %v342, 4294901760
      %1515 = vmatmul.mubr.f32.gmra.mxu0 %v1514
      %v1516 = vpop.f32.mrf.mxu0
      %v1517 = vadd.f32 %v1372, %v1516
      %v1518 = vpop.f32.mrf.mxu0
      %v1519 = vand.u32 %v395, 4294901760
      %1520 = vmatprep.mubr.f32.mxu0 %v1519
      %v1521 = vand.u32 %v344, 4294901760
      %1522 = vmatmul.mubr.f32.gmra.mxu0 %v1521
      %v1523 = vpop.f32.mrf.mxu0
      %v1524 = vadd.f32 %v1379, %v1523
      %v1525 = vpop.f32.mrf.mxu0
      %v1526 = vand.u32 %v398, 4294901760
      %1527 = vmatprep.mubr.f32.mxu0 %v1526
      %v1528 = vand.u32 %v346, 4294901760
      %1529 = vmatmul.mubr.f32.gmra.mxu0 %v1528
      %v1530 = vpop.f32.mrf.mxu0
      %v1531 = vadd.f32 %v1386, %v1530
      %v1532 = vpop.f32.mrf.mxu0
      %v1533 = vand.u32 %v401, 4294901760
      %1534 = vmatprep.mubr.f32.mxu0 %v1533
      %v1535 = vand.u32 %v348, 4294901760
      %1536 = vmatmul.mubr.f32.gmra.mxu0 %v1535
      %v1537 = vpop.f32.mrf.mxu0
      %v1538 = vadd.f32 %v1393, %v1537
      %v1539 = vpop.f32.mrf.mxu0
      %v1540 = vand.u32 %v404, 4294901760
      %1541 = vmatprep.mubr.f32.mxu0 %v1540
      %v1542 = vand.u32 %v350, 4294901760
      %1543 = vmatmul.mubr.f32.gmra.mxu0 %v1542
      %v1544 = vpop.f32.mrf.mxu0
      %v1545 = vadd.f32 %v1400, %v1544
      %v1546 = vpop.f32.mrf.mxu0
      %v1547 = vand.u32 %v407, 4294901760
      %1548 = vmatprep.mubr.f32.mxu0 %v1547
      %v1549 = vand.u32 %v352, 4294901760
      %1550 = vmatmul.mubr.f32.gmra.mxu0 %v1549
      %v1551 = vpop.f32.mrf.mxu0
      %v1552 = vadd.f32 %v1407, %v1551
      %v1553 = vpop.f32.mrf.mxu0
      %v1554 = vand.u32 %v410, 4294901760
      %1555 = vmatprep.mubr.f32.mxu0 %v1554
      %v1556 = vand.u32 %v354, 4294901760
      %1557 = vmatmul.mubr.f32.gmra.mxu0 %v1556
      %v1558 = vpop.f32.mrf.mxu0
      %v1559 = vadd.f32 %v1414, %v1558
      %v1560 = vpop.f32.mrf.mxu0
      %1561 = vdwg.mxu0
      %v1562 = vld [vmem:[%s4] sm:$0xf]
      %v1563 = vld [vmem:[%s5] sm:$0xf]
      %s1564 = scalar_lea.vmem [#allocation2], 192
      %1565 = vst.msk [vmem:[%s1564 + $0x8] sm:$0xff] %vm250, %v1510
      %1566 = vst.msk [vmem:[%s1564 + $0x20] sm:$0xff] %vm250, %v1517
      %1567 = vst.msk [vmem:[%s1564 + $0x38] sm:$0xff] %vm250, %v1524
      %1568 = vst.msk [vmem:[%s1564 + $0x50] sm:$0xff] %vm250, %v1531
      %1569 = vst.msk [vmem:[%s1564 + $0x68] sm:$0xff] %vm250, %v1538
      %1570 = vst.msk [vmem:[%s1564 + $0x80] sm:$0xff] %vm250, %v1545
      %1571 = vst.msk [vmem:[%s1564 + $0x98] sm:$0xff] %vm250, %v1552
      %1572 = vst.msk [vmem:[%s1564 + $0xb0] sm:$0xff] %vm250, %v1559
      %s1573 = scalar_lea.vmem [#allocation2], 168
      %v1574 = vld [vmem:[%s1573 + $0x7] sm:$0xff]
      %v1575 = vld [vmem:[%s1573 + $0x1f] sm:$0xff]
      %v1576 = vld [vmem:[%s1573 + $0x37] sm:$0xff]
      %v1577 = vld [vmem:[%s1573 + $0x4f] sm:$0xff]
      %v1578 = vld [vmem:[%s1573 + $0x67] sm:$0xff]
      %v1579 = vld [vmem:[%s1573 + $0x7f] sm:$0xff]
      %v1580 = vld [vmem:[%s1573 + $0x97] sm:$0xff]
      %v1581 = vld [vmem:[%s1573 + $0xaf] sm:$0xff]
      %1582 = vst.msk [vmem:[#allocation3] sm:$0xff] %vm250, %v1574
      %1583 = vst.msk [vmem:[#allocation3 + $0x10] sm:$0xff] %vm250, %v1575
      %1584 = vst.msk [vmem:[#allocation3 + $0x20] sm:$0xff] %vm250, %v1576
      %1585 = vst.msk [vmem:[#allocation3 + $0x30] sm:$0xff] %vm250, %v1577
      %1586 = vst.msk [vmem:[#allocation3 + $0x40] sm:$0xff] %vm250, %v1578
      %1587 = vst.msk [vmem:[#allocation3 + $0x50] sm:$0xff] %vm250, %v1579
      %1588 = vst.msk [vmem:[#allocation3 + $0x60] sm:$0xff] %vm250, %v1580
      %1589 = vst.msk [vmem:[#allocation3 + $0x70] sm:$0xff] %vm250, %v1581
      %v1590 = vld [vmem:[%s1573 + $0x8] sm:$0xff]
      %v1591 = vld [vmem:[%s1573 + $0x20] sm:$0xff]
      %v1592 = vld [vmem:[%s1573 + $0x38] sm:$0xff]
      %v1593 = vld [vmem:[%s1573 + $0x50] sm:$0xff]
      %v1594 = vld [vmem:[%s1573 + $0x68] sm:$0xff]
      %v1595 = vld [vmem:[%s1573 + $0x80] sm:$0xff]
      %v1596 = vld [vmem:[%s1573 + $0x98] sm:$0xff]
      %v1597 = vld [vmem:[%s1573 + $0xb0] sm:$0xff]
      %1606 = vrot.lane.b32.xlu0 %v1590, 8
      %v1607 = vpop.permute.xlu0 %1606
      %1608 = vrot.lane.b32.xlu0 %v1591, 8
      %v1609 = vpop.permute.xlu0 %1608
      %1610 = vrot.lane.b32.xlu0 %v1592, 8
      %v1611 = vpop.permute.xlu0 %1610
      %1612 = vrot.lane.b32.xlu0 %v1593, 8
      %v1613 = vpop.permute.xlu0 %1612
      %1614 = vrot.lane.b32.xlu0 %v1594, 8
      %v1615 = vpop.permute.xlu0 %1614
      %1616 = vrot.lane.b32.xlu0 %v1595, 8
      %v1617 = vpop.permute.xlu0 %1616
      %1618 = vrot.lane.b32.xlu0 %v1596, 8
      %v1619 = vpop.permute.xlu0 %1618
      %1620 = vrot.lane.b32.xlu0 %v1597, 8
      %v1621 = vpop.permute.xlu0 %1620
      %vm1630 = vcmask 130112
      %1631 = vst.msk [vmem:[#allocation3] sm:$0xff] %vm1630, %v1607
      %1632 = vst.msk [vmem:[#allocation3 + $0x10] sm:$0xff] %vm1630, %v1609
      %1633 = vst.msk [vmem:[#allocation3 + $0x20] sm:$0xff] %vm1630, %v1611
      %1634 = vst.msk [vmem:[#allocation3 + $0x30] sm:$0xff] %vm1630, %v1613
      %1635 = vst.msk [vmem:[#allocation3 + $0x40] sm:$0xff] %vm1630, %v1615
      %1636 = vst.msk [vmem:[#allocation3 + $0x50] sm:$0xff] %vm1630, %v1617
      %1637 = vst.msk [vmem:[#allocation3 + $0x60] sm:$0xff] %vm1630, %v1619
      %1638 = vst.msk [vmem:[#allocation3 + $0x70] sm:$0xff] %vm1630, %v1621
      %v1639 = vld [vmem:[%s1573 + $0x9] sm:$0xff]
      %v1640 = vld [vmem:[%s1573 + $0x21] sm:$0xff]
      %v1641 = vld [vmem:[%s1573 + $0x39] sm:$0xff]
      %v1642 = vld [vmem:[%s1573 + $0x51] sm:$0xff]
      %v1643 = vld [vmem:[%s1573 + $0x69] sm:$0xff]
      %v1644 = vld [vmem:[%s1573 + $0x81] sm:$0xff]
      %v1645 = vld [vmem:[%s1573 + $0x99] sm:$0xff]
      %v1646 = vld [vmem:[%s1573 + $0xb1] sm:$0xff]
      %1655 = vrot.lane.b32.xlu0 %v1639, 16
      %v1656 = vpop.permute.xlu0 %1655
      %1657 = vrot.lane.b32.xlu0 %v1640, 16
      %v1658 = vpop.permute.xlu0 %1657
      %1659 = vrot.lane.b32.xlu0 %v1641, 16
      %v1660 = vpop.permute.xlu0 %1659
      %1661 = vrot.lane.b32.xlu0 %v1642, 16
      %v1662 = vpop.permute.xlu0 %1661
      %1663 = vrot.lane.b32.xlu0 %v1643, 16
      %v1664 = vpop.permute.xlu0 %1663
      %1665 = vrot.lane.b32.xlu0 %v1644, 16
      %v1666 = vpop.permute.xlu0 %1665
      %1667 = vrot.lane.b32.xlu0 %v1645, 16
      %v1668 = vpop.permute.xlu0 %1667
      %1669 = vrot.lane.b32.xlu0 %v1646, 16
      %v1670 = vpop.permute.xlu0 %1669
      %vm1679 = vcmask 195712
      %1680 = vst.msk [vmem:[#allocation3] sm:$0xff] %vm1679, %v1656
      %1681 = vst.msk [vmem:[#allocation3 + $0x10] sm:$0xff] %vm1679, %v1658
      %1682 = vst.msk [vmem:[#allocation3 + $0x20] sm:$0xff] %vm1679, %v1660
      %1683 = vst.msk [vmem:[#allocation3 + $0x30] sm:$0xff] %vm1679, %v1662
      %1684 = vst.msk [vmem:[#allocation3 + $0x40] sm:$0xff] %vm1679, %v1664
      %1685 = vst.msk [vmem:[#allocation3 + $0x50] sm:$0xff] %vm1679, %v1666
      %1686 = vst.msk [vmem:[#allocation3 + $0x60] sm:$0xff] %vm1679, %v1668
      %1687 = vst.msk [vmem:[#allocation3 + $0x70] sm:$0xff] %vm1679, %v1670
      %v1688 = vld [vmem:[%s1564 + $0x7] sm:$0xff]
      %v1689 = vld [vmem:[%s1564 + $0x1f] sm:$0xff]
      %v1690 = vld [vmem:[%s1564 + $0x37] sm:$0xff]
      %v1691 = vld [vmem:[%s1564 + $0x4f] sm:$0xff]
      %v1692 = vld [vmem:[%s1564 + $0x67] sm:$0xff]
      %v1693 = vld [vmem:[%s1564 + $0x7f] sm:$0xff]
      %v1694 = vld [vmem:[%s1564 + $0x97] sm:$0xff]
      %v1695 = vld [vmem:[%s1564 + $0xaf] sm:$0xff]
      %1704 = vrot.lane.b32.xlu0 %v1688, 24
      %v1705 = vpop.permute.xlu0 %1704
      %1706 = vrot.lane.b32.xlu0 %v1689, 24
      %v1707 = vpop.permute.xlu0 %1706
      %1708 = vrot.lane.b32.xlu0 %v1690, 24
      %v1709 = vpop.permute.xlu0 %1708
      %1710 = vrot.lane.b32.xlu0 %v1691, 24
      %v1711 = vpop.permute.xlu0 %1710
      %1712 = vrot.lane.b32.xlu0 %v1692, 24
      %v1713 = vpop.permute.xlu0 %1712
      %1714 = vrot.lane.b32.xlu0 %v1693, 24
      %v1715 = vpop.permute.xlu0 %1714
      %1716 = vrot.lane.b32.xlu0 %v1694, 24
      %v1717 = vpop.permute.xlu0 %1716
      %1718 = vrot.lane.b32.xlu0 %v1695, 24
      %v1719 = vpop.permute.xlu0 %1718
      %vm1728 = vcmask 261312
      %1729 = vst.msk [vmem:[#allocation3] sm:$0xff] %vm1728, %v1705
      %1730 = vst.msk [vmem:[#allocation3 + $0x10] sm:$0xff] %vm1728, %v1707
      %1731 = vst.msk [vmem:[#allocation3 + $0x20] sm:$0xff] %vm1728, %v1709
      %1732 = vst.msk [vmem:[#allocation3 + $0x30] sm:$0xff] %vm1728, %v1711
      %1733 = vst.msk [vmem:[#allocation3 + $0x40] sm:$0xff] %vm1728, %v1713
      %1734 = vst.msk [vmem:[#allocation3 + $0x50] sm:$0xff] %vm1728, %v1715
      %1735 = vst.msk [vmem:[#allocation3 + $0x60] sm:$0xff] %vm1728, %v1717
      %1736 = vst.msk [vmem:[#allocation3 + $0x70] sm:$0xff] %vm1728, %v1719
      %v1737 = vld [vmem:[%s1564 + $0x8] sm:$0xff]
      %v1738 = vld [vmem:[%s1564 + $0x20] sm:$0xff]
      %v1739 = vld [vmem:[%s1564 + $0x38] sm:$0xff]
      %v1740 = vld [vmem:[%s1564 + $0x50] sm:$0xff]
      %v1741 = vld [vmem:[%s1564 + $0x68] sm:$0xff]
      %v1742 = vld [vmem:[%s1564 + $0x80] sm:$0xff]
      %v1743 = vld [vmem:[%s1564 + $0x98] sm:$0xff]
      %v1744 = vld [vmem:[%s1564 + $0xb0] sm:$0xff]
      %1753 = vrot.lane.b32.xlu0 %v1737, 32
      %v1754 = vpop.permute.xlu0 %1753
      %1755 = vrot.lane.b32.xlu0 %v1738, 32
      %v1756 = vpop.permute.xlu0 %1755
      %1757 = vrot.lane.b32.xlu0 %v1739, 32
      %v1758 = vpop.permute.xlu0 %1757
      %1759 = vrot.lane.b32.xlu0 %v1740, 32
      %v1760 = vpop.permute.xlu0 %1759
      %1761 = vrot.lane.b32.xlu0 %v1741, 32
      %v1762 = vpop.permute.xlu0 %1761
      %1763 = vrot.lane.b32.xlu0 %v1742, 32
      %v1764 = vpop.permute.xlu0 %1763
      %1765 = vrot.lane.b32.xlu0 %v1743, 32
      %v1766 = vpop.permute.xlu0 %1765
      %1767 = vrot.lane.b32.xlu0 %v1744, 32
      %v1768 = vpop.permute.xlu0 %1767
      %vm1777 = vcmask 326912
      %1778 = vst.msk [vmem:[#allocation3] sm:$0xff] %vm1777, %v1754
      %1779 = vst.msk [vmem:[#allocation3 + $0x10] sm:$0xff] %vm1777, %v1756
      %1780 = vst.msk [vmem:[#allocation3 + $0x20] sm:$0xff] %vm1777, %v1758
      %1781 = vst.msk [vmem:[#allocation3 + $0x30] sm:$0xff] %vm1777, %v1760
      %1782 = vst.msk [vmem:[#allocation3 + $0x40] sm:$0xff] %vm1777, %v1762
      %1783 = vst.msk [vmem:[#allocation3 + $0x50] sm:$0xff] %vm1777, %v1764
      %1784 = vst.msk [vmem:[#allocation3 + $0x60] sm:$0xff] %vm1777, %v1766
      %1785 = vst.msk [vmem:[#allocation3 + $0x70] sm:$0xff] %vm1777, %v1768
      %v1786 = vld [vmem:[%s1564 + $0x9] sm:$0xff]
      %v1787 = vld [vmem:[%s1564 + $0x21] sm:$0xff]
      %v1788 = vld [vmem:[%s1564 + $0x39] sm:$0xff]
      %v1789 = vld [vmem:[%s1564 + $0x51] sm:$0xff]
      %v1790 = vld [vmem:[%s1564 + $0x69] sm:$0xff]
      %v1791 = vld [vmem:[%s1564 + $0x81] sm:$0xff]
      %v1792 = vld [vmem:[%s1564 + $0x99] sm:$0xff]
      %v1793 = vld [vmem:[%s1564 + $0xb1] sm:$0xff]
      %1802 = vrot.lane.b32.xlu0 %v1786, 40
      %v1803 = vpop.permute.xlu0 %1802
      %1804 = vrot.lane.b32.xlu0 %v1787, 40
      %v1805 = vpop.permute.xlu0 %1804
      %1806 = vrot.lane.b32.xlu0 %v1788, 40
      %v1807 = vpop.permute.xlu0 %1806
      %1808 = vrot.lane.b32.xlu0 %v1789, 40
      %v1809 = vpop.permute.xlu0 %1808
      %1810 = vrot.lane.b32.xlu0 %v1790, 40
      %v1811 = vpop.permute.xlu0 %1810
      %1812 = vrot.lane.b32.xlu0 %v1791, 40
      %v1813 = vpop.permute.xlu0 %1812
      %1814 = vrot.lane.b32.xlu0 %v1792, 40
      %v1815 = vpop.permute.xlu0 %1814
      %1816 = vrot.lane.b32.xlu0 %v1793, 40
      %v1817 = vpop.permute.xlu0 %1816
      %vm1826 = vcmask 392512
      %1827 = vst.msk [vmem:[#allocation3] sm:$0xff] %vm1826, %v1803
      %1828 = vst.msk [vmem:[#allocation3 + $0x10] sm:$0xff] %vm1826, %v1805
      %1829 = vst.msk [vmem:[#allocation3 + $0x20] sm:$0xff] %vm1826, %v1807
      %1830 = vst.msk [vmem:[#allocation3 + $0x30] sm:$0xff] %vm1826, %v1809
      %1831 = vst.msk [vmem:[#allocation3 + $0x40] sm:$0xff] %vm1826, %v1811
      %1832 = vst.msk [vmem:[#allocation3 + $0x50] sm:$0xff] %vm1826, %v1813
      %1833 = vst.msk [vmem:[#allocation3 + $0x60] sm:$0xff] %vm1826, %v1815
      %1834 = vst.msk [vmem:[#allocation3 + $0x70] sm:$0xff] %vm1826, %v1817
      %s1835 = scalar_lea.vmem [#allocation2], 216
      %v1836 = vld [vmem:[%s1835 + $0x7] sm:$0xff]
      %v1837 = vld [vmem:[%s1835 + $0x1f] sm:$0xff]
      %v1838 = vld [vmem:[%s1835 + $0x37] sm:$0xff]
      %v1839 = vld [vmem:[%s1835 + $0x4f] sm:$0xff]
      %v1840 = vld [vmem:[%s1835 + $0x67] sm:$0xff]
      %v1841 = vld [vmem:[%s1835 + $0x7f] sm:$0xff]
      %v1842 = vld [vmem:[%s1835 + $0x97] sm:$0xff]
      %v1843 = vld [vmem:[%s1835 + $0xaf] sm:$0xff]
      %1852 = vrot.lane.b32.xlu0 %v1836, 48
      %v1853 = vpop.permute.xlu0 %1852
      %1854 = vrot.lane.b32.xlu0 %v1837, 48
      %v1855 = vpop.permute.xlu0 %1854
      %1856 = vrot.lane.b32.xlu0 %v1838, 48
      %v1857 = vpop.permute.xlu0 %1856
      %1858 = vrot.lane.b32.xlu0 %v1839, 48
      %v1859 = vpop.permute.xlu0 %1858
      %1860 = vrot.lane.b32.xlu0 %v1840, 48
      %v1861 = vpop.permute.xlu0 %1860
      %1862 = vrot.lane.b32.xlu0 %v1841, 48
      %v1863 = vpop.permute.xlu0 %1862
      %1864 = vrot.lane.b32.xlu0 %v1842, 48
      %v1865 = vpop.permute.xlu0 %1864
      %1866 = vrot.lane.b32.xlu0 %v1843, 48
      %v1867 = vpop.permute.xlu0 %1866
      %vm1876 = vcmask 458112
      %1877 = vst.msk [vmem:[#allocation3] sm:$0xff] %vm1876, %v1853
      %1878 = vst.msk [vmem:[#allocation3 + $0x10] sm:$0xff] %vm1876, %v1855
      %1879 = vst.msk [vmem:[#allocation3 + $0x20] sm:$0xff] %vm1876, %v1857
      %1880 = vst.msk [vmem:[#allocation3 + $0x30] sm:$0xff] %vm1876, %v1859
      %1881 = vst.msk [vmem:[#allocation3 + $0x40] sm:$0xff] %vm1876, %v1861
      %1882 = vst.msk [vmem:[#allocation3 + $0x50] sm:$0xff] %vm1876, %v1863
      %1883 = vst.msk [vmem:[#allocation3 + $0x60] sm:$0xff] %vm1876, %v1865
      %1884 = vst.msk [vmem:[#allocation3 + $0x70] sm:$0xff] %vm1876, %v1867
      %v1885 = vld [vmem:[%s1835 + $0x8] sm:$0xff]
      %v1886 = vld [vmem:[%s1835 + $0x20] sm:$0xff]
      %v1887 = vld [vmem:[%s1835 + $0x38] sm:$0xff]
      %v1888 = vld [vmem:[%s1835 + $0x50] sm:$0xff]
      %v1889 = vld [vmem:[%s1835 + $0x68] sm:$0xff]
      %v1890 = vld [vmem:[%s1835 + $0x80] sm:$0xff]
      %v1891 = vld [vmem:[%s1835 + $0x98] sm:$0xff]
      %v1892 = vld [vmem:[%s1835 + $0xb0] sm:$0xff]
      %1901 = vrot.lane.b32.xlu0 %v1885, 56
      %v1902 = vpop.permute.xlu0 %1901
      %1903 = vrot.lane.b32.xlu0 %v1886, 56
      %v1904 = vpop.permute.xlu0 %1903
      %1905 = vrot.lane.b32.xlu0 %v1887, 56
      %v1906 = vpop.permute.xlu0 %1905
      %1907 = vrot.lane.b32.xlu0 %v1888, 56
      %v1908 = vpop.permute.xlu0 %1907
      %1909 = vrot.lane.b32.xlu0 %v1889, 56
      %v1910 = vpop.permute.xlu0 %1909
      %1911 = vrot.lane.b32.xlu0 %v1890, 56
      %v1912 = vpop.permute.xlu0 %1911
      %1913 = vrot.lane.b32.xlu0 %v1891, 56
      %v1914 = vpop.permute.xlu0 %1913
      %1915 = vrot.lane.b32.xlu0 %v1892, 56
      %v1916 = vpop.permute.xlu0 %1915
      %vm1925 = vcmask 523712
      %1926 = vst.msk [vmem:[#allocation3] sm:$0xff] %vm1925, %v1902
      %1927 = vst.msk [vmem:[#allocation3 + $0x10] sm:$0xff] %vm1925, %v1904
      %1928 = vst.msk [vmem:[#allocation3 + $0x20] sm:$0xff] %vm1925, %v1906
      %1929 = vst.msk [vmem:[#allocation3 + $0x30] sm:$0xff] %vm1925, %v1908
      %1930 = vst.msk [vmem:[#allocation3 + $0x40] sm:$0xff] %vm1925, %v1910
      %1931 = vst.msk [vmem:[#allocation3 + $0x50] sm:$0xff] %vm1925, %v1912
      %1932 = vst.msk [vmem:[#allocation3 + $0x60] sm:$0xff] %vm1925, %v1914
      %1933 = vst.msk [vmem:[#allocation3 + $0x70] sm:$0xff] %vm1925, %v1916
      %v1934 = vld [vmem:[%s1835 + $0x9] sm:$0xff]
      %v1935 = vld [vmem:[%s1835 + $0x21] sm:$0xff]
      %v1936 = vld [vmem:[%s1835 + $0x39] sm:$0xff]
      %v1937 = vld [vmem:[%s1835 + $0x51] sm:$0xff]
      %v1938 = vld [vmem:[%s1835 + $0x69] sm:$0xff]
      %v1939 = vld [vmem:[%s1835 + $0x81] sm:$0xff]
      %v1940 = vld [vmem:[%s1835 + $0x99] sm:$0xff]
      %v1941 = vld [vmem:[%s1835 + $0xb1] sm:$0xff]
      %1950 = vrot.lane.b32.xlu0 %v1934, 64
      %v1951 = vpop.permute.xlu0 %1950
      %1952 = vrot.lane.b32.xlu0 %v1935, 64
      %v1953 = vpop.permute.xlu0 %1952
      %1954 = vrot.lane.b32.xlu0 %v1936, 64
      %v1955 = vpop.permute.xlu0 %1954
      %1956 = vrot.lane.b32.xlu0 %v1937, 64
      %v1957 = vpop.permute.xlu0 %1956
      %1958 = vrot.lane.b32.xlu0 %v1938, 64
      %v1959 = vpop.permute.xlu0 %1958
      %1960 = vrot.lane.b32.xlu0 %v1939, 64
      %v1961 = vpop.permute.xlu0 %1960
      %1962 = vrot.lane.b32.xlu0 %v1940, 64
      %v1963 = vpop.permute.xlu0 %1962
      %1964 = vrot.lane.b32.xlu0 %v1941, 64
      %v1965 = vpop.permute.xlu0 %1964
      %vm1974 = vcmask 589312
      %1975 = vst.msk [vmem:[#allocation3] sm:$0xff] %vm1974, %v1951
      %1976 = vst.msk [vmem:[#allocation3 + $0x10] sm:$0xff] %vm1974, %v1953
      %1977 = vst.msk [vmem:[#allocation3 + $0x20] sm:$0xff] %vm1974, %v1955
      %1978 = vst.msk [vmem:[#allocation3 + $0x30] sm:$0xff] %vm1974, %v1957
      %1979 = vst.msk [vmem:[#allocation3 + $0x40] sm:$0xff] %vm1974, %v1959
      %1980 = vst.msk [vmem:[#allocation3 + $0x50] sm:$0xff] %vm1974, %v1961
      %1981 = vst.msk [vmem:[#allocation3 + $0x60] sm:$0xff] %vm1974, %v1963
      %1982 = vst.msk [vmem:[#allocation3 + $0x70] sm:$0xff] %vm1974, %v1965
      %v1983 = vld [vmem:[#allocation3] sm:$0xff]
      %v1984 = vld [vmem:[#allocation3 + $0x8] sm:$0xff]
      %v1985 = vld [vmem:[#allocation3 + $0x10] sm:$0xff]
      %v1986 = vld [vmem:[#allocation3 + $0x18] sm:$0xff]
      %v1987 = vld [vmem:[#allocation3 + $0x20] sm:$0xff]
      %v1988 = vld [vmem:[#allocation3 + $0x28] sm:$0xff]
      %v1989 = vld [vmem:[#allocation3 + $0x30] sm:$0xff]
      %v1990 = vld [vmem:[#allocation3 + $0x38] sm:$0xff]
      %v1991 = vld [vmem:[#allocation3 + $0x40] sm:$0xff]
      %v1992 = vld [vmem:[#allocation3 + $0x48] sm:$0xff]
      %v1993 = vld [vmem:[#allocation3 + $0x50] sm:$0xff]
      %v1994 = vld [vmem:[#allocation3 + $0x58] sm:$0xff]
      %v1995 = vld [vmem:[#allocation3 + $0x60] sm:$0xff]
      %v1996 = vld [vmem:[#allocation3 + $0x68] sm:$0xff]
      %v1997 = vld [vmem:[#allocation3 + $0x70] sm:$0xff]
      %v1998 = vld [vmem:[#allocation3 + $0x78] sm:$0xff]
      %v1999 = vld [vmem:[%s3] sm:$0xff]
      %v2000 = vld [vmem:[%s3 + $0x8] sm:$0xff]
      %v2001 = vld [vmem:[%s3 + $0x10] sm:$0xff]
      %v2002 = vld [vmem:[%s3 + $0x18] sm:$0xff]
      %v2003 = vld [vmem:[%s3 + $0x20] sm:$0xff]
      %v2004 = vld [vmem:[%s3 + $0x28] sm:$0xff]
      %v2005 = vld [vmem:[%s3 + $0x30] sm:$0xff]
      %v2006 = vld [vmem:[%s3 + $0x38] sm:$0xff]
      %v2007 = vld [vmem:[%s3 + $0x40] sm:$0xff]
      %v2008 = vld [vmem:[%s3 + $0x48] sm:$0xff]
      %v2009 = vld [vmem:[%s3 + $0x50] sm:$0xff]
      %v2010 = vld [vmem:[%s3 + $0x58] sm:$0xff]
      %v2011 = vld [vmem:[%s3 + $0x60] sm:$0xff]
      %v2012 = vld [vmem:[%s3 + $0x68] sm:$0xff]
      %v2013 = vld [vmem:[%s3 + $0x70] sm:$0xff]
      %v2014 = vld [vmem:[%s3 + $0x78] sm:$0xff]
      %v2015 = vld [vmem:[%s3 + $0x80] sm:$0xff]
      %v2016 = vld [vmem:[%s3 + $0x88] sm:$0xff]
      %v2017 = vld [vmem:[%s3 + $0x90] sm:$0xff]
      %v2018 = vld [vmem:[%s3 + $0x98] sm:$0xff]
      %v2019 = vld [vmem:[%s3 + $0xa0] sm:$0xff]
      %v2020 = vld [vmem:[%s3 + $0xa8] sm:$0xff]
      %v2021 = vld [vmem:[%s3 + $0xb0] sm:$0xff]
      %v2022 = vld [vmem:[%s3 + $0xb8] sm:$0xff]
      %v2023 = vld [vmem:[%s3 + $0xc0] sm:$0xff]
      %v2025 = vsel %vm324, %v1984, 0
      %v2028 = vsel %vm324, %v1986, 0
      %v2031 = vsel %vm324, %v1988, 0
      %v2034 = vsel %vm324, %v1990, 0
      %v2037 = vsel %vm324, %v1992, 0
      %v2040 = vsel %vm324, %v1994, 0
      %v2043 = vsel %vm324, %v1996, 0
      %v2046 = vsel %vm324, %v1998, 0
      %2048 = vmatprep.subr.mxu0 0.0
      %v2049 = vand.u32 %v2014, 4294901760
      %2050 = vmatpush1.msra.mxu0 %v2049
      %2051 = vmatprep.subr.mxu0 0.0
      %v2052 = vand.u32 %v2013, 4294901760
      %2053 = vmatpush1.msra.mxu0 %v2052
      %2054 = vmatprep.subr.mxu0 0.0
      %v2055 = vand.u32 %v2012, 4294901760
      %2056 = vmatpush1.msra.mxu0 %v2055
      %2057 = vmatprep.subr.mxu0 0.0
      %v2058 = vand.u32 %v2011, 4294901760
      %2059 = vmatpush1.msra.mxu0 %v2058
      %2060 = vmatprep.subr.mxu0 0.0
      %v2061 = vand.u32 %v2010, 4294901760
      %2062 = vmatpush1.msra.mxu0 %v2061
      %2063 = vmatprep.subr.mxu0 0.0
      %v2064 = vand.u32 %v2009, 4294901760
      %2065 = vmatpush1.msra.mxu0 %v2064
      %2066 = vmatprep.subr.mxu0 0.0
      %v2067 = vand.u32 %v2008, 4294901760
      %2068 = vmatpush1.msra.mxu0 %v2067
      %2069 = vmatprep.subr.mxu0 0.0
      %v2070 = vand.u32 %v2007, 4294901760
      %2071 = vmatpush1.msra.mxu0 %v2070
      %2072 = vmatprep.subr.mxu0 0.0
      %v2073 = vand.u32 %v2006, 4294901760
      %2074 = vmatpush1.msra.mxu0 %v2073
      %2075 = vmatprep.subr.mxu0 0.0
      %v2076 = vand.u32 %v2005, 4294901760
      %2077 = vmatpush1.msra.mxu0 %v2076
      %2078 = vmatprep.subr.mxu0 0.0
      %v2079 = vand.u32 %v2004, 4294901760
      %2080 = vmatpush1.msra.mxu0 %v2079
      %2081 = vmatprep.subr.mxu0 0.0
      %v2082 = vand.u32 %v2003, 4294901760
      %2083 = vmatpush1.msra.mxu0 %v2082
      %2084 = vmatprep.subr.mxu0 0.0
      %v2085 = vand.u32 %v2002, 4294901760
      %2086 = vmatpush1.msra.mxu0 %v2085
      %2087 = vmatprep.subr.mxu0 0.0
      %v2088 = vand.u32 %v2001, 4294901760
      %2089 = vmatpush1.msra.mxu0 %v2088
      %2090 = vmatprep.subr.mxu0 0.0
      %v2091 = vand.u32 %v2000, 4294901760
      %2092 = vmatpush1.msra.mxu0 %v2091
      %2093 = vmatprep.subr.mxu0 0.0
      %v2094 = vand.u32 %v1999, 4294901760
      %2095 = vmatpush1.msra.mxu0 %v2094
      %2096 = vmatprep.subr.mxu0 0.0
      %2097 = vmatpush2.msra.mxu0 0.0
      %2098 = vmatprep.subr.mxu0 0.0
      %2099 = vmatpush2.msra.mxu0 0.0
      %2100 = vmatprep.subr.mxu0 0.0
      %2101 = vmatpush2.msra.mxu0 0.0
      %2102 = vmatprep.subr.mxu0 0.0
      %2103 = vmatpush2.msra.mxu0 0.0
      %2104 = vmatprep.subr.mxu0 0.0
      %2105 = vmatpush2.msra.mxu0 0.0
      %2106 = vmatprep.subr.mxu0 0.0
      %2107 = vmatpush2.msra.mxu0 0.0
      %2108 = vmatprep.subr.mxu0 0.0
      %2109 = vmatpush2.msra.mxu0 0.0
      %2110 = vmatprep.subr.mxu0 0.0
      %v2111 = vand.u32 %v2023, 4294901760
      %2112 = vmatpush2.msra.mxu0 %v2111
      %2113 = vmatprep.subr.mxu0 0.0
      %v2114 = vand.u32 %v2022, 4294901760
      %2115 = vmatpush2.msra.mxu0 %v2114
      %2116 = vmatprep.subr.mxu0 0.0
      %v2117 = vand.u32 %v2021, 4294901760
      %2118 = vmatpush2.msra.mxu0 %v2117
      %2119 = vmatprep.subr.mxu0 0.0
      %v2120 = vand.u32 %v2020, 4294901760
      %2121 = vmatpush2.msra.mxu0 %v2120
      %2122 = vmatprep.subr.mxu0 0.0
      %v2123 = vand.u32 %v2019, 4294901760
      %2124 = vmatpush2.msra.mxu0 %v2123
      %2125 = vmatprep.subr.mxu0 0.0
      %v2126 = vand.u32 %v2018, 4294901760
      %2127 = vmatpush2.msra.mxu0 %v2126
      %2128 = vmatprep.subr.mxu0 0.0
      %v2129 = vand.u32 %v2017, 4294901760
      %2130 = vmatpush2.msra.mxu0 %v2129
      %2131 = vmatprep.subr.mxu0 0.0
      %v2132 = vand.u32 %v2016, 4294901760
      %2133 = vmatpush2.msra.mxu0 %v2132
      %2134 = vmatprep.subr.mxu0 0.0
      %v2135 = vand.u32 %v2015, 4294901760
      %2136 = vmatpush2.msra.mxu0 %v2135
      %v2137 = vand.u32 %v2025, 4294901760
      %v2138 = vsub.f32 %v2025, %v2137
      %v2139 = vand.u32 %v2138, 4294901760
      %v2140 = vsub.f32 %v2138, %v2139
      %v2141 = vand.u32 %v2140, 4294901760
      %2142 = vmatprep.mubr.f32.mxu0 %v2141
      %v2143 = vand.u32 %v1983, 4294901760
      %v2144 = vsub.f32 %v1983, %v2143
      %v2145 = vand.u32 %v2144, 4294901760
      %v2146 = vsub.f32 %v2144, %v2145
      %v2147 = vand.u32 %v2146, 4294901760
      %2148 = vmatmul.mubr.f32.gmra.mxu0 %v2147
      %v2149 = vpop.f32.mrf.mxu0
      %v2150 = vadd.f32 0.0, %v2149
      %v2151 = vpop.f32.mrf.mxu0
      %v2152 = vand.u32 %v2028, 4294901760
      %v2153 = vsub.f32 %v2028, %v2152
      %v2154 = vand.u32 %v2153, 4294901760
      %v2155 = vsub.f32 %v2153, %v2154
      %v2156 = vand.u32 %v2155, 4294901760
      %2157 = vmatprep.mubr.f32.mxu0 %v2156
      %v2158 = vand.u32 %v1985, 4294901760
      %v2159 = vsub.f32 %v1985, %v2158
      %v2160 = vand.u32 %v2159, 4294901760
      %v2161 = vsub.f32 %v2159, %v2160
      %v2162 = vand.u32 %v2161, 4294901760
      %2163 = vmatmul.mubr.f32.gmra.mxu0 %v2162
      %v2164 = vpop.f32.mrf.mxu0
      %v2165 = vadd.f32 0.0, %v2164
      %v2166 = vpop.f32.mrf.mxu0
      %v2167 = vand.u32 %v2031, 4294901760
      %v2168 = vsub.f32 %v2031, %v2167
      %v2169 = vand.u32 %v2168, 4294901760
      %v2170 = vsub.f32 %v2168, %v2169
      %v2171 = vand.u32 %v2170, 4294901760
      %2172 = vmatprep.mubr.f32.mxu0 %v2171
      %v2173 = vand.u32 %v1987, 4294901760
      %v2174 = vsub.f32 %v1987, %v2173
      %v2175 = vand.u32 %v2174, 4294901760
      %v2176 = vsub.f32 %v2174, %v2175
      %v2177 = vand.u32 %v2176, 4294901760
      %2178 = vmatmul.mubr.f32.gmra.mxu0 %v2177
      %v2179 = vpop.f32.mrf.mxu0
      %v2180 = vadd.f32 0.0, %v2179
      %v2181 = vpop.f32.mrf.mxu0
      %v2182 = vand.u32 %v2034, 4294901760
      %v2183 = vsub.f32 %v2034, %v2182
      %v2184 = vand.u32 %v2183, 4294901760
      %v2185 = vsub.f32 %v2183, %v2184
      %v2186 = vand.u32 %v2185, 4294901760
      %2187 = vmatprep.mubr.f32.mxu0 %v2186
      %v2188 = vand.u32 %v1989, 4294901760
      %v2189 = vsub.f32 %v1989, %v2188
      %v2190 = vand.u32 %v2189, 4294901760
      %v2191 = vsub.f32 %v2189, %v2190
      %v2192 = vand.u32 %v2191, 4294901760
      %2193 = vmatmul.mubr.f32.gmra.mxu0 %v2192
      %v2194 = vpop.f32.mrf.mxu0
      %v2195 = vadd.f32 0.0, %v2194
      %v2196 = vpop.f32.mrf.mxu0
      %v2197 = vand.u32 %v2037, 4294901760
      %v2198 = vsub.f32 %v2037, %v2197
      %v2199 = vand.u32 %v2198, 4294901760
      %v2200 = vsub.f32 %v2198, %v2199
      %v2201 = vand.u32 %v2200, 4294901760
      %2202 = vmatprep.mubr.f32.mxu0 %v2201
      %v2203 = vand.u32 %v1991, 4294901760
      %v2204 = vsub.f32 %v1991, %v2203
      %v2205 = vand.u32 %v2204, 4294901760
      %v2206 = vsub.f32 %v2204, %v2205
      %v2207 = vand.u32 %v2206, 4294901760
      %2208 = vmatmul.mubr.f32.gmra.mxu0 %v2207
      %v2209 = vpop.f32.mrf.mxu0
      %v2210 = vadd.f32 0.0, %v2209
      %v2211 = vpop.f32.mrf.mxu0
      %v2212 = vand.u32 %v2040, 4294901760
      %v2213 = vsub.f32 %v2040, %v2212
      %v2214 = vand.u32 %v2213, 4294901760
      %v2215 = vsub.f32 %v2213, %v2214
      %v2216 = vand.u32 %v2215, 4294901760
      %2217 = vmatprep.mubr.f32.mxu0 %v2216
      %v2218 = vand.u32 %v1993, 4294901760
      %v2219 = vsub.f32 %v1993, %v2218
      %v2220 = vand.u32 %v2219, 4294901760
      %v2221 = vsub.f32 %v2219, %v2220
      %v2222 = vand.u32 %v2221, 4294901760
      %2223 = vmatmul.mubr.f32.gmra.mxu0 %v2222
      %v2224 = vpop.f32.mrf.mxu0
      %v2225 = vadd.f32 0.0, %v2224
      %v2226 = vpop.f32.mrf.mxu0
      %v2227 = vand.u32 %v2043, 4294901760
      %v2228 = vsub.f32 %v2043, %v2227
      %v2229 = vand.u32 %v2228, 4294901760
      %v2230 = vsub.f32 %v2228, %v2229
      %v2231 = vand.u32 %v2230, 4294901760
      %2232 = vmatprep.mubr.f32.mxu0 %v2231
      %v2233 = vand.u32 %v1995, 4294901760
      %v2234 = vsub.f32 %v1995, %v2233
      %v2235 = vand.u32 %v2234, 4294901760
      %v2236 = vsub.f32 %v2234, %v2235
      %v2237 = vand.u32 %v2236, 4294901760
      %2238 = vmatmul.mubr.f32.gmra.mxu0 %v2237
      %v2239 = vpop.f32.mrf.mxu0
      %v2240 = vadd.f32 0.0, %v2239
      %v2241 = vpop.f32.mrf.mxu0
      %v2242 = vand.u32 %v2046, 4294901760
      %v2243 = vsub.f32 %v2046, %v2242
      %v2244 = vand.u32 %v2243, 4294901760
      %v2245 = vsub.f32 %v2243, %v2244
      %v2246 = vand.u32 %v2245, 4294901760
      %2247 = vmatprep.mubr.f32.mxu0 %v2246
      %v2248 = vand.u32 %v1997, 4294901760
      %v2249 = vsub.f32 %v1997, %v2248
      %v2250 = vand.u32 %v2249, 4294901760
      %v2251 = vsub.f32 %v2249, %v2250
      %v2252 = vand.u32 %v2251, 4294901760
      %2253 = vmatmul.mubr.f32.gmra.mxu0 %v2252
      %v2254 = vpop.f32.mrf.mxu0
      %v2255 = vadd.f32 0.0, %v2254
      %v2256 = vpop.f32.mrf.mxu0
      %2257 = vdwg.mxu0
      %2258 = vmatprep.subr.mxu0 0.0
      %v2259 = vand.u32 %v2014, 4294901760
      %v2260 = vsub.f32 %v2014, %v2259
      %v2261 = vand.u32 %v2260, 4294901760
      %v2262 = vsub.f32 %v2260, %v2261
      %v2263 = vand.u32 %v2262, 4294901760
      %2264 = vmatpush1.msra.mxu0 %v2263
      %2265 = vmatprep.subr.mxu0 0.0
      %v2266 = vand.u32 %v2013, 4294901760
      %v2267 = vsub.f32 %v2013, %v2266
      %v2268 = vand.u32 %v2267, 4294901760
      %v2269 = vsub.f32 %v2267, %v2268
      %v2270 = vand.u32 %v2269, 4294901760
      %2271 = vmatpush1.msra.mxu0 %v2270
      %2272 = vmatprep.subr.mxu0 0.0
      %v2273 = vand.u32 %v2012, 4294901760
      %v2274 = vsub.f32 %v2012, %v2273
      %v2275 = vand.u32 %v2274, 4294901760
      %v2276 = vsub.f32 %v2274, %v2275
      %v2277 = vand.u32 %v2276, 4294901760
      %2278 = vmatpush1.msra.mxu0 %v2277
      %2279 = vmatprep.subr.mxu0 0.0
      %v2280 = vand.u32 %v2011, 4294901760
      %v2281 = vsub.f32 %v2011, %v2280
      %v2282 = vand.u32 %v2281, 4294901760
      %v2283 = vsub.f32 %v2281, %v2282
      %v2284 = vand.u32 %v2283, 4294901760
      %2285 = vmatpush1.msra.mxu0 %v2284
      %2286 = vmatprep.subr.mxu0 0.0
      %v2287 = vand.u32 %v2010, 4294901760
      %v2288 = vsub.f32 %v2010, %v2287
      %v2289 = vand.u32 %v2288, 4294901760
      %v2290 = vsub.f32 %v2288, %v2289
      %v2291 = vand.u32 %v2290, 4294901760
      %2292 = vmatpush1.msra.mxu0 %v2291
      %2293 = vmatprep.subr.mxu0 0.0
      %v2294 = vand.u32 %v2009, 4294901760
      %v2295 = vsub.f32 %v2009, %v2294
      %v2296 = vand.u32 %v2295, 4294901760
      %v2297 = vsub.f32 %v2295, %v2296
      %v2298 = vand.u32 %v2297, 4294901760
      %2299 = vmatpush1.msra.mxu0 %v2298
      %2300 = vmatprep.subr.mxu0 0.0
      %v2301 = vand.u32 %v2008, 4294901760
      %v2302 = vsub.f32 %v2008, %v2301
      %v2303 = vand.u32 %v2302, 4294901760
      %v2304 = vsub.f32 %v2302, %v2303
      %v2305 = vand.u32 %v2304, 4294901760
      %2306 = vmatpush1.msra.mxu0 %v2305
      %2307 = vmatprep.subr.mxu0 0.0
      %v2308 = vand.u32 %v2007, 4294901760
      %v2309 = vsub.f32 %v2007, %v2308
      %v2310 = vand.u32 %v2309, 4294901760
      %v2311 = vsub.f32 %v2309, %v2310
      %v2312 = vand.u32 %v2311, 4294901760
      %2313 = vmatpush1.msra.mxu0 %v2312
      %2314 = vmatprep.subr.mxu0 0.0
      %v2315 = vand.u32 %v2006, 4294901760
      %v2316 = vsub.f32 %v2006, %v2315
      %v2317 = vand.u32 %v2316, 4294901760
      %v2318 = vsub.f32 %v2316, %v2317
      %v2319 = vand.u32 %v2318, 4294901760
      %2320 = vmatpush1.msra.mxu0 %v2319
      %2321 = vmatprep.subr.mxu0 0.0
      %v2322 = vand.u32 %v2005, 4294901760
      %v2323 = vsub.f32 %v2005, %v2322
      %v2324 = vand.u32 %v2323, 4294901760
      %v2325 = vsub.f32 %v2323, %v2324
      %v2326 = vand.u32 %v2325, 4294901760
      %2327 = vmatpush1.msra.mxu0 %v2326
      %2328 = vmatprep.subr.mxu0 0.0
      %v2329 = vand.u32 %v2004, 4294901760
      %v2330 = vsub.f32 %v2004, %v2329
      %v2331 = vand.u32 %v2330, 4294901760
      %v2332 = vsub.f32 %v2330, %v2331
      %v2333 = vand.u32 %v2332, 4294901760
      %2334 = vmatpush1.msra.mxu0 %v2333
      %2335 = vmatprep.subr.mxu0 0.0
      %v2336 = vand.u32 %v2003, 4294901760
      %v2337 = vsub.f32 %v2003, %v2336
      %v2338 = vand.u32 %v2337, 4294901760
      %v2339 = vsub.f32 %v2337, %v2338
      %v2340 = vand.u32 %v2339, 4294901760
      %2341 = vmatpush1.msra.mxu0 %v2340
      %2342 = vmatprep.subr.mxu0 0.0
      %v2343 = vand.u32 %v2002, 4294901760
      %v2344 = vsub.f32 %v2002, %v2343
      %v2345 = vand.u32 %v2344, 4294901760
      %v2346 = vsub.f32 %v2344, %v2345
      %v2347 = vand.u32 %v2346, 4294901760
      %2348 = vmatpush1.msra.mxu0 %v2347
      %2349 = vmatprep.subr.mxu0 0.0
      %v2350 = vand.u32 %v2001, 4294901760
      %v2351 = vsub.f32 %v2001, %v2350
      %v2352 = vand.u32 %v2351, 4294901760
      %v2353 = vsub.f32 %v2351, %v2352
      %v2354 = vand.u32 %v2353, 4294901760
      %2355 = vmatpush1.msra.mxu0 %v2354
      %2356 = vmatprep.subr.mxu0 0.0
      %v2357 = vand.u32 %v2000, 4294901760
      %v2358 = vsub.f32 %v2000, %v2357
      %v2359 = vand.u32 %v2358, 4294901760
      %v2360 = vsub.f32 %v2358, %v2359
      %v2361 = vand.u32 %v2360, 4294901760
      %2362 = vmatpush1.msra.mxu0 %v2361
      %2363 = vmatprep.subr.mxu0 0.0
      %v2364 = vand.u32 %v1999, 4294901760
      %v2365 = vsub.f32 %v1999, %v2364
      %v2366 = vand.u32 %v2365, 4294901760
      %v2367 = vsub.f32 %v2365, %v2366
      %v2368 = vand.u32 %v2367, 4294901760
      %2369 = vmatpush1.msra.mxu0 %v2368
      %2370 = vmatprep.subr.mxu0 0.0
      %2371 = vmatpush2.msra.mxu0 0.0
      %2372 = vmatprep.subr.mxu0 0.0
      %2373 = vmatpush2.msra.mxu0 0.0
      %2374 = vmatprep.subr.mxu0 0.0
      %2375 = vmatpush2.msra.mxu0 0.0
      %2376 = vmatprep.subr.mxu0 0.0
      %2377 = vmatpush2.msra.mxu0 0.0
      %2378 = vmatprep.subr.mxu0 0.0
      %2379 = vmatpush2.msra.mxu0 0.0
      %2380 = vmatprep.subr.mxu0 0.0
      %2381 = vmatpush2.msra.mxu0 0.0
      %2382 = vmatprep.subr.mxu0 0.0
      %2383 = vmatpush2.msra.mxu0 0.0
      %2384 = vmatprep.subr.mxu0 0.0
      %v2385 = vand.u32 %v2023, 4294901760
      %v2386 = vsub.f32 %v2023, %v2385
      %v2387 = vand.u32 %v2386, 4294901760
      %v2388 = vsub.f32 %v2386, %v2387
      %v2389 = vand.u32 %v2388, 4294901760
      %2390 = vmatpush2.msra.mxu0 %v2389
      %2391 = vmatprep.subr.mxu0 0.0
      %v2392 = vand.u32 %v2022, 4294901760
      %v2393 = vsub.f32 %v2022, %v2392
      %v2394 = vand.u32 %v2393, 4294901760
      %v2395 = vsub.f32 %v2393, %v2394
      %v2396 = vand.u32 %v2395, 4294901760
      %2397 = vmatpush2.msra.mxu0 %v2396
      %2398 = vmatprep.subr.mxu0 0.0
      %v2399 = vand.u32 %v2021, 4294901760
      %v2400 = vsub.f32 %v2021, %v2399
      %v2401 = vand.u32 %v2400, 4294901760
      %v2402 = vsub.f32 %v2400, %v2401
      %v2403 = vand.u32 %v2402, 4294901760
      %2404 = vmatpush2.msra.mxu0 %v2403
      %2405 = vmatprep.subr.mxu0 0.0
      %v2406 = vand.u32 %v2020, 4294901760
      %v2407 = vsub.f32 %v2020, %v2406
      %v2408 = vand.u32 %v2407, 4294901760
      %v2409 = vsub.f32 %v2407, %v2408
      %v2410 = vand.u32 %v2409, 4294901760
      %2411 = vmatpush2.msra.mxu0 %v2410
      %2412 = vmatprep.subr.mxu0 0.0
      %v2413 = vand.u32 %v2019, 4294901760
      %v2414 = vsub.f32 %v2019, %v2413
      %v2415 = vand.u32 %v2414, 4294901760
      %v2416 = vsub.f32 %v2414, %v2415
      %v2417 = vand.u32 %v2416, 4294901760
      %2418 = vmatpush2.msra.mxu0 %v2417
      %2419 = vmatprep.subr.mxu0 0.0
      %v2420 = vand.u32 %v2018, 4294901760
      %v2421 = vsub.f32 %v2018, %v2420
      %v2422 = vand.u32 %v2421, 4294901760
      %v2423 = vsub.f32 %v2421, %v2422
      %v2424 = vand.u32 %v2423, 4294901760
      %2425 = vmatpush2.msra.mxu0 %v2424
      %2426 = vmatprep.subr.mxu0 0.0
      %v2427 = vand.u32 %v2017, 4294901760
      %v2428 = vsub.f32 %v2017, %v2427
      %v2429 = vand.u32 %v2428, 4294901760
      %v2430 = vsub.f32 %v2428, %v2429
      %v2431 = vand.u32 %v2430, 4294901760
      %2432 = vmatpush2.msra.mxu0 %v2431
      %2433 = vmatprep.subr.mxu0 0.0
      %v2434 = vand.u32 %v2016, 4294901760
      %v2435 = vsub.f32 %v2016, %v2434
      %v2436 = vand.u32 %v2435, 4294901760
      %v2437 = vsub.f32 %v2435, %v2436
      %v2438 = vand.u32 %v2437, 4294901760
      %2439 = vmatpush2.msra.mxu0 %v2438
      %2440 = vmatprep.subr.mxu0 0.0
      %v2441 = vand.u32 %v2015, 4294901760
      %v2442 = vsub.f32 %v2015, %v2441
      %v2443 = vand.u32 %v2442, 4294901760
      %v2444 = vsub.f32 %v2442, %v2443
      %v2445 = vand.u32 %v2444, 4294901760
      %2446 = vmatpush2.msra.mxu0 %v2445
      %v2447 = vand.u32 %v2025, 4294901760
      %2448 = vmatprep.mubr.f32.mxu0 %v2447
      %v2449 = vand.u32 %v1983, 4294901760
      %2450 = vmatmul.mubr.f32.gmra.mxu0 %v2449
      %v2451 = vpop.f32.mrf.mxu0
      %v2452 = vadd.f32 %v2150, %v2451
      %v2453 = vpop.f32.mrf.mxu0
      %v2454 = vand.u32 %v2028, 4294901760
      %2455 = vmatprep.mubr.f32.mxu0 %v2454
      %v2456 = vand.u32 %v1985, 4294901760
      %2457 = vmatmul.mubr.f32.gmra.mxu0 %v2456
      %v2458 = vpop.f32.mrf.mxu0
      %v2459 = vadd.f32 %v2165, %v2458
      %v2460 = vpop.f32.mrf.mxu0
      %v2461 = vand.u32 %v2031, 4294901760
      %2462 = vmatprep.mubr.f32.mxu0 %v2461
      %v2463 = vand.u32 %v1987, 4294901760
      %2464 = vmatmul.mubr.f32.gmra.mxu0 %v2463
      %v2465 = vpop.f32.mrf.mxu0
      %v2466 = vadd.f32 %v2180, %v2465
      %v2467 = vpop.f32.mrf.mxu0
      %v2468 = vand.u32 %v2034, 4294901760
      %2469 = vmatprep.mubr.f32.mxu0 %v2468
      %v2470 = vand.u32 %v1989, 4294901760
      %2471 = vmatmul.mubr.f32.gmra.mxu0 %v2470
      %v2472 = vpop.f32.mrf.mxu0
      %v2473 = vadd.f32 %v2195, %v2472
      %v2474 = vpop.f32.mrf.mxu0
      %v2475 = vand.u32 %v2037, 4294901760
      %2476 = vmatprep.mubr.f32.mxu0 %v2475
      %v2477 = vand.u32 %v1991, 4294901760
      %2478 = vmatmul.mubr.f32.gmra.mxu0 %v2477
      %v2479 = vpop.f32.mrf.mxu0
      %v2480 = vadd.f32 %v2210, %v2479
      %v2481 = vpop.f32.mrf.mxu0
      %v2482 = vand.u32 %v2040, 4294901760
      %2483 = vmatprep.mubr.f32.mxu0 %v2482
      %v2484 = vand.u32 %v1993, 4294901760
      %2485 = vmatmul.mubr.f32.gmra.mxu0 %v2484
      %v2486 = vpop.f32.mrf.mxu0
      %v2487 = vadd.f32 %v2225, %v2486
      %v2488 = vpop.f32.mrf.mxu0
      %v2489 = vand.u32 %v2043, 4294901760
      %2490 = vmatprep.mubr.f32.mxu0 %v2489
      %v2491 = vand.u32 %v1995, 4294901760
      %2492 = vmatmul.mubr.f32.gmra.mxu0 %v2491
      %v2493 = vpop.f32.mrf.mxu0
      %v2494 = vadd.f32 %v2240, %v2493
      %v2495 = vpop.f32.mrf.mxu0
      %v2496 = vand.u32 %v2046, 4294901760
      %2497 = vmatprep.mubr.f32.mxu0 %v2496
      %v2498 = vand.u32 %v1997, 4294901760
      %2499 = vmatmul.mubr.f32.gmra.mxu0 %v2498
      %v2500 = vpop.f32.mrf.mxu0
      %v2501 = vadd.f32 %v2255, %v2500
      %v2502 = vpop.f32.mrf.mxu0
      %2503 = vdwg.mxu0
      %2504 = vmatprep.subr.mxu0 0.0
      %v2505 = vand.u32 %v2014, 4294901760
      %v2506 = vsub.f32 %v2014, %v2505
      %2507 = vmatpush1.msra.mxu0 %v2506
      %2508 = vmatprep.subr.mxu0 0.0
      %v2509 = vand.u32 %v2013, 4294901760
      %v2510 = vsub.f32 %v2013, %v2509
      %2511 = vmatpush1.msra.mxu0 %v2510
      %2512 = vmatprep.subr.mxu0 0.0
      %v2513 = vand.u32 %v2012, 4294901760
      %v2514 = vsub.f32 %v2012, %v2513
      %2515 = vmatpush1.msra.mxu0 %v2514
      %2516 = vmatprep.subr.mxu0 0.0
      %v2517 = vand.u32 %v2011, 4294901760
      %v2518 = vsub.f32 %v2011, %v2517
      %2519 = vmatpush1.msra.mxu0 %v2518
      %2520 = vmatprep.subr.mxu0 0.0
      %v2521 = vand.u32 %v2010, 4294901760
      %v2522 = vsub.f32 %v2010, %v2521
      %2523 = vmatpush1.msra.mxu0 %v2522
      %2524 = vmatprep.subr.mxu0 0.0
      %v2525 = vand.u32 %v2009, 4294901760
      %v2526 = vsub.f32 %v2009, %v2525
      %2527 = vmatpush1.msra.mxu0 %v2526
      %2528 = vmatprep.subr.mxu0 0.0
      %v2529 = vand.u32 %v2008, 4294901760
      %v2530 = vsub.f32 %v2008, %v2529
      %2531 = vmatpush1.msra.mxu0 %v2530
      %2532 = vmatprep.subr.mxu0 0.0
      %v2533 = vand.u32 %v2007, 4294901760
      %v2534 = vsub.f32 %v2007, %v2533
      %2535 = vmatpush1.msra.mxu0 %v2534
      %2536 = vmatprep.subr.mxu0 0.0
      %v2537 = vand.u32 %v2006, 4294901760
      %v2538 = vsub.f32 %v2006, %v2537
      %2539 = vmatpush1.msra.mxu0 %v2538
      %2540 = vmatprep.subr.mxu0 0.0
      %v2541 = vand.u32 %v2005, 4294901760
      %v2542 = vsub.f32 %v2005, %v2541
      %2543 = vmatpush1.msra.mxu0 %v2542
      %2544 = vmatprep.subr.mxu0 0.0
      %v2545 = vand.u32 %v2004, 4294901760
      %v2546 = vsub.f32 %v2004, %v2545
      %2547 = vmatpush1.msra.mxu0 %v2546
      %2548 = vmatprep.subr.mxu0 0.0
      %v2549 = vand.u32 %v2003, 4294901760
      %v2550 = vsub.f32 %v2003, %v2549
      %2551 = vmatpush1.msra.mxu0 %v2550
      %2552 = vmatprep.subr.mxu0 0.0
      %v2553 = vand.u32 %v2002, 4294901760
      %v2554 = vsub.f32 %v2002, %v2553
      %2555 = vmatpush1.msra.mxu0 %v2554
      %2556 = vmatprep.subr.mxu0 0.0
      %v2557 = vand.u32 %v2001, 4294901760
      %v2558 = vsub.f32 %v2001, %v2557
      %2559 = vmatpush1.msra.mxu0 %v2558
      %2560 = vmatprep.subr.mxu0 0.0
      %v2561 = vand.u32 %v2000, 4294901760
      %v2562 = vsub.f32 %v2000, %v2561
      %2563 = vmatpush1.msra.mxu0 %v2562
      %2564 = vmatprep.subr.mxu0 0.0
      %v2565 = vand.u32 %v1999, 4294901760
      %v2566 = vsub.f32 %v1999, %v2565
      %2567 = vmatpush1.msra.mxu0 %v2566
      %2568 = vmatprep.subr.mxu0 0.0
      %2569 = vmatpush2.msra.mxu0 0.0
      %2570 = vmatprep.subr.mxu0 0.0
      %2571 = vmatpush2.msra.mxu0 0.0
      %2572 = vmatprep.subr.mxu0 0.0
      %2573 = vmatpush2.msra.mxu0 0.0
      %2574 = vmatprep.subr.mxu0 0.0
      %2575 = vmatpush2.msra.mxu0 0.0
      %2576 = vmatprep.subr.mxu0 0.0
      %2577 = vmatpush2.msra.mxu0 0.0
      %2578 = vmatprep.subr.mxu0 0.0
      %2579 = vmatpush2.msra.mxu0 0.0
      %2580 = vmatprep.subr.mxu0 0.0
      %2581 = vmatpush2.msra.mxu0 0.0
      %2582 = vmatprep.subr.mxu0 0.0
      %v2583 = vand.u32 %v2023, 4294901760
      %v2584 = vsub.f32 %v2023, %v2583
      %2585 = vmatpush2.msra.mxu0 %v2584
      %2586 = vmatprep.subr.mxu0 0.0
      %v2587 = vand.u32 %v2022, 4294901760
      %v2588 = vsub.f32 %v2022, %v2587
      %2589 = vmatpush2.msra.mxu0 %v2588
      %2590 = vmatprep.subr.mxu0 0.0
      %v2591 = vand.u32 %v2021, 4294901760
      %v2592 = vsub.f32 %v2021, %v2591
      %2593 = vmatpush2.msra.mxu0 %v2592
      %2594 = vmatprep.subr.mxu0 0.0
      %v2595 = vand.u32 %v2020, 4294901760
      %v2596 = vsub.f32 %v2020, %v2595
      %2597 = vmatpush2.msra.mxu0 %v2596
      %2598 = vmatprep.subr.mxu0 0.0
      %v2599 = vand.u32 %v2019, 4294901760
      %v2600 = vsub.f32 %v2019, %v2599
      %2601 = vmatpush2.msra.mxu0 %v2600
      %2602 = vmatprep.subr.mxu0 0.0
      %v2603 = vand.u32 %v2018, 4294901760
      %v2604 = vsub.f32 %v2018, %v2603
      %2605 = vmatpush2.msra.mxu0 %v2604
      %2606 = vmatprep.subr.mxu0 0.0
      %v2607 = vand.u32 %v2017, 4294901760
      %v2608 = vsub.f32 %v2017, %v2607
      %2609 = vmatpush2.msra.mxu0 %v2608
      %2610 = vmatprep.subr.mxu0 0.0
      %v2611 = vand.u32 %v2016, 4294901760
      %v2612 = vsub.f32 %v2016, %v2611
      %2613 = vmatpush2.msra.mxu0 %v2612
      %2614 = vmatprep.subr.mxu0 0.0
      %v2615 = vand.u32 %v2015, 4294901760
      %v2616 = vsub.f32 %v2015, %v2615
      %2617 = vmatpush2.msra.mxu0 %v2616
      %v2618 = vand.u32 %v2025, 4294901760
      %v2619 = vsub.f32 %v2025, %v2618
      %2620 = vmatprep.mubr.f32.mxu0 %v2619
      %v2621 = vand.u32 %v1983, 4294901760
      %v2622 = vsub.f32 %v1983, %v2621
      %2623 = vmatmul.mubr.f32.gmra.mxu0 %v2622
      %v2624 = vpop.f32.mrf.mxu0
      %v2625 = vadd.f32 %v2452, %v2624
      %v2626 = vpop.f32.mrf.mxu0
      %v2627 = vand.u32 %v2028, 4294901760
      %v2628 = vsub.f32 %v2028, %v2627
      %2629 = vmatprep.mubr.f32.mxu0 %v2628
      %v2630 = vand.u32 %v1985, 4294901760
      %v2631 = vsub.f32 %v1985, %v2630
      %2632 = vmatmul.mubr.f32.gmra.mxu0 %v2631
      %v2633 = vpop.f32.mrf.mxu0
      %v2634 = vadd.f32 %v2459, %v2633
      %v2635 = vpop.f32.mrf.mxu0
      %v2636 = vand.u32 %v2031, 4294901760
      %v2637 = vsub.f32 %v2031, %v2636
      %2638 = vmatprep.mubr.f32.mxu0 %v2637
      %v2639 = vand.u32 %v1987, 4294901760
      %v2640 = vsub.f32 %v1987, %v2639
      %2641 = vmatmul.mubr.f32.gmra.mxu0 %v2640
      %v2642 = vpop.f32.mrf.mxu0
      %v2643 = vadd.f32 %v2466, %v2642
      %v2644 = vpop.f32.mrf.mxu0
      %v2645 = vand.u32 %v2034, 4294901760
      %v2646 = vsub.f32 %v2034, %v2645
      %2647 = vmatprep.mubr.f32.mxu0 %v2646
      %v2648 = vand.u32 %v1989, 4294901760
      %v2649 = vsub.f32 %v1989, %v2648
      %2650 = vmatmul.mubr.f32.gmra.mxu0 %v2649
      %v2651 = vpop.f32.mrf.mxu0
      %v2652 = vadd.f32 %v2473, %v2651
      %v2653 = vpop.f32.mrf.mxu0
      %v2654 = vand.u32 %v2037, 4294901760
      %v2655 = vsub.f32 %v2037, %v2654
      %2656 = vmatprep.mubr.f32.mxu0 %v2655
      %v2657 = vand.u32 %v1991, 4294901760
      %v2658 = vsub.f32 %v1991, %v2657
      %2659 = vmatmul.mubr.f32.gmra.mxu0 %v2658
      %v2660 = vpop.f32.mrf.mxu0
      %v2661 = vadd.f32 %v2480, %v2660
      %v2662 = vpop.f32.mrf.mxu0
      %v2663 = vand.u32 %v2040, 4294901760
      %v2664 = vsub.f32 %v2040, %v2663
      %2665 = vmatprep.mubr.f32.mxu0 %v2664
      %v2666 = vand.u32 %v1993, 4294901760
      %v2667 = vsub.f32 %v1993, %v2666
      %2668 = vmatmul.mubr.f32.gmra.mxu0 %v2667
      %v2669 = vpop.f32.mrf.mxu0
      %v2670 = vadd.f32 %v2487, %v2669
      %v2671 = vpop.f32.mrf.mxu0
      %v2672 = vand.u32 %v2043, 4294901760
      %v2673 = vsub.f32 %v2043, %v2672
      %2674 = vmatprep.mubr.f32.mxu0 %v2673
      %v2675 = vand.u32 %v1995, 4294901760
      %v2676 = vsub.f32 %v1995, %v2675
      %2677 = vmatmul.mubr.f32.gmra.mxu0 %v2676
      %v2678 = vpop.f32.mrf.mxu0
      %v2679 = vadd.f32 %v2494, %v2678
      %v2680 = vpop.f32.mrf.mxu0
      %v2681 = vand.u32 %v2046, 4294901760
      %v2682 = vsub.f32 %v2046, %v2681
      %2683 = vmatprep.mubr.f32.mxu0 %v2682
      %v2684 = vand.u32 %v1997, 4294901760
      %v2685 = vsub.f32 %v1997, %v2684
      %2686 = vmatmul.mubr.f32.gmra.mxu0 %v2685
      %v2687 = vpop.f32.mrf.mxu0
      %v2688 = vadd.f32 %v2501, %v2687
      %v2689 = vpop.f32.mrf.mxu0
      %2690 = vdwg.mxu0
      %2691 = vmatprep.subr.mxu0 0.0
      %v2692 = vand.u32 %v2014, 4294901760
      %2693 = vmatpush1.msra.mxu0 %v2692
      %2694 = vmatprep.subr.mxu0 0.0
      %v2695 = vand.u32 %v2013, 4294901760
      %2696 = vmatpush1.msra.mxu0 %v2695
      %2697 = vmatprep.subr.mxu0 0.0
      %v2698 = vand.u32 %v2012, 4294901760
      %2699 = vmatpush1.msra.mxu0 %v2698
      %2700 = vmatprep.subr.mxu0 0.0
      %v2701 = vand.u32 %v2011, 4294901760
      %2702 = vmatpush1.msra.mxu0 %v2701
      %2703 = vmatprep.subr.mxu0 0.0
      %v2704 = vand.u32 %v2010, 4294901760
      %2705 = vmatpush1.msra.mxu0 %v2704
      %2706 = vmatprep.subr.mxu0 0.0
      %v2707 = vand.u32 %v2009, 4294901760
      %2708 = vmatpush1.msra.mxu0 %v2707
      %2709 = vmatprep.subr.mxu0 0.0
      %v2710 = vand.u32 %v2008, 4294901760
      %2711 = vmatpush1.msra.mxu0 %v2710
      %2712 = vmatprep.subr.mxu0 0.0
      %v2713 = vand.u32 %v2007, 4294901760
      %2714 = vmatpush1.msra.mxu0 %v2713
      %2715 = vmatprep.subr.mxu0 0.0
      %v2716 = vand.u32 %v2006, 4294901760
      %2717 = vmatpush1.msra.mxu0 %v2716
      %2718 = vmatprep.subr.mxu0 0.0
      %v2719 = vand.u32 %v2005, 4294901760
      %2720 = vmatpush1.msra.mxu0 %v2719
      %2721 = vmatprep.subr.mxu0 0.0
      %v2722 = vand.u32 %v2004, 4294901760
      %2723 = vmatpush1.msra.mxu0 %v2722
      %2724 = vmatprep.subr.mxu0 0.0
      %v2725 = vand.u32 %v2003, 4294901760
      %2726 = vmatpush1.msra.mxu0 %v2725
      %2727 = vmatprep.subr.mxu0 0.0
      %v2728 = vand.u32 %v2002, 4294901760
      %2729 = vmatpush1.msra.mxu0 %v2728
      %2730 = vmatprep.subr.mxu0 0.0
      %v2731 = vand.u32 %v2001, 4294901760
      %2732 = vmatpush1.msra.mxu0 %v2731
      %2733 = vmatprep.subr.mxu0 0.0
      %v2734 = vand.u32 %v2000, 4294901760
      %2735 = vmatpush1.msra.mxu0 %v2734
      %2736 = vmatprep.subr.mxu0 0.0
      %v2737 = vand.u32 %v1999, 4294901760
      %2738 = vmatpush1.msra.mxu0 %v2737
      %2739 = vmatprep.subr.mxu0 0.0
      %2740 = vmatpush2.msra.mxu0 0.0
      %2741 = vmatprep.subr.mxu0 0.0
      %2742 = vmatpush2.msra.mxu0 0.0
      %2743 = vmatprep.subr.mxu0 0.0
      %2744 = vmatpush2.msra.mxu0 0.0
      %2745 = vmatprep.subr.mxu0 0.0
      %2746 = vmatpush2.msra.mxu0 0.0
      %2747 = vmatprep.subr.mxu0 0.0
      %2748 = vmatpush2.msra.mxu0 0.0
      %2749 = vmatprep.subr.mxu0 0.0
      %2750 = vmatpush2.msra.mxu0 0.0
      %2751 = vmatprep.subr.mxu0 0.0
      %2752 = vmatpush2.msra.mxu0 0.0
      %2753 = vmatprep.subr.mxu0 0.0
      %v2754 = vand.u32 %v2023, 4294901760
      %2755 = vmatpush2.msra.mxu0 %v2754
      %2756 = vmatprep.subr.mxu0 0.0
      %v2757 = vand.u32 %v2022, 4294901760
      %2758 = vmatpush2.msra.mxu0 %v2757
      %2759 = vmatprep.subr.mxu0 0.0
      %v2760 = vand.u32 %v2021, 4294901760
      %2761 = vmatpush2.msra.mxu0 %v2760
      %2762 = vmatprep.subr.mxu0 0.0
      %v2763 = vand.u32 %v2020, 4294901760
      %2764 = vmatpush2.msra.mxu0 %v2763
      %2765 = vmatprep.subr.mxu0 0.0
      %v2766 = vand.u32 %v2019, 4294901760
      %2767 = vmatpush2.msra.mxu0 %v2766
      %2768 = vmatprep.subr.mxu0 0.0
      %v2769 = vand.u32 %v2018, 4294901760
      %2770 = vmatpush2.msra.mxu0 %v2769
      %2771 = vmatprep.subr.mxu0 0.0
      %v2772 = vand.u32 %v2017, 4294901760
      %2773 = vmatpush2.msra.mxu0 %v2772
      %2774 = vmatprep.subr.mxu0 0.0
      %v2775 = vand.u32 %v2016, 4294901760
      %2776 = vmatpush2.msra.mxu0 %v2775
      %2777 = vmatprep.subr.mxu0 0.0
      %v2778 = vand.u32 %v2015, 4294901760
      %2779 = vmatpush2.msra.mxu0 %v2778
      %v2780 = vand.u32 %v2025, 4294901760
      %v2781 = vsub.f32 %v2025, %v2780
      %v2782 = vand.u32 %v2781, 4294901760
      %2783 = vmatprep.mubr.f32.mxu0 %v2782
      %v2784 = vand.u32 %v1983, 4294901760
      %v2785 = vsub.f32 %v1983, %v2784
      %v2786 = vand.u32 %v2785, 4294901760
      %2787 = vmatmul.mubr.f32.gmra.mxu0 %v2786
      %v2788 = vpop.f32.mrf.mxu0
      %v2789 = vadd.f32 %v2625, %v2788
      %v2790 = vpop.f32.mrf.mxu0
      %v2791 = vand.u32 %v2028, 4294901760
      %v2792 = vsub.f32 %v2028, %v2791
      %v2793 = vand.u32 %v2792, 4294901760
      %2794 = vmatprep.mubr.f32.mxu0 %v2793
      %v2795 = vand.u32 %v1985, 4294901760
      %v2796 = vsub.f32 %v1985, %v2795
      %v2797 = vand.u32 %v2796, 4294901760
      %2798 = vmatmul.mubr.f32.gmra.mxu0 %v2797
      %v2799 = vpop.f32.mrf.mxu0
      %v2800 = vadd.f32 %v2634, %v2799
      %v2801 = vpop.f32.mrf.mxu0
      %v2802 = vand.u32 %v2031, 4294901760
      %v2803 = vsub.f32 %v2031, %v2802
      %v2804 = vand.u32 %v2803, 4294901760
      %2805 = vmatprep.mubr.f32.mxu0 %v2804
      %v2806 = vand.u32 %v1987, 4294901760
      %v2807 = vsub.f32 %v1987, %v2806
      %v2808 = vand.u32 %v2807, 4294901760
      %2809 = vmatmul.mubr.f32.gmra.mxu0 %v2808
      %v2810 = vpop.f32.mrf.mxu0
      %v2811 = vadd.f32 %v2643, %v2810
      %v2812 = vpop.f32.mrf.mxu0
      %v2813 = vand.u32 %v2034, 4294901760
      %v2814 = vsub.f32 %v2034, %v2813
      %v2815 = vand.u32 %v2814, 4294901760
      %2816 = vmatprep.mubr.f32.mxu0 %v2815
      %v2817 = vand.u32 %v1989, 4294901760
      %v2818 = vsub.f32 %v1989, %v2817
      %v2819 = vand.u32 %v2818, 4294901760
      %2820 = vmatmul.mubr.f32.gmra.mxu0 %v2819
      %v2821 = vpop.f32.mrf.mxu0
      %v2822 = vadd.f32 %v2652, %v2821
      %v2823 = vpop.f32.mrf.mxu0
      %v2824 = vand.u32 %v2037, 4294901760
      %v2825 = vsub.f32 %v2037, %v2824
      %v2826 = vand.u32 %v2825, 4294901760
      %2827 = vmatprep.mubr.f32.mxu0 %v2826
      %v2828 = vand.u32 %v1991, 4294901760
      %v2829 = vsub.f32 %v1991, %v2828
      %v2830 = vand.u32 %v2829, 4294901760
      %2831 = vmatmul.mubr.f32.gmra.mxu0 %v2830
      %v2832 = vpop.f32.mrf.mxu0
      %v2833 = vadd.f32 %v2661, %v2832
      %v2834 = vpop.f32.mrf.mxu0
      %v2835 = vand.u32 %v2040, 4294901760
      %v2836 = vsub.f32 %v2040, %v2835
      %v2837 = vand.u32 %v2836, 4294901760
      %2838 = vmatprep.mubr.f32.mxu0 %v2837
      %v2839 = vand.u32 %v1993, 4294901760
      %v2840 = vsub.f32 %v1993, %v2839
      %v2841 = vand.u32 %v2840, 4294901760
      %2842 = vmatmul.mubr.f32.gmra.mxu0 %v2841
      %v2843 = vpop.f32.mrf.mxu0
      %v2844 = vadd.f32 %v2670, %v2843
      %v2845 = vpop.f32.mrf.mxu0
      %v2846 = vand.u32 %v2043, 4294901760
      %v2847 = vsub.f32 %v2043, %v2846
      %v2848 = vand.u32 %v2847, 4294901760
      %2849 = vmatprep.mubr.f32.mxu0 %v2848
      %v2850 = vand.u32 %v1995, 4294901760
      %v2851 = vsub.f32 %v1995, %v2850
      %v2852 = vand.u32 %v2851, 4294901760
      %2853 = vmatmul.mubr.f32.gmra.mxu0 %v2852
      %v2854 = vpop.f32.mrf.mxu0
      %v2855 = vadd.f32 %v2679, %v2854
      %v2856 = vpop.f32.mrf.mxu0
      %v2857 = vand.u32 %v2046, 4294901760
      %v2858 = vsub.f32 %v2046, %v2857
      %v2859 = vand.u32 %v2858, 4294901760
      %2860 = vmatprep.mubr.f32.mxu0 %v2859
      %v2861 = vand.u32 %v1997, 4294901760
      %v2862 = vsub.f32 %v1997, %v2861
      %v2863 = vand.u32 %v2862, 4294901760
      %2864 = vmatmul.mubr.f32.gmra.mxu0 %v2863
      %v2865 = vpop.f32.mrf.mxu0
      %v2866 = vadd.f32 %v2688, %v2865
      %v2867 = vpop.f32.mrf.mxu0
      %2868 = vdwg.mxu0
      %2869 = vmatprep.subr.mxu0 0.0
      %v2870 = vand.u32 %v2014, 4294901760
      %v2871 = vsub.f32 %v2014, %v2870
      %v2872 = vand.u32 %v2871, 4294901760
      %2873 = vmatpush1.msra.mxu0 %v2872
      %2874 = vmatprep.subr.mxu0 0.0
      %v2875 = vand.u32 %v2013, 4294901760
      %v2876 = vsub.f32 %v2013, %v2875
      %v2877 = vand.u32 %v2876, 4294901760
      %2878 = vmatpush1.msra.mxu0 %v2877
      %2879 = vmatprep.subr.mxu0 0.0
      %v2880 = vand.u32 %v2012, 4294901760
      %v2881 = vsub.f32 %v2012, %v2880
      %v2882 = vand.u32 %v2881, 4294901760
      %2883 = vmatpush1.msra.mxu0 %v2882
      %2884 = vmatprep.subr.mxu0 0.0
      %v2885 = vand.u32 %v2011, 4294901760
      %v2886 = vsub.f32 %v2011, %v2885
      %v2887 = vand.u32 %v2886, 4294901760
      %2888 = vmatpush1.msra.mxu0 %v2887
      %2889 = vmatprep.subr.mxu0 0.0
      %v2890 = vand.u32 %v2010, 4294901760
      %v2891 = vsub.f32 %v2010, %v2890
      %v2892 = vand.u32 %v2891, 4294901760
      %2893 = vmatpush1.msra.mxu0 %v2892
      %2894 = vmatprep.subr.mxu0 0.0
      %v2895 = vand.u32 %v2009, 4294901760
      %v2896 = vsub.f32 %v2009, %v2895
      %v2897 = vand.u32 %v2896, 4294901760
      %2898 = vmatpush1.msra.mxu0 %v2897
      %2899 = vmatprep.subr.mxu0 0.0
      %v2900 = vand.u32 %v2008, 4294901760
      %v2901 = vsub.f32 %v2008, %v2900
      %v2902 = vand.u32 %v2901, 4294901760
      %2903 = vmatpush1.msra.mxu0 %v2902
      %2904 = vmatprep.subr.mxu0 0.0
      %v2905 = vand.u32 %v2007, 4294901760
      %v2906 = vsub.f32 %v2007, %v2905
      %v2907 = vand.u32 %v2906, 4294901760
      %2908 = vmatpush1.msra.mxu0 %v2907
      %2909 = vmatprep.subr.mxu0 0.0
      %v2910 = vand.u32 %v2006, 4294901760
      %v2911 = vsub.f32 %v2006, %v2910
      %v2912 = vand.u32 %v2911, 4294901760
      %2913 = vmatpush1.msra.mxu0 %v2912
      %2914 = vmatprep.subr.mxu0 0.0
      %v2915 = vand.u32 %v2005, 4294901760
      %v2916 = vsub.f32 %v2005, %v2915
      %v2917 = vand.u32 %v2916, 4294901760
      %2918 = vmatpush1.msra.mxu0 %v2917
      %2919 = vmatprep.subr.mxu0 0.0
      %v2920 = vand.u32 %v2004, 4294901760
      %v2921 = vsub.f32 %v2004, %v2920
      %v2922 = vand.u32 %v2921, 4294901760
      %2923 = vmatpush1.msra.mxu0 %v2922
      %2924 = vmatprep.subr.mxu0 0.0
      %v2925 = vand.u32 %v2003, 4294901760
      %v2926 = vsub.f32 %v2003, %v2925
      %v2927 = vand.u32 %v2926, 4294901760
      %2928 = vmatpush1.msra.mxu0 %v2927
      %2929 = vmatprep.subr.mxu0 0.0
      %v2930 = vand.u32 %v2002, 4294901760
      %v2931 = vsub.f32 %v2002, %v2930
      %v2932 = vand.u32 %v2931, 4294901760
      %2933 = vmatpush1.msra.mxu0 %v2932
      %2934 = vmatprep.subr.mxu0 0.0
      %v2935 = vand.u32 %v2001, 4294901760
      %v2936 = vsub.f32 %v2001, %v2935
      %v2937 = vand.u32 %v2936, 4294901760
      %2938 = vmatpush1.msra.mxu0 %v2937
      %2939 = vmatprep.subr.mxu0 0.0
      %v2940 = vand.u32 %v2000, 4294901760
      %v2941 = vsub.f32 %v2000, %v2940
      %v2942 = vand.u32 %v2941, 4294901760
      %2943 = vmatpush1.msra.mxu0 %v2942
      %2944 = vmatprep.subr.mxu0 0.0
      %v2945 = vand.u32 %v1999, 4294901760
      %v2946 = vsub.f32 %v1999, %v2945
      %v2947 = vand.u32 %v2946, 4294901760
      %2948 = vmatpush1.msra.mxu0 %v2947
      %2949 = vmatprep.subr.mxu0 0.0
      %2950 = vmatpush2.msra.mxu0 0.0
      %2951 = vmatprep.subr.mxu0 0.0
      %2952 = vmatpush2.msra.mxu0 0.0
      %2953 = vmatprep.subr.mxu0 0.0
      %2954 = vmatpush2.msra.mxu0 0.0
      %2955 = vmatprep.subr.mxu0 0.0
      %2956 = vmatpush2.msra.mxu0 0.0
      %2957 = vmatprep.subr.mxu0 0.0
      %2958 = vmatpush2.msra.mxu0 0.0
      %2959 = vmatprep.subr.mxu0 0.0
      %2960 = vmatpush2.msra.mxu0 0.0
      %2961 = vmatprep.subr.mxu0 0.0
      %2962 = vmatpush2.msra.mxu0 0.0
      %2963 = vmatprep.subr.mxu0 0.0
      %v2964 = vand.u32 %v2023, 4294901760
      %v2965 = vsub.f32 %v2023, %v2964
      %v2966 = vand.u32 %v2965, 4294901760
      %2967 = vmatpush2.msra.mxu0 %v2966
      %2968 = vmatprep.subr.mxu0 0.0
      %v2969 = vand.u32 %v2022, 4294901760
      %v2970 = vsub.f32 %v2022, %v2969
      %v2971 = vand.u32 %v2970, 4294901760
      %2972 = vmatpush2.msra.mxu0 %v2971
      %2973 = vmatprep.subr.mxu0 0.0
      %v2974 = vand.u32 %v2021, 4294901760
      %v2975 = vsub.f32 %v2021, %v2974
      %v2976 = vand.u32 %v2975, 4294901760
      %2977 = vmatpush2.msra.mxu0 %v2976
      %2978 = vmatprep.subr.mxu0 0.0
      %v2979 = vand.u32 %v2020, 4294901760
      %v2980 = vsub.f32 %v2020, %v2979
      %v2981 = vand.u32 %v2980, 4294901760
      %2982 = vmatpush2.msra.mxu0 %v2981
      %2983 = vmatprep.subr.mxu0 0.0
      %v2984 = vand.u32 %v2019, 4294901760
      %v2985 = vsub.f32 %v2019, %v2984
      %v2986 = vand.u32 %v2985, 4294901760
      %2987 = vmatpush2.msra.mxu0 %v2986
      %2988 = vmatprep.subr.mxu0 0.0
      %v2989 = vand.u32 %v2018, 4294901760
      %v2990 = vsub.f32 %v2018, %v2989
      %v2991 = vand.u32 %v2990, 4294901760
      %2992 = vmatpush2.msra.mxu0 %v2991
      %2993 = vmatprep.subr.mxu0 0.0
      %v2994 = vand.u32 %v2017, 4294901760
      %v2995 = vsub.f32 %v2017, %v2994
      %v2996 = vand.u32 %v2995, 4294901760
      %2997 = vmatpush2.msra.mxu0 %v2996
      %2998 = vmatprep.subr.mxu0 0.0
      %v2999 = vand.u32 %v2016, 4294901760
      %v3000 = vsub.f32 %v2016, %v2999
      %v3001 = vand.u32 %v3000, 4294901760
      %3002 = vmatpush2.msra.mxu0 %v3001
      %3003 = vmatprep.subr.mxu0 0.0
      %v3004 = vand.u32 %v2015, 4294901760
      %v3005 = vsub.f32 %v2015, %v3004
      %v3006 = vand.u32 %v3005, 4294901760
      %3007 = vmatpush2.msra.mxu0 %v3006
      %v3008 = vand.u32 %v2025, 4294901760
      %3009 = vmatprep.mubr.f32.mxu0 %v3008
      %v3010 = vand.u32 %v1983, 4294901760
      %3011 = vmatmul.mubr.f32.gmra.mxu0 %v3010
      %v3012 = vpop.f32.mrf.mxu0
      %v3013 = vadd.f32 %v2789, %v3012
      %v3014 = vpop.f32.mrf.mxu0
      %v3015 = vand.u32 %v2028, 4294901760
      %3016 = vmatprep.mubr.f32.mxu0 %v3015
      %v3017 = vand.u32 %v1985, 4294901760
      %3018 = vmatmul.mubr.f32.gmra.mxu0 %v3017
      %v3019 = vpop.f32.mrf.mxu0
      %v3020 = vadd.f32 %v2800, %v3019
      %v3021 = vpop.f32.mrf.mxu0
      %v3022 = vand.u32 %v2031, 4294901760
      %3023 = vmatprep.mubr.f32.mxu0 %v3022
      %v3024 = vand.u32 %v1987, 4294901760
      %3025 = vmatmul.mubr.f32.gmra.mxu0 %v3024
      %v3026 = vpop.f32.mrf.mxu0
      %v3027 = vadd.f32 %v2811, %v3026
      %v3028 = vpop.f32.mrf.mxu0
      %v3029 = vand.u32 %v2034, 4294901760
      %3030 = vmatprep.mubr.f32.mxu0 %v3029
      %v3031 = vand.u32 %v1989, 4294901760
      %3032 = vmatmul.mubr.f32.gmra.mxu0 %v3031
      %v3033 = vpop.f32.mrf.mxu0
      %v3034 = vadd.f32 %v2822, %v3033
      %v3035 = vpop.f32.mrf.mxu0
      %v3036 = vand.u32 %v2037, 4294901760
      %3037 = vmatprep.mubr.f32.mxu0 %v3036
      %v3038 = vand.u32 %v1991, 4294901760
      %3039 = vmatmul.mubr.f32.gmra.mxu0 %v3038
      %v3040 = vpop.f32.mrf.mxu0
      %v3041 = vadd.f32 %v2833, %v3040
      %v3042 = vpop.f32.mrf.mxu0
      %v3043 = vand.u32 %v2040, 4294901760
      %3044 = vmatprep.mubr.f32.mxu0 %v3043
      %v3045 = vand.u32 %v1993, 4294901760
      %3046 = vmatmul.mubr.f32.gmra.mxu0 %v3045
      %v3047 = vpop.f32.mrf.mxu0
      %v3048 = vadd.f32 %v2844, %v3047
      %v3049 = vpop.f32.mrf.mxu0
      %v3050 = vand.u32 %v2043, 4294901760
      %3051 = vmatprep.mubr.f32.mxu0 %v3050
      %v3052 = vand.u32 %v1995, 4294901760
      %3053 = vmatmul.mubr.f32.gmra.mxu0 %v3052
      %v3054 = vpop.f32.mrf.mxu0
      %v3055 = vadd.f32 %v2855, %v3054
      %v3056 = vpop.f32.mrf.mxu0
      %v3057 = vand.u32 %v2046, 4294901760
      %3058 = vmatprep.mubr.f32.mxu0 %v3057
      %v3059 = vand.u32 %v1997, 4294901760
      %3060 = vmatmul.mubr.f32.gmra.mxu0 %v3059
      %v3061 = vpop.f32.mrf.mxu0
      %v3062 = vadd.f32 %v2866, %v3061
      %v3063 = vpop.f32.mrf.mxu0
      %3064 = vdwg.mxu0
      %3065 = vmatprep.subr.mxu0 0.0
      %v3066 = vand.u32 %v2014, 4294901760
      %3067 = vmatpush1.msra.mxu0 %v3066
      %3068 = vmatprep.subr.mxu0 0.0
      %v3069 = vand.u32 %v2013, 4294901760
      %3070 = vmatpush1.msra.mxu0 %v3069
      %3071 = vmatprep.subr.mxu0 0.0
      %v3072 = vand.u32 %v2012, 4294901760
      %3073 = vmatpush1.msra.mxu0 %v3072
      %3074 = vmatprep.subr.mxu0 0.0
      %v3075 = vand.u32 %v2011, 4294901760
      %3076 = vmatpush1.msra.mxu0 %v3075
      %3077 = vmatprep.subr.mxu0 0.0
      %v3078 = vand.u32 %v2010, 4294901760
      %3079 = vmatpush1.msra.mxu0 %v3078
      %3080 = vmatprep.subr.mxu0 0.0
      %v3081 = vand.u32 %v2009, 4294901760
      %3082 = vmatpush1.msra.mxu0 %v3081
      %3083 = vmatprep.subr.mxu0 0.0
      %v3084 = vand.u32 %v2008, 4294901760
      %3085 = vmatpush1.msra.mxu0 %v3084
      %3086 = vmatprep.subr.mxu0 0.0
      %v3087 = vand.u32 %v2007, 4294901760
      %3088 = vmatpush1.msra.mxu0 %v3087
      %3089 = vmatprep.subr.mxu0 0.0
      %v3090 = vand.u32 %v2006, 4294901760
      %3091 = vmatpush1.msra.mxu0 %v3090
      %3092 = vmatprep.subr.mxu0 0.0
      %v3093 = vand.u32 %v2005, 4294901760
      %3094 = vmatpush1.msra.mxu0 %v3093
      %3095 = vmatprep.subr.mxu0 0.0
      %v3096 = vand.u32 %v2004, 4294901760
      %3097 = vmatpush1.msra.mxu0 %v3096
      %3098 = vmatprep.subr.mxu0 0.0
      %v3099 = vand.u32 %v2003, 4294901760
      %3100 = vmatpush1.msra.mxu0 %v3099
      %3101 = vmatprep.subr.mxu0 0.0
      %v3102 = vand.u32 %v2002, 4294901760
      %3103 = vmatpush1.msra.mxu0 %v3102
      %3104 = vmatprep.subr.mxu0 0.0
      %v3105 = vand.u32 %v2001, 4294901760
      %3106 = vmatpush1.msra.mxu0 %v3105
      %3107 = vmatprep.subr.mxu0 0.0
      %v3108 = vand.u32 %v2000, 4294901760
      %3109 = vmatpush1.msra.mxu0 %v3108
      %3110 = vmatprep.subr.mxu0 0.0
      %v3111 = vand.u32 %v1999, 4294901760
      %3112 = vmatpush1.msra.mxu0 %v3111
      %3113 = vmatprep.subr.mxu0 0.0
      %3114 = vmatpush2.msra.mxu0 0.0
      %3115 = vmatprep.subr.mxu0 0.0
      %3116 = vmatpush2.msra.mxu0 0.0
      %3117 = vmatprep.subr.mxu0 0.0
      %3118 = vmatpush2.msra.mxu0 0.0
      %3119 = vmatprep.subr.mxu0 0.0
      %3120 = vmatpush2.msra.mxu0 0.0
      %3121 = vmatprep.subr.mxu0 0.0
      %3122 = vmatpush2.msra.mxu0 0.0
      %3123 = vmatprep.subr.mxu0 0.0
      %3124 = vmatpush2.msra.mxu0 0.0
      %3125 = vmatprep.subr.mxu0 0.0
      %3126 = vmatpush2.msra.mxu0 0.0
      %3127 = vmatprep.subr.mxu0 0.0
      %v3128 = vand.u32 %v2023, 4294901760
      %3129 = vmatpush2.msra.mxu0 %v3128
      %3130 = vmatprep.subr.mxu0 0.0
      %v3131 = vand.u32 %v2022, 4294901760
      %3132 = vmatpush2.msra.mxu0 %v3131
      %3133 = vmatprep.subr.mxu0 0.0
      %v3134 = vand.u32 %v2021, 4294901760
      %3135 = vmatpush2.msra.mxu0 %v3134
      %3136 = vmatprep.subr.mxu0 0.0
      %v3137 = vand.u32 %v2020, 4294901760
      %3138 = vmatpush2.msra.mxu0 %v3137
      %3139 = vmatprep.subr.mxu0 0.0
      %v3140 = vand.u32 %v2019, 4294901760
      %3141 = vmatpush2.msra.mxu0 %v3140
      %3142 = vmatprep.subr.mxu0 0.0
      %v3143 = vand.u32 %v2018, 4294901760
      %3144 = vmatpush2.msra.mxu0 %v3143
      %3145 = vmatprep.subr.mxu0 0.0
      %v3146 = vand.u32 %v2017, 4294901760
      %3147 = vmatpush2.msra.mxu0 %v3146
      %3148 = vmatprep.subr.mxu0 0.0
      %v3149 = vand.u32 %v2016, 4294901760
      %3150 = vmatpush2.msra.mxu0 %v3149
      %3151 = vmatprep.subr.mxu0 0.0
      %v3152 = vand.u32 %v2015, 4294901760
      %3153 = vmatpush2.msra.mxu0 %v3152
      %v3154 = vand.u32 %v2025, 4294901760
      %3155 = vmatprep.mubr.f32.mxu0 %v3154
      %v3156 = vand.u32 %v1983, 4294901760
      %3157 = vmatmul.mubr.f32.gmra.mxu0 %v3156
      %v3158 = vpop.f32.mrf.mxu0
      %v3159 = vadd.f32 %v3013, %v3158
      %v3160 = vpop.f32.mrf.mxu0
      %v3161 = vand.u32 %v2028, 4294901760
      %3162 = vmatprep.mubr.f32.mxu0 %v3161
      %v3163 = vand.u32 %v1985, 4294901760
      %3164 = vmatmul.mubr.f32.gmra.mxu0 %v3163
      %v3165 = vpop.f32.mrf.mxu0
      %v3166 = vadd.f32 %v3020, %v3165
      %v3167 = vpop.f32.mrf.mxu0
      %v3168 = vand.u32 %v2031, 4294901760
      %3169 = vmatprep.mubr.f32.mxu0 %v3168
      %v3170 = vand.u32 %v1987, 4294901760
      %3171 = vmatmul.mubr.f32.gmra.mxu0 %v3170
      %v3172 = vpop.f32.mrf.mxu0
      %v3173 = vadd.f32 %v3027, %v3172
      %v3174 = vpop.f32.mrf.mxu0
      %v3175 = vand.u32 %v2034, 4294901760
      %3176 = vmatprep.mubr.f32.mxu0 %v3175
      %v3177 = vand.u32 %v1989, 4294901760
      %3178 = vmatmul.mubr.f32.gmra.mxu0 %v3177
      %v3179 = vpop.f32.mrf.mxu0
      %v3180 = vadd.f32 %v3034, %v3179
      %v3181 = vpop.f32.mrf.mxu0
      %v3182 = vand.u32 %v2037, 4294901760
      %3183 = vmatprep.mubr.f32.mxu0 %v3182
      %v3184 = vand.u32 %v1991, 4294901760
      %3185 = vmatmul.mubr.f32.gmra.mxu0 %v3184
      %v3186 = vpop.f32.mrf.mxu0
      %v3187 = vadd.f32 %v3041, %v3186
      %v3188 = vpop.f32.mrf.mxu0
      %v3189 = vand.u32 %v2040, 4294901760
      %3190 = vmatprep.mubr.f32.mxu0 %v3189
      %v3191 = vand.u32 %v1993, 4294901760
      %3192 = vmatmul.mubr.f32.gmra.mxu0 %v3191
      %v3193 = vpop.f32.mrf.mxu0
      %v3194 = vadd.f32 %v3048, %v3193
      %v3195 = vpop.f32.mrf.mxu0
      %v3196 = vand.u32 %v2043, 4294901760
      %3197 = vmatprep.mubr.f32.mxu0 %v3196
      %v3198 = vand.u32 %v1995, 4294901760
      %3199 = vmatmul.mubr.f32.gmra.mxu0 %v3198
      %v3200 = vpop.f32.mrf.mxu0
      %v3201 = vadd.f32 %v3055, %v3200
      %v3202 = vpop.f32.mrf.mxu0
      %v3203 = vand.u32 %v2046, 4294901760
      %3204 = vmatprep.mubr.f32.mxu0 %v3203
      %v3205 = vand.u32 %v1997, 4294901760
      %3206 = vmatmul.mubr.f32.gmra.mxu0 %v3205
      %v3207 = vpop.f32.mrf.mxu0
      %v3208 = vadd.f32 %v3062, %v3207
      %v3209 = vpop.f32.mrf.mxu0
      %3210 = vdwg.mxu0
      %v3211 = vlaneseq
      %v3212 = vshrl.u32 %v3211, 7
      %v3213 = vsub.s32 0, %v3212
      %v3214 = vrot.slane %v1562, %v3213
      %v3215 = vmul.f32 %v3159, %v3214
      %v3216 = vmul.f32 %v3166, %v3214
      %v3217 = vmul.f32 %v3173, %v3214
      %v3218 = vmul.f32 %v3180, %v3214
      %v3219 = vmul.f32 %v3187, %v3214
      %v3220 = vmul.f32 %v3194, %v3214
      %v3221 = vmul.f32 %v3201, %v3214
      %v3222 = vmul.f32 %v3208, %v3214
      %v3223 = vlaneseq
      %v3224 = vshrl.u32 %v3223, 7
      %v3225 = vsub.s32 0, %v3224
      %v3226 = vrot.slane %v1563, %v3225
      %v3227 = vadd.f32 %v3215, %v3226
      %v3228 = vadd.f32 %v3216, %v3226
      %v3229 = vadd.f32 %v3217, %v3226
      %v3230 = vadd.f32 %v3218, %v3226
      %v3231 = vadd.f32 %v3219, %v3226
      %v3232 = vadd.f32 %v3220, %v3226
      %v3233 = vadd.f32 %v3221, %v3226
      %v3234 = vadd.f32 %v3222, %v3226
      %v3235 = vmax.f32 %v3227, 0.0
      %v3236 = vmax.f32 %v3228, 0.0
      %v3237 = vmax.f32 %v3229, 0.0
      %v3238 = vmax.f32 %v3230, 0.0
      %v3239 = vmax.f32 %v3231, 0.0
      %v3240 = vmax.f32 %v3232, 0.0
      %v3241 = vmax.f32 %v3233, 0.0
      %v3242 = vmax.f32 %v3234, 0.0
      %3243 = vst.msk [vmem:[%s1564 + $0x8] sm:$0xff] %vm250, %v3235
      %3244 = vst.msk [vmem:[%s1564 + $0x20] sm:$0xff] %vm250, %v3236
      %3245 = vst.msk [vmem:[%s1564 + $0x38] sm:$0xff] %vm250, %v3237
      %3246 = vst.msk [vmem:[%s1564 + $0x50] sm:$0xff] %vm250, %v3238
      %3247 = vst.msk [vmem:[%s1564 + $0x68] sm:$0xff] %vm250, %v3239
      %3248 = vst.msk [vmem:[%s1564 + $0x80] sm:$0xff] %vm250, %v3240
      %3249 = vst.msk [vmem:[%s1564 + $0x98] sm:$0xff] %vm250, %v3241
      %3250 = vst.msk [vmem:[%s1564 + $0xb0] sm:$0xff] %vm250, %v3242
      %s3251 = scalar_lea.vmem [#allocation2], 144
      %v3252 = vld [vmem:[%s3251 + $0x6] sm:$0xff]
      %v3253 = vld [vmem:[%s3251 + $0x1e] sm:$0xff]
      %v3254 = vld [vmem:[%s3251 + $0x36] sm:$0xff]
      %v3255 = vld [vmem:[%s3251 + $0x4e] sm:$0xff]
      %v3256 = vld [vmem:[%s3251 + $0x66] sm:$0xff]
      %v3257 = vld [vmem:[%s3251 + $0x7e] sm:$0xff]
      %v3258 = vld [vmem:[%s3251 + $0x96] sm:$0xff]
      %v3259 = vld [vmem:[%s3251 + $0xae] sm:$0xff]
      %3260 = vst.msk [vmem:[#allocation3] sm:$0xff] %vm250, %v3252
      %3261 = vst.msk [vmem:[#allocation3 + $0x10] sm:$0xff] %vm250, %v3253
      %3262 = vst.msk [vmem:[#allocation3 + $0x20] sm:$0xff] %vm250, %v3254
      %3263 = vst.msk [vmem:[#allocation3 + $0x30] sm:$0xff] %vm250, %v3255
      %3264 = vst.msk [vmem:[#allocation3 + $0x40] sm:$0xff] %vm250, %v3256
      %3265 = vst.msk [vmem:[#allocation3 + $0x50] sm:$0xff] %vm250, %v3257
      %3266 = vst.msk [vmem:[#allocation3 + $0x60] sm:$0xff] %vm250, %v3258
      %3267 = vst.msk [vmem:[#allocation3 + $0x70] sm:$0xff] %vm250, %v3259
      %v3268 = vld [vmem:[%s3251 + $0x7] sm:$0xff]
      %v3269 = vld [vmem:[%s3251 + $0x1f] sm:$0xff]
      %v3270 = vld [vmem:[%s3251 + $0x37] sm:$0xff]
      %v3271 = vld [vmem:[%s3251 + $0x4f] sm:$0xff]
      %v3272 = vld [vmem:[%s3251 + $0x67] sm:$0xff]
      %v3273 = vld [vmem:[%s3251 + $0x7f] sm:$0xff]
      %v3274 = vld [vmem:[%s3251 + $0x97] sm:$0xff]
      %v3275 = vld [vmem:[%s3251 + $0xaf] sm:$0xff]
      %3284 = vrot.lane.b32.xlu0 %v3268, 8
      %v3285 = vpop.permute.xlu0 %3284
      %3286 = vrot.lane.b32.xlu0 %v3269, 8
      %v3287 = vpop.permute.xlu0 %3286
      %3288 = vrot.lane.b32.xlu0 %v3270, 8
      %v3289 = vpop.permute.xlu0 %3288
      %3290 = vrot.lane.b32.xlu0 %v3271, 8
      %v3291 = vpop.permute.xlu0 %3290
      %3292 = vrot.lane.b32.xlu0 %v3272, 8
      %v3293 = vpop.permute.xlu0 %3292
      %3294 = vrot.lane.b32.xlu0 %v3273, 8
      %v3295 = vpop.permute.xlu0 %3294
      %3296 = vrot.lane.b32.xlu0 %v3274, 8
      %v3297 = vpop.permute.xlu0 %3296
      %3298 = vrot.lane.b32.xlu0 %v3275, 8
      %v3299 = vpop.permute.xlu0 %3298
      %3308 = vst.msk [vmem:[#allocation3] sm:$0xff] %vm1630, %v3285
      %3309 = vst.msk [vmem:[#allocation3 + $0x10] sm:$0xff] %vm1630, %v3287
      %3310 = vst.msk [vmem:[#allocation3 + $0x20] sm:$0xff] %vm1630, %v3289
      %3311 = vst.msk [vmem:[#allocation3 + $0x30] sm:$0xff] %vm1630, %v3291
      %3312 = vst.msk [vmem:[#allocation3 + $0x40] sm:$0xff] %vm1630, %v3293
      %3313 = vst.msk [vmem:[#allocation3 + $0x50] sm:$0xff] %vm1630, %v3295
      %3314 = vst.msk [vmem:[#allocation3 + $0x60] sm:$0xff] %vm1630, %v3297
      %3315 = vst.msk [vmem:[#allocation3 + $0x70] sm:$0xff] %vm1630, %v3299
      %v3316 = vld [vmem:[%s3251 + $0x8] sm:$0xff]
      %v3317 = vld [vmem:[%s3251 + $0x20] sm:$0xff]
      %v3318 = vld [vmem:[%s3251 + $0x38] sm:$0xff]
      %v3319 = vld [vmem:[%s3251 + $0x50] sm:$0xff]
      %v3320 = vld [vmem:[%s3251 + $0x68] sm:$0xff]
      %v3321 = vld [vmem:[%s3251 + $0x80] sm:$0xff]
      %v3322 = vld [vmem:[%s3251 + $0x98] sm:$0xff]
      %v3323 = vld [vmem:[%s3251 + $0xb0] sm:$0xff]
      %3332 = vrot.lane.b32.xlu0 %v3316, 16
      %v3333 = vpop.permute.xlu0 %3332
      %3334 = vrot.lane.b32.xlu0 %v3317, 16
      %v3335 = vpop.permute.xlu0 %3334
      %3336 = vrot.lane.b32.xlu0 %v3318, 16
      %v3337 = vpop.permute.xlu0 %3336
      %3338 = vrot.lane.b32.xlu0 %v3319, 16
      %v3339 = vpop.permute.xlu0 %3338
      %3340 = vrot.lane.b32.xlu0 %v3320, 16
      %v3341 = vpop.permute.xlu0 %3340
      %3342 = vrot.lane.b32.xlu0 %v3321, 16
      %v3343 = vpop.permute.xlu0 %3342
      %3344 = vrot.lane.b32.xlu0 %v3322, 16
      %v3345 = vpop.permute.xlu0 %3344
      %3346 = vrot.lane.b32.xlu0 %v3323, 16
      %v3347 = vpop.permute.xlu0 %3346
      %3356 = vst.msk [vmem:[#allocation3] sm:$0xff] %vm1679, %v3333
      %3357 = vst.msk [vmem:[#allocation3 + $0x10] sm:$0xff] %vm1679, %v3335
      %3358 = vst.msk [vmem:[#allocation3 + $0x20] sm:$0xff] %vm1679, %v3337
      %3359 = vst.msk [vmem:[#allocation3 + $0x30] sm:$0xff] %vm1679, %v3339
      %3360 = vst.msk [vmem:[#allocation3 + $0x40] sm:$0xff] %vm1679, %v3341
      %3361 = vst.msk [vmem:[#allocation3 + $0x50] sm:$0xff] %vm1679, %v3343
      %3362 = vst.msk [vmem:[#allocation3 + $0x60] sm:$0xff] %vm1679, %v3345
      %3363 = vst.msk [vmem:[#allocation3 + $0x70] sm:$0xff] %vm1679, %v3347
      %v3364 = vld [vmem:[%s3251 + $0x9] sm:$0xff]
      %v3365 = vld [vmem:[%s3251 + $0x21] sm:$0xff]
      %v3366 = vld [vmem:[%s3251 + $0x39] sm:$0xff]
      %v3367 = vld [vmem:[%s3251 + $0x51] sm:$0xff]
      %v3368 = vld [vmem:[%s3251 + $0x69] sm:$0xff]
      %v3369 = vld [vmem:[%s3251 + $0x81] sm:$0xff]
      %v3370 = vld [vmem:[%s3251 + $0x99] sm:$0xff]
      %v3371 = vld [vmem:[%s3251 + $0xb1] sm:$0xff]
      %3380 = vrot.lane.b32.xlu0 %v3364, 24
      %v3381 = vpop.permute.xlu0 %3380
      %3382 = vrot.lane.b32.xlu0 %v3365, 24
      %v3383 = vpop.permute.xlu0 %3382
      %3384 = vrot.lane.b32.xlu0 %v3366, 24
      %v3385 = vpop.permute.xlu0 %3384
      %3386 = vrot.lane.b32.xlu0 %v3367, 24
      %v3387 = vpop.permute.xlu0 %3386
      %3388 = vrot.lane.b32.xlu0 %v3368, 24
      %v3389 = vpop.permute.xlu0 %3388
      %3390 = vrot.lane.b32.xlu0 %v3369, 24
      %v3391 = vpop.permute.xlu0 %3390
      %3392 = vrot.lane.b32.xlu0 %v3370, 24
      %v3393 = vpop.permute.xlu0 %3392
      %3394 = vrot.lane.b32.xlu0 %v3371, 24
      %v3395 = vpop.permute.xlu0 %3394
      %3404 = vst.msk [vmem:[#allocation3] sm:$0xff] %vm1728, %v3381
      %3405 = vst.msk [vmem:[#allocation3 + $0x10] sm:$0xff] %vm1728, %v3383
      %3406 = vst.msk [vmem:[#allocation3 + $0x20] sm:$0xff] %vm1728, %v3385
      %3407 = vst.msk [vmem:[#allocation3 + $0x30] sm:$0xff] %vm1728, %v3387
      %3408 = vst.msk [vmem:[#allocation3 + $0x40] sm:$0xff] %vm1728, %v3389
      %3409 = vst.msk [vmem:[#allocation3 + $0x50] sm:$0xff] %vm1728, %v3391
      %3410 = vst.msk [vmem:[#allocation3 + $0x60] sm:$0xff] %vm1728, %v3393
      %3411 = vst.msk [vmem:[#allocation3 + $0x70] sm:$0xff] %vm1728, %v3395
      %v3412 = vld [vmem:[%s3251 + $0xa] sm:$0xff]
      %v3413 = vld [vmem:[%s3251 + $0x22] sm:$0xff]
      %v3414 = vld [vmem:[%s3251 + $0x3a] sm:$0xff]
      %v3415 = vld [vmem:[%s3251 + $0x52] sm:$0xff]
      %v3416 = vld [vmem:[%s3251 + $0x6a] sm:$0xff]
      %v3417 = vld [vmem:[%s3251 + $0x82] sm:$0xff]
      %v3418 = vld [vmem:[%s3251 + $0x9a] sm:$0xff]
      %v3419 = vld [vmem:[%s3251 + $0xb2] sm:$0xff]
      %3428 = vrot.lane.b32.xlu0 %v3412, 32
      %v3429 = vpop.permute.xlu0 %3428
      %3430 = vrot.lane.b32.xlu0 %v3413, 32
      %v3431 = vpop.permute.xlu0 %3430
      %3432 = vrot.lane.b32.xlu0 %v3414, 32
      %v3433 = vpop.permute.xlu0 %3432
      %3434 = vrot.lane.b32.xlu0 %v3415, 32
      %v3435 = vpop.permute.xlu0 %3434
      %3436 = vrot.lane.b32.xlu0 %v3416, 32
      %v3437 = vpop.permute.xlu0 %3436
      %3438 = vrot.lane.b32.xlu0 %v3417, 32
      %v3439 = vpop.permute.xlu0 %3438
      %3440 = vrot.lane.b32.xlu0 %v3418, 32
      %v3441 = vpop.permute.xlu0 %3440
      %3442 = vrot.lane.b32.xlu0 %v3419, 32
      %v3443 = vpop.permute.xlu0 %3442
      %3452 = vst.msk [vmem:[#allocation3] sm:$0xff] %vm1777, %v3429
      %3453 = vst.msk [vmem:[#allocation3 + $0x10] sm:$0xff] %vm1777, %v3431
      %3454 = vst.msk [vmem:[#allocation3 + $0x20] sm:$0xff] %vm1777, %v3433
      %3455 = vst.msk [vmem:[#allocation3 + $0x30] sm:$0xff] %vm1777, %v3435
      %3456 = vst.msk [vmem:[#allocation3 + $0x40] sm:$0xff] %vm1777, %v3437
      %3457 = vst.msk [vmem:[#allocation3 + $0x50] sm:$0xff] %vm1777, %v3439
      %3458 = vst.msk [vmem:[#allocation3 + $0x60] sm:$0xff] %vm1777, %v3441
      %3459 = vst.msk [vmem:[#allocation3 + $0x70] sm:$0xff] %vm1777, %v3443
      %v3460 = vld [vmem:[%s1573 + $0x6] sm:$0xff]
      %v3461 = vld [vmem:[%s1573 + $0x1e] sm:$0xff]
      %v3462 = vld [vmem:[%s1573 + $0x36] sm:$0xff]
      %v3463 = vld [vmem:[%s1573 + $0x4e] sm:$0xff]
      %v3464 = vld [vmem:[%s1573 + $0x66] sm:$0xff]
      %v3465 = vld [vmem:[%s1573 + $0x7e] sm:$0xff]
      %v3466 = vld [vmem:[%s1573 + $0x96] sm:$0xff]
      %v3467 = vld [vmem:[%s1573 + $0xae] sm:$0xff]
      %3476 = vrot.lane.b32.xlu0 %v3460, 40
      %v3477 = vpop.permute.xlu0 %3476
      %3478 = vrot.lane.b32.xlu0 %v3461, 40
      %v3479 = vpop.permute.xlu0 %3478
      %3480 = vrot.lane.b32.xlu0 %v3462, 40
      %v3481 = vpop.permute.xlu0 %3480
      %3482 = vrot.lane.b32.xlu0 %v3463, 40
      %v3483 = vpop.permute.xlu0 %3482
      %3484 = vrot.lane.b32.xlu0 %v3464, 40
      %v3485 = vpop.permute.xlu0 %3484
      %3486 = vrot.lane.b32.xlu0 %v3465, 40
      %v3487 = vpop.permute.xlu0 %3486
      %3488 = vrot.lane.b32.xlu0 %v3466, 40
      %v3489 = vpop.permute.xlu0 %3488
      %3490 = vrot.lane.b32.xlu0 %v3467, 40
      %v3491 = vpop.permute.xlu0 %3490
      %3500 = vst.msk [vmem:[#allocation3] sm:$0xff] %vm1826, %v3477
      %3501 = vst.msk [vmem:[#allocation3 + $0x10] sm:$0xff] %vm1826, %v3479
      %3502 = vst.msk [vmem:[#allocation3 + $0x20] sm:$0xff] %vm1826, %v3481
      %3503 = vst.msk [vmem:[#allocation3 + $0x30] sm:$0xff] %vm1826, %v3483
      %3504 = vst.msk [vmem:[#allocation3 + $0x40] sm:$0xff] %vm1826, %v3485
      %3505 = vst.msk [vmem:[#allocation3 + $0x50] sm:$0xff] %vm1826, %v3487
      %3506 = vst.msk [vmem:[#allocation3 + $0x60] sm:$0xff] %vm1826, %v3489
      %3507 = vst.msk [vmem:[#allocation3 + $0x70] sm:$0xff] %vm1826, %v3491
      %v3508 = vld [vmem:[%s1573 + $0x7] sm:$0xff]
      %v3509 = vld [vmem:[%s1573 + $0x1f] sm:$0xff]
      %v3510 = vld [vmem:[%s1573 + $0x37] sm:$0xff]
      %v3511 = vld [vmem:[%s1573 + $0x4f] sm:$0xff]
      %v3512 = vld [vmem:[%s1573 + $0x67] sm:$0xff]
      %v3513 = vld [vmem:[%s1573 + $0x7f] sm:$0xff]
      %v3514 = vld [vmem:[%s1573 + $0x97] sm:$0xff]
      %v3515 = vld [vmem:[%s1573 + $0xaf] sm:$0xff]
      %3524 = vrot.lane.b32.xlu0 %v3508, 48
      %v3525 = vpop.permute.xlu0 %3524
      %3526 = vrot.lane.b32.xlu0 %v3509, 48
      %v3527 = vpop.permute.xlu0 %3526
      %3528 = vrot.lane.b32.xlu0 %v3510, 48
      %v3529 = vpop.permute.xlu0 %3528
      %3530 = vrot.lane.b32.xlu0 %v3511, 48
      %v3531 = vpop.permute.xlu0 %3530
      %3532 = vrot.lane.b32.xlu0 %v3512, 48
      %v3533 = vpop.permute.xlu0 %3532
      %3534 = vrot.lane.b32.xlu0 %v3513, 48
      %v3535 = vpop.permute.xlu0 %3534
      %3536 = vrot.lane.b32.xlu0 %v3514, 48
      %v3537 = vpop.permute.xlu0 %3536
      %3538 = vrot.lane.b32.xlu0 %v3515, 48
      %v3539 = vpop.permute.xlu0 %3538
      %3548 = vst.msk [vmem:[#allocation3] sm:$0xff] %vm1876, %v3525
      %3549 = vst.msk [vmem:[#allocation3 + $0x10] sm:$0xff] %vm1876, %v3527
      %3550 = vst.msk [vmem:[#allocation3 + $0x20] sm:$0xff] %vm1876, %v3529
      %3551 = vst.msk [vmem:[#allocation3 + $0x30] sm:$0xff] %vm1876, %v3531
      %3552 = vst.msk [vmem:[#allocation3 + $0x40] sm:$0xff] %vm1876, %v3533
      %3553 = vst.msk [vmem:[#allocation3 + $0x50] sm:$0xff] %vm1876, %v3535
      %3554 = vst.msk [vmem:[#allocation3 + $0x60] sm:$0xff] %vm1876, %v3537
      %3555 = vst.msk [vmem:[#allocation3 + $0x70] sm:$0xff] %vm1876, %v3539
      %v3556 = vld [vmem:[%s1573 + $0x8] sm:$0xff]
      %v3557 = vld [vmem:[%s1573 + $0x20] sm:$0xff]
      %v3558 = vld [vmem:[%s1573 + $0x38] sm:$0xff]
      %v3559 = vld [vmem:[%s1573 + $0x50] sm:$0xff]
      %v3560 = vld [vmem:[%s1573 + $0x68] sm:$0xff]
      %v3561 = vld [vmem:[%s1573 + $0x80] sm:$0xff]
      %v3562 = vld [vmem:[%s1573 + $0x98] sm:$0xff]
      %v3563 = vld [vmem:[%s1573 + $0xb0] sm:$0xff]
      %3572 = vrot.lane.b32.xlu0 %v3556, 56
      %v3573 = vpop.permute.xlu0 %3572
      %3574 = vrot.lane.b32.xlu0 %v3557, 56
      %v3575 = vpop.permute.xlu0 %3574
      %3576 = vrot.lane.b32.xlu0 %v3558, 56
      %v3577 = vpop.permute.xlu0 %3576
      %3578 = vrot.lane.b32.xlu0 %v3559, 56
      %v3579 = vpop.permute.xlu0 %3578
      %3580 = vrot.lane.b32.xlu0 %v3560, 56
      %v3581 = vpop.permute.xlu0 %3580
      %3582 = vrot.lane.b32.xlu0 %v3561, 56
      %v3583 = vpop.permute.xlu0 %3582
      %3584 = vrot.lane.b32.xlu0 %v3562, 56
      %v3585 = vpop.permute.xlu0 %3584
      %3586 = vrot.lane.b32.xlu0 %v3563, 56
      %v3587 = vpop.permute.xlu0 %3586
      %3596 = vst.msk [vmem:[#allocation3] sm:$0xff] %vm1925, %v3573
      %3597 = vst.msk [vmem:[#allocation3 + $0x10] sm:$0xff] %vm1925, %v3575
      %3598 = vst.msk [vmem:[#allocation3 + $0x20] sm:$0xff] %vm1925, %v3577
      %3599 = vst.msk [vmem:[#allocation3 + $0x30] sm:$0xff] %vm1925, %v3579
      %3600 = vst.msk [vmem:[#allocation3 + $0x40] sm:$0xff] %vm1925, %v3581
      %3601 = vst.msk [vmem:[#allocation3 + $0x50] sm:$0xff] %vm1925, %v3583
      %3602 = vst.msk [vmem:[#allocation3 + $0x60] sm:$0xff] %vm1925, %v3585
      %3603 = vst.msk [vmem:[#allocation3 + $0x70] sm:$0xff] %vm1925, %v3587
      %v3604 = vld [vmem:[%s1573 + $0x9] sm:$0xff]
      %v3605 = vld [vmem:[%s1573 + $0x21] sm:$0xff]
      %v3606 = vld [vmem:[%s1573 + $0x39] sm:$0xff]
      %v3607 = vld [vmem:[%s1573 + $0x51] sm:$0xff]
      %v3608 = vld [vmem:[%s1573 + $0x69] sm:$0xff]
      %v3609 = vld [vmem:[%s1573 + $0x81] sm:$0xff]
      %v3610 = vld [vmem:[%s1573 + $0x99] sm:$0xff]
      %v3611 = vld [vmem:[%s1573 + $0xb1] sm:$0xff]
      %3620 = vrot.lane.b32.xlu0 %v3604, 64
      %v3621 = vpop.permute.xlu0 %3620
      %3622 = vrot.lane.b32.xlu0 %v3605, 64
      %v3623 = vpop.permute.xlu0 %3622
      %3624 = vrot.lane.b32.xlu0 %v3606, 64
      %v3625 = vpop.permute.xlu0 %3624
      %3626 = vrot.lane.b32.xlu0 %v3607, 64
      %v3627 = vpop.permute.xlu0 %3626
      %3628 = vrot.lane.b32.xlu0 %v3608, 64
      %v3629 = vpop.permute.xlu0 %3628
      %3630 = vrot.lane.b32.xlu0 %v3609, 64
      %v3631 = vpop.permute.xlu0 %3630
      %3632 = vrot.lane.b32.xlu0 %v3610, 64
      %v3633 = vpop.permute.xlu0 %3632
      %3634 = vrot.lane.b32.xlu0 %v3611, 64
      %v3635 = vpop.permute.xlu0 %3634
      %3644 = vst.msk [vmem:[#allocation3] sm:$0xff] %vm1974, %v3621
      %3645 = vst.msk [vmem:[#allocation3 + $0x10] sm:$0xff] %vm1974, %v3623
      %3646 = vst.msk [vmem:[#allocation3 + $0x20] sm:$0xff] %vm1974, %v3625
      %3647 = vst.msk [vmem:[#allocation3 + $0x30] sm:$0xff] %vm1974, %v3627
      %3648 = vst.msk [vmem:[#allocation3 + $0x40] sm:$0xff] %vm1974, %v3629
      %3649 = vst.msk [vmem:[#allocation3 + $0x50] sm:$0xff] %vm1974, %v3631
      %3650 = vst.msk [vmem:[#allocation3 + $0x60] sm:$0xff] %vm1974, %v3633
      %3651 = vst.msk [vmem:[#allocation3 + $0x70] sm:$0xff] %vm1974, %v3635
      %v3652 = vld [vmem:[%s1573 + $0xa] sm:$0xff]
      %v3653 = vld [vmem:[%s1573 + $0x22] sm:$0xff]
      %v3654 = vld [vmem:[%s1573 + $0x3a] sm:$0xff]
      %v3655 = vld [vmem:[%s1573 + $0x52] sm:$0xff]
      %v3656 = vld [vmem:[%s1573 + $0x6a] sm:$0xff]
      %v3657 = vld [vmem:[%s1573 + $0x82] sm:$0xff]
      %v3658 = vld [vmem:[%s1573 + $0x9a] sm:$0xff]
      %v3659 = vld [vmem:[%s1573 + $0xb2] sm:$0xff]
      %3668 = vrot.lane.b32.xlu0 %v3652, 72
      %v3669 = vpop.permute.xlu0 %3668
      %3670 = vrot.lane.b32.xlu0 %v3653, 72
      %v3671 = vpop.permute.xlu0 %3670
      %3672 = vrot.lane.b32.xlu0 %v3654, 72
      %v3673 = vpop.permute.xlu0 %3672
      %3674 = vrot.lane.b32.xlu0 %v3655, 72
      %v3675 = vpop.permute.xlu0 %3674
      %3676 = vrot.lane.b32.xlu0 %v3656, 72
      %v3677 = vpop.permute.xlu0 %3676
      %3678 = vrot.lane.b32.xlu0 %v3657, 72
      %v3679 = vpop.permute.xlu0 %3678
      %3680 = vrot.lane.b32.xlu0 %v3658, 72
      %v3681 = vpop.permute.xlu0 %3680
      %3682 = vrot.lane.b32.xlu0 %v3659, 72
      %v3683 = vpop.permute.xlu0 %3682
      %vm3692 = vcmask 654912
      %3693 = vst.msk [vmem:[#allocation3] sm:$0xff] %vm3692, %v3669
      %3694 = vst.msk [vmem:[#allocation3 + $0x10] sm:$0xff] %vm3692, %v3671
      %3695 = vst.msk [vmem:[#allocation3 + $0x20] sm:$0xff] %vm3692, %v3673
      %3696 = vst.msk [vmem:[#allocation3 + $0x30] sm:$0xff] %vm3692, %v3675
      %3697 = vst.msk [vmem:[#allocation3 + $0x40] sm:$0xff] %vm3692, %v3677
      %3698 = vst.msk [vmem:[#allocation3 + $0x50] sm:$0xff] %vm3692, %v3679
      %3699 = vst.msk [vmem:[#allocation3 + $0x60] sm:$0xff] %vm3692, %v3681
      %3700 = vst.msk [vmem:[#allocation3 + $0x70] sm:$0xff] %vm3692, %v3683
      %v3701 = vld [vmem:[%s1564 + $0x6] sm:$0xff]
      %v3702 = vld [vmem:[%s1564 + $0x1e] sm:$0xff]
      %v3703 = vld [vmem:[%s1564 + $0x36] sm:$0xff]
      %v3704 = vld [vmem:[%s1564 + $0x4e] sm:$0xff]
      %v3705 = vld [vmem:[%s1564 + $0x66] sm:$0xff]
      %v3706 = vld [vmem:[%s1564 + $0x7e] sm:$0xff]
      %v3707 = vld [vmem:[%s1564 + $0x96] sm:$0xff]
      %v3708 = vld [vmem:[%s1564 + $0xae] sm:$0xff]
      %3717 = vrot.lane.b32.xlu0 %v3701, 80
      %v3718 = vpop.permute.xlu0 %3717
      %3719 = vrot.lane.b32.xlu0 %v3702, 80
      %v3720 = vpop.permute.xlu0 %3719
      %3721 = vrot.lane.b32.xlu0 %v3703, 80
      %v3722 = vpop.permute.xlu0 %3721
      %3723 = vrot.lane.b32.xlu0 %v3704, 80
      %v3724 = vpop.permute.xlu0 %3723
      %3725 = vrot.lane.b32.xlu0 %v3705, 80
      %v3726 = vpop.permute.xlu0 %3725
      %3727 = vrot.lane.b32.xlu0 %v3706, 80
      %v3728 = vpop.permute.xlu0 %3727
      %3729 = vrot.lane.b32.xlu0 %v3707, 80
      %v3730 = vpop.permute.xlu0 %3729
      %3731 = vrot.lane.b32.xlu0 %v3708, 80
      %v3732 = vpop.permute.xlu0 %3731
      %vm3741 = vcmask 720512
      %3742 = vst.msk [vmem:[#allocation3] sm:$0xff] %vm3741, %v3718
      %3743 = vst.msk [vmem:[#allocation3 + $0x10] sm:$0xff] %vm3741, %v3720
      %3744 = vst.msk [vmem:[#allocation3 + $0x20] sm:$0xff] %vm3741, %v3722
      %3745 = vst.msk [vmem:[#allocation3 + $0x30] sm:$0xff] %vm3741, %v3724
      %3746 = vst.msk [vmem:[#allocation3 + $0x40] sm:$0xff] %vm3741, %v3726
      %3747 = vst.msk [vmem:[#allocation3 + $0x50] sm:$0xff] %vm3741, %v3728
      %3748 = vst.msk [vmem:[#allocation3 + $0x60] sm:$0xff] %vm3741, %v3730
      %3749 = vst.msk [vmem:[#allocation3 + $0x70] sm:$0xff] %vm3741, %v3732
      %v3750 = vld [vmem:[%s1564 + $0x7] sm:$0xff]
      %v3751 = vld [vmem:[%s1564 + $0x1f] sm:$0xff]
      %v3752 = vld [vmem:[%s1564 + $0x37] sm:$0xff]
      %v3753 = vld [vmem:[%s1564 + $0x4f] sm:$0xff]
      %v3754 = vld [vmem:[%s1564 + $0x67] sm:$0xff]
      %v3755 = vld [vmem:[%s1564 + $0x7f] sm:$0xff]
      %v3756 = vld [vmem:[%s1564 + $0x97] sm:$0xff]
      %v3757 = vld [vmem:[%s1564 + $0xaf] sm:$0xff]
      %3766 = vrot.lane.b32.xlu0 %v3750, 88
      %v3767 = vpop.permute.xlu0 %3766
      %3768 = vrot.lane.b32.xlu0 %v3751, 88
      %v3769 = vpop.permute.xlu0 %3768
      %3770 = vrot.lane.b32.xlu0 %v3752, 88
      %v3771 = vpop.permute.xlu0 %3770
      %3772 = vrot.lane.b32.xlu0 %v3753, 88
      %v3773 = vpop.permute.xlu0 %3772
      %3774 = vrot.lane.b32.xlu0 %v3754, 88
      %v3775 = vpop.permute.xlu0 %3774
      %3776 = vrot.lane.b32.xlu0 %v3755, 88
      %v3777 = vpop.permute.xlu0 %3776
      %3778 = vrot.lane.b32.xlu0 %v3756, 88
      %v3779 = vpop.permute.xlu0 %3778
      %3780 = vrot.lane.b32.xlu0 %v3757, 88
      %v3781 = vpop.permute.xlu0 %3780
      %vm3790 = vcmask 786112
      %3791 = vst.msk [vmem:[#allocation3] sm:$0xff] %vm3790, %v3767
      %3792 = vst.msk [vmem:[#allocation3 + $0x10] sm:$0xff] %vm3790, %v3769
      %3793 = vst.msk [vmem:[#allocation3 + $0x20] sm:$0xff] %vm3790, %v3771
      %3794 = vst.msk [vmem:[#allocation3 + $0x30] sm:$0xff] %vm3790, %v3773
      %3795 = vst.msk [vmem:[#allocation3 + $0x40] sm:$0xff] %vm3790, %v3775
      %3796 = vst.msk [vmem:[#allocation3 + $0x50] sm:$0xff] %vm3790, %v3777
      %3797 = vst.msk [vmem:[#allocation3 + $0x60] sm:$0xff] %vm3790, %v3779
      %3798 = vst.msk [vmem:[#allocation3 + $0x70] sm:$0xff] %vm3790, %v3781
      %v3799 = vld [vmem:[%s1564 + $0x8] sm:$0xff]
      %v3800 = vld [vmem:[%s1564 + $0x20] sm:$0xff]
      %v3801 = vld [vmem:[%s1564 + $0x38] sm:$0xff]
      %v3802 = vld [vmem:[%s1564 + $0x50] sm:$0xff]
      %v3803 = vld [vmem:[%s1564 + $0x68] sm:$0xff]
      %v3804 = vld [vmem:[%s1564 + $0x80] sm:$0xff]
      %v3805 = vld [vmem:[%s1564 + $0x98] sm:$0xff]
      %v3806 = vld [vmem:[%s1564 + $0xb0] sm:$0xff]
      %3815 = vrot.lane.b32.xlu0 %v3799, 96
      %v3816 = vpop.permute.xlu0 %3815
      %3817 = vrot.lane.b32.xlu0 %v3800, 96
      %v3818 = vpop.permute.xlu0 %3817
      %3819 = vrot.lane.b32.xlu0 %v3801, 96
      %v3820 = vpop.permute.xlu0 %3819
      %3821 = vrot.lane.b32.xlu0 %v3802, 96
      %v3822 = vpop.permute.xlu0 %3821
      %3823 = vrot.lane.b32.xlu0 %v3803, 96
      %v3824 = vpop.permute.xlu0 %3823
      %3825 = vrot.lane.b32.xlu0 %v3804, 96
      %v3826 = vpop.permute.xlu0 %3825
      %3827 = vrot.lane.b32.xlu0 %v3805, 96
      %v3828 = vpop.permute.xlu0 %3827
      %3829 = vrot.lane.b32.xlu0 %v3806, 96
      %v3830 = vpop.permute.xlu0 %3829
      %vm3839 = vcmask 851712
      %3840 = vst.msk [vmem:[#allocation3] sm:$0xff] %vm3839, %v3816
      %3841 = vst.msk [vmem:[#allocation3 + $0x10] sm:$0xff] %vm3839, %v3818
      %3842 = vst.msk [vmem:[#allocation3 + $0x20] sm:$0xff] %vm3839, %v3820
      %3843 = vst.msk [vmem:[#allocation3 + $0x30] sm:$0xff] %vm3839, %v3822
      %3844 = vst.msk [vmem:[#allocation3 + $0x40] sm:$0xff] %vm3839, %v3824
      %3845 = vst.msk [vmem:[#allocation3 + $0x50] sm:$0xff] %vm3839, %v3826
      %3846 = vst.msk [vmem:[#allocation3 + $0x60] sm:$0xff] %vm3839, %v3828
      %3847 = vst.msk [vmem:[#allocation3 + $0x70] sm:$0xff] %vm3839, %v3830
      %v3848 = vld [vmem:[%s1564 + $0x9] sm:$0xff]
      %v3849 = vld [vmem:[%s1564 + $0x21] sm:$0xff]
      %v3850 = vld [vmem:[%s1564 + $0x39] sm:$0xff]
      %v3851 = vld [vmem:[%s1564 + $0x51] sm:$0xff]
      %v3852 = vld [vmem:[%s1564 + $0x69] sm:$0xff]
      %v3853 = vld [vmem:[%s1564 + $0x81] sm:$0xff]
      %v3854 = vld [vmem:[%s1564 + $0x99] sm:$0xff]
      %v3855 = vld [vmem:[%s1564 + $0xb1] sm:$0xff]
      %3864 = vrot.lane.b32.xlu0 %v3848, 104
      %v3865 = vpop.permute.xlu0 %3864
      %3866 = vrot.lane.b32.xlu0 %v3849, 104
      %v3867 = vpop.permute.xlu0 %3866
      %3868 = vrot.lane.b32.xlu0 %v3850, 104
      %v3869 = vpop.permute.xlu0 %3868
      %3870 = vrot.lane.b32.xlu0 %v3851, 104
      %v3871 = vpop.permute.xlu0 %3870
      %3872 = vrot.lane.b32.xlu0 %v3852, 104
      %v3873 = vpop.permute.xlu0 %3872
      %3874 = vrot.lane.b32.xlu0 %v3853, 104
      %v3875 = vpop.permute.xlu0 %3874
      %3876 = vrot.lane.b32.xlu0 %v3854, 104
      %v3877 = vpop.permute.xlu0 %3876
      %3878 = vrot.lane.b32.xlu0 %v3855, 104
      %v3879 = vpop.permute.xlu0 %3878
      %vm3888 = vcmask 917312
      %3889 = vst.msk [vmem:[#allocation3] sm:$0xff] %vm3888, %v3865
      %3890 = vst.msk [vmem:[#allocation3 + $0x10] sm:$0xff] %vm3888, %v3867
      %3891 = vst.msk [vmem:[#allocation3 + $0x20] sm:$0xff] %vm3888, %v3869
      %3892 = vst.msk [vmem:[#allocation3 + $0x30] sm:$0xff] %vm3888, %v3871
      %3893 = vst.msk [vmem:[#allocation3 + $0x40] sm:$0xff] %vm3888, %v3873
      %3894 = vst.msk [vmem:[#allocation3 + $0x50] sm:$0xff] %vm3888, %v3875
      %3895 = vst.msk [vmem:[#allocation3 + $0x60] sm:$0xff] %vm3888, %v3877
      %3896 = vst.msk [vmem:[#allocation3 + $0x70] sm:$0xff] %vm3888, %v3879
      %v3897 = vld [vmem:[%s1564 + $0xa] sm:$0xff]
      %v3898 = vld [vmem:[%s1564 + $0x22] sm:$0xff]
      %v3899 = vld [vmem:[%s1564 + $0x3a] sm:$0xff]
      %v3900 = vld [vmem:[%s1564 + $0x52] sm:$0xff]
      %v3901 = vld [vmem:[%s1564 + $0x6a] sm:$0xff]
      %v3902 = vld [vmem:[%s1564 + $0x82] sm:$0xff]
      %v3903 = vld [vmem:[%s1564 + $0x9a] sm:$0xff]
      %v3904 = vld [vmem:[%s1564 + $0xb2] sm:$0xff]
      %3913 = vrot.lane.b32.xlu0 %v3897, 112
      %v3914 = vpop.permute.xlu0 %3913
      %3915 = vrot.lane.b32.xlu0 %v3898, 112
      %v3916 = vpop.permute.xlu0 %3915
      %3917 = vrot.lane.b32.xlu0 %v3899, 112
      %v3918 = vpop.permute.xlu0 %3917
      %3919 = vrot.lane.b32.xlu0 %v3900, 112
      %v3920 = vpop.permute.xlu0 %3919
      %3921 = vrot.lane.b32.xlu0 %v3901, 112
      %v3922 = vpop.permute.xlu0 %3921
      %3923 = vrot.lane.b32.xlu0 %v3902, 112
      %v3924 = vpop.permute.xlu0 %3923
      %3925 = vrot.lane.b32.xlu0 %v3903, 112
      %v3926 = vpop.permute.xlu0 %3925
      %3927 = vrot.lane.b32.xlu0 %v3904, 112
      %v3928 = vpop.permute.xlu0 %3927
      %vm3937 = vcmask 982912
      %3938 = vst.msk [vmem:[#allocation3] sm:$0xff] %vm3937, %v3914
      %3939 = vst.msk [vmem:[#allocation3 + $0x10] sm:$0xff] %vm3937, %v3916
      %3940 = vst.msk [vmem:[#allocation3 + $0x20] sm:$0xff] %vm3937, %v3918
      %3941 = vst.msk [vmem:[#allocation3 + $0x30] sm:$0xff] %vm3937, %v3920
      %3942 = vst.msk [vmem:[#allocation3 + $0x40] sm:$0xff] %vm3937, %v3922
      %3943 = vst.msk [vmem:[#allocation3 + $0x50] sm:$0xff] %vm3937, %v3924
      %3944 = vst.msk [vmem:[#allocation3 + $0x60] sm:$0xff] %vm3937, %v3926
      %3945 = vst.msk [vmem:[#allocation3 + $0x70] sm:$0xff] %vm3937, %v3928
      %v3946 = vld [vmem:[%s1835 + $0x6] sm:$0xff]
      %v3947 = vld [vmem:[%s1835 + $0x1e] sm:$0xff]
      %v3948 = vld [vmem:[%s1835 + $0x36] sm:$0xff]
      %v3949 = vld [vmem:[%s1835 + $0x4e] sm:$0xff]
      %v3950 = vld [vmem:[%s1835 + $0x66] sm:$0xff]
      %v3951 = vld [vmem:[%s1835 + $0x7e] sm:$0xff]
      %v3952 = vld [vmem:[%s1835 + $0x96] sm:$0xff]
      %v3953 = vld [vmem:[%s1835 + $0xae] sm:$0xff]
      %3962 = vrot.lane.b32.xlu0 %v3946, 120
      %v3963 = vpop.permute.xlu0 %3962
      %3964 = vrot.lane.b32.xlu0 %v3947, 120
      %v3965 = vpop.permute.xlu0 %3964
      %3966 = vrot.lane.b32.xlu0 %v3948, 120
      %v3967 = vpop.permute.xlu0 %3966
      %3968 = vrot.lane.b32.xlu0 %v3949, 120
      %v3969 = vpop.permute.xlu0 %3968
      %3970 = vrot.lane.b32.xlu0 %v3950, 120
      %v3971 = vpop.permute.xlu0 %3970
      %3972 = vrot.lane.b32.xlu0 %v3951, 120
      %v3973 = vpop.permute.xlu0 %3972
      %3974 = vrot.lane.b32.xlu0 %v3952, 120
      %v3975 = vpop.permute.xlu0 %3974
      %3976 = vrot.lane.b32.xlu0 %v3953, 120
      %v3977 = vpop.permute.xlu0 %3976
      %vm3986 = vcmask 1048512
      %3987 = vst.msk [vmem:[#allocation3] sm:$0xff] %vm3986, %v3963
      %3988 = vst.msk [vmem:[#allocation3 + $0x10] sm:$0xff] %vm3986, %v3965
      %3989 = vst.msk [vmem:[#allocation3 + $0x20] sm:$0xff] %vm3986, %v3967
      %3990 = vst.msk [vmem:[#allocation3 + $0x30] sm:$0xff] %vm3986, %v3969
      %3991 = vst.msk [vmem:[#allocation3 + $0x40] sm:$0xff] %vm3986, %v3971
      %3992 = vst.msk [vmem:[#allocation3 + $0x50] sm:$0xff] %vm3986, %v3973
      %3993 = vst.msk [vmem:[#allocation3 + $0x60] sm:$0xff] %vm3986, %v3975
      %3994 = vst.msk [vmem:[#allocation3 + $0x70] sm:$0xff] %vm3986, %v3977
      %v3995 = vld [vmem:[%s1835 + $0x7] sm:$0xff]
      %v3996 = vld [vmem:[%s1835 + $0x1f] sm:$0xff]
      %v3997 = vld [vmem:[%s1835 + $0x37] sm:$0xff]
      %v3998 = vld [vmem:[%s1835 + $0x4f] sm:$0xff]
      %v3999 = vld [vmem:[%s1835 + $0x67] sm:$0xff]
      %v4000 = vld [vmem:[%s1835 + $0x7f] sm:$0xff]
      %v4001 = vld [vmem:[%s1835 + $0x97] sm:$0xff]
      %v4002 = vld [vmem:[%s1835 + $0xaf] sm:$0xff]
      %4003 = vst.msk [vmem:[#allocation3 + $0x8] sm:$0xff] %vm250, %v3995
      %4004 = vst.msk [vmem:[#allocation3 + $0x18] sm:$0xff] %vm250, %v3996
      %4005 = vst.msk [vmem:[#allocation3 + $0x28] sm:$0xff] %vm250, %v3997
      %4006 = vst.msk [vmem:[#allocation3 + $0x38] sm:$0xff] %vm250, %v3998
      %4007 = vst.msk [vmem:[#allocation3 + $0x48] sm:$0xff] %vm250, %v3999
      %4008 = vst.msk [vmem:[#allocation3 + $0x58] sm:$0xff] %vm250, %v4000
      %4009 = vst.msk [vmem:[#allocation3 + $0x68] sm:$0xff] %vm250, %v4001
      %4010 = vst.msk [vmem:[#allocation3 + $0x78] sm:$0xff] %vm250, %v4002
      %v4011 = vld [vmem:[%s1835 + $0x8] sm:$0xff]
      %v4012 = vld [vmem:[%s1835 + $0x20] sm:$0xff]
      %v4013 = vld [vmem:[%s1835 + $0x38] sm:$0xff]
      %v4014 = vld [vmem:[%s1835 + $0x50] sm:$0xff]
      %v4015 = vld [vmem:[%s1835 + $0x68] sm:$0xff]
      %v4016 = vld [vmem:[%s1835 + $0x80] sm:$0xff]
      %v4017 = vld [vmem:[%s1835 + $0x98] sm:$0xff]
      %v4018 = vld [vmem:[%s1835 + $0xb0] sm:$0xff]
      %4027 = vrot.lane.b32.xlu0 %v4011, 8
      %v4028 = vpop.permute.xlu0 %4027
      %4029 = vrot.lane.b32.xlu0 %v4012, 8
      %v4030 = vpop.permute.xlu0 %4029
      %4031 = vrot.lane.b32.xlu0 %v4013, 8
      %v4032 = vpop.permute.xlu0 %4031
      %4033 = vrot.lane.b32.xlu0 %v4014, 8
      %v4034 = vpop.permute.xlu0 %4033
      %4035 = vrot.lane.b32.xlu0 %v4015, 8
      %v4036 = vpop.permute.xlu0 %4035
      %4037 = vrot.lane.b32.xlu0 %v4016, 8
      %v4038 = vpop.permute.xlu0 %4037
      %4039 = vrot.lane.b32.xlu0 %v4017, 8
      %v4040 = vpop.permute.xlu0 %4039
      %4041 = vrot.lane.b32.xlu0 %v4018, 8
      %v4042 = vpop.permute.xlu0 %4041
      %4051 = vst.msk [vmem:[#allocation3 + $0x8] sm:$0xff] %vm1630, %v4028
      %4052 = vst.msk [vmem:[#allocation3 + $0x18] sm:$0xff] %vm1630, %v4030
      %4053 = vst.msk [vmem:[#allocation3 + $0x28] sm:$0xff] %vm1630, %v4032
      %4054 = vst.msk [vmem:[#allocation3 + $0x38] sm:$0xff] %vm1630, %v4034
      %4055 = vst.msk [vmem:[#allocation3 + $0x48] sm:$0xff] %vm1630, %v4036
      %4056 = vst.msk [vmem:[#allocation3 + $0x58] sm:$0xff] %vm1630, %v4038
      %4057 = vst.msk [vmem:[#allocation3 + $0x68] sm:$0xff] %vm1630, %v4040
      %4058 = vst.msk [vmem:[#allocation3 + $0x78] sm:$0xff] %vm1630, %v4042
      %v4059 = vld [vmem:[%s1835 + $0x9] sm:$0xff]
      %v4060 = vld [vmem:[%s1835 + $0x21] sm:$0xff]
      %v4061 = vld [vmem:[%s1835 + $0x39] sm:$0xff]
      %v4062 = vld [vmem:[%s1835 + $0x51] sm:$0xff]
      %v4063 = vld [vmem:[%s1835 + $0x69] sm:$0xff]
      %v4064 = vld [vmem:[%s1835 + $0x81] sm:$0xff]
      %v4065 = vld [vmem:[%s1835 + $0x99] sm:$0xff]
      %v4066 = vld [vmem:[%s1835 + $0xb1] sm:$0xff]
      %4075 = vrot.lane.b32.xlu0 %v4059, 16
      %v4076 = vpop.permute.xlu0 %4075
      %4077 = vrot.lane.b32.xlu0 %v4060, 16
      %v4078 = vpop.permute.xlu0 %4077
      %4079 = vrot.lane.b32.xlu0 %v4061, 16
      %v4080 = vpop.permute.xlu0 %4079
      %4081 = vrot.lane.b32.xlu0 %v4062, 16
      %v4082 = vpop.permute.xlu0 %4081
      %4083 = vrot.lane.b32.xlu0 %v4063, 16
      %v4084 = vpop.permute.xlu0 %4083
      %4085 = vrot.lane.b32.xlu0 %v4064, 16
      %v4086 = vpop.permute.xlu0 %4085
      %4087 = vrot.lane.b32.xlu0 %v4065, 16
      %v4088 = vpop.permute.xlu0 %4087
      %4089 = vrot.lane.b32.xlu0 %v4066, 16
      %v4090 = vpop.permute.xlu0 %4089
      %4099 = vst.msk [vmem:[#allocation3 + $0x8] sm:$0xff] %vm1679, %v4076
      %4100 = vst.msk [vmem:[#allocation3 + $0x18] sm:$0xff] %vm1679, %v4078
      %4101 = vst.msk [vmem:[#allocation3 + $0x28] sm:$0xff] %vm1679, %v4080
      %4102 = vst.msk [vmem:[#allocation3 + $0x38] sm:$0xff] %vm1679, %v4082
      %4103 = vst.msk [vmem:[#allocation3 + $0x48] sm:$0xff] %vm1679, %v4084
      %4104 = vst.msk [vmem:[#allocation3 + $0x58] sm:$0xff] %vm1679, %v4086
      %4105 = vst.msk [vmem:[#allocation3 + $0x68] sm:$0xff] %vm1679, %v4088
      %4106 = vst.msk [vmem:[#allocation3 + $0x78] sm:$0xff] %vm1679, %v4090
      %v4107 = vld [vmem:[%s1835 + $0xa] sm:$0xff]
      %v4108 = vld [vmem:[%s1835 + $0x22] sm:$0xff]
      %v4109 = vld [vmem:[%s1835 + $0x3a] sm:$0xff]
      %v4110 = vld [vmem:[%s1835 + $0x52] sm:$0xff]
      %v4111 = vld [vmem:[%s1835 + $0x6a] sm:$0xff]
      %v4112 = vld [vmem:[%s1835 + $0x82] sm:$0xff]
      %v4113 = vld [vmem:[%s1835 + $0x9a] sm:$0xff]
      %v4114 = vld [vmem:[%s1835 + $0xb2] sm:$0xff]
      %4123 = vrot.lane.b32.xlu0 %v4107, 24
      %v4124 = vpop.permute.xlu0 %4123
      %4125 = vrot.lane.b32.xlu0 %v4108, 24
      %v4126 = vpop.permute.xlu0 %4125
      %4127 = vrot.lane.b32.xlu0 %v4109, 24
      %v4128 = vpop.permute.xlu0 %4127
      %4129 = vrot.lane.b32.xlu0 %v4110, 24
      %v4130 = vpop.permute.xlu0 %4129
      %4131 = vrot.lane.b32.xlu0 %v4111, 24
      %v4132 = vpop.permute.xlu0 %4131
      %4133 = vrot.lane.b32.xlu0 %v4112, 24
      %v4134 = vpop.permute.xlu0 %4133
      %4135 = vrot.lane.b32.xlu0 %v4113, 24
      %v4136 = vpop.permute.xlu0 %4135
      %4137 = vrot.lane.b32.xlu0 %v4114, 24
      %v4138 = vpop.permute.xlu0 %4137
      %4147 = vst.msk [vmem:[#allocation3 + $0x8] sm:$0xff] %vm1728, %v4124
      %4148 = vst.msk [vmem:[#allocation3 + $0x18] sm:$0xff] %vm1728, %v4126
      %4149 = vst.msk [vmem:[#allocation3 + $0x28] sm:$0xff] %vm1728, %v4128
      %4150 = vst.msk [vmem:[#allocation3 + $0x38] sm:$0xff] %vm1728, %v4130
      %4151 = vst.msk [vmem:[#allocation3 + $0x48] sm:$0xff] %vm1728, %v4132
      %4152 = vst.msk [vmem:[#allocation3 + $0x58] sm:$0xff] %vm1728, %v4134
      %4153 = vst.msk [vmem:[#allocation3 + $0x68] sm:$0xff] %vm1728, %v4136
      %4154 = vst.msk [vmem:[#allocation3 + $0x78] sm:$0xff] %vm1728, %v4138
      %s4155 = scalar_lea.vmem [#allocation2], 240
      %v4156 = vld [vmem:[%s4155 + $0x6] sm:$0xff]
      %v4157 = vld [vmem:[%s4155 + $0x1e] sm:$0xff]
      %v4158 = vld [vmem:[%s4155 + $0x36] sm:$0xff]
      %v4159 = vld [vmem:[%s4155 + $0x4e] sm:$0xff]
      %v4160 = vld [vmem:[%s4155 + $0x66] sm:$0xff]
      %v4161 = vld [vmem:[%s4155 + $0x7e] sm:$0xff]
      %v4162 = vld [vmem:[%s4155 + $0x96] sm:$0xff]
      %v4163 = vld [vmem:[%s4155 + $0xae] sm:$0xff]
      %4172 = vrot.lane.b32.xlu0 %v4156, 32
      %v4173 = vpop.permute.xlu0 %4172
      %4174 = vrot.lane.b32.xlu0 %v4157, 32
      %v4175 = vpop.permute.xlu0 %4174
      %4176 = vrot.lane.b32.xlu0 %v4158, 32
      %v4177 = vpop.permute.xlu0 %4176
      %4178 = vrot.lane.b32.xlu0 %v4159, 32
      %v4179 = vpop.permute.xlu0 %4178
      %4180 = vrot.lane.b32.xlu0 %v4160, 32
      %v4181 = vpop.permute.xlu0 %4180
      %4182 = vrot.lane.b32.xlu0 %v4161, 32
      %v4183 = vpop.permute.xlu0 %4182
      %4184 = vrot.lane.b32.xlu0 %v4162, 32
      %v4185 = vpop.permute.xlu0 %4184
      %4186 = vrot.lane.b32.xlu0 %v4163, 32
      %v4187 = vpop.permute.xlu0 %4186
      %4196 = vst.msk [vmem:[#allocation3 + $0x8] sm:$0xff] %vm1777, %v4173
      %4197 = vst.msk [vmem:[#allocation3 + $0x18] sm:$0xff] %vm1777, %v4175
      %4198 = vst.msk [vmem:[#allocation3 + $0x28] sm:$0xff] %vm1777, %v4177
      %4199 = vst.msk [vmem:[#allocation3 + $0x38] sm:$0xff] %vm1777, %v4179
      %4200 = vst.msk [vmem:[#allocation3 + $0x48] sm:$0xff] %vm1777, %v4181
      %4201 = vst.msk [vmem:[#allocation3 + $0x58] sm:$0xff] %vm1777, %v4183
      %4202 = vst.msk [vmem:[#allocation3 + $0x68] sm:$0xff] %vm1777, %v4185
      %4203 = vst.msk [vmem:[#allocation3 + $0x78] sm:$0xff] %vm1777, %v4187
      %v4204 = vld [vmem:[%s4155 + $0x7] sm:$0xff]
      %v4205 = vld [vmem:[%s4155 + $0x1f] sm:$0xff]
      %v4206 = vld [vmem:[%s4155 + $0x37] sm:$0xff]
      %v4207 = vld [vmem:[%s4155 + $0x4f] sm:$0xff]
      %v4208 = vld [vmem:[%s4155 + $0x67] sm:$0xff]
      %v4209 = vld [vmem:[%s4155 + $0x7f] sm:$0xff]
      %v4210 = vld [vmem:[%s4155 + $0x97] sm:$0xff]
      %v4211 = vld [vmem:[%s4155 + $0xaf] sm:$0xff]
      %4220 = vrot.lane.b32.xlu0 %v4204, 40
      %v4221 = vpop.permute.xlu0 %4220
      %4222 = vrot.lane.b32.xlu0 %v4205, 40
      %v4223 = vpop.permute.xlu0 %4222
      %4224 = vrot.lane.b32.xlu0 %v4206, 40
      %v4225 = vpop.permute.xlu0 %4224
      %4226 = vrot.lane.b32.xlu0 %v4207, 40
      %v4227 = vpop.permute.xlu0 %4226
      %4228 = vrot.lane.b32.xlu0 %v4208, 40
      %v4229 = vpop.permute.xlu0 %4228
      %4230 = vrot.lane.b32.xlu0 %v4209, 40
      %v4231 = vpop.permute.xlu0 %4230
      %4232 = vrot.lane.b32.xlu0 %v4210, 40
      %v4233 = vpop.permute.xlu0 %4232
      %4234 = vrot.lane.b32.xlu0 %v4211, 40
      %v4235 = vpop.permute.xlu0 %4234
      %4244 = vst.msk [vmem:[#allocation3 + $0x8] sm:$0xff] %vm1826, %v4221
      %4245 = vst.msk [vmem:[#allocation3 + $0x18] sm:$0xff] %vm1826, %v4223
      %4246 = vst.msk [vmem:[#allocation3 + $0x28] sm:$0xff] %vm1826, %v4225
      %4247 = vst.msk [vmem:[#allocation3 + $0x38] sm:$0xff] %vm1826, %v4227
      %4248 = vst.msk [vmem:[#allocation3 + $0x48] sm:$0xff] %vm1826, %v4229
      %4249 = vst.msk [vmem:[#allocation3 + $0x58] sm:$0xff] %vm1826, %v4231
      %4250 = vst.msk [vmem:[#allocation3 + $0x68] sm:$0xff] %vm1826, %v4233
      %4251 = vst.msk [vmem:[#allocation3 + $0x78] sm:$0xff] %vm1826, %v4235
      %v4252 = vld [vmem:[%s4155 + $0x8] sm:$0xff]
      %v4253 = vld [vmem:[%s4155 + $0x20] sm:$0xff]
      %v4254 = vld [vmem:[%s4155 + $0x38] sm:$0xff]
      %v4255 = vld [vmem:[%s4155 + $0x50] sm:$0xff]
      %v4256 = vld [vmem:[%s4155 + $0x68] sm:$0xff]
      %v4257 = vld [vmem:[%s4155 + $0x80] sm:$0xff]
      %v4258 = vld [vmem:[%s4155 + $0x98] sm:$0xff]
      %v4259 = vld [vmem:[%s4155 + $0xb0] sm:$0xff]
      %4268 = vrot.lane.b32.xlu0 %v4252, 48
      %v4269 = vpop.permute.xlu0 %4268
      %4270 = vrot.lane.b32.xlu0 %v4253, 48
      %v4271 = vpop.permute.xlu0 %4270
      %4272 = vrot.lane.b32.xlu0 %v4254, 48
      %v4273 = vpop.permute.xlu0 %4272
      %4274 = vrot.lane.b32.xlu0 %v4255, 48
      %v4275 = vpop.permute.xlu0 %4274
      %4276 = vrot.lane.b32.xlu0 %v4256, 48
      %v4277 = vpop.permute.xlu0 %4276
      %4278 = vrot.lane.b32.xlu0 %v4257, 48
      %v4279 = vpop.permute.xlu0 %4278
      %4280 = vrot.lane.b32.xlu0 %v4258, 48
      %v4281 = vpop.permute.xlu0 %4280
      %4282 = vrot.lane.b32.xlu0 %v4259, 48
      %v4283 = vpop.permute.xlu0 %4282
      %4292 = vst.msk [vmem:[#allocation3 + $0x8] sm:$0xff] %vm1876, %v4269
      %4293 = vst.msk [vmem:[#allocation3 + $0x18] sm:$0xff] %vm1876, %v4271
      %4294 = vst.msk [vmem:[#allocation3 + $0x28] sm:$0xff] %vm1876, %v4273
      %4295 = vst.msk [vmem:[#allocation3 + $0x38] sm:$0xff] %vm1876, %v4275
      %4296 = vst.msk [vmem:[#allocation3 + $0x48] sm:$0xff] %vm1876, %v4277
      %4297 = vst.msk [vmem:[#allocation3 + $0x58] sm:$0xff] %vm1876, %v4279
      %4298 = vst.msk [vmem:[#allocation3 + $0x68] sm:$0xff] %vm1876, %v4281
      %4299 = vst.msk [vmem:[#allocation3 + $0x78] sm:$0xff] %vm1876, %v4283
      %v4300 = vld [vmem:[%s4155 + $0x9] sm:$0xff]
      %v4301 = vld [vmem:[%s4155 + $0x21] sm:$0xff]
      %v4302 = vld [vmem:[%s4155 + $0x39] sm:$0xff]
      %v4303 = vld [vmem:[%s4155 + $0x51] sm:$0xff]
      %v4304 = vld [vmem:[%s4155 + $0x69] sm:$0xff]
      %v4305 = vld [vmem:[%s4155 + $0x81] sm:$0xff]
      %v4306 = vld [vmem:[%s4155 + $0x99] sm:$0xff]
      %v4307 = vld [vmem:[%s4155 + $0xb1] sm:$0xff]
      %4316 = vrot.lane.b32.xlu0 %v4300, 56
      %v4317 = vpop.permute.xlu0 %4316
      %4318 = vrot.lane.b32.xlu0 %v4301, 56
      %v4319 = vpop.permute.xlu0 %4318
      %4320 = vrot.lane.b32.xlu0 %v4302, 56
      %v4321 = vpop.permute.xlu0 %4320
      %4322 = vrot.lane.b32.xlu0 %v4303, 56
      %v4323 = vpop.permute.xlu0 %4322
      %4324 = vrot.lane.b32.xlu0 %v4304, 56
      %v4325 = vpop.permute.xlu0 %4324
      %4326 = vrot.lane.b32.xlu0 %v4305, 56
      %v4327 = vpop.permute.xlu0 %4326
      %4328 = vrot.lane.b32.xlu0 %v4306, 56
      %v4329 = vpop.permute.xlu0 %4328
      %4330 = vrot.lane.b32.xlu0 %v4307, 56
      %v4331 = vpop.permute.xlu0 %4330
      %4340 = vst.msk [vmem:[#allocation3 + $0x8] sm:$0xff] %vm1925, %v4317
      %4341 = vst.msk [vmem:[#allocation3 + $0x18] sm:$0xff] %vm1925, %v4319
      %4342 = vst.msk [vmem:[#allocation3 + $0x28] sm:$0xff] %vm1925, %v4321
      %4343 = vst.msk [vmem:[#allocation3 + $0x38] sm:$0xff] %vm1925, %v4323
      %4344 = vst.msk [vmem:[#allocation3 + $0x48] sm:$0xff] %vm1925, %v4325
      %4345 = vst.msk [vmem:[#allocation3 + $0x58] sm:$0xff] %vm1925, %v4327
      %4346 = vst.msk [vmem:[#allocation3 + $0x68] sm:$0xff] %vm1925, %v4329
      %4347 = vst.msk [vmem:[#allocation3 + $0x78] sm:$0xff] %vm1925, %v4331
      %v4348 = vld [vmem:[%s4155 + $0xa] sm:$0xff]
      %v4349 = vld [vmem:[%s4155 + $0x22] sm:$0xff]
      %v4350 = vld [vmem:[%s4155 + $0x3a] sm:$0xff]
      %v4351 = vld [vmem:[%s4155 + $0x52] sm:$0xff]
      %v4352 = vld [vmem:[%s4155 + $0x6a] sm:$0xff]
      %v4353 = vld [vmem:[%s4155 + $0x82] sm:$0xff]
      %v4354 = vld [vmem:[%s4155 + $0x9a] sm:$0xff]
      %v4355 = vld [vmem:[%s4155 + $0xb2] sm:$0xff]
      %4364 = vrot.lane.b32.xlu0 %v4348, 64
      %v4365 = vpop.permute.xlu0 %4364
      %4366 = vrot.lane.b32.xlu0 %v4349, 64
      %v4367 = vpop.permute.xlu0 %4366
      %4368 = vrot.lane.b32.xlu0 %v4350, 64
      %v4369 = vpop.permute.xlu0 %4368
      %4370 = vrot.lane.b32.xlu0 %v4351, 64
      %v4371 = vpop.permute.xlu0 %4370
      %4372 = vrot.lane.b32.xlu0 %v4352, 64
      %v4373 = vpop.permute.xlu0 %4372
      %4374 = vrot.lane.b32.xlu0 %v4353, 64
      %v4375 = vpop.permute.xlu0 %4374
      %4376 = vrot.lane.b32.xlu0 %v4354, 64
      %v4377 = vpop.permute.xlu0 %4376
      %4378 = vrot.lane.b32.xlu0 %v4355, 64
      %v4379 = vpop.permute.xlu0 %4378
      %4388 = vst.msk [vmem:[#allocation3 + $0x8] sm:$0xff] %vm1974, %v4365
      %4389 = vst.msk [vmem:[#allocation3 + $0x18] sm:$0xff] %vm1974, %v4367
      %4390 = vst.msk [vmem:[#allocation3 + $0x28] sm:$0xff] %vm1974, %v4369
      %4391 = vst.msk [vmem:[#allocation3 + $0x38] sm:$0xff] %vm1974, %v4371
      %4392 = vst.msk [vmem:[#allocation3 + $0x48] sm:$0xff] %vm1974, %v4373
      %4393 = vst.msk [vmem:[#allocation3 + $0x58] sm:$0xff] %vm1974, %v4375
      %4394 = vst.msk [vmem:[#allocation3 + $0x68] sm:$0xff] %vm1974, %v4377
      %4395 = vst.msk [vmem:[#allocation3 + $0x78] sm:$0xff] %vm1974, %v4379
      %v4396 = vld [vmem:[#allocation3] sm:$0xff]
      %v4397 = vld [vmem:[#allocation3 + $0x8] sm:$0xff]
      %v4398 = vld [vmem:[#allocation3 + $0x10] sm:$0xff]
      %v4399 = vld [vmem:[#allocation3 + $0x18] sm:$0xff]
      %v4400 = vld [vmem:[#allocation3 + $0x20] sm:$0xff]
      %v4401 = vld [vmem:[#allocation3 + $0x28] sm:$0xff]
      %v4402 = vld [vmem:[#allocation3 + $0x30] sm:$0xff]
      %v4403 = vld [vmem:[#allocation3 + $0x38] sm:$0xff]
      %v4404 = vld [vmem:[#allocation3 + $0x40] sm:$0xff]
      %v4405 = vld [vmem:[#allocation3 + $0x48] sm:$0xff]
      %v4406 = vld [vmem:[#allocation3 + $0x50] sm:$0xff]
      %v4407 = vld [vmem:[#allocation3 + $0x58] sm:$0xff]
      %v4408 = vld [vmem:[#allocation3 + $0x60] sm:$0xff]
      %v4409 = vld [vmem:[#allocation3 + $0x68] sm:$0xff]
      %v4410 = vld [vmem:[#allocation3 + $0x70] sm:$0xff]
      %v4411 = vld [vmem:[#allocation3 + $0x78] sm:$0xff]
      %s4412 = scalar_lea.vmem %s3, 200
      %v4413 = vld [vmem:[%s4412] sm:$0xff]
      %v4414 = vld [vmem:[%s4412 + $0x8] sm:$0xff]
      %v4415 = vld [vmem:[%s4412 + $0x10] sm:$0xff]
      %v4416 = vld [vmem:[%s4412 + $0x18] sm:$0xff]
      %v4417 = vld [vmem:[%s4412 + $0x20] sm:$0xff]
      %v4418 = vld [vmem:[%s4412 + $0x28] sm:$0xff]
      %v4419 = vld [vmem:[%s4412 + $0x30] sm:$0xff]
      %v4420 = vld [vmem:[%s4412 + $0x38] sm:$0xff]
      %v4421 = vld [vmem:[%s4412 + $0x40] sm:$0xff]
      %v4422 = vld [vmem:[%s4412 + $0x48] sm:$0xff]
      %v4423 = vld [vmem:[%s4412 + $0x50] sm:$0xff]
      %v4424 = vld [vmem:[%s4412 + $0x58] sm:$0xff]
      %v4425 = vld [vmem:[%s4412 + $0x60] sm:$0xff]
      %v4426 = vld [vmem:[%s4412 + $0x68] sm:$0xff]
      %v4427 = vld [vmem:[%s4412 + $0x70] sm:$0xff]
      %v4428 = vld [vmem:[%s4412 + $0x78] sm:$0xff]
      %v4429 = vld [vmem:[%s4412 + $0x80] sm:$0xff]
      %v4430 = vld [vmem:[%s4412 + $0x88] sm:$0xff]
      %v4431 = vld [vmem:[%s4412 + $0x90] sm:$0xff]
      %v4432 = vld [vmem:[%s4412 + $0x98] sm:$0xff]
      %v4433 = vld [vmem:[%s4412 + $0xa0] sm:$0xff]
      %v4434 = vld [vmem:[%s4412 + $0xa8] sm:$0xff]
      %v4435 = vld [vmem:[%s4412 + $0xb0] sm:$0xff]
      %v4436 = vld [vmem:[%s4412 + $0xb8] sm:$0xff]
      %v4437 = vld [vmem:[%s4412 + $0xc0] sm:$0xff]
      %v4439 = vsel %vm324, %v4397, 0
      %v4442 = vsel %vm324, %v4399, 0
      %v4445 = vsel %vm324, %v4401, 0
      %v4448 = vsel %vm324, %v4403, 0
      %v4451 = vsel %vm324, %v4405, 0
      %v4454 = vsel %vm324, %v4407, 0
      %v4457 = vsel %vm324, %v4409, 0
      %v4460 = vsel %vm324, %v4411, 0
      %4462 = vmatprep.subr.mxu0 0.0
      %v4463 = vand.u32 %v4428, 4294901760
      %4464 = vmatpush1.msra.mxu0 %v4463
      %4465 = vmatprep.subr.mxu0 0.0
      %v4466 = vand.u32 %v4427, 4294901760
      %4467 = vmatpush1.msra.mxu0 %v4466
      %4468 = vmatprep.subr.mxu0 0.0
      %v4469 = vand.u32 %v4426, 4294901760
      %4470 = vmatpush1.msra.mxu0 %v4469
      %4471 = vmatprep.subr.mxu0 0.0
      %v4472 = vand.u32 %v4425, 4294901760
      %4473 = vmatpush1.msra.mxu0 %v4472
      %4474 = vmatprep.subr.mxu0 0.0
      %v4475 = vand.u32 %v4424, 4294901760
      %4476 = vmatpush1.msra.mxu0 %v4475
      %4477 = vmatprep.subr.mxu0 0.0
      %v4478 = vand.u32 %v4423, 4294901760
      %4479 = vmatpush1.msra.mxu0 %v4478
      %4480 = vmatprep.subr.mxu0 0.0
      %v4481 = vand.u32 %v4422, 4294901760
      %4482 = vmatpush1.msra.mxu0 %v4481
      %4483 = vmatprep.subr.mxu0 0.0
      %v4484 = vand.u32 %v4421, 4294901760
      %4485 = vmatpush1.msra.mxu0 %v4484
      %4486 = vmatprep.subr.mxu0 0.0
      %v4487 = vand.u32 %v4420, 4294901760
      %4488 = vmatpush1.msra.mxu0 %v4487
      %4489 = vmatprep.subr.mxu0 0.0
      %v4490 = vand.u32 %v4419, 4294901760
      %4491 = vmatpush1.msra.mxu0 %v4490
      %4492 = vmatprep.subr.mxu0 0.0
      %v4493 = vand.u32 %v4418, 4294901760
      %4494 = vmatpush1.msra.mxu0 %v4493
      %4495 = vmatprep.subr.mxu0 0.0
      %v4496 = vand.u32 %v4417, 4294901760
      %4497 = vmatpush1.msra.mxu0 %v4496
      %4498 = vmatprep.subr.mxu0 0.0
      %v4499 = vand.u32 %v4416, 4294901760
      %4500 = vmatpush1.msra.mxu0 %v4499
      %4501 = vmatprep.subr.mxu0 0.0
      %v4502 = vand.u32 %v4415, 4294901760
      %4503 = vmatpush1.msra.mxu0 %v4502
      %4504 = vmatprep.subr.mxu0 0.0
      %v4505 = vand.u32 %v4414, 4294901760
      %4506 = vmatpush1.msra.mxu0 %v4505
      %4507 = vmatprep.subr.mxu0 0.0
      %v4508 = vand.u32 %v4413, 4294901760
      %4509 = vmatpush1.msra.mxu0 %v4508
      %4510 = vmatprep.subr.mxu0 0.0
      %4511 = vmatpush2.msra.mxu0 0.0
      %4512 = vmatprep.subr.mxu0 0.0
      %4513 = vmatpush2.msra.mxu0 0.0
      %4514 = vmatprep.subr.mxu0 0.0
      %4515 = vmatpush2.msra.mxu0 0.0
      %4516 = vmatprep.subr.mxu0 0.0
      %4517 = vmatpush2.msra.mxu0 0.0
      %4518 = vmatprep.subr.mxu0 0.0
      %4519 = vmatpush2.msra.mxu0 0.0
      %4520 = vmatprep.subr.mxu0 0.0
      %4521 = vmatpush2.msra.mxu0 0.0
      %4522 = vmatprep.subr.mxu0 0.0
      %4523 = vmatpush2.msra.mxu0 0.0
      %4524 = vmatprep.subr.mxu0 0.0
      %v4525 = vand.u32 %v4437, 4294901760
      %4526 = vmatpush2.msra.mxu0 %v4525
      %4527 = vmatprep.subr.mxu0 0.0
      %v4528 = vand.u32 %v4436, 4294901760
      %4529 = vmatpush2.msra.mxu0 %v4528
      %4530 = vmatprep.subr.mxu0 0.0
      %v4531 = vand.u32 %v4435, 4294901760
      %4532 = vmatpush2.msra.mxu0 %v4531
      %4533 = vmatprep.subr.mxu0 0.0
      %v4534 = vand.u32 %v4434, 4294901760
      %4535 = vmatpush2.msra.mxu0 %v4534
      %4536 = vmatprep.subr.mxu0 0.0
      %v4537 = vand.u32 %v4433, 4294901760
      %4538 = vmatpush2.msra.mxu0 %v4537
      %4539 = vmatprep.subr.mxu0 0.0
      %v4540 = vand.u32 %v4432, 4294901760
      %4541 = vmatpush2.msra.mxu0 %v4540
      %4542 = vmatprep.subr.mxu0 0.0
      %v4543 = vand.u32 %v4431, 4294901760
      %4544 = vmatpush2.msra.mxu0 %v4543
      %4545 = vmatprep.subr.mxu0 0.0
      %v4546 = vand.u32 %v4430, 4294901760
      %4547 = vmatpush2.msra.mxu0 %v4546
      %4548 = vmatprep.subr.mxu0 0.0
      %v4549 = vand.u32 %v4429, 4294901760
      %4550 = vmatpush2.msra.mxu0 %v4549
      %v4551 = vand.u32 %v4439, 4294901760
      %v4552 = vsub.f32 %v4439, %v4551
      %v4553 = vand.u32 %v4552, 4294901760
      %v4554 = vsub.f32 %v4552, %v4553
      %v4555 = vand.u32 %v4554, 4294901760
      %4556 = vmatprep.mubr.f32.mxu0 %v4555
      %v4557 = vand.u32 %v4396, 4294901760
      %v4558 = vsub.f32 %v4396, %v4557
      %v4559 = vand.u32 %v4558, 4294901760
      %v4560 = vsub.f32 %v4558, %v4559
      %v4561 = vand.u32 %v4560, 4294901760
      %4562 = vmatmul.mubr.f32.gmra.mxu0 %v4561
      %v4563 = vpop.f32.mrf.mxu0
      %v4564 = vadd.f32 0.0, %v4563
      %v4565 = vpop.f32.mrf.mxu0
      %v4566 = vand.u32 %v4442, 4294901760
      %v4567 = vsub.f32 %v4442, %v4566
      %v4568 = vand.u32 %v4567, 4294901760
      %v4569 = vsub.f32 %v4567, %v4568
      %v4570 = vand.u32 %v4569, 4294901760
      %4571 = vmatprep.mubr.f32.mxu0 %v4570
      %v4572 = vand.u32 %v4398, 4294901760
      %v4573 = vsub.f32 %v4398, %v4572
      %v4574 = vand.u32 %v4573, 4294901760
      %v4575 = vsub.f32 %v4573, %v4574
      %v4576 = vand.u32 %v4575, 4294901760
      %4577 = vmatmul.mubr.f32.gmra.mxu0 %v4576
      %v4578 = vpop.f32.mrf.mxu0
      %v4579 = vadd.f32 0.0, %v4578
      %v4580 = vpop.f32.mrf.mxu0
      %v4581 = vand.u32 %v4445, 4294901760
      %v4582 = vsub.f32 %v4445, %v4581
      %v4583 = vand.u32 %v4582, 4294901760
      %v4584 = vsub.f32 %v4582, %v4583
      %v4585 = vand.u32 %v4584, 4294901760
      %4586 = vmatprep.mubr.f32.mxu0 %v4585
      %v4587 = vand.u32 %v4400, 4294901760
      %v4588 = vsub.f32 %v4400, %v4587
      %v4589 = vand.u32 %v4588, 4294901760
      %v4590 = vsub.f32 %v4588, %v4589
      %v4591 = vand.u32 %v4590, 4294901760
      %4592 = vmatmul.mubr.f32.gmra.mxu0 %v4591
      %v4593 = vpop.f32.mrf.mxu0
      %v4594 = vadd.f32 0.0, %v4593
      %v4595 = vpop.f32.mrf.mxu0
      %v4596 = vand.u32 %v4448, 4294901760
      %v4597 = vsub.f32 %v4448, %v4596
      %v4598 = vand.u32 %v4597, 4294901760
      %v4599 = vsub.f32 %v4597, %v4598
      %v4600 = vand.u32 %v4599, 4294901760
      %4601 = vmatprep.mubr.f32.mxu0 %v4600
      %v4602 = vand.u32 %v4402, 4294901760
      %v4603 = vsub.f32 %v4402, %v4602
      %v4604 = vand.u32 %v4603, 4294901760
      %v4605 = vsub.f32 %v4603, %v4604
      %v4606 = vand.u32 %v4605, 4294901760
      %4607 = vmatmul.mubr.f32.gmra.mxu0 %v4606
      %v4608 = vpop.f32.mrf.mxu0
      %v4609 = vadd.f32 0.0, %v4608
      %v4610 = vpop.f32.mrf.mxu0
      %v4611 = vand.u32 %v4451, 4294901760
      %v4612 = vsub.f32 %v4451, %v4611
      %v4613 = vand.u32 %v4612, 4294901760
      %v4614 = vsub.f32 %v4612, %v4613
      %v4615 = vand.u32 %v4614, 4294901760
      %4616 = vmatprep.mubr.f32.mxu0 %v4615
      %v4617 = vand.u32 %v4404, 4294901760
      %v4618 = vsub.f32 %v4404, %v4617
      %v4619 = vand.u32 %v4618, 4294901760
      %v4620 = vsub.f32 %v4618, %v4619
      %v4621 = vand.u32 %v4620, 4294901760
      %4622 = vmatmul.mubr.f32.gmra.mxu0 %v4621
      %v4623 = vpop.f32.mrf.mxu0
      %v4624 = vadd.f32 0.0, %v4623
      %v4625 = vpop.f32.mrf.mxu0
      %v4626 = vand.u32 %v4454, 4294901760
      %v4627 = vsub.f32 %v4454, %v4626
      %v4628 = vand.u32 %v4627, 4294901760
      %v4629 = vsub.f32 %v4627, %v4628
      %v4630 = vand.u32 %v4629, 4294901760
      %4631 = vmatprep.mubr.f32.mxu0 %v4630
      %v4632 = vand.u32 %v4406, 4294901760
      %v4633 = vsub.f32 %v4406, %v4632
      %v4634 = vand.u32 %v4633, 4294901760
      %v4635 = vsub.f32 %v4633, %v4634
      %v4636 = vand.u32 %v4635, 4294901760
      %4637 = vmatmul.mubr.f32.gmra.mxu0 %v4636
      %v4638 = vpop.f32.mrf.mxu0
      %v4639 = vadd.f32 0.0, %v4638
      %v4640 = vpop.f32.mrf.mxu0
      %v4641 = vand.u32 %v4457, 4294901760
      %v4642 = vsub.f32 %v4457, %v4641
      %v4643 = vand.u32 %v4642, 4294901760
      %v4644 = vsub.f32 %v4642, %v4643
      %v4645 = vand.u32 %v4644, 4294901760
      %4646 = vmatprep.mubr.f32.mxu0 %v4645
      %v4647 = vand.u32 %v4408, 4294901760
      %v4648 = vsub.f32 %v4408, %v4647
      %v4649 = vand.u32 %v4648, 4294901760
      %v4650 = vsub.f32 %v4648, %v4649
      %v4651 = vand.u32 %v4650, 4294901760
      %4652 = vmatmul.mubr.f32.gmra.mxu0 %v4651
      %v4653 = vpop.f32.mrf.mxu0
      %v4654 = vadd.f32 0.0, %v4653
      %v4655 = vpop.f32.mrf.mxu0
      %v4656 = vand.u32 %v4460, 4294901760
      %v4657 = vsub.f32 %v4460, %v4656
      %v4658 = vand.u32 %v4657, 4294901760
      %v4659 = vsub.f32 %v4657, %v4658
      %v4660 = vand.u32 %v4659, 4294901760
      %4661 = vmatprep.mubr.f32.mxu0 %v4660
      %v4662 = vand.u32 %v4410, 4294901760
      %v4663 = vsub.f32 %v4410, %v4662
      %v4664 = vand.u32 %v4663, 4294901760
      %v4665 = vsub.f32 %v4663, %v4664
      %v4666 = vand.u32 %v4665, 4294901760
      %4667 = vmatmul.mubr.f32.gmra.mxu0 %v4666
      %v4668 = vpop.f32.mrf.mxu0
      %v4669 = vadd.f32 0.0, %v4668
      %v4670 = vpop.f32.mrf.mxu0
      %4671 = vdwg.mxu0
      %4672 = vmatprep.subr.mxu0 0.0
      %v4673 = vand.u32 %v4428, 4294901760
      %v4674 = vsub.f32 %v4428, %v4673
      %v4675 = vand.u32 %v4674, 4294901760
      %v4676 = vsub.f32 %v4674, %v4675
      %v4677 = vand.u32 %v4676, 4294901760
      %4678 = vmatpush1.msra.mxu0 %v4677
      %4679 = vmatprep.subr.mxu0 0.0
      %v4680 = vand.u32 %v4427, 4294901760
      %v4681 = vsub.f32 %v4427, %v4680
      %v4682 = vand.u32 %v4681, 4294901760
      %v4683 = vsub.f32 %v4681, %v4682
      %v4684 = vand.u32 %v4683, 4294901760
      %4685 = vmatpush1.msra.mxu0 %v4684
      %4686 = vmatprep.subr.mxu0 0.0
      %v4687 = vand.u32 %v4426, 4294901760
      %v4688 = vsub.f32 %v4426, %v4687
      %v4689 = vand.u32 %v4688, 4294901760
      %v4690 = vsub.f32 %v4688, %v4689
      %v4691 = vand.u32 %v4690, 4294901760
      %4692 = vmatpush1.msra.mxu0 %v4691
      %4693 = vmatprep.subr.mxu0 0.0
      %v4694 = vand.u32 %v4425, 4294901760
      %v4695 = vsub.f32 %v4425, %v4694
      %v4696 = vand.u32 %v4695, 4294901760
      %v4697 = vsub.f32 %v4695, %v4696
      %v4698 = vand.u32 %v4697, 4294901760
      %4699 = vmatpush1.msra.mxu0 %v4698
      %4700 = vmatprep.subr.mxu0 0.0
      %v4701 = vand.u32 %v4424, 4294901760
      %v4702 = vsub.f32 %v4424, %v4701
      %v4703 = vand.u32 %v4702, 4294901760
      %v4704 = vsub.f32 %v4702, %v4703
      %v4705 = vand.u32 %v4704, 4294901760
      %4706 = vmatpush1.msra.mxu0 %v4705
      %4707 = vmatprep.subr.mxu0 0.0
      %v4708 = vand.u32 %v4423, 4294901760
      %v4709 = vsub.f32 %v4423, %v4708
      %v4710 = vand.u32 %v4709, 4294901760
      %v4711 = vsub.f32 %v4709, %v4710
      %v4712 = vand.u32 %v4711, 4294901760
      %4713 = vmatpush1.msra.mxu0 %v4712
      %4714 = vmatprep.subr.mxu0 0.0
      %v4715 = vand.u32 %v4422, 4294901760
      %v4716 = vsub.f32 %v4422, %v4715
      %v4717 = vand.u32 %v4716, 4294901760
      %v4718 = vsub.f32 %v4716, %v4717
      %v4719 = vand.u32 %v4718, 4294901760
      %4720 = vmatpush1.msra.mxu0 %v4719
      %4721 = vmatprep.subr.mxu0 0.0
      %v4722 = vand.u32 %v4421, 4294901760
      %v4723 = vsub.f32 %v4421, %v4722
      %v4724 = vand.u32 %v4723, 4294901760
      %v4725 = vsub.f32 %v4723, %v4724
      %v4726 = vand.u32 %v4725, 4294901760
      %4727 = vmatpush1.msra.mxu0 %v4726
      %4728 = vmatprep.subr.mxu0 0.0
      %v4729 = vand.u32 %v4420, 4294901760
      %v4730 = vsub.f32 %v4420, %v4729
      %v4731 = vand.u32 %v4730, 4294901760
      %v4732 = vsub.f32 %v4730, %v4731
      %v4733 = vand.u32 %v4732, 4294901760
      %4734 = vmatpush1.msra.mxu0 %v4733
      %4735 = vmatprep.subr.mxu0 0.0
      %v4736 = vand.u32 %v4419, 4294901760
      %v4737 = vsub.f32 %v4419, %v4736
      %v4738 = vand.u32 %v4737, 4294901760
      %v4739 = vsub.f32 %v4737, %v4738
      %v4740 = vand.u32 %v4739, 4294901760
      %4741 = vmatpush1.msra.mxu0 %v4740
      %4742 = vmatprep.subr.mxu0 0.0
      %v4743 = vand.u32 %v4418, 4294901760
      %v4744 = vsub.f32 %v4418, %v4743
      %v4745 = vand.u32 %v4744, 4294901760
      %v4746 = vsub.f32 %v4744, %v4745
      %v4747 = vand.u32 %v4746, 4294901760
      %4748 = vmatpush1.msra.mxu0 %v4747
      %4749 = vmatprep.subr.mxu0 0.0
      %v4750 = vand.u32 %v4417, 4294901760
      %v4751 = vsub.f32 %v4417, %v4750
      %v4752 = vand.u32 %v4751, 4294901760
      %v4753 = vsub.f32 %v4751, %v4752
      %v4754 = vand.u32 %v4753, 4294901760
      %4755 = vmatpush1.msra.mxu0 %v4754
      %4756 = vmatprep.subr.mxu0 0.0
      %v4757 = vand.u32 %v4416, 4294901760
      %v4758 = vsub.f32 %v4416, %v4757
      %v4759 = vand.u32 %v4758, 4294901760
      %v4760 = vsub.f32 %v4758, %v4759
      %v4761 = vand.u32 %v4760, 4294901760
      %4762 = vmatpush1.msra.mxu0 %v4761
      %4763 = vmatprep.subr.mxu0 0.0
      %v4764 = vand.u32 %v4415, 4294901760
      %v4765 = vsub.f32 %v4415, %v4764
      %v4766 = vand.u32 %v4765, 4294901760
      %v4767 = vsub.f32 %v4765, %v4766
      %v4768 = vand.u32 %v4767, 4294901760
      %4769 = vmatpush1.msra.mxu0 %v4768
      %4770 = vmatprep.subr.mxu0 0.0
      %v4771 = vand.u32 %v4414, 4294901760
      %v4772 = vsub.f32 %v4414, %v4771
      %v4773 = vand.u32 %v4772, 4294901760
      %v4774 = vsub.f32 %v4772, %v4773
      %v4775 = vand.u32 %v4774, 4294901760
      %4776 = vmatpush1.msra.mxu0 %v4775
      %4777 = vmatprep.subr.mxu0 0.0
      %v4778 = vand.u32 %v4413, 4294901760
      %v4779 = vsub.f32 %v4413, %v4778
      %v4780 = vand.u32 %v4779, 4294901760
      %v4781 = vsub.f32 %v4779, %v4780
      %v4782 = vand.u32 %v4781, 4294901760
      %4783 = vmatpush1.msra.mxu0 %v4782
      %4784 = vmatprep.subr.mxu0 0.0
      %4785 = vmatpush2.msra.mxu0 0.0
      %4786 = vmatprep.subr.mxu0 0.0
      %4787 = vmatpush2.msra.mxu0 0.0
      %4788 = vmatprep.subr.mxu0 0.0
      %4789 = vmatpush2.msra.mxu0 0.0
      %4790 = vmatprep.subr.mxu0 0.0
      %4791 = vmatpush2.msra.mxu0 0.0
      %4792 = vmatprep.subr.mxu0 0.0
      %4793 = vmatpush2.msra.mxu0 0.0
      %4794 = vmatprep.subr.mxu0 0.0
      %4795 = vmatpush2.msra.mxu0 0.0
      %4796 = vmatprep.subr.mxu0 0.0
      %4797 = vmatpush2.msra.mxu0 0.0
      %4798 = vmatprep.subr.mxu0 0.0
      %v4799 = vand.u32 %v4437, 4294901760
      %v4800 = vsub.f32 %v4437, %v4799
      %v4801 = vand.u32 %v4800, 4294901760
      %v4802 = vsub.f32 %v4800, %v4801
      %v4803 = vand.u32 %v4802, 4294901760
      %4804 = vmatpush2.msra.mxu0 %v4803
      %4805 = vmatprep.subr.mxu0 0.0
      %v4806 = vand.u32 %v4436, 4294901760
      %v4807 = vsub.f32 %v4436, %v4806
      %v4808 = vand.u32 %v4807, 4294901760
      %v4809 = vsub.f32 %v4807, %v4808
      %v4810 = vand.u32 %v4809, 4294901760
      %4811 = vmatpush2.msra.mxu0 %v4810
      %4812 = vmatprep.subr.mxu0 0.0
      %v4813 = vand.u32 %v4435, 4294901760
      %v4814 = vsub.f32 %v4435, %v4813
      %v4815 = vand.u32 %v4814, 4294901760
      %v4816 = vsub.f32 %v4814, %v4815
      %v4817 = vand.u32 %v4816, 4294901760
      %4818 = vmatpush2.msra.mxu0 %v4817
      %4819 = vmatprep.subr.mxu0 0.0
      %v4820 = vand.u32 %v4434, 4294901760
      %v4821 = vsub.f32 %v4434, %v4820
      %v4822 = vand.u32 %v4821, 4294901760
      %v4823 = vsub.f32 %v4821, %v4822
      %v4824 = vand.u32 %v4823, 4294901760
      %4825 = vmatpush2.msra.mxu0 %v4824
      %4826 = vmatprep.subr.mxu0 0.0
      %v4827 = vand.u32 %v4433, 4294901760
      %v4828 = vsub.f32 %v4433, %v4827
      %v4829 = vand.u32 %v4828, 4294901760
      %v4830 = vsub.f32 %v4828, %v4829
      %v4831 = vand.u32 %v4830, 4294901760
      %4832 = vmatpush2.msra.mxu0 %v4831
      %4833 = vmatprep.subr.mxu0 0.0
      %v4834 = vand.u32 %v4432, 4294901760
      %v4835 = vsub.f32 %v4432, %v4834
      %v4836 = vand.u32 %v4835, 4294901760
      %v4837 = vsub.f32 %v4835, %v4836
      %v4838 = vand.u32 %v4837, 4294901760
      %4839 = vmatpush2.msra.mxu0 %v4838
      %4840 = vmatprep.subr.mxu0 0.0
      %v4841 = vand.u32 %v4431, 4294901760
      %v4842 = vsub.f32 %v4431, %v4841
      %v4843 = vand.u32 %v4842, 4294901760
      %v4844 = vsub.f32 %v4842, %v4843
      %v4845 = vand.u32 %v4844, 4294901760
      %4846 = vmatpush2.msra.mxu0 %v4845
      %4847 = vmatprep.subr.mxu0 0.0
      %v4848 = vand.u32 %v4430, 4294901760
      %v4849 = vsub.f32 %v4430, %v4848
      %v4850 = vand.u32 %v4849, 4294901760
      %v4851 = vsub.f32 %v4849, %v4850
      %v4852 = vand.u32 %v4851, 4294901760
      %4853 = vmatpush2.msra.mxu0 %v4852
      %4854 = vmatprep.subr.mxu0 0.0
      %v4855 = vand.u32 %v4429, 4294901760
      %v4856 = vsub.f32 %v4429, %v4855
      %v4857 = vand.u32 %v4856, 4294901760
      %v4858 = vsub.f32 %v4856, %v4857
      %v4859 = vand.u32 %v4858, 4294901760
      %4860 = vmatpush2.msra.mxu0 %v4859
      %v4861 = vand.u32 %v4439, 4294901760
      %4862 = vmatprep.mubr.f32.mxu0 %v4861
      %v4863 = vand.u32 %v4396, 4294901760
      %4864 = vmatmul.mubr.f32.gmra.mxu0 %v4863
      %v4865 = vpop.f32.mrf.mxu0
      %v4866 = vadd.f32 %v4564, %v4865
      %v4867 = vpop.f32.mrf.mxu0
      %v4868 = vand.u32 %v4442, 4294901760
      %4869 = vmatprep.mubr.f32.mxu0 %v4868
      %v4870 = vand.u32 %v4398, 4294901760
      %4871 = vmatmul.mubr.f32.gmra.mxu0 %v4870
      %v4872 = vpop.f32.mrf.mxu0
      %v4873 = vadd.f32 %v4579, %v4872
      %v4874 = vpop.f32.mrf.mxu0
      %v4875 = vand.u32 %v4445, 4294901760
      %4876 = vmatprep.mubr.f32.mxu0 %v4875
      %v4877 = vand.u32 %v4400, 4294901760
      %4878 = vmatmul.mubr.f32.gmra.mxu0 %v4877
      %v4879 = vpop.f32.mrf.mxu0
      %v4880 = vadd.f32 %v4594, %v4879
      %v4881 = vpop.f32.mrf.mxu0
      %v4882 = vand.u32 %v4448, 4294901760
      %4883 = vmatprep.mubr.f32.mxu0 %v4882
      %v4884 = vand.u32 %v4402, 4294901760
      %4885 = vmatmul.mubr.f32.gmra.mxu0 %v4884
      %v4886 = vpop.f32.mrf.mxu0
      %v4887 = vadd.f32 %v4609, %v4886
      %v4888 = vpop.f32.mrf.mxu0
      %v4889 = vand.u32 %v4451, 4294901760
      %4890 = vmatprep.mubr.f32.mxu0 %v4889
      %v4891 = vand.u32 %v4404, 4294901760
      %4892 = vmatmul.mubr.f32.gmra.mxu0 %v4891
      %v4893 = vpop.f32.mrf.mxu0
      %v4894 = vadd.f32 %v4624, %v4893
      %v4895 = vpop.f32.mrf.mxu0
      %v4896 = vand.u32 %v4454, 4294901760
      %4897 = vmatprep.mubr.f32.mxu0 %v4896
      %v4898 = vand.u32 %v4406, 4294901760
      %4899 = vmatmul.mubr.f32.gmra.mxu0 %v4898
      %v4900 = vpop.f32.mrf.mxu0
      %v4901 = vadd.f32 %v4639, %v4900
      %v4902 = vpop.f32.mrf.mxu0
      %v4903 = vand.u32 %v4457, 4294901760
      %4904 = vmatprep.mubr.f32.mxu0 %v4903
      %v4905 = vand.u32 %v4408, 4294901760
      %4906 = vmatmul.mubr.f32.gmra.mxu0 %v4905
      %v4907 = vpop.f32.mrf.mxu0
      %v4908 = vadd.f32 %v4654, %v4907
      %v4909 = vpop.f32.mrf.mxu0
      %v4910 = vand.u32 %v4460, 4294901760
      %4911 = vmatprep.mubr.f32.mxu0 %v4910
      %v4912 = vand.u32 %v4410, 4294901760
      %4913 = vmatmul.mubr.f32.gmra.mxu0 %v4912
      %v4914 = vpop.f32.mrf.mxu0
      %v4915 = vadd.f32 %v4669, %v4914
      %v4916 = vpop.f32.mrf.mxu0
      %4917 = vdwg.mxu0
      %4918 = vmatprep.subr.mxu0 0.0
      %v4919 = vand.u32 %v4428, 4294901760
      %v4920 = vsub.f32 %v4428, %v4919
      %4921 = vmatpush1.msra.mxu0 %v4920
      %4922 = vmatprep.subr.mxu0 0.0
      %v4923 = vand.u32 %v4427, 4294901760
      %v4924 = vsub.f32 %v4427, %v4923
      %4925 = vmatpush1.msra.mxu0 %v4924
      %4926 = vmatprep.subr.mxu0 0.0
      %v4927 = vand.u32 %v4426, 4294901760
      %v4928 = vsub.f32 %v4426, %v4927
      %4929 = vmatpush1.msra.mxu0 %v4928
      %4930 = vmatprep.subr.mxu0 0.0
      %v4931 = vand.u32 %v4425, 4294901760
      %v4932 = vsub.f32 %v4425, %v4931
      %4933 = vmatpush1.msra.mxu0 %v4932
      %4934 = vmatprep.subr.mxu0 0.0
      %v4935 = vand.u32 %v4424, 4294901760
      %v4936 = vsub.f32 %v4424, %v4935
      %4937 = vmatpush1.msra.mxu0 %v4936
      %4938 = vmatprep.subr.mxu0 0.0
      %v4939 = vand.u32 %v4423, 4294901760
      %v4940 = vsub.f32 %v4423, %v4939
      %4941 = vmatpush1.msra.mxu0 %v4940
      %4942 = vmatprep.subr.mxu0 0.0
      %v4943 = vand.u32 %v4422, 4294901760
      %v4944 = vsub.f32 %v4422, %v4943
      %4945 = vmatpush1.msra.mxu0 %v4944
      %4946 = vmatprep.subr.mxu0 0.0
      %v4947 = vand.u32 %v4421, 4294901760
      %v4948 = vsub.f32 %v4421, %v4947
      %4949 = vmatpush1.msra.mxu0 %v4948
      %4950 = vmatprep.subr.mxu0 0.0
      %v4951 = vand.u32 %v4420, 4294901760
      %v4952 = vsub.f32 %v4420, %v4951
      %4953 = vmatpush1.msra.mxu0 %v4952
      %4954 = vmatprep.subr.mxu0 0.0
      %v4955 = vand.u32 %v4419, 4294901760
      %v4956 = vsub.f32 %v4419, %v4955
      %4957 = vmatpush1.msra.mxu0 %v4956
      %4958 = vmatprep.subr.mxu0 0.0
      %v4959 = vand.u32 %v4418, 4294901760
      %v4960 = vsub.f32 %v4418, %v4959
      %4961 = vmatpush1.msra.mxu0 %v4960
      %4962 = vmatprep.subr.mxu0 0.0
      %v4963 = vand.u32 %v4417, 4294901760
      %v4964 = vsub.f32 %v4417, %v4963
      %4965 = vmatpush1.msra.mxu0 %v4964
      %4966 = vmatprep.subr.mxu0 0.0
      %v4967 = vand.u32 %v4416, 4294901760
      %v4968 = vsub.f32 %v4416, %v4967
      %4969 = vmatpush1.msra.mxu0 %v4968
      %4970 = vmatprep.subr.mxu0 0.0
      %v4971 = vand.u32 %v4415, 4294901760
      %v4972 = vsub.f32 %v4415, %v4971
      %4973 = vmatpush1.msra.mxu0 %v4972
      %4974 = vmatprep.subr.mxu0 0.0
      %v4975 = vand.u32 %v4414, 4294901760
      %v4976 = vsub.f32 %v4414, %v4975
      %4977 = vmatpush1.msra.mxu0 %v4976
      %4978 = vmatprep.subr.mxu0 0.0
      %v4979 = vand.u32 %v4413, 4294901760
      %v4980 = vsub.f32 %v4413, %v4979
      %4981 = vmatpush1.msra.mxu0 %v4980
      %4982 = vmatprep.subr.mxu0 0.0
      %4983 = vmatpush2.msra.mxu0 0.0
      %4984 = vmatprep.subr.mxu0 0.0
      %4985 = vmatpush2.msra.mxu0 0.0
      %4986 = vmatprep.subr.mxu0 0.0
      %4987 = vmatpush2.msra.mxu0 0.0
      %4988 = vmatprep.subr.mxu0 0.0
      %4989 = vmatpush2.msra.mxu0 0.0
      %4990 = vmatprep.subr.mxu0 0.0
      %4991 = vmatpush2.msra.mxu0 0.0
      %4992 = vmatprep.subr.mxu0 0.0
      %4993 = vmatpush2.msra.mxu0 0.0
      %4994 = vmatprep.subr.mxu0 0.0
      %4995 = vmatpush2.msra.mxu0 0.0
      %4996 = vmatprep.subr.mxu0 0.0
      %v4997 = vand.u32 %v4437, 4294901760
      %v4998 = vsub.f32 %v4437, %v4997
      %4999 = vmatpush2.msra.mxu0 %v4998
      %5000 = vmatprep.subr.mxu0 0.0
      %v5001 = vand.u32 %v4436, 4294901760
      %v5002 = vsub.f32 %v4436, %v5001
      %5003 = vmatpush2.msra.mxu0 %v5002
      %5004 = vmatprep.subr.mxu0 0.0
      %v5005 = vand.u32 %v4435, 4294901760
      %v5006 = vsub.f32 %v4435, %v5005
      %5007 = vmatpush2.msra.mxu0 %v5006
      %5008 = vmatprep.subr.mxu0 0.0
      %v5009 = vand.u32 %v4434, 4294901760
      %v5010 = vsub.f32 %v4434, %v5009
      %5011 = vmatpush2.msra.mxu0 %v5010
      %5012 = vmatprep.subr.mxu0 0.0
      %v5013 = vand.u32 %v4433, 4294901760
      %v5014 = vsub.f32 %v4433, %v5013
      %5015 = vmatpush2.msra.mxu0 %v5014
      %5016 = vmatprep.subr.mxu0 0.0
      %v5017 = vand.u32 %v4432, 4294901760
      %v5018 = vsub.f32 %v4432, %v5017
      %5019 = vmatpush2.msra.mxu0 %v5018
      %5020 = vmatprep.subr.mxu0 0.0
      %v5021 = vand.u32 %v4431, 4294901760
      %v5022 = vsub.f32 %v4431, %v5021
      %5023 = vmatpush2.msra.mxu0 %v5022
      %5024 = vmatprep.subr.mxu0 0.0
      %v5025 = vand.u32 %v4430, 4294901760
      %v5026 = vsub.f32 %v4430, %v5025
      %5027 = vmatpush2.msra.mxu0 %v5026
      %5028 = vmatprep.subr.mxu0 0.0
      %v5029 = vand.u32 %v4429, 4294901760
      %v5030 = vsub.f32 %v4429, %v5029
      %5031 = vmatpush2.msra.mxu0 %v5030
      %v5032 = vand.u32 %v4439, 4294901760
      %v5033 = vsub.f32 %v4439, %v5032
      %5034 = vmatprep.mubr.f32.mxu0 %v5033
      %v5035 = vand.u32 %v4396, 4294901760
      %v5036 = vsub.f32 %v4396, %v5035
      %5037 = vmatmul.mubr.f32.gmra.mxu0 %v5036
      %v5038 = vpop.f32.mrf.mxu0
      %v5039 = vadd.f32 %v4866, %v5038
      %v5040 = vpop.f32.mrf.mxu0
      %v5041 = vand.u32 %v4442, 4294901760
      %v5042 = vsub.f32 %v4442, %v5041
      %5043 = vmatprep.mubr.f32.mxu0 %v5042
      %v5044 = vand.u32 %v4398, 4294901760
      %v5045 = vsub.f32 %v4398, %v5044
      %5046 = vmatmul.mubr.f32.gmra.mxu0 %v5045
      %v5047 = vpop.f32.mrf.mxu0
      %v5048 = vadd.f32 %v4873, %v5047
      %v5049 = vpop.f32.mrf.mxu0
      %v5050 = vand.u32 %v4445, 4294901760
      %v5051 = vsub.f32 %v4445, %v5050
      %5052 = vmatprep.mubr.f32.mxu0 %v5051
      %v5053 = vand.u32 %v4400, 4294901760
      %v5054 = vsub.f32 %v4400, %v5053
      %5055 = vmatmul.mubr.f32.gmra.mxu0 %v5054
      %v5056 = vpop.f32.mrf.mxu0
      %v5057 = vadd.f32 %v4880, %v5056
      %v5058 = vpop.f32.mrf.mxu0
      %v5059 = vand.u32 %v4448, 4294901760
      %v5060 = vsub.f32 %v4448, %v5059
      %5061 = vmatprep.mubr.f32.mxu0 %v5060
      %v5062 = vand.u32 %v4402, 4294901760
      %v5063 = vsub.f32 %v4402, %v5062
      %5064 = vmatmul.mubr.f32.gmra.mxu0 %v5063
      %v5065 = vpop.f32.mrf.mxu0
      %v5066 = vadd.f32 %v4887, %v5065
      %v5067 = vpop.f32.mrf.mxu0
      %v5068 = vand.u32 %v4451, 4294901760
      %v5069 = vsub.f32 %v4451, %v5068
      %5070 = vmatprep.mubr.f32.mxu0 %v5069
      %v5071 = vand.u32 %v4404, 4294901760
      %v5072 = vsub.f32 %v4404, %v5071
      %5073 = vmatmul.mubr.f32.gmra.mxu0 %v5072
      %v5074 = vpop.f32.mrf.mxu0
      %v5075 = vadd.f32 %v4894, %v5074
      %v5076 = vpop.f32.mrf.mxu0
      %v5077 = vand.u32 %v4454, 4294901760
      %v5078 = vsub.f32 %v4454, %v5077
      %5079 = vmatprep.mubr.f32.mxu0 %v5078
      %v5080 = vand.u32 %v4406, 4294901760
      %v5081 = vsub.f32 %v4406, %v5080
      %5082 = vmatmul.mubr.f32.gmra.mxu0 %v5081
      %v5083 = vpop.f32.mrf.mxu0
      %v5084 = vadd.f32 %v4901, %v5083
      %v5085 = vpop.f32.mrf.mxu0
      %v5086 = vand.u32 %v4457, 4294901760
      %v5087 = vsub.f32 %v4457, %v5086
      %5088 = vmatprep.mubr.f32.mxu0 %v5087
      %v5089 = vand.u32 %v4408, 4294901760
      %v5090 = vsub.f32 %v4408, %v5089
      %5091 = vmatmul.mubr.f32.gmra.mxu0 %v5090
      %v5092 = vpop.f32.mrf.mxu0
      %v5093 = vadd.f32 %v4908, %v5092
      %v5094 = vpop.f32.mrf.mxu0
      %v5095 = vand.u32 %v4460, 4294901760
      %v5096 = vsub.f32 %v4460, %v5095
      %5097 = vmatprep.mubr.f32.mxu0 %v5096
      %v5098 = vand.u32 %v4410, 4294901760
      %v5099 = vsub.f32 %v4410, %v5098
      %5100 = vmatmul.mubr.f32.gmra.mxu0 %v5099
      %v5101 = vpop.f32.mrf.mxu0
      %v5102 = vadd.f32 %v4915, %v5101
      %v5103 = vpop.f32.mrf.mxu0
      %5104 = vdwg.mxu0
      %5105 = vmatprep.subr.mxu0 0.0
      %v5106 = vand.u32 %v4428, 4294901760
      %5107 = vmatpush1.msra.mxu0 %v5106
      %5108 = vmatprep.subr.mxu0 0.0
      %v5109 = vand.u32 %v4427, 4294901760
      %5110 = vmatpush1.msra.mxu0 %v5109
      %5111 = vmatprep.subr.mxu0 0.0
      %v5112 = vand.u32 %v4426, 4294901760
      %5113 = vmatpush1.msra.mxu0 %v5112
      %5114 = vmatprep.subr.mxu0 0.0
      %v5115 = vand.u32 %v4425, 4294901760
      %5116 = vmatpush1.msra.mxu0 %v5115
      %5117 = vmatprep.subr.mxu0 0.0
      %v5118 = vand.u32 %v4424, 4294901760
      %5119 = vmatpush1.msra.mxu0 %v5118
      %5120 = vmatprep.subr.mxu0 0.0
      %v5121 = vand.u32 %v4423, 4294901760
      %5122 = vmatpush1.msra.mxu0 %v5121
      %5123 = vmatprep.subr.mxu0 0.0
      %v5124 = vand.u32 %v4422, 4294901760
      %5125 = vmatpush1.msra.mxu0 %v5124
      %5126 = vmatprep.subr.mxu0 0.0
      %v5127 = vand.u32 %v4421, 4294901760
      %5128 = vmatpush1.msra.mxu0 %v5127
      %5129 = vmatprep.subr.mxu0 0.0
      %v5130 = vand.u32 %v4420, 4294901760
      %5131 = vmatpush1.msra.mxu0 %v5130
      %5132 = vmatprep.subr.mxu0 0.0
      %v5133 = vand.u32 %v4419, 4294901760
      %5134 = vmatpush1.msra.mxu0 %v5133
      %5135 = vmatprep.subr.mxu0 0.0
      %v5136 = vand.u32 %v4418, 4294901760
      %5137 = vmatpush1.msra.mxu0 %v5136
      %5138 = vmatprep.subr.mxu0 0.0
      %v5139 = vand.u32 %v4417, 4294901760
      %5140 = vmatpush1.msra.mxu0 %v5139
      %5141 = vmatprep.subr.mxu0 0.0
      %v5142 = vand.u32 %v4416, 4294901760
      %5143 = vmatpush1.msra.mxu0 %v5142
      %5144 = vmatprep.subr.mxu0 0.0
      %v5145 = vand.u32 %v4415, 4294901760
      %5146 = vmatpush1.msra.mxu0 %v5145
      %5147 = vmatprep.subr.mxu0 0.0
      %v5148 = vand.u32 %v4414, 4294901760
      %5149 = vmatpush1.msra.mxu0 %v5148
      %5150 = vmatprep.subr.mxu0 0.0
      %v5151 = vand.u32 %v4413, 4294901760
      %5152 = vmatpush1.msra.mxu0 %v5151
      %5153 = vmatprep.subr.mxu0 0.0
      %5154 = vmatpush2.msra.mxu0 0.0
      %5155 = vmatprep.subr.mxu0 0.0
      %5156 = vmatpush2.msra.mxu0 0.0
      %5157 = vmatprep.subr.mxu0 0.0
      %5158 = vmatpush2.msra.mxu0 0.0
      %5159 = vmatprep.subr.mxu0 0.0
      %5160 = vmatpush2.msra.mxu0 0.0
      %5161 = vmatprep.subr.mxu0 0.0
      %5162 = vmatpush2.msra.mxu0 0.0
      %5163 = vmatprep.subr.mxu0 0.0
      %5164 = vmatpush2.msra.mxu0 0.0
      %5165 = vmatprep.subr.mxu0 0.0
      %5166 = vmatpush2.msra.mxu0 0.0
      %5167 = vmatprep.subr.mxu0 0.0
      %v5168 = vand.u32 %v4437, 4294901760
      %5169 = vmatpush2.msra.mxu0 %v5168
      %5170 = vmatprep.subr.mxu0 0.0
      %v5171 = vand.u32 %v4436, 4294901760
      %5172 = vmatpush2.msra.mxu0 %v5171
      %5173 = vmatprep.subr.mxu0 0.0
      %v5174 = vand.u32 %v4435, 4294901760
      %5175 = vmatpush2.msra.mxu0 %v5174
      %5176 = vmatprep.subr.mxu0 0.0
      %v5177 = vand.u32 %v4434, 4294901760
      %5178 = vmatpush2.msra.mxu0 %v5177
      %5179 = vmatprep.subr.mxu0 0.0
      %v5180 = vand.u32 %v4433, 4294901760
      %5181 = vmatpush2.msra.mxu0 %v5180
      %5182 = vmatprep.subr.mxu0 0.0
      %v5183 = vand.u32 %v4432, 4294901760
      %5184 = vmatpush2.msra.mxu0 %v5183
      %5185 = vmatprep.subr.mxu0 0.0
      %v5186 = vand.u32 %v4431, 4294901760
      %5187 = vmatpush2.msra.mxu0 %v5186
      %5188 = vmatprep.subr.mxu0 0.0
      %v5189 = vand.u32 %v4430, 4294901760
      %5190 = vmatpush2.msra.mxu0 %v5189
      %5191 = vmatprep.subr.mxu0 0.0
      %v5192 = vand.u32 %v4429, 4294901760
      %5193 = vmatpush2.msra.mxu0 %v5192
      %v5194 = vand.u32 %v4439, 4294901760
      %v5195 = vsub.f32 %v4439, %v5194
      %v5196 = vand.u32 %v5195, 4294901760
      %5197 = vmatprep.mubr.f32.mxu0 %v5196
      %v5198 = vand.u32 %v4396, 4294901760
      %v5199 = vsub.f32 %v4396, %v5198
      %v5200 = vand.u32 %v5199, 4294901760
      %5201 = vmatmul.mubr.f32.gmra.mxu0 %v5200
      %v5202 = vpop.f32.mrf.mxu0
      %v5203 = vadd.f32 %v5039, %v5202
      %v5204 = vpop.f32.mrf.mxu0
      %v5205 = vand.u32 %v4442, 4294901760
      %v5206 = vsub.f32 %v4442, %v5205
      %v5207 = vand.u32 %v5206, 4294901760
      %5208 = vmatprep.mubr.f32.mxu0 %v5207
      %v5209 = vand.u32 %v4398, 4294901760
      %v5210 = vsub.f32 %v4398, %v5209
      %v5211 = vand.u32 %v5210, 4294901760
      %5212 = vmatmul.mubr.f32.gmra.mxu0 %v5211
      %v5213 = vpop.f32.mrf.mxu0
      %v5214 = vadd.f32 %v5048, %v5213
      %v5215 = vpop.f32.mrf.mxu0
      %v5216 = vand.u32 %v4445, 4294901760
      %v5217 = vsub.f32 %v4445, %v5216
      %v5218 = vand.u32 %v5217, 4294901760
      %5219 = vmatprep.mubr.f32.mxu0 %v5218
      %v5220 = vand.u32 %v4400, 4294901760
      %v5221 = vsub.f32 %v4400, %v5220
      %v5222 = vand.u32 %v5221, 4294901760
      %5223 = vmatmul.mubr.f32.gmra.mxu0 %v5222
      %v5224 = vpop.f32.mrf.mxu0
      %v5225 = vadd.f32 %v5057, %v5224
      %v5226 = vpop.f32.mrf.mxu0
      %v5227 = vand.u32 %v4448, 4294901760
      %v5228 = vsub.f32 %v4448, %v5227
      %v5229 = vand.u32 %v5228, 4294901760
      %5230 = vmatprep.mubr.f32.mxu0 %v5229
      %v5231 = vand.u32 %v4402, 4294901760
      %v5232 = vsub.f32 %v4402, %v5231
      %v5233 = vand.u32 %v5232, 4294901760
      %5234 = vmatmul.mubr.f32.gmra.mxu0 %v5233
      %v5235 = vpop.f32.mrf.mxu0
      %v5236 = vadd.f32 %v5066, %v5235
      %v5237 = vpop.f32.mrf.mxu0
      %v5238 = vand.u32 %v4451, 4294901760
      %v5239 = vsub.f32 %v4451, %v5238
      %v5240 = vand.u32 %v5239, 4294901760
      %5241 = vmatprep.mubr.f32.mxu0 %v5240
      %v5242 = vand.u32 %v4404, 4294901760
      %v5243 = vsub.f32 %v4404, %v5242
      %v5244 = vand.u32 %v5243, 4294901760
      %5245 = vmatmul.mubr.f32.gmra.mxu0 %v5244
      %v5246 = vpop.f32.mrf.mxu0
      %v5247 = vadd.f32 %v5075, %v5246
      %v5248 = vpop.f32.mrf.mxu0
      %v5249 = vand.u32 %v4454, 4294901760
      %v5250 = vsub.f32 %v4454, %v5249
      %v5251 = vand.u32 %v5250, 4294901760
      %5252 = vmatprep.mubr.f32.mxu0 %v5251
      %v5253 = vand.u32 %v4406, 4294901760
      %v5254 = vsub.f32 %v4406, %v5253
      %v5255 = vand.u32 %v5254, 4294901760
      %5256 = vmatmul.mubr.f32.gmra.mxu0 %v5255
      %v5257 = vpop.f32.mrf.mxu0
      %v5258 = vadd.f32 %v5084, %v5257
      %v5259 = vpop.f32.mrf.mxu0
      %v5260 = vand.u32 %v4457, 4294901760
      %v5261 = vsub.f32 %v4457, %v5260
      %v5262 = vand.u32 %v5261, 4294901760
      %5263 = vmatprep.mubr.f32.mxu0 %v5262
      %v5264 = vand.u32 %v4408, 4294901760
      %v5265 = vsub.f32 %v4408, %v5264
      %v5266 = vand.u32 %v5265, 4294901760
      %5267 = vmatmul.mubr.f32.gmra.mxu0 %v5266
      %v5268 = vpop.f32.mrf.mxu0
      %v5269 = vadd.f32 %v5093, %v5268
      %v5270 = vpop.f32.mrf.mxu0
      %v5271 = vand.u32 %v4460, 4294901760
      %v5272 = vsub.f32 %v4460, %v5271
      %v5273 = vand.u32 %v5272, 4294901760
      %5274 = vmatprep.mubr.f32.mxu0 %v5273
      %v5275 = vand.u32 %v4410, 4294901760
      %v5276 = vsub.f32 %v4410, %v5275
      %v5277 = vand.u32 %v5276, 4294901760
      %5278 = vmatmul.mubr.f32.gmra.mxu0 %v5277
      %v5279 = vpop.f32.mrf.mxu0
      %v5280 = vadd.f32 %v5102, %v5279
      %v5281 = vpop.f32.mrf.mxu0
      %5282 = vdwg.mxu0
      %5283 = vmatprep.subr.mxu0 0.0
      %v5284 = vand.u32 %v4428, 4294901760
      %v5285 = vsub.f32 %v4428, %v5284
      %v5286 = vand.u32 %v5285, 4294901760
      %5287 = vmatpush1.msra.mxu0 %v5286
      %5288 = vmatprep.subr.mxu0 0.0
      %v5289 = vand.u32 %v4427, 4294901760
      %v5290 = vsub.f32 %v4427, %v5289
      %v5291 = vand.u32 %v5290, 4294901760
      %5292 = vmatpush1.msra.mxu0 %v5291
      %5293 = vmatprep.subr.mxu0 0.0
      %v5294 = vand.u32 %v4426, 4294901760
      %v5295 = vsub.f32 %v4426, %v5294
      %v5296 = vand.u32 %v5295, 4294901760
      %5297 = vmatpush1.msra.mxu0 %v5296
      %5298 = vmatprep.subr.mxu0 0.0
      %v5299 = vand.u32 %v4425, 4294901760
      %v5300 = vsub.f32 %v4425, %v5299
      %v5301 = vand.u32 %v5300, 4294901760
      %5302 = vmatpush1.msra.mxu0 %v5301
      %5303 = vmatprep.subr.mxu0 0.0
      %v5304 = vand.u32 %v4424, 4294901760
      %v5305 = vsub.f32 %v4424, %v5304
      %v5306 = vand.u32 %v5305, 4294901760
      %5307 = vmatpush1.msra.mxu0 %v5306
      %5308 = vmatprep.subr.mxu0 0.0
      %v5309 = vand.u32 %v4423, 4294901760
      %v5310 = vsub.f32 %v4423, %v5309
      %v5311 = vand.u32 %v5310, 4294901760
      %5312 = vmatpush1.msra.mxu0 %v5311
      %5313 = vmatprep.subr.mxu0 0.0
      %v5314 = vand.u32 %v4422, 4294901760
      %v5315 = vsub.f32 %v4422, %v5314
      %v5316 = vand.u32 %v5315, 4294901760
      %5317 = vmatpush1.msra.mxu0 %v5316
      %5318 = vmatprep.subr.mxu0 0.0
      %v5319 = vand.u32 %v4421, 4294901760
      %v5320 = vsub.f32 %v4421, %v5319
      %v5321 = vand.u32 %v5320, 4294901760
      %5322 = vmatpush1.msra.mxu0 %v5321
      %5323 = vmatprep.subr.mxu0 0.0
      %v5324 = vand.u32 %v4420, 4294901760
      %v5325 = vsub.f32 %v4420, %v5324
      %v5326 = vand.u32 %v5325, 4294901760
      %5327 = vmatpush1.msra.mxu0 %v5326
      %5328 = vmatprep.subr.mxu0 0.0
      %v5329 = vand.u32 %v4419, 4294901760
      %v5330 = vsub.f32 %v4419, %v5329
      %v5331 = vand.u32 %v5330, 4294901760
      %5332 = vmatpush1.msra.mxu0 %v5331
      %5333 = vmatprep.subr.mxu0 0.0
      %v5334 = vand.u32 %v4418, 4294901760
      %v5335 = vsub.f32 %v4418, %v5334
      %v5336 = vand.u32 %v5335, 4294901760
      %5337 = vmatpush1.msra.mxu0 %v5336
      %5338 = vmatprep.subr.mxu0 0.0
      %v5339 = vand.u32 %v4417, 4294901760
      %v5340 = vsub.f32 %v4417, %v5339
      %v5341 = vand.u32 %v5340, 4294901760
      %5342 = vmatpush1.msra.mxu0 %v5341
      %5343 = vmatprep.subr.mxu0 0.0
      %v5344 = vand.u32 %v4416, 4294901760
      %v5345 = vsub.f32 %v4416, %v5344
      %v5346 = vand.u32 %v5345, 4294901760
      %5347 = vmatpush1.msra.mxu0 %v5346
      %5348 = vmatprep.subr.mxu0 0.0
      %v5349 = vand.u32 %v4415, 4294901760
      %v5350 = vsub.f32 %v4415, %v5349
      %v5351 = vand.u32 %v5350, 4294901760
      %5352 = vmatpush1.msra.mxu0 %v5351
      %5353 = vmatprep.subr.mxu0 0.0
      %v5354 = vand.u32 %v4414, 4294901760
      %v5355 = vsub.f32 %v4414, %v5354
      %v5356 = vand.u32 %v5355, 4294901760
      %5357 = vmatpush1.msra.mxu0 %v5356
      %5358 = vmatprep.subr.mxu0 0.0
      %v5359 = vand.u32 %v4413, 4294901760
      %v5360 = vsub.f32 %v4413, %v5359
      %v5361 = vand.u32 %v5360, 4294901760
      %5362 = vmatpush1.msra.mxu0 %v5361
      %5363 = vmatprep.subr.mxu0 0.0
      %5364 = vmatpush2.msra.mxu0 0.0
      %5365 = vmatprep.subr.mxu0 0.0
      %5366 = vmatpush2.msra.mxu0 0.0
      %5367 = vmatprep.subr.mxu0 0.0
      %5368 = vmatpush2.msra.mxu0 0.0
      %5369 = vmatprep.subr.mxu0 0.0
      %5370 = vmatpush2.msra.mxu0 0.0
      %5371 = vmatprep.subr.mxu0 0.0
      %5372 = vmatpush2.msra.mxu0 0.0
      %5373 = vmatprep.subr.mxu0 0.0
      %5374 = vmatpush2.msra.mxu0 0.0
      %5375 = vmatprep.subr.mxu0 0.0
      %5376 = vmatpush2.msra.mxu0 0.0
      %5377 = vmatprep.subr.mxu0 0.0
      %v5378 = vand.u32 %v4437, 4294901760
      %v5379 = vsub.f32 %v4437, %v5378
      %v5380 = vand.u32 %v5379, 4294901760
      %5381 = vmatpush2.msra.mxu0 %v5380
      %5382 = vmatprep.subr.mxu0 0.0
      %v5383 = vand.u32 %v4436, 4294901760
      %v5384 = vsub.f32 %v4436, %v5383
      %v5385 = vand.u32 %v5384, 4294901760
      %5386 = vmatpush2.msra.mxu0 %v5385
      %5387 = vmatprep.subr.mxu0 0.0
      %v5388 = vand.u32 %v4435, 4294901760
      %v5389 = vsub.f32 %v4435, %v5388
      %v5390 = vand.u32 %v5389, 4294901760
      %5391 = vmatpush2.msra.mxu0 %v5390
      %5392 = vmatprep.subr.mxu0 0.0
      %v5393 = vand.u32 %v4434, 4294901760
      %v5394 = vsub.f32 %v4434, %v5393
      %v5395 = vand.u32 %v5394, 4294901760
      %5396 = vmatpush2.msra.mxu0 %v5395
      %5397 = vmatprep.subr.mxu0 0.0
      %v5398 = vand.u32 %v4433, 4294901760
      %v5399 = vsub.f32 %v4433, %v5398
      %v5400 = vand.u32 %v5399, 4294901760
      %5401 = vmatpush2.msra.mxu0 %v5400
      %5402 = vmatprep.subr.mxu0 0.0
      %v5403 = vand.u32 %v4432, 4294901760
      %v5404 = vsub.f32 %v4432, %v5403
      %v5405 = vand.u32 %v5404, 4294901760
      %5406 = vmatpush2.msra.mxu0 %v5405
      %5407 = vmatprep.subr.mxu0 0.0
      %v5408 = vand.u32 %v4431, 4294901760
      %v5409 = vsub.f32 %v4431, %v5408
      %v5410 = vand.u32 %v5409, 4294901760
      %5411 = vmatpush2.msra.mxu0 %v5410
      %5412 = vmatprep.subr.mxu0 0.0
      %v5413 = vand.u32 %v4430, 4294901760
      %v5414 = vsub.f32 %v4430, %v5413
      %v5415 = vand.u32 %v5414, 4294901760
      %5416 = vmatpush2.msra.mxu0 %v5415
      %5417 = vmatprep.subr.mxu0 0.0
      %v5418 = vand.u32 %v4429, 4294901760
      %v5419 = vsub.f32 %v4429, %v5418
      %v5420 = vand.u32 %v5419, 4294901760
      %5421 = vmatpush2.msra.mxu0 %v5420
      %v5422 = vand.u32 %v4439, 4294901760
      %5423 = vmatprep.mubr.f32.mxu0 %v5422
      %v5424 = vand.u32 %v4396, 4294901760
      %5425 = vmatmul.mubr.f32.gmra.mxu0 %v5424
      %v5426 = vpop.f32.mrf.mxu0
      %v5427 = vadd.f32 %v5203, %v5426
      %v5428 = vpop.f32.mrf.mxu0
      %v5429 = vand.u32 %v4442, 4294901760
      %5430 = vmatprep.mubr.f32.mxu0 %v5429
      %v5431 = vand.u32 %v4398, 4294901760
      %5432 = vmatmul.mubr.f32.gmra.mxu0 %v5431
      %v5433 = vpop.f32.mrf.mxu0
      %v5434 = vadd.f32 %v5214, %v5433
      %v5435 = vpop.f32.mrf.mxu0
      %v5436 = vand.u32 %v4445, 4294901760
      %5437 = vmatprep.mubr.f32.mxu0 %v5436
      %v5438 = vand.u32 %v4400, 4294901760
      %5439 = vmatmul.mubr.f32.gmra.mxu0 %v5438
      %v5440 = vpop.f32.mrf.mxu0
      %v5441 = vadd.f32 %v5225, %v5440
      %v5442 = vpop.f32.mrf.mxu0
      %v5443 = vand.u32 %v4448, 4294901760
      %5444 = vmatprep.mubr.f32.mxu0 %v5443
      %v5445 = vand.u32 %v4402, 4294901760
      %5446 = vmatmul.mubr.f32.gmra.mxu0 %v5445
      %v5447 = vpop.f32.mrf.mxu0
      %v5448 = vadd.f32 %v5236, %v5447
      %v5449 = vpop.f32.mrf.mxu0
      %v5450 = vand.u32 %v4451, 4294901760
      %5451 = vmatprep.mubr.f32.mxu0 %v5450
      %v5452 = vand.u32 %v4404, 4294901760
      %5453 = vmatmul.mubr.f32.gmra.mxu0 %v5452
      %v5454 = vpop.f32.mrf.mxu0
      %v5455 = vadd.f32 %v5247, %v5454
      %v5456 = vpop.f32.mrf.mxu0
      %v5457 = vand.u32 %v4454, 4294901760
      %5458 = vmatprep.mubr.f32.mxu0 %v5457
      %v5459 = vand.u32 %v4406, 4294901760
      %5460 = vmatmul.mubr.f32.gmra.mxu0 %v5459
      %v5461 = vpop.f32.mrf.mxu0
      %v5462 = vadd.f32 %v5258, %v5461
      %v5463 = vpop.f32.mrf.mxu0
      %v5464 = vand.u32 %v4457, 4294901760
      %5465 = vmatprep.mubr.f32.mxu0 %v5464
      %v5466 = vand.u32 %v4408, 4294901760
      %5467 = vmatmul.mubr.f32.gmra.mxu0 %v5466
      %v5468 = vpop.f32.mrf.mxu0
      %v5469 = vadd.f32 %v5269, %v5468
      %v5470 = vpop.f32.mrf.mxu0
      %v5471 = vand.u32 %v4460, 4294901760
      %5472 = vmatprep.mubr.f32.mxu0 %v5471
      %v5473 = vand.u32 %v4410, 4294901760
      %5474 = vmatmul.mubr.f32.gmra.mxu0 %v5473
      %v5475 = vpop.f32.mrf.mxu0
      %v5476 = vadd.f32 %v5280, %v5475
      %v5477 = vpop.f32.mrf.mxu0
      %5478 = vdwg.mxu0
      %5479 = vmatprep.subr.mxu0 0.0
      %v5480 = vand.u32 %v4428, 4294901760
      %5481 = vmatpush1.msra.mxu0 %v5480
      %5482 = vmatprep.subr.mxu0 0.0
      %v5483 = vand.u32 %v4427, 4294901760
      %5484 = vmatpush1.msra.mxu0 %v5483
      %5485 = vmatprep.subr.mxu0 0.0
      %v5486 = vand.u32 %v4426, 4294901760
      %5487 = vmatpush1.msra.mxu0 %v5486
      %5488 = vmatprep.subr.mxu0 0.0
      %v5489 = vand.u32 %v4425, 4294901760
      %5490 = vmatpush1.msra.mxu0 %v5489
      %5491 = vmatprep.subr.mxu0 0.0
      %v5492 = vand.u32 %v4424, 4294901760
      %5493 = vmatpush1.msra.mxu0 %v5492
      %5494 = vmatprep.subr.mxu0 0.0
      %v5495 = vand.u32 %v4423, 4294901760
      %5496 = vmatpush1.msra.mxu0 %v5495
      %5497 = vmatprep.subr.mxu0 0.0
      %v5498 = vand.u32 %v4422, 4294901760
      %5499 = vmatpush1.msra.mxu0 %v5498
      %5500 = vmatprep.subr.mxu0 0.0
      %v5501 = vand.u32 %v4421, 4294901760
      %5502 = vmatpush1.msra.mxu0 %v5501
      %5503 = vmatprep.subr.mxu0 0.0
      %v5504 = vand.u32 %v4420, 4294901760
      %5505 = vmatpush1.msra.mxu0 %v5504
      %5506 = vmatprep.subr.mxu0 0.0
      %v5507 = vand.u32 %v4419, 4294901760
      %5508 = vmatpush1.msra.mxu0 %v5507
      %5509 = vmatprep.subr.mxu0 0.0
      %v5510 = vand.u32 %v4418, 4294901760
      %5511 = vmatpush1.msra.mxu0 %v5510
      %5512 = vmatprep.subr.mxu0 0.0
      %v5513 = vand.u32 %v4417, 4294901760
      %5514 = vmatpush1.msra.mxu0 %v5513
      %5515 = vmatprep.subr.mxu0 0.0
      %v5516 = vand.u32 %v4416, 4294901760
      %5517 = vmatpush1.msra.mxu0 %v5516
      %5518 = vmatprep.subr.mxu0 0.0
      %v5519 = vand.u32 %v4415, 4294901760
      %5520 = vmatpush1.msra.mxu0 %v5519
      %5521 = vmatprep.subr.mxu0 0.0
      %v5522 = vand.u32 %v4414, 4294901760
      %5523 = vmatpush1.msra.mxu0 %v5522
      %5524 = vmatprep.subr.mxu0 0.0
      %v5525 = vand.u32 %v4413, 4294901760
      %5526 = vmatpush1.msra.mxu0 %v5525
      %5527 = vmatprep.subr.mxu0 0.0
      %5528 = vmatpush2.msra.mxu0 0.0
      %5529 = vmatprep.subr.mxu0 0.0
      %5530 = vmatpush2.msra.mxu0 0.0
      %5531 = vmatprep.subr.mxu0 0.0
      %5532 = vmatpush2.msra.mxu0 0.0
      %5533 = vmatprep.subr.mxu0 0.0
      %5534 = vmatpush2.msra.mxu0 0.0
      %5535 = vmatprep.subr.mxu0 0.0
      %5536 = vmatpush2.msra.mxu0 0.0
      %5537 = vmatprep.subr.mxu0 0.0
      %5538 = vmatpush2.msra.mxu0 0.0
      %5539 = vmatprep.subr.mxu0 0.0
      %5540 = vmatpush2.msra.mxu0 0.0
      %5541 = vmatprep.subr.mxu0 0.0
      %v5542 = vand.u32 %v4437, 4294901760
      %5543 = vmatpush2.msra.mxu0 %v5542
      %5544 = vmatprep.subr.mxu0 0.0
      %v5545 = vand.u32 %v4436, 4294901760
      %5546 = vmatpush2.msra.mxu0 %v5545
      %5547 = vmatprep.subr.mxu0 0.0
      %v5548 = vand.u32 %v4435, 4294901760
      %5549 = vmatpush2.msra.mxu0 %v5548
      %5550 = vmatprep.subr.mxu0 0.0
      %v5551 = vand.u32 %v4434, 4294901760
      %5552 = vmatpush2.msra.mxu0 %v5551
      %5553 = vmatprep.subr.mxu0 0.0
      %v5554 = vand.u32 %v4433, 4294901760
      %5555 = vmatpush2.msra.mxu0 %v5554
      %5556 = vmatprep.subr.mxu0 0.0
      %v5557 = vand.u32 %v4432, 4294901760
      %5558 = vmatpush2.msra.mxu0 %v5557
      %5559 = vmatprep.subr.mxu0 0.0
      %v5560 = vand.u32 %v4431, 4294901760
      %5561 = vmatpush2.msra.mxu0 %v5560
      %5562 = vmatprep.subr.mxu0 0.0
      %v5563 = vand.u32 %v4430, 4294901760
      %5564 = vmatpush2.msra.mxu0 %v5563
      %5565 = vmatprep.subr.mxu0 0.0
      %v5566 = vand.u32 %v4429, 4294901760
      %5567 = vmatpush2.msra.mxu0 %v5566
      %v5568 = vand.u32 %v4439, 4294901760
      %5569 = vmatprep.mubr.f32.mxu0 %v5568
      %v5570 = vand.u32 %v4396, 4294901760
      %5571 = vmatmul.mubr.f32.gmra.mxu0 %v5570
      %v5572 = vpop.f32.mrf.mxu0
      %v5573 = vadd.f32 %v5427, %v5572
      %v5574 = vpop.f32.mrf.mxu0
      %v5575 = vand.u32 %v4442, 4294901760
      %5576 = vmatprep.mubr.f32.mxu0 %v5575
      %v5577 = vand.u32 %v4398, 4294901760
      %5578 = vmatmul.mubr.f32.gmra.mxu0 %v5577
      %v5579 = vpop.f32.mrf.mxu0
      %v5580 = vadd.f32 %v5434, %v5579
      %v5581 = vpop.f32.mrf.mxu0
      %v5582 = vand.u32 %v4445, 4294901760
      %5583 = vmatprep.mubr.f32.mxu0 %v5582
      %v5584 = vand.u32 %v4400, 4294901760
      %5585 = vmatmul.mubr.f32.gmra.mxu0 %v5584
      %v5586 = vpop.f32.mrf.mxu0
      %v5587 = vadd.f32 %v5441, %v5586
      %v5588 = vpop.f32.mrf.mxu0
      %v5589 = vand.u32 %v4448, 4294901760
      %5590 = vmatprep.mubr.f32.mxu0 %v5589
      %v5591 = vand.u32 %v4402, 4294901760
      %5592 = vmatmul.mubr.f32.gmra.mxu0 %v5591
      %v5593 = vpop.f32.mrf.mxu0
      %v5594 = vadd.f32 %v5448, %v5593
      %v5595 = vpop.f32.mrf.mxu0
      %v5596 = vand.u32 %v4451, 4294901760
      %5597 = vmatprep.mubr.f32.mxu0 %v5596
      %v5598 = vand.u32 %v4404, 4294901760
      %5599 = vmatmul.mubr.f32.gmra.mxu0 %v5598
      %v5600 = vpop.f32.mrf.mxu0
      %v5601 = vadd.f32 %v5455, %v5600
      %v5602 = vpop.f32.mrf.mxu0
      %v5603 = vand.u32 %v4454, 4294901760
      %5604 = vmatprep.mubr.f32.mxu0 %v5603
      %v5605 = vand.u32 %v4406, 4294901760
      %5606 = vmatmul.mubr.f32.gmra.mxu0 %v5605
      %v5607 = vpop.f32.mrf.mxu0
      %v5608 = vadd.f32 %v5462, %v5607
      %v5609 = vpop.f32.mrf.mxu0
      %v5610 = vand.u32 %v4457, 4294901760
      %5611 = vmatprep.mubr.f32.mxu0 %v5610
      %v5612 = vand.u32 %v4408, 4294901760
      %5613 = vmatmul.mubr.f32.gmra.mxu0 %v5612
      %v5614 = vpop.f32.mrf.mxu0
      %v5615 = vadd.f32 %v5469, %v5614
      %v5616 = vpop.f32.mrf.mxu0
      %v5617 = vand.u32 %v4460, 4294901760
      %5618 = vmatprep.mubr.f32.mxu0 %v5617
      %v5619 = vand.u32 %v4410, 4294901760
      %5620 = vmatmul.mubr.f32.gmra.mxu0 %v5619
      %v5621 = vpop.f32.mrf.mxu0
      %v5622 = vadd.f32 %v5476, %v5621
      %v5623 = vpop.f32.mrf.mxu0
      %5624 = vdwg.mxu0
      %v5625 = vlaneseq
      %v5626 = vshrl.u32 %v5625, 7
      %v5627 = vsub.s32 1, %v5626
      %v5628 = vrot.slane %v1562, %v5627
      %v5629 = vmul.f32 %v5573, %v5628
      %v5630 = vmul.f32 %v5580, %v5628
      %v5631 = vmul.f32 %v5587, %v5628
      %v5632 = vmul.f32 %v5594, %v5628
      %v5633 = vmul.f32 %v5601, %v5628
      %v5634 = vmul.f32 %v5608, %v5628
      %v5635 = vmul.f32 %v5615, %v5628
      %v5636 = vmul.f32 %v5622, %v5628
      %v5637 = vlaneseq
      %v5638 = vshrl.u32 %v5637, 7
      %v5639 = vsub.s32 1, %v5638
      %v5640 = vrot.slane %v1563, %v5639
      %v5641 = vadd.f32 %v5629, %v5640
      %v5642 = vadd.f32 %v5630, %v5640
      %v5643 = vadd.f32 %v5631, %v5640
      %v5644 = vadd.f32 %v5632, %v5640
      %v5645 = vadd.f32 %v5633, %v5640
      %v5646 = vadd.f32 %v5634, %v5640
      %v5647 = vadd.f32 %v5635, %v5640
      %v5648 = vadd.f32 %v5636, %v5640
      %v5649 = vmax.f32 %v5641, 0.0
      %v5650 = vmax.f32 %v5642, 0.0
      %v5651 = vmax.f32 %v5643, 0.0
      %v5652 = vmax.f32 %v5644, 0.0
      %v5653 = vmax.f32 %v5645, 0.0
      %v5654 = vmax.f32 %v5646, 0.0
      %v5655 = vmax.f32 %v5647, 0.0
      %v5656 = vmax.f32 %v5648, 0.0
      %5657 = vst.msk [vmem:[%s1564 + $0x8] sm:$0xff] %vm250, %v5649
      %5658 = vst.msk [vmem:[%s1564 + $0x20] sm:$0xff] %vm250, %v5650
      %5659 = vst.msk [vmem:[%s1564 + $0x38] sm:$0xff] %vm250, %v5651
      %5660 = vst.msk [vmem:[%s1564 + $0x50] sm:$0xff] %vm250, %v5652
      %5661 = vst.msk [vmem:[%s1564 + $0x68] sm:$0xff] %vm250, %v5653
      %5662 = vst.msk [vmem:[%s1564 + $0x80] sm:$0xff] %vm250, %v5654
      %5663 = vst.msk [vmem:[%s1564 + $0x98] sm:$0xff] %vm250, %v5655
      %5664 = vst.msk [vmem:[%s1564 + $0xb0] sm:$0xff] %vm250, %v5656
      %v5665 = vld [vmem:[%s3251 + $0x6] sm:$0xff]
      %v5666 = vld [vmem:[%s3251 + $0x1e] sm:$0xff]
      %v5667 = vld [vmem:[%s3251 + $0x36] sm:$0xff]
      %v5668 = vld [vmem:[%s3251 + $0x4e] sm:$0xff]
      %v5669 = vld [vmem:[%s3251 + $0x66] sm:$0xff]
      %v5670 = vld [vmem:[%s3251 + $0x7e] sm:$0xff]
      %v5671 = vld [vmem:[%s3251 + $0x96] sm:$0xff]
      %v5672 = vld [vmem:[%s3251 + $0xae] sm:$0xff]
      %5673 = vst.msk [vmem:[#allocation3] sm:$0xff] %vm250, %v5665
      %5674 = vst.msk [vmem:[#allocation3 + $0x10] sm:$0xff] %vm250, %v5666
      %5675 = vst.msk [vmem:[#allocation3 + $0x20] sm:$0xff] %vm250, %v5667
      %5676 = vst.msk [vmem:[#allocation3 + $0x30] sm:$0xff] %vm250, %v5668
      %5677 = vst.msk [vmem:[#allocation3 + $0x40] sm:$0xff] %vm250, %v5669
      %5678 = vst.msk [vmem:[#allocation3 + $0x50] sm:$0xff] %vm250, %v5670
      %5679 = vst.msk [vmem:[#allocation3 + $0x60] sm:$0xff] %vm250, %v5671
      %5680 = vst.msk [vmem:[#allocation3 + $0x70] sm:$0xff] %vm250, %v5672
      %v5681 = vld [vmem:[%s3251 + $0x7] sm:$0xff]
      %v5682 = vld [vmem:[%s3251 + $0x1f] sm:$0xff]
      %v5683 = vld [vmem:[%s3251 + $0x37] sm:$0xff]
      %v5684 = vld [vmem:[%s3251 + $0x4f] sm:$0xff]
      %v5685 = vld [vmem:[%s3251 + $0x67] sm:$0xff]
      %v5686 = vld [vmem:[%s3251 + $0x7f] sm:$0xff]
      %v5687 = vld [vmem:[%s3251 + $0x97] sm:$0xff]
      %v5688 = vld [vmem:[%s3251 + $0xaf] sm:$0xff]
      %5697 = vrot.lane.b32.xlu0 %v5681, 8
      %v5698 = vpop.permute.xlu0 %5697
      %5699 = vrot.lane.b32.xlu0 %v5682, 8
      %v5700 = vpop.permute.xlu0 %5699
      %5701 = vrot.lane.b32.xlu0 %v5683, 8
      %v5702 = vpop.permute.xlu0 %5701
      %5703 = vrot.lane.b32.xlu0 %v5684, 8
      %v5704 = vpop.permute.xlu0 %5703
      %5705 = vrot.lane.b32.xlu0 %v5685, 8
      %v5706 = vpop.permute.xlu0 %5705
      %5707 = vrot.lane.b32.xlu0 %v5686, 8
      %v5708 = vpop.permute.xlu0 %5707
      %5709 = vrot.lane.b32.xlu0 %v5687, 8
      %v5710 = vpop.permute.xlu0 %5709
      %5711 = vrot.lane.b32.xlu0 %v5688, 8
      %v5712 = vpop.permute.xlu0 %5711
      %5721 = vst.msk [vmem:[#allocation3] sm:$0xff] %vm1630, %v5698
      %5722 = vst.msk [vmem:[#allocation3 + $0x10] sm:$0xff] %vm1630, %v5700
      %5723 = vst.msk [vmem:[#allocation3 + $0x20] sm:$0xff] %vm1630, %v5702
      %5724 = vst.msk [vmem:[#allocation3 + $0x30] sm:$0xff] %vm1630, %v5704
      %5725 = vst.msk [vmem:[#allocation3 + $0x40] sm:$0xff] %vm1630, %v5706
      %5726 = vst.msk [vmem:[#allocation3 + $0x50] sm:$0xff] %vm1630, %v5708
      %5727 = vst.msk [vmem:[#allocation3 + $0x60] sm:$0xff] %vm1630, %v5710
      %5728 = vst.msk [vmem:[#allocation3 + $0x70] sm:$0xff] %vm1630, %v5712
      %v5729 = vld [vmem:[%s3251 + $0x8] sm:$0xff]
      %v5730 = vld [vmem:[%s3251 + $0x20] sm:$0xff]
      %v5731 = vld [vmem:[%s3251 + $0x38] sm:$0xff]
      %v5732 = vld [vmem:[%s3251 + $0x50] sm:$0xff]
      %v5733 = vld [vmem:[%s3251 + $0x68] sm:$0xff]
      %v5734 = vld [vmem:[%s3251 + $0x80] sm:$0xff]
      %v5735 = vld [vmem:[%s3251 + $0x98] sm:$0xff]
      %v5736 = vld [vmem:[%s3251 + $0xb0] sm:$0xff]
      %5745 = vrot.lane.b32.xlu0 %v5729, 16
      %v5746 = vpop.permute.xlu0 %5745
      %5747 = vrot.lane.b32.xlu0 %v5730, 16
      %v5748 = vpop.permute.xlu0 %5747
      %5749 = vrot.lane.b32.xlu0 %v5731, 16
      %v5750 = vpop.permute.xlu0 %5749
      %5751 = vrot.lane.b32.xlu0 %v5732, 16
      %v5752 = vpop.permute.xlu0 %5751
      %5753 = vrot.lane.b32.xlu0 %v5733, 16
      %v5754 = vpop.permute.xlu0 %5753
      %5755 = vrot.lane.b32.xlu0 %v5734, 16
      %v5756 = vpop.permute.xlu0 %5755
      %5757 = vrot.lane.b32.xlu0 %v5735, 16
      %v5758 = vpop.permute.xlu0 %5757
      %5759 = vrot.lane.b32.xlu0 %v5736, 16
      %v5760 = vpop.permute.xlu0 %5759
      %5769 = vst.msk [vmem:[#allocation3] sm:$0xff] %vm1679, %v5746
      %5770 = vst.msk [vmem:[#allocation3 + $0x10] sm:$0xff] %vm1679, %v5748
      %5771 = vst.msk [vmem:[#allocation3 + $0x20] sm:$0xff] %vm1679, %v5750
      %5772 = vst.msk [vmem:[#allocation3 + $0x30] sm:$0xff] %vm1679, %v5752
      %5773 = vst.msk [vmem:[#allocation3 + $0x40] sm:$0xff] %vm1679, %v5754
      %5774 = vst.msk [vmem:[#allocation3 + $0x50] sm:$0xff] %vm1679, %v5756
      %5775 = vst.msk [vmem:[#allocation3 + $0x60] sm:$0xff] %vm1679, %v5758
      %5776 = vst.msk [vmem:[#allocation3 + $0x70] sm:$0xff] %vm1679, %v5760
      %v5777 = vld [vmem:[%s3251 + $0x9] sm:$0xff]
      %v5778 = vld [vmem:[%s3251 + $0x21] sm:$0xff]
      %v5779 = vld [vmem:[%s3251 + $0x39] sm:$0xff]
      %v5780 = vld [vmem:[%s3251 + $0x51] sm:$0xff]
      %v5781 = vld [vmem:[%s3251 + $0x69] sm:$0xff]
      %v5782 = vld [vmem:[%s3251 + $0x81] sm:$0xff]
      %v5783 = vld [vmem:[%s3251 + $0x99] sm:$0xff]
      %v5784 = vld [vmem:[%s3251 + $0xb1] sm:$0xff]
      %5793 = vrot.lane.b32.xlu0 %v5777, 24
      %v5794 = vpop.permute.xlu0 %5793
      %5795 = vrot.lane.b32.xlu0 %v5778, 24
      %v5796 = vpop.permute.xlu0 %5795
      %5797 = vrot.lane.b32.xlu0 %v5779, 24
      %v5798 = vpop.permute.xlu0 %5797
      %5799 = vrot.lane.b32.xlu0 %v5780, 24
      %v5800 = vpop.permute.xlu0 %5799
      %5801 = vrot.lane.b32.xlu0 %v5781, 24
      %v5802 = vpop.permute.xlu0 %5801
      %5803 = vrot.lane.b32.xlu0 %v5782, 24
      %v5804 = vpop.permute.xlu0 %5803
      %5805 = vrot.lane.b32.xlu0 %v5783, 24
      %v5806 = vpop.permute.xlu0 %5805
      %5807 = vrot.lane.b32.xlu0 %v5784, 24
      %v5808 = vpop.permute.xlu0 %5807
      %5817 = vst.msk [vmem:[#allocation3] sm:$0xff] %vm1728, %v5794
      %5818 = vst.msk [vmem:[#allocation3 + $0x10] sm:$0xff] %vm1728, %v5796
      %5819 = vst.msk [vmem:[#allocation3 + $0x20] sm:$0xff] %vm1728, %v5798
      %5820 = vst.msk [vmem:[#allocation3 + $0x30] sm:$0xff] %vm1728, %v5800
      %5821 = vst.msk [vmem:[#allocation3 + $0x40] sm:$0xff] %vm1728, %v5802
      %5822 = vst.msk [vmem:[#allocation3 + $0x50] sm:$0xff] %vm1728, %v5804
      %5823 = vst.msk [vmem:[#allocation3 + $0x60] sm:$0xff] %vm1728, %v5806
      %5824 = vst.msk [vmem:[#allocation3 + $0x70] sm:$0xff] %vm1728, %v5808
      %v5825 = vld [vmem:[%s3251 + $0xa] sm:$0xff]
      %v5826 = vld [vmem:[%s3251 + $0x22] sm:$0xff]
      %v5827 = vld [vmem:[%s3251 + $0x3a] sm:$0xff]
      %v5828 = vld [vmem:[%s3251 + $0x52] sm:$0xff]
      %v5829 = vld [vmem:[%s3251 + $0x6a] sm:$0xff]
      %v5830 = vld [vmem:[%s3251 + $0x82] sm:$0xff]
      %v5831 = vld [vmem:[%s3251 + $0x9a] sm:$0xff]
      %v5832 = vld [vmem:[%s3251 + $0xb2] sm:$0xff]
      %5841 = vrot.lane.b32.xlu0 %v5825, 32
      %v5842 = vpop.permute.xlu0 %5841
      %5843 = vrot.lane.b32.xlu0 %v5826, 32
      %v5844 = vpop.permute.xlu0 %5843
      %5845 = vrot.lane.b32.xlu0 %v5827, 32
      %v5846 = vpop.permute.xlu0 %5845
      %5847 = vrot.lane.b32.xlu0 %v5828, 32
      %v5848 = vpop.permute.xlu0 %5847
      %5849 = vrot.lane.b32.xlu0 %v5829, 32
      %v5850 = vpop.permute.xlu0 %5849
      %5851 = vrot.lane.b32.xlu0 %v5830, 32
      %v5852 = vpop.permute.xlu0 %5851
      %5853 = vrot.lane.b32.xlu0 %v5831, 32
      %v5854 = vpop.permute.xlu0 %5853
      %5855 = vrot.lane.b32.xlu0 %v5832, 32
      %v5856 = vpop.permute.xlu0 %5855
      %5865 = vst.msk [vmem:[#allocation3] sm:$0xff] %vm1777, %v5842
      %5866 = vst.msk [vmem:[#allocation3 + $0x10] sm:$0xff] %vm1777, %v5844
      %5867 = vst.msk [vmem:[#allocation3 + $0x20] sm:$0xff] %vm1777, %v5846
      %5868 = vst.msk [vmem:[#allocation3 + $0x30] sm:$0xff] %vm1777, %v5848
      %5869 = vst.msk [vmem:[#allocation3 + $0x40] sm:$0xff] %vm1777, %v5850
      %5870 = vst.msk [vmem:[#allocation3 + $0x50] sm:$0xff] %vm1777, %v5852
      %5871 = vst.msk [vmem:[#allocation3 + $0x60] sm:$0xff] %vm1777, %v5854
      %5872 = vst.msk [vmem:[#allocation3 + $0x70] sm:$0xff] %vm1777, %v5856
      %v5873 = vld [vmem:[%s1573 + $0x6] sm:$0xff]
      %v5874 = vld [vmem:[%s1573 + $0x1e] sm:$0xff]
      %v5875 = vld [vmem:[%s1573 + $0x36] sm:$0xff]
      %v5876 = vld [vmem:[%s1573 + $0x4e] sm:$0xff]
      %v5877 = vld [vmem:[%s1573 + $0x66] sm:$0xff]
      %v5878 = vld [vmem:[%s1573 + $0x7e] sm:$0xff]
      %v5879 = vld [vmem:[%s1573 + $0x96] sm:$0xff]
      %v5880 = vld [vmem:[%s1573 + $0xae] sm:$0xff]
      %5889 = vrot.lane.b32.xlu0 %v5873, 40
      %v5890 = vpop.permute.xlu0 %5889
      %5891 = vrot.lane.b32.xlu0 %v5874, 40
      %v5892 = vpop.permute.xlu0 %5891
      %5893 = vrot.lane.b32.xlu0 %v5875, 40
      %v5894 = vpop.permute.xlu0 %5893
      %5895 = vrot.lane.b32.xlu0 %v5876, 40
      %v5896 = vpop.permute.xlu0 %5895
      %5897 = vrot.lane.b32.xlu0 %v5877, 40
      %v5898 = vpop.permute.xlu0 %5897
      %5899 = vrot.lane.b32.xlu0 %v5878, 40
      %v5900 = vpop.permute.xlu0 %5899
      %5901 = vrot.lane.b32.xlu0 %v5879, 40
      %v5902 = vpop.permute.xlu0 %5901
      %5903 = vrot.lane.b32.xlu0 %v5880, 40
      %v5904 = vpop.permute.xlu0 %5903
      %5913 = vst.msk [vmem:[#allocation3] sm:$0xff] %vm1826, %v5890
      %5914 = vst.msk [vmem:[#allocation3 + $0x10] sm:$0xff] %vm1826, %v5892
      %5915 = vst.msk [vmem:[#allocation3 + $0x20] sm:$0xff] %vm1826, %v5894
      %5916 = vst.msk [vmem:[#allocation3 + $0x30] sm:$0xff] %vm1826, %v5896
      %5917 = vst.msk [vmem:[#allocation3 + $0x40] sm:$0xff] %vm1826, %v5898
      %5918 = vst.msk [vmem:[#allocation3 + $0x50] sm:$0xff] %vm1826, %v5900
      %5919 = vst.msk [vmem:[#allocation3 + $0x60] sm:$0xff] %vm1826, %v5902
      %5920 = vst.msk [vmem:[#allocation3 + $0x70] sm:$0xff] %vm1826, %v5904
      %v5921 = vld [vmem:[%s1573 + $0x7] sm:$0xff]
      %v5922 = vld [vmem:[%s1573 + $0x1f] sm:$0xff]
      %v5923 = vld [vmem:[%s1573 + $0x37] sm:$0xff]
      %v5924 = vld [vmem:[%s1573 + $0x4f] sm:$0xff]
      %v5925 = vld [vmem:[%s1573 + $0x67] sm:$0xff]
      %v5926 = vld [vmem:[%s1573 + $0x7f] sm:$0xff]
      %v5927 = vld [vmem:[%s1573 + $0x97] sm:$0xff]
      %v5928 = vld [vmem:[%s1573 + $0xaf] sm:$0xff]
      %5937 = vrot.lane.b32.xlu0 %v5921, 48
      %v5938 = vpop.permute.xlu0 %5937
      %5939 = vrot.lane.b32.xlu0 %v5922, 48
      %v5940 = vpop.permute.xlu0 %5939
      %5941 = vrot.lane.b32.xlu0 %v5923, 48
      %v5942 = vpop.permute.xlu0 %5941
      %5943 = vrot.lane.b32.xlu0 %v5924, 48
      %v5944 = vpop.permute.xlu0 %5943
      %5945 = vrot.lane.b32.xlu0 %v5925, 48
      %v5946 = vpop.permute.xlu0 %5945
      %5947 = vrot.lane.b32.xlu0 %v5926, 48
      %v5948 = vpop.permute.xlu0 %5947
      %5949 = vrot.lane.b32.xlu0 %v5927, 48
      %v5950 = vpop.permute.xlu0 %5949
      %5951 = vrot.lane.b32.xlu0 %v5928, 48
      %v5952 = vpop.permute.xlu0 %5951
      %5961 = vst.msk [vmem:[#allocation3] sm:$0xff] %vm1876, %v5938
      %5962 = vst.msk [vmem:[#allocation3 + $0x10] sm:$0xff] %vm1876, %v5940
      %5963 = vst.msk [vmem:[#allocation3 + $0x20] sm:$0xff] %vm1876, %v5942
      %5964 = vst.msk [vmem:[#allocation3 + $0x30] sm:$0xff] %vm1876, %v5944
      %5965 = vst.msk [vmem:[#allocation3 + $0x40] sm:$0xff] %vm1876, %v5946
      %5966 = vst.msk [vmem:[#allocation3 + $0x50] sm:$0xff] %vm1876, %v5948
      %5967 = vst.msk [vmem:[#allocation3 + $0x60] sm:$0xff] %vm1876, %v5950
      %5968 = vst.msk [vmem:[#allocation3 + $0x70] sm:$0xff] %vm1876, %v5952
      %v5969 = vld [vmem:[%s1573 + $0x8] sm:$0xff]
      %v5970 = vld [vmem:[%s1573 + $0x20] sm:$0xff]
      %v5971 = vld [vmem:[%s1573 + $0x38] sm:$0xff]
      %v5972 = vld [vmem:[%s1573 + $0x50] sm:$0xff]
      %v5973 = vld [vmem:[%s1573 + $0x68] sm:$0xff]
      %v5974 = vld [vmem:[%s1573 + $0x80] sm:$0xff]
      %v5975 = vld [vmem:[%s1573 + $0x98] sm:$0xff]
      %v5976 = vld [vmem:[%s1573 + $0xb0] sm:$0xff]
      %5985 = vrot.lane.b32.xlu0 %v5969, 56
      %v5986 = vpop.permute.xlu0 %5985
      %5987 = vrot.lane.b32.xlu0 %v5970, 56
      %v5988 = vpop.permute.xlu0 %5987
      %5989 = vrot.lane.b32.xlu0 %v5971, 56
      %v5990 = vpop.permute.xlu0 %5989
      %5991 = vrot.lane.b32.xlu0 %v5972, 56
      %v5992 = vpop.permute.xlu0 %5991
      %5993 = vrot.lane.b32.xlu0 %v5973, 56
      %v5994 = vpop.permute.xlu0 %5993
      %5995 = vrot.lane.b32.xlu0 %v5974, 56
      %v5996 = vpop.permute.xlu0 %5995
      %5997 = vrot.lane.b32.xlu0 %v5975, 56
      %v5998 = vpop.permute.xlu0 %5997
      %5999 = vrot.lane.b32.xlu0 %v5976, 56
      %v6000 = vpop.permute.xlu0 %5999
      %6009 = vst.msk [vmem:[#allocation3] sm:$0xff] %vm1925, %v5986
      %6010 = vst.msk [vmem:[#allocation3 + $0x10] sm:$0xff] %vm1925, %v5988
      %6011 = vst.msk [vmem:[#allocation3 + $0x20] sm:$0xff] %vm1925, %v5990
      %6012 = vst.msk [vmem:[#allocation3 + $0x30] sm:$0xff] %vm1925, %v5992
      %6013 = vst.msk [vmem:[#allocation3 + $0x40] sm:$0xff] %vm1925, %v5994
      %6014 = vst.msk [vmem:[#allocation3 + $0x50] sm:$0xff] %vm1925, %v5996
      %6015 = vst.msk [vmem:[#allocation3 + $0x60] sm:$0xff] %vm1925, %v5998
      %6016 = vst.msk [vmem:[#allocation3 + $0x70] sm:$0xff] %vm1925, %v6000
      %v6017 = vld [vmem:[%s1573 + $0x9] sm:$0xff]
      %v6018 = vld [vmem:[%s1573 + $0x21] sm:$0xff]
      %v6019 = vld [vmem:[%s1573 + $0x39] sm:$0xff]
      %v6020 = vld [vmem:[%s1573 + $0x51] sm:$0xff]
      %v6021 = vld [vmem:[%s1573 + $0x69] sm:$0xff]
      %v6022 = vld [vmem:[%s1573 + $0x81] sm:$0xff]
      %v6023 = vld [vmem:[%s1573 + $0x99] sm:$0xff]
      %v6024 = vld [vmem:[%s1573 + $0xb1] sm:$0xff]
      %6033 = vrot.lane.b32.xlu0 %v6017, 64
      %v6034 = vpop.permute.xlu0 %6033
      %6035 = vrot.lane.b32.xlu0 %v6018, 64
      %v6036 = vpop.permute.xlu0 %6035
      %6037 = vrot.lane.b32.xlu0 %v6019, 64
      %v6038 = vpop.permute.xlu0 %6037
      %6039 = vrot.lane.b32.xlu0 %v6020, 64
      %v6040 = vpop.permute.xlu0 %6039
      %6041 = vrot.lane.b32.xlu0 %v6021, 64
      %v6042 = vpop.permute.xlu0 %6041
      %6043 = vrot.lane.b32.xlu0 %v6022, 64
      %v6044 = vpop.permute.xlu0 %6043
      %6045 = vrot.lane.b32.xlu0 %v6023, 64
      %v6046 = vpop.permute.xlu0 %6045
      %6047 = vrot.lane.b32.xlu0 %v6024, 64
      %v6048 = vpop.permute.xlu0 %6047
      %6057 = vst.msk [vmem:[#allocation3] sm:$0xff] %vm1974, %v6034
      %6058 = vst.msk [vmem:[#allocation3 + $0x10] sm:$0xff] %vm1974, %v6036
      %6059 = vst.msk [vmem:[#allocation3 + $0x20] sm:$0xff] %vm1974, %v6038
      %6060 = vst.msk [vmem:[#allocation3 + $0x30] sm:$0xff] %vm1974, %v6040
      %6061 = vst.msk [vmem:[#allocation3 + $0x40] sm:$0xff] %vm1974, %v6042
      %6062 = vst.msk [vmem:[#allocation3 + $0x50] sm:$0xff] %vm1974, %v6044
      %6063 = vst.msk [vmem:[#allocation3 + $0x60] sm:$0xff] %vm1974, %v6046
      %6064 = vst.msk [vmem:[#allocation3 + $0x70] sm:$0xff] %vm1974, %v6048
      %v6065 = vld [vmem:[%s1573 + $0xa] sm:$0xff]
      %v6066 = vld [vmem:[%s1573 + $0x22] sm:$0xff]
      %v6067 = vld [vmem:[%s1573 + $0x3a] sm:$0xff]
      %v6068 = vld [vmem:[%s1573 + $0x52] sm:$0xff]
      %v6069 = vld [vmem:[%s1573 + $0x6a] sm:$0xff]
      %v6070 = vld [vmem:[%s1573 + $0x82] sm:$0xff]
      %v6071 = vld [vmem:[%s1573 + $0x9a] sm:$0xff]
      %v6072 = vld [vmem:[%s1573 + $0xb2] sm:$0xff]
      %6081 = vrot.lane.b32.xlu0 %v6065, 72
      %v6082 = vpop.permute.xlu0 %6081
      %6083 = vrot.lane.b32.xlu0 %v6066, 72
      %v6084 = vpop.permute.xlu0 %6083
      %6085 = vrot.lane.b32.xlu0 %v6067, 72
      %v6086 = vpop.permute.xlu0 %6085
      %6087 = vrot.lane.b32.xlu0 %v6068, 72
      %v6088 = vpop.permute.xlu0 %6087
      %6089 = vrot.lane.b32.xlu0 %v6069, 72
      %v6090 = vpop.permute.xlu0 %6089
      %6091 = vrot.lane.b32.xlu0 %v6070, 72
      %v6092 = vpop.permute.xlu0 %6091
      %6093 = vrot.lane.b32.xlu0 %v6071, 72
      %v6094 = vpop.permute.xlu0 %6093
      %6095 = vrot.lane.b32.xlu0 %v6072, 72
      %v6096 = vpop.permute.xlu0 %6095
      %6105 = vst.msk [vmem:[#allocation3] sm:$0xff] %vm3692, %v6082
      %6106 = vst.msk [vmem:[#allocation3 + $0x10] sm:$0xff] %vm3692, %v6084
      %6107 = vst.msk [vmem:[#allocation3 + $0x20] sm:$0xff] %vm3692, %v6086
      %6108 = vst.msk [vmem:[#allocation3 + $0x30] sm:$0xff] %vm3692, %v6088
      %6109 = vst.msk [vmem:[#allocation3 + $0x40] sm:$0xff] %vm3692, %v6090
      %6110 = vst.msk [vmem:[#allocation3 + $0x50] sm:$0xff] %vm3692, %v6092
      %6111 = vst.msk [vmem:[#allocation3 + $0x60] sm:$0xff] %vm3692, %v6094
      %6112 = vst.msk [vmem:[#allocation3 + $0x70] sm:$0xff] %vm3692, %v6096
      %v6113 = vld [vmem:[%s1564 + $0x6] sm:$0xff]
      %v6114 = vld [vmem:[%s1564 + $0x1e] sm:$0xff]
      %v6115 = vld [vmem:[%s1564 + $0x36] sm:$0xff]
      %v6116 = vld [vmem:[%s1564 + $0x4e] sm:$0xff]
      %v6117 = vld [vmem:[%s1564 + $0x66] sm:$0xff]
      %v6118 = vld [vmem:[%s1564 + $0x7e] sm:$0xff]
      %v6119 = vld [vmem:[%s1564 + $0x96] sm:$0xff]
      %v6120 = vld [vmem:[%s1564 + $0xae] sm:$0xff]
      %6129 = vrot.lane.b32.xlu0 %v6113, 80
      %v6130 = vpop.permute.xlu0 %6129
      %6131 = vrot.lane.b32.xlu0 %v6114, 80
      %v6132 = vpop.permute.xlu0 %6131
      %6133 = vrot.lane.b32.xlu0 %v6115, 80
      %v6134 = vpop.permute.xlu0 %6133
      %6135 = vrot.lane.b32.xlu0 %v6116, 80
      %v6136 = vpop.permute.xlu0 %6135
      %6137 = vrot.lane.b32.xlu0 %v6117, 80
      %v6138 = vpop.permute.xlu0 %6137
      %6139 = vrot.lane.b32.xlu0 %v6118, 80
      %v6140 = vpop.permute.xlu0 %6139
      %6141 = vrot.lane.b32.xlu0 %v6119, 80
      %v6142 = vpop.permute.xlu0 %6141
      %6143 = vrot.lane.b32.xlu0 %v6120, 80
      %v6144 = vpop.permute.xlu0 %6143
      %6153 = vst.msk [vmem:[#allocation3] sm:$0xff] %vm3741, %v6130
      %6154 = vst.msk [vmem:[#allocation3 + $0x10] sm:$0xff] %vm3741, %v6132
      %6155 = vst.msk [vmem:[#allocation3 + $0x20] sm:$0xff] %vm3741, %v6134
      %6156 = vst.msk [vmem:[#allocation3 + $0x30] sm:$0xff] %vm3741, %v6136
      %6157 = vst.msk [vmem:[#allocation3 + $0x40] sm:$0xff] %vm3741, %v6138
      %6158 = vst.msk [vmem:[#allocation3 + $0x50] sm:$0xff] %vm3741, %v6140
      %6159 = vst.msk [vmem:[#allocation3 + $0x60] sm:$0xff] %vm3741, %v6142
      %6160 = vst.msk [vmem:[#allocation3 + $0x70] sm:$0xff] %vm3741, %v6144
      %v6161 = vld [vmem:[%s1564 + $0x7] sm:$0xff]
      %v6162 = vld [vmem:[%s1564 + $0x1f] sm:$0xff]
      %v6163 = vld [vmem:[%s1564 + $0x37] sm:$0xff]
      %v6164 = vld [vmem:[%s1564 + $0x4f] sm:$0xff]
      %v6165 = vld [vmem:[%s1564 + $0x67] sm:$0xff]
      %v6166 = vld [vmem:[%s1564 + $0x7f] sm:$0xff]
      %v6167 = vld [vmem:[%s1564 + $0x97] sm:$0xff]
      %v6168 = vld [vmem:[%s1564 + $0xaf] sm:$0xff]
      %6177 = vrot.lane.b32.xlu0 %v6161, 88
      %v6178 = vpop.permute.xlu0 %6177
      %6179 = vrot.lane.b32.xlu0 %v6162, 88
      %v6180 = vpop.permute.xlu0 %6179
      %6181 = vrot.lane.b32.xlu0 %v6163, 88
      %v6182 = vpop.permute.xlu0 %6181
      %6183 = vrot.lane.b32.xlu0 %v6164, 88
      %v6184 = vpop.permute.xlu0 %6183
      %6185 = vrot.lane.b32.xlu0 %v6165, 88
      %v6186 = vpop.permute.xlu0 %6185
      %6187 = vrot.lane.b32.xlu0 %v6166, 88
      %v6188 = vpop.permute.xlu0 %6187
      %6189 = vrot.lane.b32.xlu0 %v6167, 88
      %v6190 = vpop.permute.xlu0 %6189
      %6191 = vrot.lane.b32.xlu0 %v6168, 88
      %v6192 = vpop.permute.xlu0 %6191
      %6201 = vst.msk [vmem:[#allocation3] sm:$0xff] %vm3790, %v6178
      %6202 = vst.msk [vmem:[#allocation3 + $0x10] sm:$0xff] %vm3790, %v6180
      %6203 = vst.msk [vmem:[#allocation3 + $0x20] sm:$0xff] %vm3790, %v6182
      %6204 = vst.msk [vmem:[#allocation3 + $0x30] sm:$0xff] %vm3790, %v6184
      %6205 = vst.msk [vmem:[#allocation3 + $0x40] sm:$0xff] %vm3790, %v6186
      %6206 = vst.msk [vmem:[#allocation3 + $0x50] sm:$0xff] %vm3790, %v6188
      %6207 = vst.msk [vmem:[#allocation3 + $0x60] sm:$0xff] %vm3790, %v6190
      %6208 = vst.msk [vmem:[#allocation3 + $0x70] sm:$0xff] %vm3790, %v6192
      %v6209 = vld [vmem:[%s1564 + $0x8] sm:$0xff]
      %v6210 = vld [vmem:[%s1564 + $0x20] sm:$0xff]
      %v6211 = vld [vmem:[%s1564 + $0x38] sm:$0xff]
      %v6212 = vld [vmem:[%s1564 + $0x50] sm:$0xff]
      %v6213 = vld [vmem:[%s1564 + $0x68] sm:$0xff]
      %v6214 = vld [vmem:[%s1564 + $0x80] sm:$0xff]
      %v6215 = vld [vmem:[%s1564 + $0x98] sm:$0xff]
      %v6216 = vld [vmem:[%s1564 + $0xb0] sm:$0xff]
      %6225 = vrot.lane.b32.xlu0 %v6209, 96
      %v6226 = vpop.permute.xlu0 %6225
      %6227 = vrot.lane.b32.xlu0 %v6210, 96
      %v6228 = vpop.permute.xlu0 %6227
      %6229 = vrot.lane.b32.xlu0 %v6211, 96
      %v6230 = vpop.permute.xlu0 %6229
      %6231 = vrot.lane.b32.xlu0 %v6212, 96
      %v6232 = vpop.permute.xlu0 %6231
      %6233 = vrot.lane.b32.xlu0 %v6213, 96
      %v6234 = vpop.permute.xlu0 %6233
      %6235 = vrot.lane.b32.xlu0 %v6214, 96
      %v6236 = vpop.permute.xlu0 %6235
      %6237 = vrot.lane.b32.xlu0 %v6215, 96
      %v6238 = vpop.permute.xlu0 %6237
      %6239 = vrot.lane.b32.xlu0 %v6216, 96
      %v6240 = vpop.permute.xlu0 %6239
      %6249 = vst.msk [vmem:[#allocation3] sm:$0xff] %vm3839, %v6226
      %6250 = vst.msk [vmem:[#allocation3 + $0x10] sm:$0xff] %vm3839, %v6228
      %6251 = vst.msk [vmem:[#allocation3 + $0x20] sm:$0xff] %vm3839, %v6230
      %6252 = vst.msk [vmem:[#allocation3 + $0x30] sm:$0xff] %vm3839, %v6232
      %6253 = vst.msk [vmem:[#allocation3 + $0x40] sm:$0xff] %vm3839, %v6234
      %6254 = vst.msk [vmem:[#allocation3 + $0x50] sm:$0xff] %vm3839, %v6236
      %6255 = vst.msk [vmem:[#allocation3 + $0x60] sm:$0xff] %vm3839, %v6238
      %6256 = vst.msk [vmem:[#allocation3 + $0x70] sm:$0xff] %vm3839, %v6240
      %v6257 = vld [vmem:[%s1564 + $0x9] sm:$0xff]
      %v6258 = vld [vmem:[%s1564 + $0x21] sm:$0xff]
      %v6259 = vld [vmem:[%s1564 + $0x39] sm:$0xff]
      %v6260 = vld [vmem:[%s1564 + $0x51] sm:$0xff]
      %v6261 = vld [vmem:[%s1564 + $0x69] sm:$0xff]
      %v6262 = vld [vmem:[%s1564 + $0x81] sm:$0xff]
      %v6263 = vld [vmem:[%s1564 + $0x99] sm:$0xff]
      %v6264 = vld [vmem:[%s1564 + $0xb1] sm:$0xff]
      %6273 = vrot.lane.b32.xlu0 %v6257, 104
      %v6274 = vpop.permute.xlu0 %6273
      %6275 = vrot.lane.b32.xlu0 %v6258, 104
      %v6276 = vpop.permute.xlu0 %6275
      %6277 = vrot.lane.b32.xlu0 %v6259, 104
      %v6278 = vpop.permute.xlu0 %6277
      %6279 = vrot.lane.b32.xlu0 %v6260, 104
      %v6280 = vpop.permute.xlu0 %6279
      %6281 = vrot.lane.b32.xlu0 %v6261, 104
      %v6282 = vpop.permute.xlu0 %6281
      %6283 = vrot.lane.b32.xlu0 %v6262, 104
      %v6284 = vpop.permute.xlu0 %6283
      %6285 = vrot.lane.b32.xlu0 %v6263, 104
      %v6286 = vpop.permute.xlu0 %6285
      %6287 = vrot.lane.b32.xlu0 %v6264, 104
      %v6288 = vpop.permute.xlu0 %6287
      %6297 = vst.msk [vmem:[#allocation3] sm:$0xff] %vm3888, %v6274
      %6298 = vst.msk [vmem:[#allocation3 + $0x10] sm:$0xff] %vm3888, %v6276
      %6299 = vst.msk [vmem:[#allocation3 + $0x20] sm:$0xff] %vm3888, %v6278
      %6300 = vst.msk [vmem:[#allocation3 + $0x30] sm:$0xff] %vm3888, %v6280
      %6301 = vst.msk [vmem:[#allocation3 + $0x40] sm:$0xff] %vm3888, %v6282
      %6302 = vst.msk [vmem:[#allocation3 + $0x50] sm:$0xff] %vm3888, %v6284
      %6303 = vst.msk [vmem:[#allocation3 + $0x60] sm:$0xff] %vm3888, %v6286
      %6304 = vst.msk [vmem:[#allocation3 + $0x70] sm:$0xff] %vm3888, %v6288
      %v6305 = vld [vmem:[%s1564 + $0xa] sm:$0xff]
      %v6306 = vld [vmem:[%s1564 + $0x22] sm:$0xff]
      %v6307 = vld [vmem:[%s1564 + $0x3a] sm:$0xff]
      %v6308 = vld [vmem:[%s1564 + $0x52] sm:$0xff]
      %v6309 = vld [vmem:[%s1564 + $0x6a] sm:$0xff]
      %v6310 = vld [vmem:[%s1564 + $0x82] sm:$0xff]
      %v6311 = vld [vmem:[%s1564 + $0x9a] sm:$0xff]
      %v6312 = vld [vmem:[%s1564 + $0xb2] sm:$0xff]
      %6321 = vrot.lane.b32.xlu0 %v6305, 112
      %v6322 = vpop.permute.xlu0 %6321
      %6323 = vrot.lane.b32.xlu0 %v6306, 112
      %v6324 = vpop.permute.xlu0 %6323
      %6325 = vrot.lane.b32.xlu0 %v6307, 112
      %v6326 = vpop.permute.xlu0 %6325
      %6327 = vrot.lane.b32.xlu0 %v6308, 112
      %v6328 = vpop.permute.xlu0 %6327
      %6329 = vrot.lane.b32.xlu0 %v6309, 112
      %v6330 = vpop.permute.xlu0 %6329
      %6331 = vrot.lane.b32.xlu0 %v6310, 112
      %v6332 = vpop.permute.xlu0 %6331
      %6333 = vrot.lane.b32.xlu0 %v6311, 112
      %v6334 = vpop.permute.xlu0 %6333
      %6335 = vrot.lane.b32.xlu0 %v6312, 112
      %v6336 = vpop.permute.xlu0 %6335
      %6345 = vst.msk [vmem:[#allocation3] sm:$0xff] %vm3937, %v6322
      %6346 = vst.msk [vmem:[#allocation3 + $0x10] sm:$0xff] %vm3937, %v6324
      %6347 = vst.msk [vmem:[#allocation3 + $0x20] sm:$0xff] %vm3937, %v6326
      %6348 = vst.msk [vmem:[#allocation3 + $0x30] sm:$0xff] %vm3937, %v6328
      %6349 = vst.msk [vmem:[#allocation3 + $0x40] sm:$0xff] %vm3937, %v6330
      %6350 = vst.msk [vmem:[#allocation3 + $0x50] sm:$0xff] %vm3937, %v6332
      %6351 = vst.msk [vmem:[#allocation3 + $0x60] sm:$0xff] %vm3937, %v6334
      %6352 = vst.msk [vmem:[#allocation3 + $0x70] sm:$0xff] %vm3937, %v6336
      %v6353 = vld [vmem:[%s1835 + $0x6] sm:$0xff]
      %v6354 = vld [vmem:[%s1835 + $0x1e] sm:$0xff]
      %v6355 = vld [vmem:[%s1835 + $0x36] sm:$0xff]
      %v6356 = vld [vmem:[%s1835 + $0x4e] sm:$0xff]
      %v6357 = vld [vmem:[%s1835 + $0x66] sm:$0xff]
      %v6358 = vld [vmem:[%s1835 + $0x7e] sm:$0xff]
      %v6359 = vld [vmem:[%s1835 + $0x96] sm:$0xff]
      %v6360 = vld [vmem:[%s1835 + $0xae] sm:$0xff]
      %6369 = vrot.lane.b32.xlu0 %v6353, 120
      %v6370 = vpop.permute.xlu0 %6369
      %6371 = vrot.lane.b32.xlu0 %v6354, 120
      %v6372 = vpop.permute.xlu0 %6371
      %6373 = vrot.lane.b32.xlu0 %v6355, 120
      %v6374 = vpop.permute.xlu0 %6373
      %6375 = vrot.lane.b32.xlu0 %v6356, 120
      %v6376 = vpop.permute.xlu0 %6375
      %6377 = vrot.lane.b32.xlu0 %v6357, 120
      %v6378 = vpop.permute.xlu0 %6377
      %6379 = vrot.lane.b32.xlu0 %v6358, 120
      %v6380 = vpop.permute.xlu0 %6379
      %6381 = vrot.lane.b32.xlu0 %v6359, 120
      %v6382 = vpop.permute.xlu0 %6381
      %6383 = vrot.lane.b32.xlu0 %v6360, 120
      %v6384 = vpop.permute.xlu0 %6383
      %6393 = vst.msk [vmem:[#allocation3] sm:$0xff] %vm3986, %v6370
      %6394 = vst.msk [vmem:[#allocation3 + $0x10] sm:$0xff] %vm3986, %v6372
      %6395 = vst.msk [vmem:[#allocation3 + $0x20] sm:$0xff] %vm3986, %v6374
      %6396 = vst.msk [vmem:[#allocation3 + $0x30] sm:$0xff] %vm3986, %v6376
      %6397 = vst.msk [vmem:[#allocation3 + $0x40] sm:$0xff] %vm3986, %v6378
      %6398 = vst.msk [vmem:[#allocation3 + $0x50] sm:$0xff] %vm3986, %v6380
      %6399 = vst.msk [vmem:[#allocation3 + $0x60] sm:$0xff] %vm3986, %v6382
      %6400 = vst.msk [vmem:[#allocation3 + $0x70] sm:$0xff] %vm3986, %v6384
      %v6401 = vld [vmem:[%s1835 + $0x7] sm:$0xff]
      %v6402 = vld [vmem:[%s1835 + $0x1f] sm:$0xff]
      %v6403 = vld [vmem:[%s1835 + $0x37] sm:$0xff]
      %v6404 = vld [vmem:[%s1835 + $0x4f] sm:$0xff]
      %v6405 = vld [vmem:[%s1835 + $0x67] sm:$0xff]
      %v6406 = vld [vmem:[%s1835 + $0x7f] sm:$0xff]
      %v6407 = vld [vmem:[%s1835 + $0x97] sm:$0xff]
      %v6408 = vld [vmem:[%s1835 + $0xaf] sm:$0xff]
      %6409 = vst.msk [vmem:[#allocation3 + $0x8] sm:$0xff] %vm250, %v6401
      %6410 = vst.msk [vmem:[#allocation3 + $0x18] sm:$0xff] %vm250, %v6402
      %6411 = vst.msk [vmem:[#allocation3 + $0x28] sm:$0xff] %vm250, %v6403
      %6412 = vst.msk [vmem:[#allocation3 + $0x38] sm:$0xff] %vm250, %v6404
      %6413 = vst.msk [vmem:[#allocation3 + $0x48] sm:$0xff] %vm250, %v6405
      %6414 = vst.msk [vmem:[#allocation3 + $0x58] sm:$0xff] %vm250, %v6406
      %6415 = vst.msk [vmem:[#allocation3 + $0x68] sm:$0xff] %vm250, %v6407
      %6416 = vst.msk [vmem:[#allocation3 + $0x78] sm:$0xff] %vm250, %v6408
      %v6417 = vld [vmem:[%s1835 + $0x8] sm:$0xff]
      %v6418 = vld [vmem:[%s1835 + $0x20] sm:$0xff]
      %v6419 = vld [vmem:[%s1835 + $0x38] sm:$0xff]
      %v6420 = vld [vmem:[%s1835 + $0x50] sm:$0xff]
      %v6421 = vld [vmem:[%s1835 + $0x68] sm:$0xff]
      %v6422 = vld [vmem:[%s1835 + $0x80] sm:$0xff]
      %v6423 = vld [vmem:[%s1835 + $0x98] sm:$0xff]
      %v6424 = vld [vmem:[%s1835 + $0xb0] sm:$0xff]
      %6433 = vrot.lane.b32.xlu0 %v6417, 8
      %v6434 = vpop.permute.xlu0 %6433
      %6435 = vrot.lane.b32.xlu0 %v6418, 8
      %v6436 = vpop.permute.xlu0 %6435
      %6437 = vrot.lane.b32.xlu0 %v6419, 8
      %v6438 = vpop.permute.xlu0 %6437
      %6439 = vrot.lane.b32.xlu0 %v6420, 8
      %v6440 = vpop.permute.xlu0 %6439
      %6441 = vrot.lane.b32.xlu0 %v6421, 8
      %v6442 = vpop.permute.xlu0 %6441
      %6443 = vrot.lane.b32.xlu0 %v6422, 8
      %v6444 = vpop.permute.xlu0 %6443
      %6445 = vrot.lane.b32.xlu0 %v6423, 8
      %v6446 = vpop.permute.xlu0 %6445
      %6447 = vrot.lane.b32.xlu0 %v6424, 8
      %v6448 = vpop.permute.xlu0 %6447
      %6457 = vst.msk [vmem:[#allocation3 + $0x8] sm:$0xff] %vm1630, %v6434
      %6458 = vst.msk [vmem:[#allocation3 + $0x18] sm:$0xff] %vm1630, %v6436
      %6459 = vst.msk [vmem:[#allocation3 + $0x28] sm:$0xff] %vm1630, %v6438
      %6460 = vst.msk [vmem:[#allocation3 + $0x38] sm:$0xff] %vm1630, %v6440
      %6461 = vst.msk [vmem:[#allocation3 + $0x48] sm:$0xff] %vm1630, %v6442
      %6462 = vst.msk [vmem:[#allocation3 + $0x58] sm:$0xff] %vm1630, %v6444
      %6463 = vst.msk [vmem:[#allocation3 + $0x68] sm:$0xff] %vm1630, %v6446
      %6464 = vst.msk [vmem:[#allocation3 + $0x78] sm:$0xff] %vm1630, %v6448
      %v6465 = vld [vmem:[%s1835 + $0x9] sm:$0xff]
      %v6466 = vld [vmem:[%s1835 + $0x21] sm:$0xff]
      %v6467 = vld [vmem:[%s1835 + $0x39] sm:$0xff]
      %v6468 = vld [vmem:[%s1835 + $0x51] sm:$0xff]
      %v6469 = vld [vmem:[%s1835 + $0x69] sm:$0xff]
      %v6470 = vld [vmem:[%s1835 + $0x81] sm:$0xff]
      %v6471 = vld [vmem:[%s1835 + $0x99] sm:$0xff]
      %v6472 = vld [vmem:[%s1835 + $0xb1] sm:$0xff]
      %6481 = vrot.lane.b32.xlu0 %v6465, 16
      %v6482 = vpop.permute.xlu0 %6481
      %6483 = vrot.lane.b32.xlu0 %v6466, 16
      %v6484 = vpop.permute.xlu0 %6483
      %6485 = vrot.lane.b32.xlu0 %v6467, 16
      %v6486 = vpop.permute.xlu0 %6485
      %6487 = vrot.lane.b32.xlu0 %v6468, 16
      %v6488 = vpop.permute.xlu0 %6487
      %6489 = vrot.lane.b32.xlu0 %v6469, 16
      %v6490 = vpop.permute.xlu0 %6489
      %6491 = vrot.lane.b32.xlu0 %v6470, 16
      %v6492 = vpop.permute.xlu0 %6491
      %6493 = vrot.lane.b32.xlu0 %v6471, 16
      %v6494 = vpop.permute.xlu0 %6493
      %6495 = vrot.lane.b32.xlu0 %v6472, 16
      %v6496 = vpop.permute.xlu0 %6495
      %6505 = vst.msk [vmem:[#allocation3 + $0x8] sm:$0xff] %vm1679, %v6482
      %6506 = vst.msk [vmem:[#allocation3 + $0x18] sm:$0xff] %vm1679, %v6484
      %6507 = vst.msk [vmem:[#allocation3 + $0x28] sm:$0xff] %vm1679, %v6486
      %6508 = vst.msk [vmem:[#allocation3 + $0x38] sm:$0xff] %vm1679, %v6488
      %6509 = vst.msk [vmem:[#allocation3 + $0x48] sm:$0xff] %vm1679, %v6490
      %6510 = vst.msk [vmem:[#allocation3 + $0x58] sm:$0xff] %vm1679, %v6492
      %6511 = vst.msk [vmem:[#allocation3 + $0x68] sm:$0xff] %vm1679, %v6494
      %6512 = vst.msk [vmem:[#allocation3 + $0x78] sm:$0xff] %vm1679, %v6496
      %v6513 = vld [vmem:[%s1835 + $0xa] sm:$0xff]
      %v6514 = vld [vmem:[%s1835 + $0x22] sm:$0xff]
      %v6515 = vld [vmem:[%s1835 + $0x3a] sm:$0xff]
      %v6516 = vld [vmem:[%s1835 + $0x52] sm:$0xff]
      %v6517 = vld [vmem:[%s1835 + $0x6a] sm:$0xff]
      %v6518 = vld [vmem:[%s1835 + $0x82] sm:$0xff]
      %v6519 = vld [vmem:[%s1835 + $0x9a] sm:$0xff]
      %v6520 = vld [vmem:[%s1835 + $0xb2] sm:$0xff]
      %6529 = vrot.lane.b32.xlu0 %v6513, 24
      %v6530 = vpop.permute.xlu0 %6529
      %6531 = vrot.lane.b32.xlu0 %v6514, 24
      %v6532 = vpop.permute.xlu0 %6531
      %6533 = vrot.lane.b32.xlu0 %v6515, 24
      %v6534 = vpop.permute.xlu0 %6533
      %6535 = vrot.lane.b32.xlu0 %v6516, 24
      %v6536 = vpop.permute.xlu0 %6535
      %6537 = vrot.lane.b32.xlu0 %v6517, 24
      %v6538 = vpop.permute.xlu0 %6537
      %6539 = vrot.lane.b32.xlu0 %v6518, 24
      %v6540 = vpop.permute.xlu0 %6539
      %6541 = vrot.lane.b32.xlu0 %v6519, 24
      %v6542 = vpop.permute.xlu0 %6541
      %6543 = vrot.lane.b32.xlu0 %v6520, 24
      %v6544 = vpop.permute.xlu0 %6543
      %6553 = vst.msk [vmem:[#allocation3 + $0x8] sm:$0xff] %vm1728, %v6530
      %6554 = vst.msk [vmem:[#allocation3 + $0x18] sm:$0xff] %vm1728, %v6532
      %6555 = vst.msk [vmem:[#allocation3 + $0x28] sm:$0xff] %vm1728, %v6534
      %6556 = vst.msk [vmem:[#allocation3 + $0x38] sm:$0xff] %vm1728, %v6536
      %6557 = vst.msk [vmem:[#allocation3 + $0x48] sm:$0xff] %vm1728, %v6538
      %6558 = vst.msk [vmem:[#allocation3 + $0x58] sm:$0xff] %vm1728, %v6540
      %6559 = vst.msk [vmem:[#allocation3 + $0x68] sm:$0xff] %vm1728, %v6542
      %6560 = vst.msk [vmem:[#allocation3 + $0x78] sm:$0xff] %vm1728, %v6544
      %v6561 = vld [vmem:[%s4155 + $0x6] sm:$0xff]
      %v6562 = vld [vmem:[%s4155 + $0x1e] sm:$0xff]
      %v6563 = vld [vmem:[%s4155 + $0x36] sm:$0xff]
      %v6564 = vld [vmem:[%s4155 + $0x4e] sm:$0xff]
      %v6565 = vld [vmem:[%s4155 + $0x66] sm:$0xff]
      %v6566 = vld [vmem:[%s4155 + $0x7e] sm:$0xff]
      %v6567 = vld [vmem:[%s4155 + $0x96] sm:$0xff]
      %v6568 = vld [vmem:[%s4155 + $0xae] sm:$0xff]
      %6577 = vrot.lane.b32.xlu0 %v6561, 32
      %v6578 = vpop.permute.xlu0 %6577
      %6579 = vrot.lane.b32.xlu0 %v6562, 32
      %v6580 = vpop.permute.xlu0 %6579
      %6581 = vrot.lane.b32.xlu0 %v6563, 32
      %v6582 = vpop.permute.xlu0 %6581
      %6583 = vrot.lane.b32.xlu0 %v6564, 32
      %v6584 = vpop.permute.xlu0 %6583
      %6585 = vrot.lane.b32.xlu0 %v6565, 32
      %v6586 = vpop.permute.xlu0 %6585
      %6587 = vrot.lane.b32.xlu0 %v6566, 32
      %v6588 = vpop.permute.xlu0 %6587
      %6589 = vrot.lane.b32.xlu0 %v6567, 32
      %v6590 = vpop.permute.xlu0 %6589
      %6591 = vrot.lane.b32.xlu0 %v6568, 32
      %v6592 = vpop.permute.xlu0 %6591
      %6601 = vst.msk [vmem:[#allocation3 + $0x8] sm:$0xff] %vm1777, %v6578
      %6602 = vst.msk [vmem:[#allocation3 + $0x18] sm:$0xff] %vm1777, %v6580
      %6603 = vst.msk [vmem:[#allocation3 + $0x28] sm:$0xff] %vm1777, %v6582
      %6604 = vst.msk [vmem:[#allocation3 + $0x38] sm:$0xff] %vm1777, %v6584
      %6605 = vst.msk [vmem:[#allocation3 + $0x48] sm:$0xff] %vm1777, %v6586
      %6606 = vst.msk [vmem:[#allocation3 + $0x58] sm:$0xff] %vm1777, %v6588
      %6607 = vst.msk [vmem:[#allocation3 + $0x68] sm:$0xff] %vm1777, %v6590
      %6608 = vst.msk [vmem:[#allocation3 + $0x78] sm:$0xff] %vm1777, %v6592
      %v6609 = vld [vmem:[%s4155 + $0x7] sm:$0xff]
      %v6610 = vld [vmem:[%s4155 + $0x1f] sm:$0xff]
      %v6611 = vld [vmem:[%s4155 + $0x37] sm:$0xff]
      %v6612 = vld [vmem:[%s4155 + $0x4f] sm:$0xff]
      %v6613 = vld [vmem:[%s4155 + $0x67] sm:$0xff]
      %v6614 = vld [vmem:[%s4155 + $0x7f] sm:$0xff]
      %v6615 = vld [vmem:[%s4155 + $0x97] sm:$0xff]
      %v6616 = vld [vmem:[%s4155 + $0xaf] sm:$0xff]
      %6625 = vrot.lane.b32.xlu0 %v6609, 40
      %v6626 = vpop.permute.xlu0 %6625
      %6627 = vrot.lane.b32.xlu0 %v6610, 40
      %v6628 = vpop.permute.xlu0 %6627
      %6629 = vrot.lane.b32.xlu0 %v6611, 40
      %v6630 = vpop.permute.xlu0 %6629
      %6631 = vrot.lane.b32.xlu0 %v6612, 40
      %v6632 = vpop.permute.xlu0 %6631
      %6633 = vrot.lane.b32.xlu0 %v6613, 40
      %v6634 = vpop.permute.xlu0 %6633
      %6635 = vrot.lane.b32.xlu0 %v6614, 40
      %v6636 = vpop.permute.xlu0 %6635
      %6637 = vrot.lane.b32.xlu0 %v6615, 40
      %v6638 = vpop.permute.xlu0 %6637
      %6639 = vrot.lane.b32.xlu0 %v6616, 40
      %v6640 = vpop.permute.xlu0 %6639
      %6649 = vst.msk [vmem:[#allocation3 + $0x8] sm:$0xff] %vm1826, %v6626
      %6650 = vst.msk [vmem:[#allocation3 + $0x18] sm:$0xff] %vm1826, %v6628
      %6651 = vst.msk [vmem:[#allocation3 + $0x28] sm:$0xff] %vm1826, %v6630
      %6652 = vst.msk [vmem:[#allocation3 + $0x38] sm:$0xff] %vm1826, %v6632
      %6653 = vst.msk [vmem:[#allocation3 + $0x48] sm:$0xff] %vm1826, %v6634
      %6654 = vst.msk [vmem:[#allocation3 + $0x58] sm:$0xff] %vm1826, %v6636
      %6655 = vst.msk [vmem:[#allocation3 + $0x68] sm:$0xff] %vm1826, %v6638
      %6656 = vst.msk [vmem:[#allocation3 + $0x78] sm:$0xff] %vm1826, %v6640
      %v6657 = vld [vmem:[%s4155 + $0x8] sm:$0xff]
      %v6658 = vld [vmem:[%s4155 + $0x20] sm:$0xff]
      %v6659 = vld [vmem:[%s4155 + $0x38] sm:$0xff]
      %v6660 = vld [vmem:[%s4155 + $0x50] sm:$0xff]
      %v6661 = vld [vmem:[%s4155 + $0x68] sm:$0xff]
      %v6662 = vld [vmem:[%s4155 + $0x80] sm:$0xff]
      %v6663 = vld [vmem:[%s4155 + $0x98] sm:$0xff]
      %v6664 = vld [vmem:[%s4155 + $0xb0] sm:$0xff]
      %6673 = vrot.lane.b32.xlu0 %v6657, 48
      %v6674 = vpop.permute.xlu0 %6673
      %6675 = vrot.lane.b32.xlu0 %v6658, 48
      %v6676 = vpop.permute.xlu0 %6675
      %6677 = vrot.lane.b32.xlu0 %v6659, 48
      %v6678 = vpop.permute.xlu0 %6677
      %6679 = vrot.lane.b32.xlu0 %v6660, 48
      %v6680 = vpop.permute.xlu0 %6679
      %6681 = vrot.lane.b32.xlu0 %v6661, 48
      %v6682 = vpop.permute.xlu0 %6681
      %6683 = vrot.lane.b32.xlu0 %v6662, 48
      %v6684 = vpop.permute.xlu0 %6683
      %6685 = vrot.lane.b32.xlu0 %v6663, 48
      %v6686 = vpop.permute.xlu0 %6685
      %6687 = vrot.lane.b32.xlu0 %v6664, 48
      %v6688 = vpop.permute.xlu0 %6687
      %6697 = vst.msk [vmem:[#allocation3 + $0x8] sm:$0xff] %vm1876, %v6674
      %6698 = vst.msk [vmem:[#allocation3 + $0x18] sm:$0xff] %vm1876, %v6676
      %6699 = vst.msk [vmem:[#allocation3 + $0x28] sm:$0xff] %vm1876, %v6678
      %6700 = vst.msk [vmem:[#allocation3 + $0x38] sm:$0xff] %vm1876, %v6680
      %6701 = vst.msk [vmem:[#allocation3 + $0x48] sm:$0xff] %vm1876, %v6682
      %6702 = vst.msk [vmem:[#allocation3 + $0x58] sm:$0xff] %vm1876, %v6684
      %6703 = vst.msk [vmem:[#allocation3 + $0x68] sm:$0xff] %vm1876, %v6686
      %6704 = vst.msk [vmem:[#allocation3 + $0x78] sm:$0xff] %vm1876, %v6688
      %v6705 = vld [vmem:[%s4155 + $0x9] sm:$0xff]
      %v6706 = vld [vmem:[%s4155 + $0x21] sm:$0xff]
      %v6707 = vld [vmem:[%s4155 + $0x39] sm:$0xff]
      %v6708 = vld [vmem:[%s4155 + $0x51] sm:$0xff]
      %v6709 = vld [vmem:[%s4155 + $0x69] sm:$0xff]
      %v6710 = vld [vmem:[%s4155 + $0x81] sm:$0xff]
      %v6711 = vld [vmem:[%s4155 + $0x99] sm:$0xff]
      %v6712 = vld [vmem:[%s4155 + $0xb1] sm:$0xff]
      %6721 = vrot.lane.b32.xlu0 %v6705, 56
      %v6722 = vpop.permute.xlu0 %6721
      %6723 = vrot.lane.b32.xlu0 %v6706, 56
      %v6724 = vpop.permute.xlu0 %6723
      %6725 = vrot.lane.b32.xlu0 %v6707, 56
      %v6726 = vpop.permute.xlu0 %6725
      %6727 = vrot.lane.b32.xlu0 %v6708, 56
      %v6728 = vpop.permute.xlu0 %6727
      %6729 = vrot.lane.b32.xlu0 %v6709, 56
      %v6730 = vpop.permute.xlu0 %6729
      %6731 = vrot.lane.b32.xlu0 %v6710, 56
      %v6732 = vpop.permute.xlu0 %6731
      %6733 = vrot.lane.b32.xlu0 %v6711, 56
      %v6734 = vpop.permute.xlu0 %6733
      %6735 = vrot.lane.b32.xlu0 %v6712, 56
      %v6736 = vpop.permute.xlu0 %6735
      %6745 = vst.msk [vmem:[#allocation3 + $0x8] sm:$0xff] %vm1925, %v6722
      %6746 = vst.msk [vmem:[#allocation3 + $0x18] sm:$0xff] %vm1925, %v6724
      %6747 = vst.msk [vmem:[#allocation3 + $0x28] sm:$0xff] %vm1925, %v6726
      %6748 = vst.msk [vmem:[#allocation3 + $0x38] sm:$0xff] %vm1925, %v6728
      %6749 = vst.msk [vmem:[#allocation3 + $0x48] sm:$0xff] %vm1925, %v6730
      %6750 = vst.msk [vmem:[#allocation3 + $0x58] sm:$0xff] %vm1925, %v6732
      %6751 = vst.msk [vmem:[#allocation3 + $0x68] sm:$0xff] %vm1925, %v6734
      %6752 = vst.msk [vmem:[#allocation3 + $0x78] sm:$0xff] %vm1925, %v6736
      %v6753 = vld [vmem:[%s4155 + $0xa] sm:$0xff]
      %v6754 = vld [vmem:[%s4155 + $0x22] sm:$0xff]
      %v6755 = vld [vmem:[%s4155 + $0x3a] sm:$0xff]
      %v6756 = vld [vmem:[%s4155 + $0x52] sm:$0xff]
      %v6757 = vld [vmem:[%s4155 + $0x6a] sm:$0xff]
      %v6758 = vld [vmem:[%s4155 + $0x82] sm:$0xff]
      %v6759 = vld [vmem:[%s4155 + $0x9a] sm:$0xff]
      %v6760 = vld [vmem:[%s4155 + $0xb2] sm:$0xff]
      %6769 = vrot.lane.b32.xlu0 %v6753, 64
      %v6770 = vpop.permute.xlu0 %6769
      %6771 = vrot.lane.b32.xlu0 %v6754, 64
      %v6772 = vpop.permute.xlu0 %6771
      %6773 = vrot.lane.b32.xlu0 %v6755, 64
      %v6774 = vpop.permute.xlu0 %6773
      %6775 = vrot.lane.b32.xlu0 %v6756, 64
      %v6776 = vpop.permute.xlu0 %6775
      %6777 = vrot.lane.b32.xlu0 %v6757, 64
      %v6778 = vpop.permute.xlu0 %6777
      %6779 = vrot.lane.b32.xlu0 %v6758, 64
      %v6780 = vpop.permute.xlu0 %6779
      %6781 = vrot.lane.b32.xlu0 %v6759, 64
      %v6782 = vpop.permute.xlu0 %6781
      %6783 = vrot.lane.b32.xlu0 %v6760, 64
      %v6784 = vpop.permute.xlu0 %6783
      %6793 = vst.msk [vmem:[#allocation3 + $0x8] sm:$0xff] %vm1974, %v6770
      %6794 = vst.msk [vmem:[#allocation3 + $0x18] sm:$0xff] %vm1974, %v6772
      %6795 = vst.msk [vmem:[#allocation3 + $0x28] sm:$0xff] %vm1974, %v6774
      %6796 = vst.msk [vmem:[#allocation3 + $0x38] sm:$0xff] %vm1974, %v6776
      %6797 = vst.msk [vmem:[#allocation3 + $0x48] sm:$0xff] %vm1974, %v6778
      %6798 = vst.msk [vmem:[#allocation3 + $0x58] sm:$0xff] %vm1974, %v6780
      %6799 = vst.msk [vmem:[#allocation3 + $0x68] sm:$0xff] %vm1974, %v6782
      %6800 = vst.msk [vmem:[#allocation3 + $0x78] sm:$0xff] %vm1974, %v6784
      %v6801 = vld [vmem:[#allocation3] sm:$0xff]
      %v6802 = vld [vmem:[#allocation3 + $0x8] sm:$0xff]
      %v6803 = vld [vmem:[#allocation3 + $0x10] sm:$0xff]
      %v6804 = vld [vmem:[#allocation3 + $0x18] sm:$0xff]
      %v6805 = vld [vmem:[#allocation3 + $0x20] sm:$0xff]
      %v6806 = vld [vmem:[#allocation3 + $0x28] sm:$0xff]
      %v6807 = vld [vmem:[#allocation3 + $0x30] sm:$0xff]
      %v6808 = vld [vmem:[#allocation3 + $0x38] sm:$0xff]
      %v6809 = vld [vmem:[#allocation3 + $0x40] sm:$0xff]
      %v6810 = vld [vmem:[#allocation3 + $0x48] sm:$0xff]
      %v6811 = vld [vmem:[#allocation3 + $0x50] sm:$0xff]
      %v6812 = vld [vmem:[#allocation3 + $0x58] sm:$0xff]
      %v6813 = vld [vmem:[#allocation3 + $0x60] sm:$0xff]
      %v6814 = vld [vmem:[#allocation3 + $0x68] sm:$0xff]
      %v6815 = vld [vmem:[#allocation3 + $0x70] sm:$0xff]
      %v6816 = vld [vmem:[#allocation3 + $0x78] sm:$0xff]
      %s6817 = scalar_lea.vmem %s3, 400
      %v6818 = vld [vmem:[%s6817] sm:$0xff]
      %v6819 = vld [vmem:[%s6817 + $0x8] sm:$0xff]
      %v6820 = vld [vmem:[%s6817 + $0x10] sm:$0xff]
      %v6821 = vld [vmem:[%s6817 + $0x18] sm:$0xff]
      %v6822 = vld [vmem:[%s6817 + $0x20] sm:$0xff]
      %v6823 = vld [vmem:[%s6817 + $0x28] sm:$0xff]
      %v6824 = vld [vmem:[%s6817 + $0x30] sm:$0xff]
      %v6825 = vld [vmem:[%s6817 + $0x38] sm:$0xff]
      %v6826 = vld [vmem:[%s6817 + $0x40] sm:$0xff]
      %v6827 = vld [vmem:[%s6817 + $0x48] sm:$0xff]
      %v6828 = vld [vmem:[%s6817 + $0x50] sm:$0xff]
      %v6829 = vld [vmem:[%s6817 + $0x58] sm:$0xff]
      %v6830 = vld [vmem:[%s6817 + $0x60] sm:$0xff]
      %v6831 = vld [vmem:[%s6817 + $0x68] sm:$0xff]
      %v6832 = vld [vmem:[%s6817 + $0x70] sm:$0xff]
      %v6833 = vld [vmem:[%s6817 + $0x78] sm:$0xff]
      %v6834 = vld [vmem:[%s6817 + $0x80] sm:$0xff]
      %v6835 = vld [vmem:[%s6817 + $0x88] sm:$0xff]
      %v6836 = vld [vmem:[%s6817 + $0x90] sm:$0xff]
      %v6837 = vld [vmem:[%s6817 + $0x98] sm:$0xff]
      %v6838 = vld [vmem:[%s6817 + $0xa0] sm:$0xff]
      %v6839 = vld [vmem:[%s6817 + $0xa8] sm:$0xff]
      %v6840 = vld [vmem:[%s6817 + $0xb0] sm:$0xff]
      %v6841 = vld [vmem:[%s6817 + $0xb8] sm:$0xff]
      %v6842 = vld [vmem:[%s6817 + $0xc0] sm:$0xff]
      %v6844 = vsel %vm324, %v6802, 0
      %v6847 = vsel %vm324, %v6804, 0
      %v6850 = vsel %vm324, %v6806, 0
      %v6853 = vsel %vm324, %v6808, 0
      %v6856 = vsel %vm324, %v6810, 0
      %v6859 = vsel %vm324, %v6812, 0
      %v6862 = vsel %vm324, %v6814, 0
      %v6865 = vsel %vm324, %v6816, 0
      %6867 = vmatprep.subr.mxu0 0.0
      %v6868 = vand.u32 %v6833, 4294901760
      %6869 = vmatpush1.msra.mxu0 %v6868
      %6870 = vmatprep.subr.mxu0 0.0
      %v6871 = vand.u32 %v6832, 4294901760
      %6872 = vmatpush1.msra.mxu0 %v6871
      %6873 = vmatprep.subr.mxu0 0.0
      %v6874 = vand.u32 %v6831, 4294901760
      %6875 = vmatpush1.msra.mxu0 %v6874
      %6876 = vmatprep.subr.mxu0 0.0
      %v6877 = vand.u32 %v6830, 4294901760
      %6878 = vmatpush1.msra.mxu0 %v6877
      %6879 = vmatprep.subr.mxu0 0.0
      %v6880 = vand.u32 %v6829, 4294901760
      %6881 = vmatpush1.msra.mxu0 %v6880
      %6882 = vmatprep.subr.mxu0 0.0
      %v6883 = vand.u32 %v6828, 4294901760
      %6884 = vmatpush1.msra.mxu0 %v6883
      %6885 = vmatprep.subr.mxu0 0.0
      %v6886 = vand.u32 %v6827, 4294901760
      %6887 = vmatpush1.msra.mxu0 %v6886
      %6888 = vmatprep.subr.mxu0 0.0
      %v6889 = vand.u32 %v6826, 4294901760
      %6890 = vmatpush1.msra.mxu0 %v6889
      %6891 = vmatprep.subr.mxu0 0.0
      %v6892 = vand.u32 %v6825, 4294901760
      %6893 = vmatpush1.msra.mxu0 %v6892
      %6894 = vmatprep.subr.mxu0 0.0
      %v6895 = vand.u32 %v6824, 4294901760
      %6896 = vmatpush1.msra.mxu0 %v6895
      %6897 = vmatprep.subr.mxu0 0.0
      %v6898 = vand.u32 %v6823, 4294901760
      %6899 = vmatpush1.msra.mxu0 %v6898
      %6900 = vmatprep.subr.mxu0 0.0
      %v6901 = vand.u32 %v6822, 4294901760
      %6902 = vmatpush1.msra.mxu0 %v6901
      %6903 = vmatprep.subr.mxu0 0.0
      %v6904 = vand.u32 %v6821, 4294901760
      %6905 = vmatpush1.msra.mxu0 %v6904
      %6906 = vmatprep.subr.mxu0 0.0
      %v6907 = vand.u32 %v6820, 4294901760
      %6908 = vmatpush1.msra.mxu0 %v6907
      %6909 = vmatprep.subr.mxu0 0.0
      %v6910 = vand.u32 %v6819, 4294901760
      %6911 = vmatpush1.msra.mxu0 %v6910
      %6912 = vmatprep.subr.mxu0 0.0
      %v6913 = vand.u32 %v6818, 4294901760
      %6914 = vmatpush1.msra.mxu0 %v6913
      %6915 = vmatprep.subr.mxu0 0.0
      %6916 = vmatpush2.msra.mxu0 0.0
      %6917 = vmatprep.subr.mxu0 0.0
      %6918 = vmatpush2.msra.mxu0 0.0
      %6919 = vmatprep.subr.mxu0 0.0
      %6920 = vmatpush2.msra.mxu0 0.0
      %6921 = vmatprep.subr.mxu0 0.0
      %6922 = vmatpush2.msra.mxu0 0.0
      %6923 = vmatprep.subr.mxu0 0.0
      %6924 = vmatpush2.msra.mxu0 0.0
      %6925 = vmatprep.subr.mxu0 0.0
      %6926 = vmatpush2.msra.mxu0 0.0
      %6927 = vmatprep.subr.mxu0 0.0
      %6928 = vmatpush2.msra.mxu0 0.0
      %6929 = vmatprep.subr.mxu0 0.0
      %v6930 = vand.u32 %v6842, 4294901760
      %6931 = vmatpush2.msra.mxu0 %v6930
      %6932 = vmatprep.subr.mxu0 0.0
      %v6933 = vand.u32 %v6841, 4294901760
      %6934 = vmatpush2.msra.mxu0 %v6933
      %6935 = vmatprep.subr.mxu0 0.0
      %v6936 = vand.u32 %v6840, 4294901760
      %6937 = vmatpush2.msra.mxu0 %v6936
      %6938 = vmatprep.subr.mxu0 0.0
      %v6939 = vand.u32 %v6839, 4294901760
      %6940 = vmatpush2.msra.mxu0 %v6939
      %6941 = vmatprep.subr.mxu0 0.0
      %v6942 = vand.u32 %v6838, 4294901760
      %6943 = vmatpush2.msra.mxu0 %v6942
      %6944 = vmatprep.subr.mxu0 0.0
      %v6945 = vand.u32 %v6837, 4294901760
      %6946 = vmatpush2.msra.mxu0 %v6945
      %6947 = vmatprep.subr.mxu0 0.0
      %v6948 = vand.u32 %v6836, 4294901760
      %6949 = vmatpush2.msra.mxu0 %v6948
      %6950 = vmatprep.subr.mxu0 0.0
      %v6951 = vand.u32 %v6835, 4294901760
      %6952 = vmatpush2.msra.mxu0 %v6951
      %6953 = vmatprep.subr.mxu0 0.0
      %v6954 = vand.u32 %v6834, 4294901760
      %6955 = vmatpush2.msra.mxu0 %v6954
      %v6956 = vand.u32 %v6844, 4294901760
      %v6957 = vsub.f32 %v6844, %v6956
      %v6958 = vand.u32 %v6957, 4294901760
      %v6959 = vsub.f32 %v6957, %v6958
      %v6960 = vand.u32 %v6959, 4294901760
      %6961 = vmatprep.mubr.f32.mxu0 %v6960
      %v6962 = vand.u32 %v6801, 4294901760
      %v6963 = vsub.f32 %v6801, %v6962
      %v6964 = vand.u32 %v6963, 4294901760
      %v6965 = vsub.f32 %v6963, %v6964
      %v6966 = vand.u32 %v6965, 4294901760
      %6967 = vmatmul.mubr.f32.gmra.mxu0 %v6966
      %v6968 = vpop.f32.mrf.mxu0
      %v6969 = vadd.f32 0.0, %v6968
      %v6970 = vpop.f32.mrf.mxu0
      %v6971 = vand.u32 %v6847, 4294901760
      %v6972 = vsub.f32 %v6847, %v6971
      %v6973 = vand.u32 %v6972, 4294901760
      %v6974 = vsub.f32 %v6972, %v6973
      %v6975 = vand.u32 %v6974, 4294901760
      %6976 = vmatprep.mubr.f32.mxu0 %v6975
      %v6977 = vand.u32 %v6803, 4294901760
      %v6978 = vsub.f32 %v6803, %v6977
      %v6979 = vand.u32 %v6978, 4294901760
      %v6980 = vsub.f32 %v6978, %v6979
      %v6981 = vand.u32 %v6980, 4294901760
      %6982 = vmatmul.mubr.f32.gmra.mxu0 %v6981
      %v6983 = vpop.f32.mrf.mxu0
      %v6984 = vadd.f32 0.0, %v6983
      %v6985 = vpop.f32.mrf.mxu0
      %v6986 = vand.u32 %v6850, 4294901760
      %v6987 = vsub.f32 %v6850, %v6986
      %v6988 = vand.u32 %v6987, 4294901760
      %v6989 = vsub.f32 %v6987, %v6988
      %v6990 = vand.u32 %v6989, 4294901760
      %6991 = vmatprep.mubr.f32.mxu0 %v6990
      %v6992 = vand.u32 %v6805, 4294901760
      %v6993 = vsub.f32 %v6805, %v6992
      %v6994 = vand.u32 %v6993, 4294901760
      %v6995 = vsub.f32 %v6993, %v6994
      %v6996 = vand.u32 %v6995, 4294901760
      %6997 = vmatmul.mubr.f32.gmra.mxu0 %v6996
      %v6998 = vpop.f32.mrf.mxu0
      %v6999 = vadd.f32 0.0, %v6998
      %v7000 = vpop.f32.mrf.mxu0
      %v7001 = vand.u32 %v6853, 4294901760
      %v7002 = vsub.f32 %v6853, %v7001
      %v7003 = vand.u32 %v7002, 4294901760
      %v7004 = vsub.f32 %v7002, %v7003
      %v7005 = vand.u32 %v7004, 4294901760
      %7006 = vmatprep.mubr.f32.mxu0 %v7005
      %v7007 = vand.u32 %v6807, 4294901760
      %v7008 = vsub.f32 %v6807, %v7007
      %v7009 = vand.u32 %v7008, 4294901760
      %v7010 = vsub.f32 %v7008, %v7009
      %v7011 = vand.u32 %v7010, 4294901760
      %7012 = vmatmul.mubr.f32.gmra.mxu0 %v7011
      %v7013 = vpop.f32.mrf.mxu0
      %v7014 = vadd.f32 0.0, %v7013
      %v7015 = vpop.f32.mrf.mxu0
      %v7016 = vand.u32 %v6856, 4294901760
      %v7017 = vsub.f32 %v6856, %v7016
      %v7018 = vand.u32 %v7017, 4294901760
      %v7019 = vsub.f32 %v7017, %v7018
      %v7020 = vand.u32 %v7019, 4294901760
      %7021 = vmatprep.mubr.f32.mxu0 %v7020
      %v7022 = vand.u32 %v6809, 4294901760
      %v7023 = vsub.f32 %v6809, %v7022
      %v7024 = vand.u32 %v7023, 4294901760
      %v7025 = vsub.f32 %v7023, %v7024
      %v7026 = vand.u32 %v7025, 4294901760
      %7027 = vmatmul.mubr.f32.gmra.mxu0 %v7026
      %v7028 = vpop.f32.mrf.mxu0
      %v7029 = vadd.f32 0.0, %v7028
      %v7030 = vpop.f32.mrf.mxu0
      %v7031 = vand.u32 %v6859, 4294901760
      %v7032 = vsub.f32 %v6859, %v7031
      %v7033 = vand.u32 %v7032, 4294901760
      %v7034 = vsub.f32 %v7032, %v7033
      %v7035 = vand.u32 %v7034, 4294901760
      %7036 = vmatprep.mubr.f32.mxu0 %v7035
      %v7037 = vand.u32 %v6811, 4294901760
      %v7038 = vsub.f32 %v6811, %v7037
      %v7039 = vand.u32 %v7038, 4294901760
      %v7040 = vsub.f32 %v7038, %v7039
      %v7041 = vand.u32 %v7040, 4294901760
      %7042 = vmatmul.mubr.f32.gmra.mxu0 %v7041
      %v7043 = vpop.f32.mrf.mxu0
      %v7044 = vadd.f32 0.0, %v7043
      %v7045 = vpop.f32.mrf.mxu0
      %v7046 = vand.u32 %v6862, 4294901760
      %v7047 = vsub.f32 %v6862, %v7046
      %v7048 = vand.u32 %v7047, 4294901760
      %v7049 = vsub.f32 %v7047, %v7048
      %v7050 = vand.u32 %v7049, 4294901760
      %7051 = vmatprep.mubr.f32.mxu0 %v7050
      %v7052 = vand.u32 %v6813, 4294901760
      %v7053 = vsub.f32 %v6813, %v7052
      %v7054 = vand.u32 %v7053, 4294901760
      %v7055 = vsub.f32 %v7053, %v7054
      %v7056 = vand.u32 %v7055, 4294901760
      %7057 = vmatmul.mubr.f32.gmra.mxu0 %v7056
      %v7058 = vpop.f32.mrf.mxu0
      %v7059 = vadd.f32 0.0, %v7058
      %v7060 = vpop.f32.mrf.mxu0
      %v7061 = vand.u32 %v6865, 4294901760
      %v7062 = vsub.f32 %v6865, %v7061
      %v7063 = vand.u32 %v7062, 4294901760
      %v7064 = vsub.f32 %v7062, %v7063
      %v7065 = vand.u32 %v7064, 4294901760
      %7066 = vmatprep.mubr.f32.mxu0 %v7065
      %v7067 = vand.u32 %v6815, 4294901760
      %v7068 = vsub.f32 %v6815, %v7067
      %v7069 = vand.u32 %v7068, 4294901760
      %v7070 = vsub.f32 %v7068, %v7069
      %v7071 = vand.u32 %v7070, 4294901760
      %7072 = vmatmul.mubr.f32.gmra.mxu0 %v7071
      %v7073 = vpop.f32.mrf.mxu0
      %v7074 = vadd.f32 0.0, %v7073
      %v7075 = vpop.f32.mrf.mxu0
      %7076 = vdwg.mxu0
      %7077 = vmatprep.subr.mxu0 0.0
      %v7078 = vand.u32 %v6833, 4294901760
      %v7079 = vsub.f32 %v6833, %v7078
      %v7080 = vand.u32 %v7079, 4294901760
      %v7081 = vsub.f32 %v7079, %v7080
      %v7082 = vand.u32 %v7081, 4294901760
      %7083 = vmatpush1.msra.mxu0 %v7082
      %7084 = vmatprep.subr.mxu0 0.0
      %v7085 = vand.u32 %v6832, 4294901760
      %v7086 = vsub.f32 %v6832, %v7085
      %v7087 = vand.u32 %v7086, 4294901760
      %v7088 = vsub.f32 %v7086, %v7087
      %v7089 = vand.u32 %v7088, 4294901760
      %7090 = vmatpush1.msra.mxu0 %v7089
      %7091 = vmatprep.subr.mxu0 0.0
      %v7092 = vand.u32 %v6831, 4294901760
      %v7093 = vsub.f32 %v6831, %v7092
      %v7094 = vand.u32 %v7093, 4294901760
      %v7095 = vsub.f32 %v7093, %v7094
      %v7096 = vand.u32 %v7095, 4294901760
      %7097 = vmatpush1.msra.mxu0 %v7096
      %7098 = vmatprep.subr.mxu0 0.0
      %v7099 = vand.u32 %v6830, 4294901760
      %v7100 = vsub.f32 %v6830, %v7099
      %v7101 = vand.u32 %v7100, 4294901760
      %v7102 = vsub.f32 %v7100, %v7101
      %v7103 = vand.u32 %v7102, 4294901760
      %7104 = vmatpush1.msra.mxu0 %v7103
      %7105 = vmatprep.subr.mxu0 0.0
      %v7106 = vand.u32 %v6829, 4294901760
      %v7107 = vsub.f32 %v6829, %v7106
      %v7108 = vand.u32 %v7107, 4294901760
      %v7109 = vsub.f32 %v7107, %v7108
      %v7110 = vand.u32 %v7109, 4294901760
      %7111 = vmatpush1.msra.mxu0 %v7110
      %7112 = vmatprep.subr.mxu0 0.0
      %v7113 = vand.u32 %v6828, 4294901760
      %v7114 = vsub.f32 %v6828, %v7113
      %v7115 = vand.u32 %v7114, 4294901760
      %v7116 = vsub.f32 %v7114, %v7115
      %v7117 = vand.u32 %v7116, 4294901760
      %7118 = vmatpush1.msra.mxu0 %v7117
      %7119 = vmatprep.subr.mxu0 0.0
      %v7120 = vand.u32 %v6827, 4294901760
      %v7121 = vsub.f32 %v6827, %v7120
      %v7122 = vand.u32 %v7121, 4294901760
      %v7123 = vsub.f32 %v7121, %v7122
      %v7124 = vand.u32 %v7123, 4294901760
      %7125 = vmatpush1.msra.mxu0 %v7124
      %7126 = vmatprep.subr.mxu0 0.0
      %v7127 = vand.u32 %v6826, 4294901760
      %v7128 = vsub.f32 %v6826, %v7127
      %v7129 = vand.u32 %v7128, 4294901760
      %v7130 = vsub.f32 %v7128, %v7129
      %v7131 = vand.u32 %v7130, 4294901760
      %7132 = vmatpush1.msra.mxu0 %v7131
      %7133 = vmatprep.subr.mxu0 0.0
      %v7134 = vand.u32 %v6825, 4294901760
      %v7135 = vsub.f32 %v6825, %v7134
      %v7136 = vand.u32 %v7135, 4294901760
      %v7137 = vsub.f32 %v7135, %v7136
      %v7138 = vand.u32 %v7137, 4294901760
      %7139 = vmatpush1.msra.mxu0 %v7138
      %7140 = vmatprep.subr.mxu0 0.0
      %v7141 = vand.u32 %v6824, 4294901760
      %v7142 = vsub.f32 %v6824, %v7141
      %v7143 = vand.u32 %v7142, 4294901760
      %v7144 = vsub.f32 %v7142, %v7143
      %v7145 = vand.u32 %v7144, 4294901760
      %7146 = vmatpush1.msra.mxu0 %v7145
      %7147 = vmatprep.subr.mxu0 0.0
      %v7148 = vand.u32 %v6823, 4294901760
      %v7149 = vsub.f32 %v6823, %v7148
      %v7150 = vand.u32 %v7149, 4294901760
      %v7151 = vsub.f32 %v7149, %v7150
      %v7152 = vand.u32 %v7151, 4294901760
      %7153 = vmatpush1.msra.mxu0 %v7152
      %7154 = vmatprep.subr.mxu0 0.0
      %v7155 = vand.u32 %v6822, 4294901760
      %v7156 = vsub.f32 %v6822, %v7155
      %v7157 = vand.u32 %v7156, 4294901760
      %v7158 = vsub.f32 %v7156, %v7157
      %v7159 = vand.u32 %v7158, 4294901760
      %7160 = vmatpush1.msra.mxu0 %v7159
      %7161 = vmatprep.subr.mxu0 0.0
      %v7162 = vand.u32 %v6821, 4294901760
      %v7163 = vsub.f32 %v6821, %v7162
      %v7164 = vand.u32 %v7163, 4294901760
      %v7165 = vsub.f32 %v7163, %v7164
      %v7166 = vand.u32 %v7165, 4294901760
      %7167 = vmatpush1.msra.mxu0 %v7166
      %7168 = vmatprep.subr.mxu0 0.0
      %v7169 = vand.u32 %v6820, 4294901760
      %v7170 = vsub.f32 %v6820, %v7169
      %v7171 = vand.u32 %v7170, 4294901760
      %v7172 = vsub.f32 %v7170, %v7171
      %v7173 = vand.u32 %v7172, 4294901760
      %7174 = vmatpush1.msra.mxu0 %v7173
      %7175 = vmatprep.subr.mxu0 0.0
      %v7176 = vand.u32 %v6819, 4294901760
      %v7177 = vsub.f32 %v6819, %v7176
      %v7178 = vand.u32 %v7177, 4294901760
      %v7179 = vsub.f32 %v7177, %v7178
      %v7180 = vand.u32 %v7179, 4294901760
      %7181 = vmatpush1.msra.mxu0 %v7180
      %7182 = vmatprep.subr.mxu0 0.0
      %v7183 = vand.u32 %v6818, 4294901760
      %v7184 = vsub.f32 %v6818, %v7183
      %v7185 = vand.u32 %v7184, 4294901760
      %v7186 = vsub.f32 %v7184, %v7185
      %v7187 = vand.u32 %v7186, 4294901760
      %7188 = vmatpush1.msra.mxu0 %v7187
      %7189 = vmatprep.subr.mxu0 0.0
      %7190 = vmatpush2.msra.mxu0 0.0
      %7191 = vmatprep.subr.mxu0 0.0
      %7192 = vmatpush2.msra.mxu0 0.0
      %7193 = vmatprep.subr.mxu0 0.0
      %7194 = vmatpush2.msra.mxu0 0.0
      %7195 = vmatprep.subr.mxu0 0.0
      %7196 = vmatpush2.msra.mxu0 0.0
      %7197 = vmatprep.subr.mxu0 0.0
      %7198 = vmatpush2.msra.mxu0 0.0
      %7199 = vmatprep.subr.mxu0 0.0
      %7200 = vmatpush2.msra.mxu0 0.0
      %7201 = vmatprep.subr.mxu0 0.0
      %7202 = vmatpush2.msra.mxu0 0.0
      %7203 = vmatprep.subr.mxu0 0.0
      %v7204 = vand.u32 %v6842, 4294901760
      %v7205 = vsub.f32 %v6842, %v7204
      %v7206 = vand.u32 %v7205, 4294901760
      %v7207 = vsub.f32 %v7205, %v7206
      %v7208 = vand.u32 %v7207, 4294901760
      %7209 = vmatpush2.msra.mxu0 %v7208
      %7210 = vmatprep.subr.mxu0 0.0
      %v7211 = vand.u32 %v6841, 4294901760
      %v7212 = vsub.f32 %v6841, %v7211
      %v7213 = vand.u32 %v7212, 4294901760
      %v7214 = vsub.f32 %v7212, %v7213
      %v7215 = vand.u32 %v7214, 4294901760
      %7216 = vmatpush2.msra.mxu0 %v7215
      %7217 = vmatprep.subr.mxu0 0.0
      %v7218 = vand.u32 %v6840, 4294901760
      %v7219 = vsub.f32 %v6840, %v7218
      %v7220 = vand.u32 %v7219, 4294901760
      %v7221 = vsub.f32 %v7219, %v7220
      %v7222 = vand.u32 %v7221, 4294901760
      %7223 = vmatpush2.msra.mxu0 %v7222
      %7224 = vmatprep.subr.mxu0 0.0
      %v7225 = vand.u32 %v6839, 4294901760
      %v7226 = vsub.f32 %v6839, %v7225
      %v7227 = vand.u32 %v7226, 4294901760
      %v7228 = vsub.f32 %v7226, %v7227
      %v7229 = vand.u32 %v7228, 4294901760
      %7230 = vmatpush2.msra.mxu0 %v7229
      %7231 = vmatprep.subr.mxu0 0.0
      %v7232 = vand.u32 %v6838, 4294901760
      %v7233 = vsub.f32 %v6838, %v7232
      %v7234 = vand.u32 %v7233, 4294901760
      %v7235 = vsub.f32 %v7233, %v7234
      %v7236 = vand.u32 %v7235, 4294901760
      %7237 = vmatpush2.msra.mxu0 %v7236
      %7238 = vmatprep.subr.mxu0 0.0
      %v7239 = vand.u32 %v6837, 4294901760
      %v7240 = vsub.f32 %v6837, %v7239
      %v7241 = vand.u32 %v7240, 4294901760
      %v7242 = vsub.f32 %v7240, %v7241
      %v7243 = vand.u32 %v7242, 4294901760
      %7244 = vmatpush2.msra.mxu0 %v7243
      %7245 = vmatprep.subr.mxu0 0.0
      %v7246 = vand.u32 %v6836, 4294901760
      %v7247 = vsub.f32 %v6836, %v7246
      %v7248 = vand.u32 %v7247, 4294901760
      %v7249 = vsub.f32 %v7247, %v7248
      %v7250 = vand.u32 %v7249, 4294901760
      %7251 = vmatpush2.msra.mxu0 %v7250
      %7252 = vmatprep.subr.mxu0 0.0
      %v7253 = vand.u32 %v6835, 4294901760
      %v7254 = vsub.f32 %v6835, %v7253
      %v7255 = vand.u32 %v7254, 4294901760
      %v7256 = vsub.f32 %v7254, %v7255
      %v7257 = vand.u32 %v7256, 4294901760
      %7258 = vmatpush2.msra.mxu0 %v7257
      %7259 = vmatprep.subr.mxu0 0.0
      %v7260 = vand.u32 %v6834, 4294901760
      %v7261 = vsub.f32 %v6834, %v7260
      %v7262 = vand.u32 %v7261, 4294901760
      %v7263 = vsub.f32 %v7261, %v7262
      %v7264 = vand.u32 %v7263, 4294901760
      %7265 = vmatpush2.msra.mxu0 %v7264
      %v7266 = vand.u32 %v6844, 4294901760
      %7267 = vmatprep.mubr.f32.mxu0 %v7266
      %v7268 = vand.u32 %v6801, 4294901760
      %7269 = vmatmul.mubr.f32.gmra.mxu0 %v7268
      %v7270 = vpop.f32.mrf.mxu0
      %v7271 = vadd.f32 %v6969, %v7270
      %v7272 = vpop.f32.mrf.mxu0
      %v7273 = vand.u32 %v6847, 4294901760
      %7274 = vmatprep.mubr.f32.mxu0 %v7273
      %v7275 = vand.u32 %v6803, 4294901760
      %7276 = vmatmul.mubr.f32.gmra.mxu0 %v7275
      %v7277 = vpop.f32.mrf.mxu0
      %v7278 = vadd.f32 %v6984, %v7277
      %v7279 = vpop.f32.mrf.mxu0
      %v7280 = vand.u32 %v6850, 4294901760
      %7281 = vmatprep.mubr.f32.mxu0 %v7280
      %v7282 = vand.u32 %v6805, 4294901760
      %7283 = vmatmul.mubr.f32.gmra.mxu0 %v7282
      %v7284 = vpop.f32.mrf.mxu0
      %v7285 = vadd.f32 %v6999, %v7284
      %v7286 = vpop.f32.mrf.mxu0
      %v7287 = vand.u32 %v6853, 4294901760
      %7288 = vmatprep.mubr.f32.mxu0 %v7287
      %v7289 = vand.u32 %v6807, 4294901760
      %7290 = vmatmul.mubr.f32.gmra.mxu0 %v7289
      %v7291 = vpop.f32.mrf.mxu0
      %v7292 = vadd.f32 %v7014, %v7291
      %v7293 = vpop.f32.mrf.mxu0
      %v7294 = vand.u32 %v6856, 4294901760
      %7295 = vmatprep.mubr.f32.mxu0 %v7294
      %v7296 = vand.u32 %v6809, 4294901760
      %7297 = vmatmul.mubr.f32.gmra.mxu0 %v7296
      %v7298 = vpop.f32.mrf.mxu0
      %v7299 = vadd.f32 %v7029, %v7298
      %v7300 = vpop.f32.mrf.mxu0
      %v7301 = vand.u32 %v6859, 4294901760
      %7302 = vmatprep.mubr.f32.mxu0 %v7301
      %v7303 = vand.u32 %v6811, 4294901760
      %7304 = vmatmul.mubr.f32.gmra.mxu0 %v7303
      %v7305 = vpop.f32.mrf.mxu0
      %v7306 = vadd.f32 %v7044, %v7305
      %v7307 = vpop.f32.mrf.mxu0
      %v7308 = vand.u32 %v6862, 4294901760
      %7309 = vmatprep.mubr.f32.mxu0 %v7308
      %v7310 = vand.u32 %v6813, 4294901760
      %7311 = vmatmul.mubr.f32.gmra.mxu0 %v7310
      %v7312 = vpop.f32.mrf.mxu0
      %v7313 = vadd.f32 %v7059, %v7312
      %v7314 = vpop.f32.mrf.mxu0
      %v7315 = vand.u32 %v6865, 4294901760
      %7316 = vmatprep.mubr.f32.mxu0 %v7315
      %v7317 = vand.u32 %v6815, 4294901760
      %7318 = vmatmul.mubr.f32.gmra.mxu0 %v7317
      %v7319 = vpop.f32.mrf.mxu0
      %v7320 = vadd.f32 %v7074, %v7319
      %v7321 = vpop.f32.mrf.mxu0
      %7322 = vdwg.mxu0
      %7323 = vmatprep.subr.mxu0 0.0
      %v7324 = vand.u32 %v6833, 4294901760
      %v7325 = vsub.f32 %v6833, %v7324
      %7326 = vmatpush1.msra.mxu0 %v7325
      %7327 = vmatprep.subr.mxu0 0.0
      %v7328 = vand.u32 %v6832, 4294901760
      %v7329 = vsub.f32 %v6832, %v7328
      %7330 = vmatpush1.msra.mxu0 %v7329
      %7331 = vmatprep.subr.mxu0 0.0
      %v7332 = vand.u32 %v6831, 4294901760
      %v7333 = vsub.f32 %v6831, %v7332
      %7334 = vmatpush1.msra.mxu0 %v7333
      %7335 = vmatprep.subr.mxu0 0.0
      %v7336 = vand.u32 %v6830, 4294901760
      %v7337 = vsub.f32 %v6830, %v7336
      %7338 = vmatpush1.msra.mxu0 %v7337
      %7339 = vmatprep.subr.mxu0 0.0
      %v7340 = vand.u32 %v6829, 4294901760
      %v7341 = vsub.f32 %v6829, %v7340
      %7342 = vmatpush1.msra.mxu0 %v7341
      %7343 = vmatprep.subr.mxu0 0.0
      %v7344 = vand.u32 %v6828, 4294901760
      %v7345 = vsub.f32 %v6828, %v7344
      %7346 = vmatpush1.msra.mxu0 %v7345
      %7347 = vmatprep.subr.mxu0 0.0
      %v7348 = vand.u32 %v6827, 4294901760
      %v7349 = vsub.f32 %v6827, %v7348
      %7350 = vmatpush1.msra.mxu0 %v7349
      %7351 = vmatprep.subr.mxu0 0.0
      %v7352 = vand.u32 %v6826, 4294901760
      %v7353 = vsub.f32 %v6826, %v7352
      %7354 = vmatpush1.msra.mxu0 %v7353
      %7355 = vmatprep.subr.mxu0 0.0
      %v7356 = vand.u32 %v6825, 4294901760
      %v7357 = vsub.f32 %v6825, %v7356
      %7358 = vmatpush1.msra.mxu0 %v7357
      %7359 = vmatprep.subr.mxu0 0.0
      %v7360 = vand.u32 %v6824, 4294901760
      %v7361 = vsub.f32 %v6824, %v7360
      %7362 = vmatpush1.msra.mxu0 %v7361
      %7363 = vmatprep.subr.mxu0 0.0
      %v7364 = vand.u32 %v6823, 4294901760
      %v7365 = vsub.f32 %v6823, %v7364
      %7366 = vmatpush1.msra.mxu0 %v7365
      %7367 = vmatprep.subr.mxu0 0.0
      %v7368 = vand.u32 %v6822, 4294901760
      %v7369 = vsub.f32 %v6822, %v7368
      %7370 = vmatpush1.msra.mxu0 %v7369
      %7371 = vmatprep.subr.mxu0 0.0
      %v7372 = vand.u32 %v6821, 4294901760
      %v7373 = vsub.f32 %v6821, %v7372
      %7374 = vmatpush1.msra.mxu0 %v7373
      %7375 = vmatprep.subr.mxu0 0.0
      %v7376 = vand.u32 %v6820, 4294901760
      %v7377 = vsub.f32 %v6820, %v7376
      %7378 = vmatpush1.msra.mxu0 %v7377
      %7379 = vmatprep.subr.mxu0 0.0
      %v7380 = vand.u32 %v6819, 4294901760
      %v7381 = vsub.f32 %v6819, %v7380
      %7382 = vmatpush1.msra.mxu0 %v7381
      %7383 = vmatprep.subr.mxu0 0.0
      %v7384 = vand.u32 %v6818, 4294901760
      %v7385 = vsub.f32 %v6818, %v7384
      %7386 = vmatpush1.msra.mxu0 %v7385
      %7387 = vmatprep.subr.mxu0 0.0
      %7388 = vmatpush2.msra.mxu0 0.0
      %7389 = vmatprep.subr.mxu0 0.0
      %7390 = vmatpush2.msra.mxu0 0.0
      %7391 = vmatprep.subr.mxu0 0.0
      %7392 = vmatpush2.msra.mxu0 0.0
      %7393 = vmatprep.subr.mxu0 0.0
      %7394 = vmatpush2.msra.mxu0 0.0
      %7395 = vmatprep.subr.mxu0 0.0
      %7396 = vmatpush2.msra.mxu0 0.0
      %7397 = vmatprep.subr.mxu0 0.0
      %7398 = vmatpush2.msra.mxu0 0.0
      %7399 = vmatprep.subr.mxu0 0.0
      %7400 = vmatpush2.msra.mxu0 0.0
      %7401 = vmatprep.subr.mxu0 0.0
      %v7402 = vand.u32 %v6842, 4294901760
      %v7403 = vsub.f32 %v6842, %v7402
      %7404 = vmatpush2.msra.mxu0 %v7403
      %7405 = vmatprep.subr.mxu0 0.0
      %v7406 = vand.u32 %v6841, 4294901760
      %v7407 = vsub.f32 %v6841, %v7406
      %7408 = vmatpush2.msra.mxu0 %v7407
      %7409 = vmatprep.subr.mxu0 0.0
      %v7410 = vand.u32 %v6840, 4294901760
      %v7411 = vsub.f32 %v6840, %v7410
      %7412 = vmatpush2.msra.mxu0 %v7411
      %7413 = vmatprep.subr.mxu0 0.0
      %v7414 = vand.u32 %v6839, 4294901760
      %v7415 = vsub.f32 %v6839, %v7414
      %7416 = vmatpush2.msra.mxu0 %v7415
      %7417 = vmatprep.subr.mxu0 0.0
      %v7418 = vand.u32 %v6838, 4294901760
      %v7419 = vsub.f32 %v6838, %v7418
      %7420 = vmatpush2.msra.mxu0 %v7419
      %7421 = vmatprep.subr.mxu0 0.0
      %v7422 = vand.u32 %v6837, 4294901760
      %v7423 = vsub.f32 %v6837, %v7422
      %7424 = vmatpush2.msra.mxu0 %v7423
      %7425 = vmatprep.subr.mxu0 0.0
      %v7426 = vand.u32 %v6836, 4294901760
      %v7427 = vsub.f32 %v6836, %v7426
      %7428 = vmatpush2.msra.mxu0 %v7427
      %7429 = vmatprep.subr.mxu0 0.0
      %v7430 = vand.u32 %v6835, 4294901760
      %v7431 = vsub.f32 %v6835, %v7430
      %7432 = vmatpush2.msra.mxu0 %v7431
      %7433 = vmatprep.subr.mxu0 0.0
      %v7434 = vand.u32 %v6834, 4294901760
      %v7435 = vsub.f32 %v6834, %v7434
      %7436 = vmatpush2.msra.mxu0 %v7435
      %v7437 = vand.u32 %v6844, 4294901760
      %v7438 = vsub.f32 %v6844, %v7437
      %7439 = vmatprep.mubr.f32.mxu0 %v7438
      %v7440 = vand.u32 %v6801, 4294901760
      %v7441 = vsub.f32 %v6801, %v7440
      %7442 = vmatmul.mubr.f32.gmra.mxu0 %v7441
      %v7443 = vpop.f32.mrf.mxu0
      %v7444 = vadd.f32 %v7271, %v7443
      %v7445 = vpop.f32.mrf.mxu0
      %v7446 = vand.u32 %v6847, 4294901760
      %v7447 = vsub.f32 %v6847, %v7446
      %7448 = vmatprep.mubr.f32.mxu0 %v7447
      %v7449 = vand.u32 %v6803, 4294901760
      %v7450 = vsub.f32 %v6803, %v7449
      %7451 = vmatmul.mubr.f32.gmra.mxu0 %v7450
      %v7452 = vpop.f32.mrf.mxu0
      %v7453 = vadd.f32 %v7278, %v7452
      %v7454 = vpop.f32.mrf.mxu0
      %v7455 = vand.u32 %v6850, 4294901760
      %v7456 = vsub.f32 %v6850, %v7455
      %7457 = vmatprep.mubr.f32.mxu0 %v7456
      %v7458 = vand.u32 %v6805, 4294901760
      %v7459 = vsub.f32 %v6805, %v7458
      %7460 = vmatmul.mubr.f32.gmra.mxu0 %v7459
      %v7461 = vpop.f32.mrf.mxu0
      %v7462 = vadd.f32 %v7285, %v7461
      %v7463 = vpop.f32.mrf.mxu0
      %v7464 = vand.u32 %v6853, 4294901760
      %v7465 = vsub.f32 %v6853, %v7464
      %7466 = vmatprep.mubr.f32.mxu0 %v7465
      %v7467 = vand.u32 %v6807, 4294901760
      %v7468 = vsub.f32 %v6807, %v7467
      %7469 = vmatmul.mubr.f32.gmra.mxu0 %v7468
      %v7470 = vpop.f32.mrf.mxu0
      %v7471 = vadd.f32 %v7292, %v7470
      %v7472 = vpop.f32.mrf.mxu0
      %v7473 = vand.u32 %v6856, 4294901760
      %v7474 = vsub.f32 %v6856, %v7473
      %7475 = vmatprep.mubr.f32.mxu0 %v7474
      %v7476 = vand.u32 %v6809, 4294901760
      %v7477 = vsub.f32 %v6809, %v7476
      %7478 = vmatmul.mubr.f32.gmra.mxu0 %v7477
      %v7479 = vpop.f32.mrf.mxu0
      %v7480 = vadd.f32 %v7299, %v7479
      %v7481 = vpop.f32.mrf.mxu0
      %v7482 = vand.u32 %v6859, 4294901760
      %v7483 = vsub.f32 %v6859, %v7482
      %7484 = vmatprep.mubr.f32.mxu0 %v7483
      %v7485 = vand.u32 %v6811, 4294901760
      %v7486 = vsub.f32 %v6811, %v7485
      %7487 = vmatmul.mubr.f32.gmra.mxu0 %v7486
      %v7488 = vpop.f32.mrf.mxu0
      %v7489 = vadd.f32 %v7306, %v7488
      %v7490 = vpop.f32.mrf.mxu0
      %v7491 = vand.u32 %v6862, 4294901760
      %v7492 = vsub.f32 %v6862, %v7491
      %7493 = vmatprep.mubr.f32.mxu0 %v7492
      %v7494 = vand.u32 %v6813, 4294901760
      %v7495 = vsub.f32 %v6813, %v7494
      %7496 = vmatmul.mubr.f32.gmra.mxu0 %v7495
      %v7497 = vpop.f32.mrf.mxu0
      %v7498 = vadd.f32 %v7313, %v7497
      %v7499 = vpop.f32.mrf.mxu0
      %v7500 = vand.u32 %v6865, 4294901760
      %v7501 = vsub.f32 %v6865, %v7500
      %7502 = vmatprep.mubr.f32.mxu0 %v7501
      %v7503 = vand.u32 %v6815, 4294901760
      %v7504 = vsub.f32 %v6815, %v7503
      %7505 = vmatmul.mubr.f32.gmra.mxu0 %v7504
      %v7506 = vpop.f32.mrf.mxu0
      %v7507 = vadd.f32 %v7320, %v7506
      %v7508 = vpop.f32.mrf.mxu0
      %7509 = vdwg.mxu0
      %7510 = vmatprep.subr.mxu0 0.0
      %v7511 = vand.u32 %v6833, 4294901760
      %7512 = vmatpush1.msra.mxu0 %v7511
      %7513 = vmatprep.subr.mxu0 0.0
      %v7514 = vand.u32 %v6832, 4294901760
      %7515 = vmatpush1.msra.mxu0 %v7514
      %7516 = vmatprep.subr.mxu0 0.0
      %v7517 = vand.u32 %v6831, 4294901760
      %7518 = vmatpush1.msra.mxu0 %v7517
      %7519 = vmatprep.subr.mxu0 0.0
      %v7520 = vand.u32 %v6830, 4294901760
      %7521 = vmatpush1.msra.mxu0 %v7520
      %7522 = vmatprep.subr.mxu0 0.0
      %v7523 = vand.u32 %v6829, 4294901760
      %7524 = vmatpush1.msra.mxu0 %v7523
      %7525 = vmatprep.subr.mxu0 0.0
      %v7526 = vand.u32 %v6828, 4294901760
      %7527 = vmatpush1.msra.mxu0 %v7526
      %7528 = vmatprep.subr.mxu0 0.0
      %v7529 = vand.u32 %v6827, 4294901760
      %7530 = vmatpush1.msra.mxu0 %v7529
      %7531 = vmatprep.subr.mxu0 0.0
      %v7532 = vand.u32 %v6826, 4294901760
      %7533 = vmatpush1.msra.mxu0 %v7532
      %7534 = vmatprep.subr.mxu0 0.0
      %v7535 = vand.u32 %v6825, 4294901760
      %7536 = vmatpush1.msra.mxu0 %v7535
      %7537 = vmatprep.subr.mxu0 0.0
      %v7538 = vand.u32 %v6824, 4294901760
      %7539 = vmatpush1.msra.mxu0 %v7538
      %7540 = vmatprep.subr.mxu0 0.0
      %v7541 = vand.u32 %v6823, 4294901760
      %7542 = vmatpush1.msra.mxu0 %v7541
      %7543 = vmatprep.subr.mxu0 0.0
      %v7544 = vand.u32 %v6822, 4294901760
      %7545 = vmatpush1.msra.mxu0 %v7544
      %7546 = vmatprep.subr.mxu0 0.0
      %v7547 = vand.u32 %v6821, 4294901760
      %7548 = vmatpush1.msra.mxu0 %v7547
      %7549 = vmatprep.subr.mxu0 0.0
      %v7550 = vand.u32 %v6820, 4294901760
      %7551 = vmatpush1.msra.mxu0 %v7550
      %7552 = vmatprep.subr.mxu0 0.0
      %v7553 = vand.u32 %v6819, 4294901760
      %7554 = vmatpush1.msra.mxu0 %v7553
      %7555 = vmatprep.subr.mxu0 0.0
      %v7556 = vand.u32 %v6818, 4294901760
      %7557 = vmatpush1.msra.mxu0 %v7556
      %7558 = vmatprep.subr.mxu0 0.0
      %7559 = vmatpush2.msra.mxu0 0.0
      %7560 = vmatprep.subr.mxu0 0.0
      %7561 = vmatpush2.msra.mxu0 0.0
      %7562 = vmatprep.subr.mxu0 0.0
      %7563 = vmatpush2.msra.mxu0 0.0
      %7564 = vmatprep.subr.mxu0 0.0
      %7565 = vmatpush2.msra.mxu0 0.0
      %7566 = vmatprep.subr.mxu0 0.0
      %7567 = vmatpush2.msra.mxu0 0.0
      %7568 = vmatprep.subr.mxu0 0.0
      %7569 = vmatpush2.msra.mxu0 0.0
      %7570 = vmatprep.subr.mxu0 0.0
      %7571 = vmatpush2.msra.mxu0 0.0
      %7572 = vmatprep.subr.mxu0 0.0
      %v7573 = vand.u32 %v6842, 4294901760
      %7574 = vmatpush2.msra.mxu0 %v7573
      %7575 = vmatprep.subr.mxu0 0.0
      %v7576 = vand.u32 %v6841, 4294901760
      %7577 = vmatpush2.msra.mxu0 %v7576
      %7578 = vmatprep.subr.mxu0 0.0
      %v7579 = vand.u32 %v6840, 4294901760
      %7580 = vmatpush2.msra.mxu0 %v7579
      %7581 = vmatprep.subr.mxu0 0.0
      %v7582 = vand.u32 %v6839, 4294901760
      %7583 = vmatpush2.msra.mxu0 %v7582
      %7584 = vmatprep.subr.mxu0 0.0
      %v7585 = vand.u32 %v6838, 4294901760
      %7586 = vmatpush2.msra.mxu0 %v7585
      %7587 = vmatprep.subr.mxu0 0.0
      %v7588 = vand.u32 %v6837, 4294901760
      %7589 = vmatpush2.msra.mxu0 %v7588
      %7590 = vmatprep.subr.mxu0 0.0
      %v7591 = vand.u32 %v6836, 4294901760
      %7592 = vmatpush2.msra.mxu0 %v7591
      %7593 = vmatprep.subr.mxu0 0.0
      %v7594 = vand.u32 %v6835, 4294901760
      %7595 = vmatpush2.msra.mxu0 %v7594
      %7596 = vmatprep.subr.mxu0 0.0
      %v7597 = vand.u32 %v6834, 4294901760
      %7598 = vmatpush2.msra.mxu0 %v7597
      %v7599 = vand.u32 %v6844, 4294901760
      %v7600 = vsub.f32 %v6844, %v7599
      %v7601 = vand.u32 %v7600, 4294901760
      %7602 = vmatprep.mubr.f32.mxu0 %v7601
      %v7603 = vand.u32 %v6801, 4294901760
      %v7604 = vsub.f32 %v6801, %v7603
      %v7605 = vand.u32 %v7604, 4294901760
      %7606 = vmatmul.mubr.f32.gmra.mxu0 %v7605
      %v7607 = vpop.f32.mrf.mxu0
      %v7608 = vadd.f32 %v7444, %v7607
      %v7609 = vpop.f32.mrf.mxu0
      %v7610 = vand.u32 %v6847, 4294901760
      %v7611 = vsub.f32 %v6847, %v7610
      %v7612 = vand.u32 %v7611, 4294901760
      %7613 = vmatprep.mubr.f32.mxu0 %v7612
      %v7614 = vand.u32 %v6803, 4294901760
      %v7615 = vsub.f32 %v6803, %v7614
      %v7616 = vand.u32 %v7615, 4294901760
      %7617 = vmatmul.mubr.f32.gmra.mxu0 %v7616
      %v7618 = vpop.f32.mrf.mxu0
      %v7619 = vadd.f32 %v7453, %v7618
      %v7620 = vpop.f32.mrf.mxu0
      %v7621 = vand.u32 %v6850, 4294901760
      %v7622 = vsub.f32 %v6850, %v7621
      %v7623 = vand.u32 %v7622, 4294901760
      %7624 = vmatprep.mubr.f32.mxu0 %v7623
      %v7625 = vand.u32 %v6805, 4294901760
      %v7626 = vsub.f32 %v6805, %v7625
      %v7627 = vand.u32 %v7626, 4294901760
      %7628 = vmatmul.mubr.f32.gmra.mxu0 %v7627
      %v7629 = vpop.f32.mrf.mxu0
      %v7630 = vadd.f32 %v7462, %v7629
      %v7631 = vpop.f32.mrf.mxu0
      %v7632 = vand.u32 %v6853, 4294901760
      %v7633 = vsub.f32 %v6853, %v7632
      %v7634 = vand.u32 %v7633, 4294901760
      %7635 = vmatprep.mubr.f32.mxu0 %v7634
      %v7636 = vand.u32 %v6807, 4294901760
      %v7637 = vsub.f32 %v6807, %v7636
      %v7638 = vand.u32 %v7637, 4294901760
      %7639 = vmatmul.mubr.f32.gmra.mxu0 %v7638
      %v7640 = vpop.f32.mrf.mxu0
      %v7641 = vadd.f32 %v7471, %v7640
      %v7642 = vpop.f32.mrf.mxu0
      %v7643 = vand.u32 %v6856, 4294901760
      %v7644 = vsub.f32 %v6856, %v7643
      %v7645 = vand.u32 %v7644, 4294901760
      %7646 = vmatprep.mubr.f32.mxu0 %v7645
      %v7647 = vand.u32 %v6809, 4294901760
      %v7648 = vsub.f32 %v6809, %v7647
      %v7649 = vand.u32 %v7648, 4294901760
      %7650 = vmatmul.mubr.f32.gmra.mxu0 %v7649
      %v7651 = vpop.f32.mrf.mxu0
      %v7652 = vadd.f32 %v7480, %v7651
      %v7653 = vpop.f32.mrf.mxu0
      %v7654 = vand.u32 %v6859, 4294901760
      %v7655 = vsub.f32 %v6859, %v7654
      %v7656 = vand.u32 %v7655, 4294901760
      %7657 = vmatprep.mubr.f32.mxu0 %v7656
      %v7658 = vand.u32 %v6811, 4294901760
      %v7659 = vsub.f32 %v6811, %v7658
      %v7660 = vand.u32 %v7659, 4294901760
      %7661 = vmatmul.mubr.f32.gmra.mxu0 %v7660
      %v7662 = vpop.f32.mrf.mxu0
      %v7663 = vadd.f32 %v7489, %v7662
      %v7664 = vpop.f32.mrf.mxu0
      %v7665 = vand.u32 %v6862, 4294901760
      %v7666 = vsub.f32 %v6862, %v7665
      %v7667 = vand.u32 %v7666, 4294901760
      %7668 = vmatprep.mubr.f32.mxu0 %v7667
      %v7669 = vand.u32 %v6813, 4294901760
      %v7670 = vsub.f32 %v6813, %v7669
      %v7671 = vand.u32 %v7670, 4294901760
      %7672 = vmatmul.mubr.f32.gmra.mxu0 %v7671
      %v7673 = vpop.f32.mrf.mxu0
      %v7674 = vadd.f32 %v7498, %v7673
      %v7675 = vpop.f32.mrf.mxu0
      %v7676 = vand.u32 %v6865, 4294901760
      %v7677 = vsub.f32 %v6865, %v7676
      %v7678 = vand.u32 %v7677, 4294901760
      %7679 = vmatprep.mubr.f32.mxu0 %v7678
      %v7680 = vand.u32 %v6815, 4294901760
      %v7681 = vsub.f32 %v6815, %v7680
      %v7682 = vand.u32 %v7681, 4294901760
      %7683 = vmatmul.mubr.f32.gmra.mxu0 %v7682
      %v7684 = vpop.f32.mrf.mxu0
      %v7685 = vadd.f32 %v7507, %v7684
      %v7686 = vpop.f32.mrf.mxu0
      %7687 = vdwg.mxu0
      %7688 = vmatprep.subr.mxu0 0.0
      %v7689 = vand.u32 %v6833, 4294901760
      %v7690 = vsub.f32 %v6833, %v7689
      %v7691 = vand.u32 %v7690, 4294901760
      %7692 = vmatpush1.msra.mxu0 %v7691
      %7693 = vmatprep.subr.mxu0 0.0
      %v7694 = vand.u32 %v6832, 4294901760
      %v7695 = vsub.f32 %v6832, %v7694
      %v7696 = vand.u32 %v7695, 4294901760
      %7697 = vmatpush1.msra.mxu0 %v7696
      %7698 = vmatprep.subr.mxu0 0.0
      %v7699 = vand.u32 %v6831, 4294901760
      %v7700 = vsub.f32 %v6831, %v7699
      %v7701 = vand.u32 %v7700, 4294901760
      %7702 = vmatpush1.msra.mxu0 %v7701
      %7703 = vmatprep.subr.mxu0 0.0
      %v7704 = vand.u32 %v6830, 4294901760
      %v7705 = vsub.f32 %v6830, %v7704
      %v7706 = vand.u32 %v7705, 4294901760
      %7707 = vmatpush1.msra.mxu0 %v7706
      %7708 = vmatprep.subr.mxu0 0.0
      %v7709 = vand.u32 %v6829, 4294901760
      %v7710 = vsub.f32 %v6829, %v7709
      %v7711 = vand.u32 %v7710, 4294901760
      %7712 = vmatpush1.msra.mxu0 %v7711
      %7713 = vmatprep.subr.mxu0 0.0
      %v7714 = vand.u32 %v6828, 4294901760
      %v7715 = vsub.f32 %v6828, %v7714
      %v7716 = vand.u32 %v7715, 4294901760
      %7717 = vmatpush1.msra.mxu0 %v7716
      %7718 = vmatprep.subr.mxu0 0.0
      %v7719 = vand.u32 %v6827, 4294901760
      %v7720 = vsub.f32 %v6827, %v7719
      %v7721 = vand.u32 %v7720, 4294901760
      %7722 = vmatpush1.msra.mxu0 %v7721
      %7723 = vmatprep.subr.mxu0 0.0
      %v7724 = vand.u32 %v6826, 4294901760
      %v7725 = vsub.f32 %v6826, %v7724
      %v7726 = vand.u32 %v7725, 4294901760
      %7727 = vmatpush1.msra.mxu0 %v7726
      %7728 = vmatprep.subr.mxu0 0.0
      %v7729 = vand.u32 %v6825, 4294901760
      %v7730 = vsub.f32 %v6825, %v7729
      %v7731 = vand.u32 %v7730, 4294901760
      %7732 = vmatpush1.msra.mxu0 %v7731
      %7733 = vmatprep.subr.mxu0 0.0
      %v7734 = vand.u32 %v6824, 4294901760
      %v7735 = vsub.f32 %v6824, %v7734
      %v7736 = vand.u32 %v7735, 4294901760
      %7737 = vmatpush1.msra.mxu0 %v7736
      %7738 = vmatprep.subr.mxu0 0.0
      %v7739 = vand.u32 %v6823, 4294901760
      %v7740 = vsub.f32 %v6823, %v7739
      %v7741 = vand.u32 %v7740, 4294901760
      %7742 = vmatpush1.msra.mxu0 %v7741
      %7743 = vmatprep.subr.mxu0 0.0
      %v7744 = vand.u32 %v6822, 4294901760
      %v7745 = vsub.f32 %v6822, %v7744
      %v7746 = vand.u32 %v7745, 4294901760
      %7747 = vmatpush1.msra.mxu0 %v7746
      %7748 = vmatprep.subr.mxu0 0.0
      %v7749 = vand.u32 %v6821, 4294901760
      %v7750 = vsub.f32 %v6821, %v7749
      %v7751 = vand.u32 %v7750, 4294901760
      %7752 = vmatpush1.msra.mxu0 %v7751
      %7753 = vmatprep.subr.mxu0 0.0
      %v7754 = vand.u32 %v6820, 4294901760
      %v7755 = vsub.f32 %v6820, %v7754
      %v7756 = vand.u32 %v7755, 4294901760
      %7757 = vmatpush1.msra.mxu0 %v7756
      %7758 = vmatprep.subr.mxu0 0.0
      %v7759 = vand.u32 %v6819, 4294901760
      %v7760 = vsub.f32 %v6819, %v7759
      %v7761 = vand.u32 %v7760, 4294901760
      %7762 = vmatpush1.msra.mxu0 %v7761
      %7763 = vmatprep.subr.mxu0 0.0
      %v7764 = vand.u32 %v6818, 4294901760
      %v7765 = vsub.f32 %v6818, %v7764
      %v7766 = vand.u32 %v7765, 4294901760
      %7767 = vmatpush1.msra.mxu0 %v7766
      %7768 = vmatprep.subr.mxu0 0.0
      %7769 = vmatpush2.msra.mxu0 0.0
      %7770 = vmatprep.subr.mxu0 0.0
      %7771 = vmatpush2.msra.mxu0 0.0
      %7772 = vmatprep.subr.mxu0 0.0
      %7773 = vmatpush2.msra.mxu0 0.0
      %7774 = vmatprep.subr.mxu0 0.0
      %7775 = vmatpush2.msra.mxu0 0.0
      %7776 = vmatprep.subr.mxu0 0.0
      %7777 = vmatpush2.msra.mxu0 0.0
      %7778 = vmatprep.subr.mxu0 0.0
      %7779 = vmatpush2.msra.mxu0 0.0
      %7780 = vmatprep.subr.mxu0 0.0
      %7781 = vmatpush2.msra.mxu0 0.0
      %7782 = vmatprep.subr.mxu0 0.0
      %v7783 = vand.u32 %v6842, 4294901760
      %v7784 = vsub.f32 %v6842, %v7783
      %v7785 = vand.u32 %v7784, 4294901760
      %7786 = vmatpush2.msra.mxu0 %v7785
      %7787 = vmatprep.subr.mxu0 0.0
      %v7788 = vand.u32 %v6841, 4294901760
      %v7789 = vsub.f32 %v6841, %v7788
      %v7790 = vand.u32 %v7789, 4294901760
      %7791 = vmatpush2.msra.mxu0 %v7790
      %7792 = vmatprep.subr.mxu0 0.0
      %v7793 = vand.u32 %v6840, 4294901760
      %v7794 = vsub.f32 %v6840, %v7793
      %v7795 = vand.u32 %v7794, 4294901760
      %7796 = vmatpush2.msra.mxu0 %v7795
      %7797 = vmatprep.subr.mxu0 0.0
      %v7798 = vand.u32 %v6839, 4294901760
      %v7799 = vsub.f32 %v6839, %v7798
      %v7800 = vand.u32 %v7799, 4294901760
      %7801 = vmatpush2.msra.mxu0 %v7800
      %7802 = vmatprep.subr.mxu0 0.0
      %v7803 = vand.u32 %v6838, 4294901760
      %v7804 = vsub.f32 %v6838, %v7803
      %v7805 = vand.u32 %v7804, 4294901760
      %7806 = vmatpush2.msra.mxu0 %v7805
      %7807 = vmatprep.subr.mxu0 0.0
      %v7808 = vand.u32 %v6837, 4294901760
      %v7809 = vsub.f32 %v6837, %v7808
      %v7810 = vand.u32 %v7809, 4294901760
      %7811 = vmatpush2.msra.mxu0 %v7810
      %7812 = vmatprep.subr.mxu0 0.0
      %v7813 = vand.u32 %v6836, 4294901760
      %v7814 = vsub.f32 %v6836, %v7813
      %v7815 = vand.u32 %v7814, 4294901760
      %7816 = vmatpush2.msra.mxu0 %v7815
      %7817 = vmatprep.subr.mxu0 0.0
      %v7818 = vand.u32 %v6835, 4294901760
      %v7819 = vsub.f32 %v6835, %v7818
      %v7820 = vand.u32 %v7819, 4294901760
      %7821 = vmatpush2.msra.mxu0 %v7820
      %7822 = vmatprep.subr.mxu0 0.0
      %v7823 = vand.u32 %v6834, 4294901760
      %v7824 = vsub.f32 %v6834, %v7823
      %v7825 = vand.u32 %v7824, 4294901760
      %7826 = vmatpush2.msra.mxu0 %v7825
      %v7827 = vand.u32 %v6844, 4294901760
      %7828 = vmatprep.mubr.f32.mxu0 %v7827
      %v7829 = vand.u32 %v6801, 4294901760
      %7830 = vmatmul.mubr.f32.gmra.mxu0 %v7829
      %v7831 = vpop.f32.mrf.mxu0
      %v7832 = vadd.f32 %v7608, %v7831
      %v7833 = vpop.f32.mrf.mxu0
      %v7834 = vand.u32 %v6847, 4294901760
      %7835 = vmatprep.mubr.f32.mxu0 %v7834
      %v7836 = vand.u32 %v6803, 4294901760
      %7837 = vmatmul.mubr.f32.gmra.mxu0 %v7836
      %v7838 = vpop.f32.mrf.mxu0
      %v7839 = vadd.f32 %v7619, %v7838
      %v7840 = vpop.f32.mrf.mxu0
      %v7841 = vand.u32 %v6850, 4294901760
      %7842 = vmatprep.mubr.f32.mxu0 %v7841
      %v7843 = vand.u32 %v6805, 4294901760
      %7844 = vmatmul.mubr.f32.gmra.mxu0 %v7843
      %v7845 = vpop.f32.mrf.mxu0
      %v7846 = vadd.f32 %v7630, %v7845
      %v7847 = vpop.f32.mrf.mxu0
      %v7848 = vand.u32 %v6853, 4294901760
      %7849 = vmatprep.mubr.f32.mxu0 %v7848
      %v7850 = vand.u32 %v6807, 4294901760
      %7851 = vmatmul.mubr.f32.gmra.mxu0 %v7850
      %v7852 = vpop.f32.mrf.mxu0
      %v7853 = vadd.f32 %v7641, %v7852
      %v7854 = vpop.f32.mrf.mxu0
      %v7855 = vand.u32 %v6856, 4294901760
      %7856 = vmatprep.mubr.f32.mxu0 %v7855
      %v7857 = vand.u32 %v6809, 4294901760
      %7858 = vmatmul.mubr.f32.gmra.mxu0 %v7857
      %v7859 = vpop.f32.mrf.mxu0
      %v7860 = vadd.f32 %v7652, %v7859
      %v7861 = vpop.f32.mrf.mxu0
      %v7862 = vand.u32 %v6859, 4294901760
      %7863 = vmatprep.mubr.f32.mxu0 %v7862
      %v7864 = vand.u32 %v6811, 4294901760
      %7865 = vmatmul.mubr.f32.gmra.mxu0 %v7864
      %v7866 = vpop.f32.mrf.mxu0
      %v7867 = vadd.f32 %v7663, %v7866
      %v7868 = vpop.f32.mrf.mxu0
      %v7869 = vand.u32 %v6862, 4294901760
      %7870 = vmatprep.mubr.f32.mxu0 %v7869
      %v7871 = vand.u32 %v6813, 4294901760
      %7872 = vmatmul.mubr.f32.gmra.mxu0 %v7871
      %v7873 = vpop.f32.mrf.mxu0
      %v7874 = vadd.f32 %v7674, %v7873
      %v7875 = vpop.f32.mrf.mxu0
      %v7876 = vand.u32 %v6865, 4294901760
      %7877 = vmatprep.mubr.f32.mxu0 %v7876
      %v7878 = vand.u32 %v6815, 4294901760
      %7879 = vmatmul.mubr.f32.gmra.mxu0 %v7878
      %v7880 = vpop.f32.mrf.mxu0
      %v7881 = vadd.f32 %v7685, %v7880
      %v7882 = vpop.f32.mrf.mxu0
      %7883 = vdwg.mxu0
      %7884 = vmatprep.subr.mxu0 0.0
      %v7885 = vand.u32 %v6833, 4294901760
      %7886 = vmatpush1.msra.mxu0 %v7885
      %7887 = vmatprep.subr.mxu0 0.0
      %v7888 = vand.u32 %v6832, 4294901760
      %7889 = vmatpush1.msra.mxu0 %v7888
      %7890 = vmatprep.subr.mxu0 0.0
      %v7891 = vand.u32 %v6831, 4294901760
      %7892 = vmatpush1.msra.mxu0 %v7891
      %7893 = vmatprep.subr.mxu0 0.0
      %v7894 = vand.u32 %v6830, 4294901760
      %7895 = vmatpush1.msra.mxu0 %v7894
      %7896 = vmatprep.subr.mxu0 0.0
      %v7897 = vand.u32 %v6829, 4294901760
      %7898 = vmatpush1.msra.mxu0 %v7897
      %7899 = vmatprep.subr.mxu0 0.0
      %v7900 = vand.u32 %v6828, 4294901760
      %7901 = vmatpush1.msra.mxu0 %v7900
      %7902 = vmatprep.subr.mxu0 0.0
      %v7903 = vand.u32 %v6827, 4294901760
      %7904 = vmatpush1.msra.mxu0 %v7903
      %7905 = vmatprep.subr.mxu0 0.0
      %v7906 = vand.u32 %v6826, 4294901760
      %7907 = vmatpush1.msra.mxu0 %v7906
      %7908 = vmatprep.subr.mxu0 0.0
      %v7909 = vand.u32 %v6825, 4294901760
      %7910 = vmatpush1.msra.mxu0 %v7909
      %7911 = vmatprep.subr.mxu0 0.0
      %v7912 = vand.u32 %v6824, 4294901760
      %7913 = vmatpush1.msra.mxu0 %v7912
      %7914 = vmatprep.subr.mxu0 0.0
      %v7915 = vand.u32 %v6823, 4294901760
      %7916 = vmatpush1.msra.mxu0 %v7915
      %7917 = vmatprep.subr.mxu0 0.0
      %v7918 = vand.u32 %v6822, 4294901760
      %7919 = vmatpush1.msra.mxu0 %v7918
      %7920 = vmatprep.subr.mxu0 0.0
      %v7921 = vand.u32 %v6821, 4294901760
      %7922 = vmatpush1.msra.mxu0 %v7921
      %7923 = vmatprep.subr.mxu0 0.0
      %v7924 = vand.u32 %v6820, 4294901760
      %7925 = vmatpush1.msra.mxu0 %v7924
      %7926 = vmatprep.subr.mxu0 0.0
      %v7927 = vand.u32 %v6819, 4294901760
      %7928 = vmatpush1.msra.mxu0 %v7927
      %7929 = vmatprep.subr.mxu0 0.0
      %v7930 = vand.u32 %v6818, 4294901760
      %7931 = vmatpush1.msra.mxu0 %v7930
      %7932 = vmatprep.subr.mxu0 0.0
      %7933 = vmatpush2.msra.mxu0 0.0
      %7934 = vmatprep.subr.mxu0 0.0
      %7935 = vmatpush2.msra.mxu0 0.0
      %7936 = vmatprep.subr.mxu0 0.0
      %7937 = vmatpush2.msra.mxu0 0.0
      %7938 = vmatprep.subr.mxu0 0.0
      %7939 = vmatpush2.msra.mxu0 0.0
      %7940 = vmatprep.subr.mxu0 0.0
      %7941 = vmatpush2.msra.mxu0 0.0
      %7942 = vmatprep.subr.mxu0 0.0
      %7943 = vmatpush2.msra.mxu0 0.0
      %7944 = vmatprep.subr.mxu0 0.0
      %7945 = vmatpush2.msra.mxu0 0.0
      %7946 = vmatprep.subr.mxu0 0.0
      %v7947 = vand.u32 %v6842, 4294901760
      %7948 = vmatpush2.msra.mxu0 %v7947
      %7949 = vmatprep.subr.mxu0 0.0
      %v7950 = vand.u32 %v6841, 4294901760
      %7951 = vmatpush2.msra.mxu0 %v7950
      %7952 = vmatprep.subr.mxu0 0.0
      %v7953 = vand.u32 %v6840, 4294901760
      %7954 = vmatpush2.msra.mxu0 %v7953
      %7955 = vmatprep.subr.mxu0 0.0
      %v7956 = vand.u32 %v6839, 4294901760
      %7957 = vmatpush2.msra.mxu0 %v7956
      %7958 = vmatprep.subr.mxu0 0.0
      %v7959 = vand.u32 %v6838, 4294901760
      %7960 = vmatpush2.msra.mxu0 %v7959
      %7961 = vmatprep.subr.mxu0 0.0
      %v7962 = vand.u32 %v6837, 4294901760
      %7963 = vmatpush2.msra.mxu0 %v7962
      %7964 = vmatprep.subr.mxu0 0.0
      %v7965 = vand.u32 %v6836, 4294901760
      %7966 = vmatpush2.msra.mxu0 %v7965
      %7967 = vmatprep.subr.mxu0 0.0
      %v7968 = vand.u32 %v6835, 4294901760
      %7969 = vmatpush2.msra.mxu0 %v7968
      %7970 = vmatprep.subr.mxu0 0.0
      %v7971 = vand.u32 %v6834, 4294901760
      %7972 = vmatpush2.msra.mxu0 %v7971
      %v7973 = vand.u32 %v6844, 4294901760
      %7974 = vmatprep.mubr.f32.mxu0 %v7973
      %v7975 = vand.u32 %v6801, 4294901760
      %7976 = vmatmul.mubr.f32.gmra.mxu0 %v7975
      %v7977 = vpop.f32.mrf.mxu0
      %v7978 = vadd.f32 %v7832, %v7977
      %v7979 = vpop.f32.mrf.mxu0
      %v7980 = vand.u32 %v6847, 4294901760
      %7981 = vmatprep.mubr.f32.mxu0 %v7980
      %v7982 = vand.u32 %v6803, 4294901760
      %7983 = vmatmul.mubr.f32.gmra.mxu0 %v7982
      %v7984 = vpop.f32.mrf.mxu0
      %v7985 = vadd.f32 %v7839, %v7984
      %v7986 = vpop.f32.mrf.mxu0
      %v7987 = vand.u32 %v6850, 4294901760
      %7988 = vmatprep.mubr.f32.mxu0 %v7987
      %v7989 = vand.u32 %v6805, 4294901760
      %7990 = vmatmul.mubr.f32.gmra.mxu0 %v7989
      %v7991 = vpop.f32.mrf.mxu0
      %v7992 = vadd.f32 %v7846, %v7991
      %v7993 = vpop.f32.mrf.mxu0
      %v7994 = vand.u32 %v6853, 4294901760
      %7995 = vmatprep.mubr.f32.mxu0 %v7994
      %v7996 = vand.u32 %v6807, 4294901760
      %7997 = vmatmul.mubr.f32.gmra.mxu0 %v7996
      %v7998 = vpop.f32.mrf.mxu0
      %v7999 = vadd.f32 %v7853, %v7998
      %v8000 = vpop.f32.mrf.mxu0
      %v8001 = vand.u32 %v6856, 4294901760
      %8002 = vmatprep.mubr.f32.mxu0 %v8001
      %v8003 = vand.u32 %v6809, 4294901760
      %8004 = vmatmul.mubr.f32.gmra.mxu0 %v8003
      %v8005 = vpop.f32.mrf.mxu0
      %v8006 = vadd.f32 %v7860, %v8005
      %v8007 = vpop.f32.mrf.mxu0
      %v8008 = vand.u32 %v6859, 4294901760
      %8009 = vmatprep.mubr.f32.mxu0 %v8008
      %v8010 = vand.u32 %v6811, 4294901760
      %8011 = vmatmul.mubr.f32.gmra.mxu0 %v8010
      %v8012 = vpop.f32.mrf.mxu0
      %v8013 = vadd.f32 %v7867, %v8012
      %v8014 = vpop.f32.mrf.mxu0
      %v8015 = vand.u32 %v6862, 4294901760
      %8016 = vmatprep.mubr.f32.mxu0 %v8015
      %v8017 = vand.u32 %v6813, 4294901760
      %8018 = vmatmul.mubr.f32.gmra.mxu0 %v8017
      %v8019 = vpop.f32.mrf.mxu0
      %v8020 = vadd.f32 %v7874, %v8019
      %v8021 = vpop.f32.mrf.mxu0
      %v8022 = vand.u32 %v6865, 4294901760
      %8023 = vmatprep.mubr.f32.mxu0 %v8022
      %v8024 = vand.u32 %v6815, 4294901760
      %8025 = vmatmul.mubr.f32.gmra.mxu0 %v8024
      %v8026 = vpop.f32.mrf.mxu0
      %v8027 = vadd.f32 %v7881, %v8026
      %v8028 = vpop.f32.mrf.mxu0
      %8029 = vdwg.mxu0
      %v8030 = vlaneseq
      %v8031 = vshrl.u32 %v8030, 7
      %v8032 = vsub.s32 2, %v8031
      %v8033 = vrot.slane %v1562, %v8032
      %v8034 = vmul.f32 %v7978, %v8033
      %v8035 = vmul.f32 %v7985, %v8033
      %v8036 = vmul.f32 %v7992, %v8033
      %v8037 = vmul.f32 %v7999, %v8033
      %v8038 = vmul.f32 %v8006, %v8033
      %v8039 = vmul.f32 %v8013, %v8033
      %v8040 = vmul.f32 %v8020, %v8033
      %v8041 = vmul.f32 %v8027, %v8033
      %v8042 = vlaneseq
      %v8043 = vshrl.u32 %v8042, 7
      %v8044 = vsub.s32 2, %v8043
      %v8045 = vrot.slane %v1563, %v8044
      %v8046 = vadd.f32 %v8034, %v8045
      %v8047 = vadd.f32 %v8035, %v8045
      %v8048 = vadd.f32 %v8036, %v8045
      %v8049 = vadd.f32 %v8037, %v8045
      %v8050 = vadd.f32 %v8038, %v8045
      %v8051 = vadd.f32 %v8039, %v8045
      %v8052 = vadd.f32 %v8040, %v8045
      %v8053 = vadd.f32 %v8041, %v8045
      %v8054 = vmax.f32 %v8046, 0.0
      %v8055 = vmax.f32 %v8047, 0.0
      %v8056 = vmax.f32 %v8048, 0.0
      %v8057 = vmax.f32 %v8049, 0.0
      %v8058 = vmax.f32 %v8050, 0.0
      %v8059 = vmax.f32 %v8051, 0.0
      %v8060 = vmax.f32 %v8052, 0.0
      %v8061 = vmax.f32 %v8053, 0.0
      %8062 = vst.msk [vmem:[%s1564 + $0x8] sm:$0xff] %vm250, %v8054
      %8063 = vst.msk [vmem:[%s1564 + $0x20] sm:$0xff] %vm250, %v8055
      %8064 = vst.msk [vmem:[%s1564 + $0x38] sm:$0xff] %vm250, %v8056
      %8065 = vst.msk [vmem:[%s1564 + $0x50] sm:$0xff] %vm250, %v8057
      %8066 = vst.msk [vmem:[%s1564 + $0x68] sm:$0xff] %vm250, %v8058
      %8067 = vst.msk [vmem:[%s1564 + $0x80] sm:$0xff] %vm250, %v8059
      %8068 = vst.msk [vmem:[%s1564 + $0x98] sm:$0xff] %vm250, %v8060
      %8069 = vst.msk [vmem:[%s1564 + $0xb0] sm:$0xff] %vm250, %v8061
      %v8070 = vld [vmem:[%s1573 + $0x7] sm:$0xff]
      %v8071 = vld [vmem:[%s1573 + $0x1f] sm:$0xff]
      %v8072 = vld [vmem:[%s1573 + $0x37] sm:$0xff]
      %v8073 = vld [vmem:[%s1573 + $0x4f] sm:$0xff]
      %v8074 = vld [vmem:[%s1573 + $0x67] sm:$0xff]
      %v8075 = vld [vmem:[%s1573 + $0x7f] sm:$0xff]
      %v8076 = vld [vmem:[%s1573 + $0x97] sm:$0xff]
      %v8077 = vld [vmem:[%s1573 + $0xaf] sm:$0xff]
      %8078 = vst.msk [vmem:[#allocation3] sm:$0xff] %vm250, %v8070
      %8079 = vst.msk [vmem:[#allocation3 + $0x10] sm:$0xff] %vm250, %v8071
      %8080 = vst.msk [vmem:[#allocation3 + $0x20] sm:$0xff] %vm250, %v8072
      %8081 = vst.msk [vmem:[#allocation3 + $0x30] sm:$0xff] %vm250, %v8073
      %8082 = vst.msk [vmem:[#allocation3 + $0x40] sm:$0xff] %vm250, %v8074
      %8083 = vst.msk [vmem:[#allocation3 + $0x50] sm:$0xff] %vm250, %v8075
      %8084 = vst.msk [vmem:[#allocation3 + $0x60] sm:$0xff] %vm250, %v8076
      %8085 = vst.msk [vmem:[#allocation3 + $0x70] sm:$0xff] %vm250, %v8077
      %v8086 = vld [vmem:[%s1573 + $0x8] sm:$0xff]
      %v8087 = vld [vmem:[%s1573 + $0x20] sm:$0xff]
      %v8088 = vld [vmem:[%s1573 + $0x38] sm:$0xff]
      %v8089 = vld [vmem:[%s1573 + $0x50] sm:$0xff]
      %v8090 = vld [vmem:[%s1573 + $0x68] sm:$0xff]
      %v8091 = vld [vmem:[%s1573 + $0x80] sm:$0xff]
      %v8092 = vld [vmem:[%s1573 + $0x98] sm:$0xff]
      %v8093 = vld [vmem:[%s1573 + $0xb0] sm:$0xff]
      %8102 = vrot.lane.b32.xlu0 %v8086, 8
      %v8103 = vpop.permute.xlu0 %8102
      %8104 = vrot.lane.b32.xlu0 %v8087, 8
      %v8105 = vpop.permute.xlu0 %8104
      %8106 = vrot.lane.b32.xlu0 %v8088, 8
      %v8107 = vpop.permute.xlu0 %8106
      %8108 = vrot.lane.b32.xlu0 %v8089, 8
      %v8109 = vpop.permute.xlu0 %8108
      %8110 = vrot.lane.b32.xlu0 %v8090, 8
      %v8111 = vpop.permute.xlu0 %8110
      %8112 = vrot.lane.b32.xlu0 %v8091, 8
      %v8113 = vpop.permute.xlu0 %8112
      %8114 = vrot.lane.b32.xlu0 %v8092, 8
      %v8115 = vpop.permute.xlu0 %8114
      %8116 = vrot.lane.b32.xlu0 %v8093, 8
      %v8117 = vpop.permute.xlu0 %8116
      %8126 = vst.msk [vmem:[#allocation3] sm:$0xff] %vm1630, %v8103
      %8127 = vst.msk [vmem:[#allocation3 + $0x10] sm:$0xff] %vm1630, %v8105
      %8128 = vst.msk [vmem:[#allocation3 + $0x20] sm:$0xff] %vm1630, %v8107
      %8129 = vst.msk [vmem:[#allocation3 + $0x30] sm:$0xff] %vm1630, %v8109
      %8130 = vst.msk [vmem:[#allocation3 + $0x40] sm:$0xff] %vm1630, %v8111
      %8131 = vst.msk [vmem:[#allocation3 + $0x50] sm:$0xff] %vm1630, %v8113
      %8132 = vst.msk [vmem:[#allocation3 + $0x60] sm:$0xff] %vm1630, %v8115
      %8133 = vst.msk [vmem:[#allocation3 + $0x70] sm:$0xff] %vm1630, %v8117
      %v8134 = vld [vmem:[%s1573 + $0x9] sm:$0xff]
      %v8135 = vld [vmem:[%s1573 + $0x21] sm:$0xff]
      %v8136 = vld [vmem:[%s1573 + $0x39] sm:$0xff]
      %v8137 = vld [vmem:[%s1573 + $0x51] sm:$0xff]
      %v8138 = vld [vmem:[%s1573 + $0x69] sm:$0xff]
      %v8139 = vld [vmem:[%s1573 + $0x81] sm:$0xff]
      %v8140 = vld [vmem:[%s1573 + $0x99] sm:$0xff]
      %v8141 = vld [vmem:[%s1573 + $0xb1] sm:$0xff]
      %8150 = vrot.lane.b32.xlu0 %v8134, 16
      %v8151 = vpop.permute.xlu0 %8150
      %8152 = vrot.lane.b32.xlu0 %v8135, 16
      %v8153 = vpop.permute.xlu0 %8152
      %8154 = vrot.lane.b32.xlu0 %v8136, 16
      %v8155 = vpop.permute.xlu0 %8154
      %8156 = vrot.lane.b32.xlu0 %v8137, 16
      %v8157 = vpop.permute.xlu0 %8156
      %8158 = vrot.lane.b32.xlu0 %v8138, 16
      %v8159 = vpop.permute.xlu0 %8158
      %8160 = vrot.lane.b32.xlu0 %v8139, 16
      %v8161 = vpop.permute.xlu0 %8160
      %8162 = vrot.lane.b32.xlu0 %v8140, 16
      %v8163 = vpop.permute.xlu0 %8162
      %8164 = vrot.lane.b32.xlu0 %v8141, 16
      %v8165 = vpop.permute.xlu0 %8164
      %8174 = vst.msk [vmem:[#allocation3] sm:$0xff] %vm1679, %v8151
      %8175 = vst.msk [vmem:[#allocation3 + $0x10] sm:$0xff] %vm1679, %v8153
      %8176 = vst.msk [vmem:[#allocation3 + $0x20] sm:$0xff] %vm1679, %v8155
      %8177 = vst.msk [vmem:[#allocation3 + $0x30] sm:$0xff] %vm1679, %v8157
      %8178 = vst.msk [vmem:[#allocation3 + $0x40] sm:$0xff] %vm1679, %v8159
      %8179 = vst.msk [vmem:[#allocation3 + $0x50] sm:$0xff] %vm1679, %v8161
      %8180 = vst.msk [vmem:[#allocation3 + $0x60] sm:$0xff] %vm1679, %v8163
      %8181 = vst.msk [vmem:[#allocation3 + $0x70] sm:$0xff] %vm1679, %v8165
      %v8182 = vld [vmem:[%s1564 + $0x7] sm:$0xff]
      %v8183 = vld [vmem:[%s1564 + $0x1f] sm:$0xff]
      %v8184 = vld [vmem:[%s1564 + $0x37] sm:$0xff]
      %v8185 = vld [vmem:[%s1564 + $0x4f] sm:$0xff]
      %v8186 = vld [vmem:[%s1564 + $0x67] sm:$0xff]
      %v8187 = vld [vmem:[%s1564 + $0x7f] sm:$0xff]
      %v8188 = vld [vmem:[%s1564 + $0x97] sm:$0xff]
      %v8189 = vld [vmem:[%s1564 + $0xaf] sm:$0xff]
      %8198 = vrot.lane.b32.xlu0 %v8182, 24
      %v8199 = vpop.permute.xlu0 %8198
      %8200 = vrot.lane.b32.xlu0 %v8183, 24
      %v8201 = vpop.permute.xlu0 %8200
      %8202 = vrot.lane.b32.xlu0 %v8184, 24
      %v8203 = vpop.permute.xlu0 %8202
      %8204 = vrot.lane.b32.xlu0 %v8185, 24
      %v8205 = vpop.permute.xlu0 %8204
      %8206 = vrot.lane.b32.xlu0 %v8186, 24
      %v8207 = vpop.permute.xlu0 %8206
      %8208 = vrot.lane.b32.xlu0 %v8187, 24
      %v8209 = vpop.permute.xlu0 %8208
      %8210 = vrot.lane.b32.xlu0 %v8188, 24
      %v8211 = vpop.permute.xlu0 %8210
      %8212 = vrot.lane.b32.xlu0 %v8189, 24
      %v8213 = vpop.permute.xlu0 %8212
      %8222 = vst.msk [vmem:[#allocation3] sm:$0xff] %vm1728, %v8199
      %8223 = vst.msk [vmem:[#allocation3 + $0x10] sm:$0xff] %vm1728, %v8201
      %8224 = vst.msk [vmem:[#allocation3 + $0x20] sm:$0xff] %vm1728, %v8203
      %8225 = vst.msk [vmem:[#allocation3 + $0x30] sm:$0xff] %vm1728, %v8205
      %8226 = vst.msk [vmem:[#allocation3 + $0x40] sm:$0xff] %vm1728, %v8207
      %8227 = vst.msk [vmem:[#allocation3 + $0x50] sm:$0xff] %vm1728, %v8209
      %8228 = vst.msk [vmem:[#allocation3 + $0x60] sm:$0xff] %vm1728, %v8211
      %8229 = vst.msk [vmem:[#allocation3 + $0x70] sm:$0xff] %vm1728, %v8213
      %v8230 = vld [vmem:[%s1564 + $0x8] sm:$0xff]
      %v8231 = vld [vmem:[%s1564 + $0x20] sm:$0xff]
      %v8232 = vld [vmem:[%s1564 + $0x38] sm:$0xff]
      %v8233 = vld [vmem:[%s1564 + $0x50] sm:$0xff]
      %v8234 = vld [vmem:[%s1564 + $0x68] sm:$0xff]
      %v8235 = vld [vmem:[%s1564 + $0x80] sm:$0xff]
      %v8236 = vld [vmem:[%s1564 + $0x98] sm:$0xff]
      %v8237 = vld [vmem:[%s1564 + $0xb0] sm:$0xff]
      %8246 = vrot.lane.b32.xlu0 %v8230, 32
      %v8247 = vpop.permute.xlu0 %8246
      %8248 = vrot.lane.b32.xlu0 %v8231, 32
      %v8249 = vpop.permute.xlu0 %8248
      %8250 = vrot.lane.b32.xlu0 %v8232, 32
      %v8251 = vpop.permute.xlu0 %8250
      %8252 = vrot.lane.b32.xlu0 %v8233, 32
      %v8253 = vpop.permute.xlu0 %8252
      %8254 = vrot.lane.b32.xlu0 %v8234, 32
      %v8255 = vpop.permute.xlu0 %8254
      %8256 = vrot.lane.b32.xlu0 %v8235, 32
      %v8257 = vpop.permute.xlu0 %8256
      %8258 = vrot.lane.b32.xlu0 %v8236, 32
      %v8259 = vpop.permute.xlu0 %8258
      %8260 = vrot.lane.b32.xlu0 %v8237, 32
      %v8261 = vpop.permute.xlu0 %8260
      %8270 = vst.msk [vmem:[#allocation3] sm:$0xff] %vm1777, %v8247
      %8271 = vst.msk [vmem:[#allocation3 + $0x10] sm:$0xff] %vm1777, %v8249
      %8272 = vst.msk [vmem:[#allocation3 + $0x20] sm:$0xff] %vm1777, %v8251
      %8273 = vst.msk [vmem:[#allocation3 + $0x30] sm:$0xff] %vm1777, %v8253
      %8274 = vst.msk [vmem:[#allocation3 + $0x40] sm:$0xff] %vm1777, %v8255
      %8275 = vst.msk [vmem:[#allocation3 + $0x50] sm:$0xff] %vm1777, %v8257
      %8276 = vst.msk [vmem:[#allocation3 + $0x60] sm:$0xff] %vm1777, %v8259
      %8277 = vst.msk [vmem:[#allocation3 + $0x70] sm:$0xff] %vm1777, %v8261
      %v8278 = vld [vmem:[%s1564 + $0x9] sm:$0xff]
      %v8279 = vld [vmem:[%s1564 + $0x21] sm:$0xff]
      %v8280 = vld [vmem:[%s1564 + $0x39] sm:$0xff]
      %v8281 = vld [vmem:[%s1564 + $0x51] sm:$0xff]
      %v8282 = vld [vmem:[%s1564 + $0x69] sm:$0xff]
      %v8283 = vld [vmem:[%s1564 + $0x81] sm:$0xff]
      %v8284 = vld [vmem:[%s1564 + $0x99] sm:$0xff]
      %v8285 = vld [vmem:[%s1564 + $0xb1] sm:$0xff]
      %8294 = vrot.lane.b32.xlu0 %v8278, 40
      %v8295 = vpop.permute.xlu0 %8294
      %8296 = vrot.lane.b32.xlu0 %v8279, 40
      %v8297 = vpop.permute.xlu0 %8296
      %8298 = vrot.lane.b32.xlu0 %v8280, 40
      %v8299 = vpop.permute.xlu0 %8298
      %8300 = vrot.lane.b32.xlu0 %v8281, 40
      %v8301 = vpop.permute.xlu0 %8300
      %8302 = vrot.lane.b32.xlu0 %v8282, 40
      %v8303 = vpop.permute.xlu0 %8302
      %8304 = vrot.lane.b32.xlu0 %v8283, 40
      %v8305 = vpop.permute.xlu0 %8304
      %8306 = vrot.lane.b32.xlu0 %v8284, 40
      %v8307 = vpop.permute.xlu0 %8306
      %8308 = vrot.lane.b32.xlu0 %v8285, 40
      %v8309 = vpop.permute.xlu0 %8308
      %8318 = vst.msk [vmem:[#allocation3] sm:$0xff] %vm1826, %v8295
      %8319 = vst.msk [vmem:[#allocation3 + $0x10] sm:$0xff] %vm1826, %v8297
      %8320 = vst.msk [vmem:[#allocation3 + $0x20] sm:$0xff] %vm1826, %v8299
      %8321 = vst.msk [vmem:[#allocation3 + $0x30] sm:$0xff] %vm1826, %v8301
      %8322 = vst.msk [vmem:[#allocation3 + $0x40] sm:$0xff] %vm1826, %v8303
      %8323 = vst.msk [vmem:[#allocation3 + $0x50] sm:$0xff] %vm1826, %v8305
      %8324 = vst.msk [vmem:[#allocation3 + $0x60] sm:$0xff] %vm1826, %v8307
      %8325 = vst.msk [vmem:[#allocation3 + $0x70] sm:$0xff] %vm1826, %v8309
      %v8326 = vld [vmem:[%s1835 + $0x7] sm:$0xff]
      %v8327 = vld [vmem:[%s1835 + $0x1f] sm:$0xff]
      %v8328 = vld [vmem:[%s1835 + $0x37] sm:$0xff]
      %v8329 = vld [vmem:[%s1835 + $0x4f] sm:$0xff]
      %v8330 = vld [vmem:[%s1835 + $0x67] sm:$0xff]
      %v8331 = vld [vmem:[%s1835 + $0x7f] sm:$0xff]
      %v8332 = vld [vmem:[%s1835 + $0x97] sm:$0xff]
      %v8333 = vld [vmem:[%s1835 + $0xaf] sm:$0xff]
      %8342 = vrot.lane.b32.xlu0 %v8326, 48
      %v8343 = vpop.permute.xlu0 %8342
      %8344 = vrot.lane.b32.xlu0 %v8327, 48
      %v8345 = vpop.permute.xlu0 %8344
      %8346 = vrot.lane.b32.xlu0 %v8328, 48
      %v8347 = vpop.permute.xlu0 %8346
      %8348 = vrot.lane.b32.xlu0 %v8329, 48
      %v8349 = vpop.permute.xlu0 %8348
      %8350 = vrot.lane.b32.xlu0 %v8330, 48
      %v8351 = vpop.permute.xlu0 %8350
      %8352 = vrot.lane.b32.xlu0 %v8331, 48
      %v8353 = vpop.permute.xlu0 %8352
      %8354 = vrot.lane.b32.xlu0 %v8332, 48
      %v8355 = vpop.permute.xlu0 %8354
      %8356 = vrot.lane.b32.xlu0 %v8333, 48
      %v8357 = vpop.permute.xlu0 %8356
      %8366 = vst.msk [vmem:[#allocation3] sm:$0xff] %vm1876, %v8343
      %8367 = vst.msk [vmem:[#allocation3 + $0x10] sm:$0xff] %vm1876, %v8345
      %8368 = vst.msk [vmem:[#allocation3 + $0x20] sm:$0xff] %vm1876, %v8347
      %8369 = vst.msk [vmem:[#allocation3 + $0x30] sm:$0xff] %vm1876, %v8349
      %8370 = vst.msk [vmem:[#allocation3 + $0x40] sm:$0xff] %vm1876, %v8351
      %8371 = vst.msk [vmem:[#allocation3 + $0x50] sm:$0xff] %vm1876, %v8353
      %8372 = vst.msk [vmem:[#allocation3 + $0x60] sm:$0xff] %vm1876, %v8355
      %8373 = vst.msk [vmem:[#allocation3 + $0x70] sm:$0xff] %vm1876, %v8357
      %v8374 = vld [vmem:[%s1835 + $0x8] sm:$0xff]
      %v8375 = vld [vmem:[%s1835 + $0x20] sm:$0xff]
      %v8376 = vld [vmem:[%s1835 + $0x38] sm:$0xff]
      %v8377 = vld [vmem:[%s1835 + $0x50] sm:$0xff]
      %v8378 = vld [vmem:[%s1835 + $0x68] sm:$0xff]
      %v8379 = vld [vmem:[%s1835 + $0x80] sm:$0xff]
      %v8380 = vld [vmem:[%s1835 + $0x98] sm:$0xff]
      %v8381 = vld [vmem:[%s1835 + $0xb0] sm:$0xff]
      %8390 = vrot.lane.b32.xlu0 %v8374, 56
      %v8391 = vpop.permute.xlu0 %8390
      %8392 = vrot.lane.b32.xlu0 %v8375, 56
      %v8393 = vpop.permute.xlu0 %8392
      %8394 = vrot.lane.b32.xlu0 %v8376, 56
      %v8395 = vpop.permute.xlu0 %8394
      %8396 = vrot.lane.b32.xlu0 %v8377, 56
      %v8397 = vpop.permute.xlu0 %8396
      %8398 = vrot.lane.b32.xlu0 %v8378, 56
      %v8399 = vpop.permute.xlu0 %8398
      %8400 = vrot.lane.b32.xlu0 %v8379, 56
      %v8401 = vpop.permute.xlu0 %8400
      %8402 = vrot.lane.b32.xlu0 %v8380, 56
      %v8403 = vpop.permute.xlu0 %8402
      %8404 = vrot.lane.b32.xlu0 %v8381, 56
      %v8405 = vpop.permute.xlu0 %8404
      %8414 = vst.msk [vmem:[#allocation3] sm:$0xff] %vm1925, %v8391
      %8415 = vst.msk [vmem:[#allocation3 + $0x10] sm:$0xff] %vm1925, %v8393
      %8416 = vst.msk [vmem:[#allocation3 + $0x20] sm:$0xff] %vm1925, %v8395
      %8417 = vst.msk [vmem:[#allocation3 + $0x30] sm:$0xff] %vm1925, %v8397
      %8418 = vst.msk [vmem:[#allocation3 + $0x40] sm:$0xff] %vm1925, %v8399
      %8419 = vst.msk [vmem:[#allocation3 + $0x50] sm:$0xff] %vm1925, %v8401
      %8420 = vst.msk [vmem:[#allocation3 + $0x60] sm:$0xff] %vm1925, %v8403
      %8421 = vst.msk [vmem:[#allocation3 + $0x70] sm:$0xff] %vm1925, %v8405
      %v8422 = vld [vmem:[%s1835 + $0x9] sm:$0xff]
      %v8423 = vld [vmem:[%s1835 + $0x21] sm:$0xff]
      %v8424 = vld [vmem:[%s1835 + $0x39] sm:$0xff]
      %v8425 = vld [vmem:[%s1835 + $0x51] sm:$0xff]
      %v8426 = vld [vmem:[%s1835 + $0x69] sm:$0xff]
      %v8427 = vld [vmem:[%s1835 + $0x81] sm:$0xff]
      %v8428 = vld [vmem:[%s1835 + $0x99] sm:$0xff]
      %v8429 = vld [vmem:[%s1835 + $0xb1] sm:$0xff]
      %8438 = vrot.lane.b32.xlu0 %v8422, 64
      %v8439 = vpop.permute.xlu0 %8438
      %8440 = vrot.lane.b32.xlu0 %v8423, 64
      %v8441 = vpop.permute.xlu0 %8440
      %8442 = vrot.lane.b32.xlu0 %v8424, 64
      %v8443 = vpop.permute.xlu0 %8442
      %8444 = vrot.lane.b32.xlu0 %v8425, 64
      %v8445 = vpop.permute.xlu0 %8444
      %8446 = vrot.lane.b32.xlu0 %v8426, 64
      %v8447 = vpop.permute.xlu0 %8446
      %8448 = vrot.lane.b32.xlu0 %v8427, 64
      %v8449 = vpop.permute.xlu0 %8448
      %8450 = vrot.lane.b32.xlu0 %v8428, 64
      %v8451 = vpop.permute.xlu0 %8450
      %8452 = vrot.lane.b32.xlu0 %v8429, 64
      %v8453 = vpop.permute.xlu0 %8452
      %8462 = vst.msk [vmem:[#allocation3] sm:$0xff] %vm1974, %v8439
      %8463 = vst.msk [vmem:[#allocation3 + $0x10] sm:$0xff] %vm1974, %v8441
      %8464 = vst.msk [vmem:[#allocation3 + $0x20] sm:$0xff] %vm1974, %v8443
      %8465 = vst.msk [vmem:[#allocation3 + $0x30] sm:$0xff] %vm1974, %v8445
      %8466 = vst.msk [vmem:[#allocation3 + $0x40] sm:$0xff] %vm1974, %v8447
      %8467 = vst.msk [vmem:[#allocation3 + $0x50] sm:$0xff] %vm1974, %v8449
      %8468 = vst.msk [vmem:[#allocation3 + $0x60] sm:$0xff] %vm1974, %v8451
      %8469 = vst.msk [vmem:[#allocation3 + $0x70] sm:$0xff] %vm1974, %v8453
      %v8470 = vld [vmem:[#allocation3] sm:$0xff]
      %v8471 = vld [vmem:[#allocation3 + $0x8] sm:$0xff]
      %v8472 = vld [vmem:[#allocation3 + $0x10] sm:$0xff]
      %v8473 = vld [vmem:[#allocation3 + $0x18] sm:$0xff]
      %v8474 = vld [vmem:[#allocation3 + $0x20] sm:$0xff]
      %v8475 = vld [vmem:[#allocation3 + $0x28] sm:$0xff]
      %v8476 = vld [vmem:[#allocation3 + $0x30] sm:$0xff]
      %v8477 = vld [vmem:[#allocation3 + $0x38] sm:$0xff]
      %v8478 = vld [vmem:[#allocation3 + $0x40] sm:$0xff]
      %v8479 = vld [vmem:[#allocation3 + $0x48] sm:$0xff]
      %v8480 = vld [vmem:[#allocation3 + $0x50] sm:$0xff]
      %v8481 = vld [vmem:[#allocation3 + $0x58] sm:$0xff]
      %v8482 = vld [vmem:[#allocation3 + $0x60] sm:$0xff]
      %v8483 = vld [vmem:[#allocation3 + $0x68] sm:$0xff]
      %v8484 = vld [vmem:[#allocation3 + $0x70] sm:$0xff]
      %v8485 = vld [vmem:[#allocation3 + $0x78] sm:$0xff]
      %s8486 = scalar_lea.vmem %s3, 600
      %v8487 = vld [vmem:[%s8486] sm:$0xff]
      %v8488 = vld [vmem:[%s8486 + $0x8] sm:$0xff]
      %v8489 = vld [vmem:[%s8486 + $0x10] sm:$0xff]
      %v8490 = vld [vmem:[%s8486 + $0x18] sm:$0xff]
      %v8491 = vld [vmem:[%s8486 + $0x20] sm:$0xff]
      %v8492 = vld [vmem:[%s8486 + $0x28] sm:$0xff]
      %v8493 = vld [vmem:[%s8486 + $0x30] sm:$0xff]
      %v8494 = vld [vmem:[%s8486 + $0x38] sm:$0xff]
      %v8495 = vld [vmem:[%s8486 + $0x40] sm:$0xff]
      %v8496 = vld [vmem:[%s8486 + $0x48] sm:$0xff]
      %v8497 = vld [vmem:[%s8486 + $0x50] sm:$0xff]
      %v8498 = vld [vmem:[%s8486 + $0x58] sm:$0xff]
      %v8499 = vld [vmem:[%s8486 + $0x60] sm:$0xff]
      %v8500 = vld [vmem:[%s8486 + $0x68] sm:$0xff]
      %v8501 = vld [vmem:[%s8486 + $0x70] sm:$0xff]
      %v8502 = vld [vmem:[%s8486 + $0x78] sm:$0xff]
      %v8503 = vld [vmem:[%s8486 + $0x80] sm:$0xff]
      %v8504 = vld [vmem:[%s8486 + $0x88] sm:$0xff]
      %v8505 = vld [vmem:[%s8486 + $0x90] sm:$0xff]
      %v8506 = vld [vmem:[%s8486 + $0x98] sm:$0xff]
      %v8507 = vld [vmem:[%s8486 + $0xa0] sm:$0xff]
      %v8508 = vld [vmem:[%s8486 + $0xa8] sm:$0xff]
      %v8509 = vld [vmem:[%s8486 + $0xb0] sm:$0xff]
      %v8510 = vld [vmem:[%s8486 + $0xb8] sm:$0xff]
      %v8511 = vld [vmem:[%s8486 + $0xc0] sm:$0xff]
      %v8513 = vsel %vm324, %v8471, 0
      %v8516 = vsel %vm324, %v8473, 0
      %v8519 = vsel %vm324, %v8475, 0
      %v8522 = vsel %vm324, %v8477, 0
      %v8525 = vsel %vm324, %v8479, 0
      %v8528 = vsel %vm324, %v8481, 0
      %v8531 = vsel %vm324, %v8483, 0
      %v8534 = vsel %vm324, %v8485, 0
      %8536 = vmatprep.subr.mxu0 0.0
      %v8537 = vand.u32 %v8502, 4294901760
      %8538 = vmatpush1.msra.mxu0 %v8537
      %8539 = vmatprep.subr.mxu0 0.0
      %v8540 = vand.u32 %v8501, 4294901760
      %8541 = vmatpush1.msra.mxu0 %v8540
      %8542 = vmatprep.subr.mxu0 0.0
      %v8543 = vand.u32 %v8500, 4294901760
      %8544 = vmatpush1.msra.mxu0 %v8543
      %8545 = vmatprep.subr.mxu0 0.0
      %v8546 = vand.u32 %v8499, 4294901760
      %8547 = vmatpush1.msra.mxu0 %v8546
      %8548 = vmatprep.subr.mxu0 0.0
      %v8549 = vand.u32 %v8498, 4294901760
      %8550 = vmatpush1.msra.mxu0 %v8549
      %8551 = vmatprep.subr.mxu0 0.0
      %v8552 = vand.u32 %v8497, 4294901760
      %8553 = vmatpush1.msra.mxu0 %v8552
      %8554 = vmatprep.subr.mxu0 0.0
      %v8555 = vand.u32 %v8496, 4294901760
      %8556 = vmatpush1.msra.mxu0 %v8555
      %8557 = vmatprep.subr.mxu0 0.0
      %v8558 = vand.u32 %v8495, 4294901760
      %8559 = vmatpush1.msra.mxu0 %v8558
      %8560 = vmatprep.subr.mxu0 0.0
      %v8561 = vand.u32 %v8494, 4294901760
      %8562 = vmatpush1.msra.mxu0 %v8561
      %8563 = vmatprep.subr.mxu0 0.0
      %v8564 = vand.u32 %v8493, 4294901760
      %8565 = vmatpush1.msra.mxu0 %v8564
      %8566 = vmatprep.subr.mxu0 0.0
      %v8567 = vand.u32 %v8492, 4294901760
      %8568 = vmatpush1.msra.mxu0 %v8567
      %8569 = vmatprep.subr.mxu0 0.0
      %v8570 = vand.u32 %v8491, 4294901760
      %8571 = vmatpush1.msra.mxu0 %v8570
      %8572 = vmatprep.subr.mxu0 0.0
      %v8573 = vand.u32 %v8490, 4294901760
      %8574 = vmatpush1.msra.mxu0 %v8573
      %8575 = vmatprep.subr.mxu0 0.0
      %v8576 = vand.u32 %v8489, 4294901760
      %8577 = vmatpush1.msra.mxu0 %v8576
      %8578 = vmatprep.subr.mxu0 0.0
      %v8579 = vand.u32 %v8488, 4294901760
      %8580 = vmatpush1.msra.mxu0 %v8579
      %8581 = vmatprep.subr.mxu0 0.0
      %v8582 = vand.u32 %v8487, 4294901760
      %8583 = vmatpush1.msra.mxu0 %v8582
      %8584 = vmatprep.subr.mxu0 0.0
      %8585 = vmatpush2.msra.mxu0 0.0
      %8586 = vmatprep.subr.mxu0 0.0
      %8587 = vmatpush2.msra.mxu0 0.0
      %8588 = vmatprep.subr.mxu0 0.0
      %8589 = vmatpush2.msra.mxu0 0.0
      %8590 = vmatprep.subr.mxu0 0.0
      %8591 = vmatpush2.msra.mxu0 0.0
      %8592 = vmatprep.subr.mxu0 0.0
      %8593 = vmatpush2.msra.mxu0 0.0
      %8594 = vmatprep.subr.mxu0 0.0
      %8595 = vmatpush2.msra.mxu0 0.0
      %8596 = vmatprep.subr.mxu0 0.0
      %8597 = vmatpush2.msra.mxu0 0.0
      %8598 = vmatprep.subr.mxu0 0.0
      %v8599 = vand.u32 %v8511, 4294901760
      %8600 = vmatpush2.msra.mxu0 %v8599
      %8601 = vmatprep.subr.mxu0 0.0
      %v8602 = vand.u32 %v8510, 4294901760
      %8603 = vmatpush2.msra.mxu0 %v8602
      %8604 = vmatprep.subr.mxu0 0.0
      %v8605 = vand.u32 %v8509, 4294901760
      %8606 = vmatpush2.msra.mxu0 %v8605
      %8607 = vmatprep.subr.mxu0 0.0
      %v8608 = vand.u32 %v8508, 4294901760
      %8609 = vmatpush2.msra.mxu0 %v8608
      %8610 = vmatprep.subr.mxu0 0.0
      %v8611 = vand.u32 %v8507, 4294901760
      %8612 = vmatpush2.msra.mxu0 %v8611
      %8613 = vmatprep.subr.mxu0 0.0
      %v8614 = vand.u32 %v8506, 4294901760
      %8615 = vmatpush2.msra.mxu0 %v8614
      %8616 = vmatprep.subr.mxu0 0.0
      %v8617 = vand.u32 %v8505, 4294901760
      %8618 = vmatpush2.msra.mxu0 %v8617
      %8619 = vmatprep.subr.mxu0 0.0
      %v8620 = vand.u32 %v8504, 4294901760
      %8621 = vmatpush2.msra.mxu0 %v8620
      %8622 = vmatprep.subr.mxu0 0.0
      %v8623 = vand.u32 %v8503, 4294901760
      %8624 = vmatpush2.msra.mxu0 %v8623
      %v8625 = vand.u32 %v8513, 4294901760
      %v8626 = vsub.f32 %v8513, %v8625
      %v8627 = vand.u32 %v8626, 4294901760
      %v8628 = vsub.f32 %v8626, %v8627
      %v8629 = vand.u32 %v8628, 4294901760
      %8630 = vmatprep.mubr.f32.mxu0 %v8629
      %v8631 = vand.u32 %v8470, 4294901760
      %v8632 = vsub.f32 %v8470, %v8631
      %v8633 = vand.u32 %v8632, 4294901760
      %v8634 = vsub.f32 %v8632, %v8633
      %v8635 = vand.u32 %v8634, 4294901760
      %8636 = vmatmul.mubr.f32.gmra.mxu0 %v8635
      %v8637 = vpop.f32.mrf.mxu0
      %v8638 = vadd.f32 0.0, %v8637
      %v8639 = vpop.f32.mrf.mxu0
      %v8640 = vand.u32 %v8516, 4294901760
      %v8641 = vsub.f32 %v8516, %v8640
      %v8642 = vand.u32 %v8641, 4294901760
      %v8643 = vsub.f32 %v8641, %v8642
      %v8644 = vand.u32 %v8643, 4294901760
      %8645 = vmatprep.mubr.f32.mxu0 %v8644
      %v8646 = vand.u32 %v8472, 4294901760
      %v8647 = vsub.f32 %v8472, %v8646
      %v8648 = vand.u32 %v8647, 4294901760
      %v8649 = vsub.f32 %v8647, %v8648
      %v8650 = vand.u32 %v8649, 4294901760
      %8651 = vmatmul.mubr.f32.gmra.mxu0 %v8650
      %v8652 = vpop.f32.mrf.mxu0
      %v8653 = vadd.f32 0.0, %v8652
      %v8654 = vpop.f32.mrf.mxu0
      %v8655 = vand.u32 %v8519, 4294901760
      %v8656 = vsub.f32 %v8519, %v8655
      %v8657 = vand.u32 %v8656, 4294901760
      %v8658 = vsub.f32 %v8656, %v8657
      %v8659 = vand.u32 %v8658, 4294901760
      %8660 = vmatprep.mubr.f32.mxu0 %v8659
      %v8661 = vand.u32 %v8474, 4294901760
      %v8662 = vsub.f32 %v8474, %v8661
      %v8663 = vand.u32 %v8662, 4294901760
      %v8664 = vsub.f32 %v8662, %v8663
      %v8665 = vand.u32 %v8664, 4294901760
      %8666 = vmatmul.mubr.f32.gmra.mxu0 %v8665
      %v8667 = vpop.f32.mrf.mxu0
      %v8668 = vadd.f32 0.0, %v8667
      %v8669 = vpop.f32.mrf.mxu0
      %v8670 = vand.u32 %v8522, 4294901760
      %v8671 = vsub.f32 %v8522, %v8670
      %v8672 = vand.u32 %v8671, 4294901760
      %v8673 = vsub.f32 %v8671, %v8672
      %v8674 = vand.u32 %v8673, 4294901760
      %8675 = vmatprep.mubr.f32.mxu0 %v8674
      %v8676 = vand.u32 %v8476, 4294901760
      %v8677 = vsub.f32 %v8476, %v8676
      %v8678 = vand.u32 %v8677, 4294901760
      %v8679 = vsub.f32 %v8677, %v8678
      %v8680 = vand.u32 %v8679, 4294901760
      %8681 = vmatmul.mubr.f32.gmra.mxu0 %v8680
      %v8682 = vpop.f32.mrf.mxu0
      %v8683 = vadd.f32 0.0, %v8682
      %v8684 = vpop.f32.mrf.mxu0
      %v8685 = vand.u32 %v8525, 4294901760
      %v8686 = vsub.f32 %v8525, %v8685
      %v8687 = vand.u32 %v8686, 4294901760
      %v8688 = vsub.f32 %v8686, %v8687
      %v8689 = vand.u32 %v8688, 4294901760
      %8690 = vmatprep.mubr.f32.mxu0 %v8689
      %v8691 = vand.u32 %v8478, 4294901760
      %v8692 = vsub.f32 %v8478, %v8691
      %v8693 = vand.u32 %v8692, 4294901760
      %v8694 = vsub.f32 %v8692, %v8693
      %v8695 = vand.u32 %v8694, 4294901760
      %8696 = vmatmul.mubr.f32.gmra.mxu0 %v8695
      %v8697 = vpop.f32.mrf.mxu0
      %v8698 = vadd.f32 0.0, %v8697
      %v8699 = vpop.f32.mrf.mxu0
      %v8700 = vand.u32 %v8528, 4294901760
      %v8701 = vsub.f32 %v8528, %v8700
      %v8702 = vand.u32 %v8701, 4294901760
      %v8703 = vsub.f32 %v8701, %v8702
      %v8704 = vand.u32 %v8703, 4294901760
      %8705 = vmatprep.mubr.f32.mxu0 %v8704
      %v8706 = vand.u32 %v8480, 4294901760
      %v8707 = vsub.f32 %v8480, %v8706
      %v8708 = vand.u32 %v8707, 4294901760
      %v8709 = vsub.f32 %v8707, %v8708
      %v8710 = vand.u32 %v8709, 4294901760
      %8711 = vmatmul.mubr.f32.gmra.mxu0 %v8710
      %v8712 = vpop.f32.mrf.mxu0
      %v8713 = vadd.f32 0.0, %v8712
      %v8714 = vpop.f32.mrf.mxu0
      %v8715 = vand.u32 %v8531, 4294901760
      %v8716 = vsub.f32 %v8531, %v8715
      %v8717 = vand.u32 %v8716, 4294901760
      %v8718 = vsub.f32 %v8716, %v8717
      %v8719 = vand.u32 %v8718, 4294901760
      %8720 = vmatprep.mubr.f32.mxu0 %v8719
      %v8721 = vand.u32 %v8482, 4294901760
      %v8722 = vsub.f32 %v8482, %v8721
      %v8723 = vand.u32 %v8722, 4294901760
      %v8724 = vsub.f32 %v8722, %v8723
      %v8725 = vand.u32 %v8724, 4294901760
      %8726 = vmatmul.mubr.f32.gmra.mxu0 %v8725
      %v8727 = vpop.f32.mrf.mxu0
      %v8728 = vadd.f32 0.0, %v8727
      %v8729 = vpop.f32.mrf.mxu0
      %v8730 = vand.u32 %v8534, 4294901760
      %v8731 = vsub.f32 %v8534, %v8730
      %v8732 = vand.u32 %v8731, 4294901760
      %v8733 = vsub.f32 %v8731, %v8732
      %v8734 = vand.u32 %v8733, 4294901760
      %8735 = vmatprep.mubr.f32.mxu0 %v8734
      %v8736 = vand.u32 %v8484, 4294901760
      %v8737 = vsub.f32 %v8484, %v8736
      %v8738 = vand.u32 %v8737, 4294901760
      %v8739 = vsub.f32 %v8737, %v8738
      %v8740 = vand.u32 %v8739, 4294901760
      %8741 = vmatmul.mubr.f32.gmra.mxu0 %v8740
      %v8742 = vpop.f32.mrf.mxu0
      %v8743 = vadd.f32 0.0, %v8742
      %v8744 = vpop.f32.mrf.mxu0
      %8745 = vdwg.mxu0
      %8746 = vmatprep.subr.mxu0 0.0
      %v8747 = vand.u32 %v8502, 4294901760
      %v8748 = vsub.f32 %v8502, %v8747
      %v8749 = vand.u32 %v8748, 4294901760
      %v8750 = vsub.f32 %v8748, %v8749
      %v8751 = vand.u32 %v8750, 4294901760
      %8752 = vmatpush1.msra.mxu0 %v8751
      %8753 = vmatprep.subr.mxu0 0.0
      %v8754 = vand.u32 %v8501, 4294901760
      %v8755 = vsub.f32 %v8501, %v8754
      %v8756 = vand.u32 %v8755, 4294901760
      %v8757 = vsub.f32 %v8755, %v8756
      %v8758 = vand.u32 %v8757, 4294901760
      %8759 = vmatpush1.msra.mxu0 %v8758
      %8760 = vmatprep.subr.mxu0 0.0
      %v8761 = vand.u32 %v8500, 4294901760
      %v8762 = vsub.f32 %v8500, %v8761
      %v8763 = vand.u32 %v8762, 4294901760
      %v8764 = vsub.f32 %v8762, %v8763
      %v8765 = vand.u32 %v8764, 4294901760
      %8766 = vmatpush1.msra.mxu0 %v8765
      %8767 = vmatprep.subr.mxu0 0.0
      %v8768 = vand.u32 %v8499, 4294901760
      %v8769 = vsub.f32 %v8499, %v8768
      %v8770 = vand.u32 %v8769, 4294901760
      %v8771 = vsub.f32 %v8769, %v8770
      %v8772 = vand.u32 %v8771, 4294901760
      %8773 = vmatpush1.msra.mxu0 %v8772
      %8774 = vmatprep.subr.mxu0 0.0
      %v8775 = vand.u32 %v8498, 4294901760
      %v8776 = vsub.f32 %v8498, %v8775
      %v8777 = vand.u32 %v8776, 4294901760
      %v8778 = vsub.f32 %v8776, %v8777
      %v8779 = vand.u32 %v8778, 4294901760
      %8780 = vmatpush1.msra.mxu0 %v8779
      %8781 = vmatprep.subr.mxu0 0.0
      %v8782 = vand.u32 %v8497, 4294901760
      %v8783 = vsub.f32 %v8497, %v8782
      %v8784 = vand.u32 %v8783, 4294901760
      %v8785 = vsub.f32 %v8783, %v8784
      %v8786 = vand.u32 %v8785, 4294901760
      %8787 = vmatpush1.msra.mxu0 %v8786
      %8788 = vmatprep.subr.mxu0 0.0
      %v8789 = vand.u32 %v8496, 4294901760
      %v8790 = vsub.f32 %v8496, %v8789
      %v8791 = vand.u32 %v8790, 4294901760
      %v8792 = vsub.f32 %v8790, %v8791
      %v8793 = vand.u32 %v8792, 4294901760
      %8794 = vmatpush1.msra.mxu0 %v8793
      %8795 = vmatprep.subr.mxu0 0.0
      %v8796 = vand.u32 %v8495, 4294901760
      %v8797 = vsub.f32 %v8495, %v8796
      %v8798 = vand.u32 %v8797, 4294901760
      %v8799 = vsub.f32 %v8797, %v8798
      %v8800 = vand.u32 %v8799, 4294901760
      %8801 = vmatpush1.msra.mxu0 %v8800
      %8802 = vmatprep.subr.mxu0 0.0
      %v8803 = vand.u32 %v8494, 4294901760
      %v8804 = vsub.f32 %v8494, %v8803
      %v8805 = vand.u32 %v8804, 4294901760
      %v8806 = vsub.f32 %v8804, %v8805
      %v8807 = vand.u32 %v8806, 4294901760
      %8808 = vmatpush1.msra.mxu0 %v8807
      %8809 = vmatprep.subr.mxu0 0.0
      %v8810 = vand.u32 %v8493, 4294901760
      %v8811 = vsub.f32 %v8493, %v8810
      %v8812 = vand.u32 %v8811, 4294901760
      %v8813 = vsub.f32 %v8811, %v8812
      %v8814 = vand.u32 %v8813, 4294901760
      %8815 = vmatpush1.msra.mxu0 %v8814
      %8816 = vmatprep.subr.mxu0 0.0
      %v8817 = vand.u32 %v8492, 4294901760
      %v8818 = vsub.f32 %v8492, %v8817
      %v8819 = vand.u32 %v8818, 4294901760
      %v8820 = vsub.f32 %v8818, %v8819
      %v8821 = vand.u32 %v8820, 4294901760
      %8822 = vmatpush1.msra.mxu0 %v8821
      %8823 = vmatprep.subr.mxu0 0.0
      %v8824 = vand.u32 %v8491, 4294901760
      %v8825 = vsub.f32 %v8491, %v8824
      %v8826 = vand.u32 %v8825, 4294901760
      %v8827 = vsub.f32 %v8825, %v8826
      %v8828 = vand.u32 %v8827, 4294901760
      %8829 = vmatpush1.msra.mxu0 %v8828
      %8830 = vmatprep.subr.mxu0 0.0
      %v8831 = vand.u32 %v8490, 4294901760
      %v8832 = vsub.f32 %v8490, %v8831
      %v8833 = vand.u32 %v8832, 4294901760
      %v8834 = vsub.f32 %v8832, %v8833
      %v8835 = vand.u32 %v8834, 4294901760
      %8836 = vmatpush1.msra.mxu0 %v8835
      %8837 = vmatprep.subr.mxu0 0.0
      %v8838 = vand.u32 %v8489, 4294901760
      %v8839 = vsub.f32 %v8489, %v8838
      %v8840 = vand.u32 %v8839, 4294901760
      %v8841 = vsub.f32 %v8839, %v8840
      %v8842 = vand.u32 %v8841, 4294901760
      %8843 = vmatpush1.msra.mxu0 %v8842
      %8844 = vmatprep.subr.mxu0 0.0
      %v8845 = vand.u32 %v8488, 4294901760
      %v8846 = vsub.f32 %v8488, %v8845
      %v8847 = vand.u32 %v8846, 4294901760
      %v8848 = vsub.f32 %v8846, %v8847
      %v8849 = vand.u32 %v8848, 4294901760
      %8850 = vmatpush1.msra.mxu0 %v8849
      %8851 = vmatprep.subr.mxu0 0.0
      %v8852 = vand.u32 %v8487, 4294901760
      %v8853 = vsub.f32 %v8487, %v8852
      %v8854 = vand.u32 %v8853, 4294901760
      %v8855 = vsub.f32 %v8853, %v8854
      %v8856 = vand.u32 %v8855, 4294901760
      %8857 = vmatpush1.msra.mxu0 %v8856
      %8858 = vmatprep.subr.mxu0 0.0
      %8859 = vmatpush2.msra.mxu0 0.0
      %8860 = vmatprep.subr.mxu0 0.0
      %8861 = vmatpush2.msra.mxu0 0.0
      %8862 = vmatprep.subr.mxu0 0.0
      %8863 = vmatpush2.msra.mxu0 0.0
      %8864 = vmatprep.subr.mxu0 0.0
      %8865 = vmatpush2.msra.mxu0 0.0
      %8866 = vmatprep.subr.mxu0 0.0
      %8867 = vmatpush2.msra.mxu0 0.0
      %8868 = vmatprep.subr.mxu0 0.0
      %8869 = vmatpush2.msra.mxu0 0.0
      %8870 = vmatprep.subr.mxu0 0.0
      %8871 = vmatpush2.msra.mxu0 0.0
      %8872 = vmatprep.subr.mxu0 0.0
      %v8873 = vand.u32 %v8511, 4294901760
      %v8874 = vsub.f32 %v8511, %v8873
      %v8875 = vand.u32 %v8874, 4294901760
      %v8876 = vsub.f32 %v8874, %v8875
      %v8877 = vand.u32 %v8876, 4294901760
      %8878 = vmatpush2.msra.mxu0 %v8877
      %8879 = vmatprep.subr.mxu0 0.0
      %v8880 = vand.u32 %v8510, 4294901760
      %v8881 = vsub.f32 %v8510, %v8880
      %v8882 = vand.u32 %v8881, 4294901760
      %v8883 = vsub.f32 %v8881, %v8882
      %v8884 = vand.u32 %v8883, 4294901760
      %8885 = vmatpush2.msra.mxu0 %v8884
      %8886 = vmatprep.subr.mxu0 0.0
      %v8887 = vand.u32 %v8509, 4294901760
      %v8888 = vsub.f32 %v8509, %v8887
      %v8889 = vand.u32 %v8888, 4294901760
      %v8890 = vsub.f32 %v8888, %v8889
      %v8891 = vand.u32 %v8890, 4294901760
      %8892 = vmatpush2.msra.mxu0 %v8891
      %8893 = vmatprep.subr.mxu0 0.0
      %v8894 = vand.u32 %v8508, 4294901760
      %v8895 = vsub.f32 %v8508, %v8894
      %v8896 = vand.u32 %v8895, 4294901760
      %v8897 = vsub.f32 %v8895, %v8896
      %v8898 = vand.u32 %v8897, 4294901760
      %8899 = vmatpush2.msra.mxu0 %v8898
      %8900 = vmatprep.subr.mxu0 0.0
      %v8901 = vand.u32 %v8507, 4294901760
      %v8902 = vsub.f32 %v8507, %v8901
      %v8903 = vand.u32 %v8902, 4294901760
      %v8904 = vsub.f32 %v8902, %v8903
      %v8905 = vand.u32 %v8904, 4294901760
      %8906 = vmatpush2.msra.mxu0 %v8905
      %8907 = vmatprep.subr.mxu0 0.0
      %v8908 = vand.u32 %v8506, 4294901760
      %v8909 = vsub.f32 %v8506, %v8908
      %v8910 = vand.u32 %v8909, 4294901760
      %v8911 = vsub.f32 %v8909, %v8910
      %v8912 = vand.u32 %v8911, 4294901760
      %8913 = vmatpush2.msra.mxu0 %v8912
      %8914 = vmatprep.subr.mxu0 0.0
      %v8915 = vand.u32 %v8505, 4294901760
      %v8916 = vsub.f32 %v8505, %v8915
      %v8917 = vand.u32 %v8916, 4294901760
      %v8918 = vsub.f32 %v8916, %v8917
      %v8919 = vand.u32 %v8918, 4294901760
      %8920 = vmatpush2.msra.mxu0 %v8919
      %8921 = vmatprep.subr.mxu0 0.0
      %v8922 = vand.u32 %v8504, 4294901760
      %v8923 = vsub.f32 %v8504, %v8922
      %v8924 = vand.u32 %v8923, 4294901760
      %v8925 = vsub.f32 %v8923, %v8924
      %v8926 = vand.u32 %v8925, 4294901760
      %8927 = vmatpush2.msra.mxu0 %v8926
      %8928 = vmatprep.subr.mxu0 0.0
      %v8929 = vand.u32 %v8503, 4294901760
      %v8930 = vsub.f32 %v8503, %v8929
      %v8931 = vand.u32 %v8930, 4294901760
      %v8932 = vsub.f32 %v8930, %v8931
      %v8933 = vand.u32 %v8932, 4294901760
      %8934 = vmatpush2.msra.mxu0 %v8933
      %v8935 = vand.u32 %v8513, 4294901760
      %8936 = vmatprep.mubr.f32.mxu0 %v8935
      %v8937 = vand.u32 %v8470, 4294901760
      %8938 = vmatmul.mubr.f32.gmra.mxu0 %v8937
      %v8939 = vpop.f32.mrf.mxu0
      %v8940 = vadd.f32 %v8638, %v8939
      %v8941 = vpop.f32.mrf.mxu0
      %v8942 = vand.u32 %v8516, 4294901760
      %8943 = vmatprep.mubr.f32.mxu0 %v8942
      %v8944 = vand.u32 %v8472, 4294901760
      %8945 = vmatmul.mubr.f32.gmra.mxu0 %v8944
      %v8946 = vpop.f32.mrf.mxu0
      %v8947 = vadd.f32 %v8653, %v8946
      %v8948 = vpop.f32.mrf.mxu0
      %v8949 = vand.u32 %v8519, 4294901760
      %8950 = vmatprep.mubr.f32.mxu0 %v8949
      %v8951 = vand.u32 %v8474, 4294901760
      %8952 = vmatmul.mubr.f32.gmra.mxu0 %v8951
      %v8953 = vpop.f32.mrf.mxu0
      %v8954 = vadd.f32 %v8668, %v8953
      %v8955 = vpop.f32.mrf.mxu0
      %v8956 = vand.u32 %v8522, 4294901760
      %8957 = vmatprep.mubr.f32.mxu0 %v8956
      %v8958 = vand.u32 %v8476, 4294901760
      %8959 = vmatmul.mubr.f32.gmra.mxu0 %v8958
      %v8960 = vpop.f32.mrf.mxu0
      %v8961 = vadd.f32 %v8683, %v8960
      %v8962 = vpop.f32.mrf.mxu0
      %v8963 = vand.u32 %v8525, 4294901760
      %8964 = vmatprep.mubr.f32.mxu0 %v8963
      %v8965 = vand.u32 %v8478, 4294901760
      %8966 = vmatmul.mubr.f32.gmra.mxu0 %v8965
      %v8967 = vpop.f32.mrf.mxu0
      %v8968 = vadd.f32 %v8698, %v8967
      %v8969 = vpop.f32.mrf.mxu0
      %v8970 = vand.u32 %v8528, 4294901760
      %8971 = vmatprep.mubr.f32.mxu0 %v8970
      %v8972 = vand.u32 %v8480, 4294901760
      %8973 = vmatmul.mubr.f32.gmra.mxu0 %v8972
      %v8974 = vpop.f32.mrf.mxu0
      %v8975 = vadd.f32 %v8713, %v8974
      %v8976 = vpop.f32.mrf.mxu0
      %v8977 = vand.u32 %v8531, 4294901760
      %8978 = vmatprep.mubr.f32.mxu0 %v8977
      %v8979 = vand.u32 %v8482, 4294901760
      %8980 = vmatmul.mubr.f32.gmra.mxu0 %v8979
      %v8981 = vpop.f32.mrf.mxu0
      %v8982 = vadd.f32 %v8728, %v8981
      %v8983 = vpop.f32.mrf.mxu0
      %v8984 = vand.u32 %v8534, 4294901760
      %8985 = vmatprep.mubr.f32.mxu0 %v8984
      %v8986 = vand.u32 %v8484, 4294901760
      %8987 = vmatmul.mubr.f32.gmra.mxu0 %v8986
      %v8988 = vpop.f32.mrf.mxu0
      %v8989 = vadd.f32 %v8743, %v8988
      %v8990 = vpop.f32.mrf.mxu0
      %8991 = vdwg.mxu0
      %8992 = vmatprep.subr.mxu0 0.0
      %v8993 = vand.u32 %v8502, 4294901760
      %v8994 = vsub.f32 %v8502, %v8993
      %8995 = vmatpush1.msra.mxu0 %v8994
      %8996 = vmatprep.subr.mxu0 0.0
      %v8997 = vand.u32 %v8501, 4294901760
      %v8998 = vsub.f32 %v8501, %v8997
      %8999 = vmatpush1.msra.mxu0 %v8998
      %9000 = vmatprep.subr.mxu0 0.0
      %v9001 = vand.u32 %v8500, 4294901760
      %v9002 = vsub.f32 %v8500, %v9001
      %9003 = vmatpush1.msra.mxu0 %v9002
      %9004 = vmatprep.subr.mxu0 0.0
      %v9005 = vand.u32 %v8499, 4294901760
      %v9006 = vsub.f32 %v8499, %v9005
      %9007 = vmatpush1.msra.mxu0 %v9006
      %9008 = vmatprep.subr.mxu0 0.0
      %v9009 = vand.u32 %v8498, 4294901760
      %v9010 = vsub.f32 %v8498, %v9009
      %9011 = vmatpush1.msra.mxu0 %v9010
      %9012 = vmatprep.subr.mxu0 0.0
      %v9013 = vand.u32 %v8497, 4294901760
      %v9014 = vsub.f32 %v8497, %v9013
      %9015 = vmatpush1.msra.mxu0 %v9014
      %9016 = vmatprep.subr.mxu0 0.0
      %v9017 = vand.u32 %v8496, 4294901760
      %v9018 = vsub.f32 %v8496, %v9017
      %9019 = vmatpush1.msra.mxu0 %v9018
      %9020 = vmatprep.subr.mxu0 0.0
      %v9021 = vand.u32 %v8495, 4294901760
      %v9022 = vsub.f32 %v8495, %v9021
      %9023 = vmatpush1.msra.mxu0 %v9022
      %9024 = vmatprep.subr.mxu0 0.0
      %v9025 = vand.u32 %v8494, 4294901760
      %v9026 = vsub.f32 %v8494, %v9025
      %9027 = vmatpush1.msra.mxu0 %v9026
      %9028 = vmatprep.subr.mxu0 0.0
      %v9029 = vand.u32 %v8493, 4294901760
      %v9030 = vsub.f32 %v8493, %v9029
      %9031 = vmatpush1.msra.mxu0 %v9030
      %9032 = vmatprep.subr.mxu0 0.0
      %v9033 = vand.u32 %v8492, 4294901760
      %v9034 = vsub.f32 %v8492, %v9033
      %9035 = vmatpush1.msra.mxu0 %v9034
      %9036 = vmatprep.subr.mxu0 0.0
      %v9037 = vand.u32 %v8491, 4294901760
      %v9038 = vsub.f32 %v8491, %v9037
      %9039 = vmatpush1.msra.mxu0 %v9038
      %9040 = vmatprep.subr.mxu0 0.0
      %v9041 = vand.u32 %v8490, 4294901760
      %v9042 = vsub.f32 %v8490, %v9041
      %9043 = vmatpush1.msra.mxu0 %v9042
      %9044 = vmatprep.subr.mxu0 0.0
      %v9045 = vand.u32 %v8489, 4294901760
      %v9046 = vsub.f32 %v8489, %v9045
      %9047 = vmatpush1.msra.mxu0 %v9046
      %9048 = vmatprep.subr.mxu0 0.0
      %v9049 = vand.u32 %v8488, 4294901760
      %v9050 = vsub.f32 %v8488, %v9049
      %9051 = vmatpush1.msra.mxu0 %v9050
      %9052 = vmatprep.subr.mxu0 0.0
      %v9053 = vand.u32 %v8487, 4294901760
      %v9054 = vsub.f32 %v8487, %v9053
      %9055 = vmatpush1.msra.mxu0 %v9054
      %9056 = vmatprep.subr.mxu0 0.0
      %9057 = vmatpush2.msra.mxu0 0.0
      %9058 = vmatprep.subr.mxu0 0.0
      %9059 = vmatpush2.msra.mxu0 0.0
      %9060 = vmatprep.subr.mxu0 0.0
      %9061 = vmatpush2.msra.mxu0 0.0
      %9062 = vmatprep.subr.mxu0 0.0
      %9063 = vmatpush2.msra.mxu0 0.0
      %9064 = vmatprep.subr.mxu0 0.0
      %9065 = vmatpush2.msra.mxu0 0.0
      %9066 = vmatprep.subr.mxu0 0.0
      %9067 = vmatpush2.msra.mxu0 0.0
      %9068 = vmatprep.subr.mxu0 0.0
      %9069 = vmatpush2.msra.mxu0 0.0
      %9070 = vmatprep.subr.mxu0 0.0
      %v9071 = vand.u32 %v8511, 4294901760
      %v9072 = vsub.f32 %v8511, %v9071
      %9073 = vmatpush2.msra.mxu0 %v9072
      %9074 = vmatprep.subr.mxu0 0.0
      %v9075 = vand.u32 %v8510, 4294901760
      %v9076 = vsub.f32 %v8510, %v9075
      %9077 = vmatpush2.msra.mxu0 %v9076
      %9078 = vmatprep.subr.mxu0 0.0
      %v9079 = vand.u32 %v8509, 4294901760
      %v9080 = vsub.f32 %v8509, %v9079
      %9081 = vmatpush2.msra.mxu0 %v9080
      %9082 = vmatprep.subr.mxu0 0.0
      %v9083 = vand.u32 %v8508, 4294901760
      %v9084 = vsub.f32 %v8508, %v9083
      %9085 = vmatpush2.msra.mxu0 %v9084
      %9086 = vmatprep.subr.mxu0 0.0
      %v9087 = vand.u32 %v8507, 4294901760
      %v9088 = vsub.f32 %v8507, %v9087
      %9089 = vmatpush2.msra.mxu0 %v9088
      %9090 = vmatprep.subr.mxu0 0.0
      %v9091 = vand.u32 %v8506, 4294901760
      %v9092 = vsub.f32 %v8506, %v9091
      %9093 = vmatpush2.msra.mxu0 %v9092
      %9094 = vmatprep.subr.mxu0 0.0
      %v9095 = vand.u32 %v8505, 4294901760
      %v9096 = vsub.f32 %v8505, %v9095
      %9097 = vmatpush2.msra.mxu0 %v9096
      %9098 = vmatprep.subr.mxu0 0.0
      %v9099 = vand.u32 %v8504, 4294901760
      %v9100 = vsub.f32 %v8504, %v9099
      %9101 = vmatpush2.msra.mxu0 %v9100
      %9102 = vmatprep.subr.mxu0 0.0
      %v9103 = vand.u32 %v8503, 4294901760
      %v9104 = vsub.f32 %v8503, %v9103
      %9105 = vmatpush2.msra.mxu0 %v9104
      %v9106 = vand.u32 %v8513, 4294901760
      %v9107 = vsub.f32 %v8513, %v9106
      %9108 = vmatprep.mubr.f32.mxu0 %v9107
      %v9109 = vand.u32 %v8470, 4294901760
      %v9110 = vsub.f32 %v8470, %v9109
      %9111 = vmatmul.mubr.f32.gmra.mxu0 %v9110
      %v9112 = vpop.f32.mrf.mxu0
      %v9113 = vadd.f32 %v8940, %v9112
      %v9114 = vpop.f32.mrf.mxu0
      %v9115 = vand.u32 %v8516, 4294901760
      %v9116 = vsub.f32 %v8516, %v9115
      %9117 = vmatprep.mubr.f32.mxu0 %v9116
      %v9118 = vand.u32 %v8472, 4294901760
      %v9119 = vsub.f32 %v8472, %v9118
      %9120 = vmatmul.mubr.f32.gmra.mxu0 %v9119
      %v9121 = vpop.f32.mrf.mxu0
      %v9122 = vadd.f32 %v8947, %v9121
      %v9123 = vpop.f32.mrf.mxu0
      %v9124 = vand.u32 %v8519, 4294901760
      %v9125 = vsub.f32 %v8519, %v9124
      %9126 = vmatprep.mubr.f32.mxu0 %v9125
      %v9127 = vand.u32 %v8474, 4294901760
      %v9128 = vsub.f32 %v8474, %v9127
      %9129 = vmatmul.mubr.f32.gmra.mxu0 %v9128
      %v9130 = vpop.f32.mrf.mxu0
      %v9131 = vadd.f32 %v8954, %v9130
      %v9132 = vpop.f32.mrf.mxu0
      %v9133 = vand.u32 %v8522, 4294901760
      %v9134 = vsub.f32 %v8522, %v9133
      %9135 = vmatprep.mubr.f32.mxu0 %v9134
      %v9136 = vand.u32 %v8476, 4294901760
      %v9137 = vsub.f32 %v8476, %v9136
      %9138 = vmatmul.mubr.f32.gmra.mxu0 %v9137
      %v9139 = vpop.f32.mrf.mxu0
      %v9140 = vadd.f32 %v8961, %v9139
      %v9141 = vpop.f32.mrf.mxu0
      %v9142 = vand.u32 %v8525, 4294901760
      %v9143 = vsub.f32 %v8525, %v9142
      %9144 = vmatprep.mubr.f32.mxu0 %v9143
      %v9145 = vand.u32 %v8478, 4294901760
      %v9146 = vsub.f32 %v8478, %v9145
      %9147 = vmatmul.mubr.f32.gmra.mxu0 %v9146
      %v9148 = vpop.f32.mrf.mxu0
      %v9149 = vadd.f32 %v8968, %v9148
      %v9150 = vpop.f32.mrf.mxu0
      %v9151 = vand.u32 %v8528, 4294901760
      %v9152 = vsub.f32 %v8528, %v9151
      %9153 = vmatprep.mubr.f32.mxu0 %v9152
      %v9154 = vand.u32 %v8480, 4294901760
      %v9155 = vsub.f32 %v8480, %v9154
      %9156 = vmatmul.mubr.f32.gmra.mxu0 %v9155
      %v9157 = vpop.f32.mrf.mxu0
      %v9158 = vadd.f32 %v8975, %v9157
      %v9159 = vpop.f32.mrf.mxu0
      %v9160 = vand.u32 %v8531, 4294901760
      %v9161 = vsub.f32 %v8531, %v9160
      %9162 = vmatprep.mubr.f32.mxu0 %v9161
      %v9163 = vand.u32 %v8482, 4294901760
      %v9164 = vsub.f32 %v8482, %v9163
      %9165 = vmatmul.mubr.f32.gmra.mxu0 %v9164
      %v9166 = vpop.f32.mrf.mxu0
      %v9167 = vadd.f32 %v8982, %v9166
      %v9168 = vpop.f32.mrf.mxu0
      %v9169 = vand.u32 %v8534, 4294901760
      %v9170 = vsub.f32 %v8534, %v9169
      %9171 = vmatprep.mubr.f32.mxu0 %v9170
      %v9172 = vand.u32 %v8484, 4294901760
      %v9173 = vsub.f32 %v8484, %v9172
      %9174 = vmatmul.mubr.f32.gmra.mxu0 %v9173
      %v9175 = vpop.f32.mrf.mxu0
      %v9176 = vadd.f32 %v8989, %v9175
      %v9177 = vpop.f32.mrf.mxu0
      %9178 = vdwg.mxu0
      %9179 = vmatprep.subr.mxu0 0.0
      %v9180 = vand.u32 %v8502, 4294901760
      %9181 = vmatpush1.msra.mxu0 %v9180
      %9182 = vmatprep.subr.mxu0 0.0
      %v9183 = vand.u32 %v8501, 4294901760
      %9184 = vmatpush1.msra.mxu0 %v9183
      %9185 = vmatprep.subr.mxu0 0.0
      %v9186 = vand.u32 %v8500, 4294901760
      %9187 = vmatpush1.msra.mxu0 %v9186
      %9188 = vmatprep.subr.mxu0 0.0
      %v9189 = vand.u32 %v8499, 4294901760
      %9190 = vmatpush1.msra.mxu0 %v9189
      %9191 = vmatprep.subr.mxu0 0.0
      %v9192 = vand.u32 %v8498, 4294901760
      %9193 = vmatpush1.msra.mxu0 %v9192
      %9194 = vmatprep.subr.mxu0 0.0
      %v9195 = vand.u32 %v8497, 4294901760
      %9196 = vmatpush1.msra.mxu0 %v9195
      %9197 = vmatprep.subr.mxu0 0.0
      %v9198 = vand.u32 %v8496, 4294901760
      %9199 = vmatpush1.msra.mxu0 %v9198
      %9200 = vmatprep.subr.mxu0 0.0
      %v9201 = vand.u32 %v8495, 4294901760
      %9202 = vmatpush1.msra.mxu0 %v9201
      %9203 = vmatprep.subr.mxu0 0.0
      %v9204 = vand.u32 %v8494, 4294901760
      %9205 = vmatpush1.msra.mxu0 %v9204
      %9206 = vmatprep.subr.mxu0 0.0
      %v9207 = vand.u32 %v8493, 4294901760
      %9208 = vmatpush1.msra.mxu0 %v9207
      %9209 = vmatprep.subr.mxu0 0.0
      %v9210 = vand.u32 %v8492, 4294901760
      %9211 = vmatpush1.msra.mxu0 %v9210
      %9212 = vmatprep.subr.mxu0 0.0
      %v9213 = vand.u32 %v8491, 4294901760
      %9214 = vmatpush1.msra.mxu0 %v9213
      %9215 = vmatprep.subr.mxu0 0.0
      %v9216 = vand.u32 %v8490, 4294901760
      %9217 = vmatpush1.msra.mxu0 %v9216
      %9218 = vmatprep.subr.mxu0 0.0
      %v9219 = vand.u32 %v8489, 4294901760
      %9220 = vmatpush1.msra.mxu0 %v9219
      %9221 = vmatprep.subr.mxu0 0.0
      %v9222 = vand.u32 %v8488, 4294901760
      %9223 = vmatpush1.msra.mxu0 %v9222
      %9224 = vmatprep.subr.mxu0 0.0
      %v9225 = vand.u32 %v8487, 4294901760
      %9226 = vmatpush1.msra.mxu0 %v9225
      %9227 = vmatprep.subr.mxu0 0.0
      %9228 = vmatpush2.msra.mxu0 0.0
      %9229 = vmatprep.subr.mxu0 0.0
      %9230 = vmatpush2.msra.mxu0 0.0
      %9231 = vmatprep.subr.mxu0 0.0
      %9232 = vmatpush2.msra.mxu0 0.0
      %9233 = vmatprep.subr.mxu0 0.0
      %9234 = vmatpush2.msra.mxu0 0.0
      %9235 = vmatprep.subr.mxu0 0.0
      %9236 = vmatpush2.msra.mxu0 0.0
      %9237 = vmatprep.subr.mxu0 0.0
      %9238 = vmatpush2.msra.mxu0 0.0
      %9239 = vmatprep.subr.mxu0 0.0
      %9240 = vmatpush2.msra.mxu0 0.0
      %9241 = vmatprep.subr.mxu0 0.0
      %v9242 = vand.u32 %v8511, 4294901760
      %9243 = vmatpush2.msra.mxu0 %v9242
      %9244 = vmatprep.subr.mxu0 0.0
      %v9245 = vand.u32 %v8510, 4294901760
      %9246 = vmatpush2.msra.mxu0 %v9245
      %9247 = vmatprep.subr.mxu0 0.0
      %v9248 = vand.u32 %v8509, 4294901760
      %9249 = vmatpush2.msra.mxu0 %v9248
      %9250 = vmatprep.subr.mxu0 0.0
      %v9251 = vand.u32 %v8508, 4294901760
      %9252 = vmatpush2.msra.mxu0 %v9251
      %9253 = vmatprep.subr.mxu0 0.0
      %v9254 = vand.u32 %v8507, 4294901760
      %9255 = vmatpush2.msra.mxu0 %v9254
      %9256 = vmatprep.subr.mxu0 0.0
      %v9257 = vand.u32 %v8506, 4294901760
      %9258 = vmatpush2.msra.mxu0 %v9257
      %9259 = vmatprep.subr.mxu0 0.0
      %v9260 = vand.u32 %v8505, 4294901760
      %9261 = vmatpush2.msra.mxu0 %v9260
      %9262 = vmatprep.subr.mxu0 0.0
      %v9263 = vand.u32 %v8504, 4294901760
      %9264 = vmatpush2.msra.mxu0 %v9263
      %9265 = vmatprep.subr.mxu0 0.0
      %v9266 = vand.u32 %v8503, 4294901760
      %9267 = vmatpush2.msra.mxu0 %v9266
      %v9268 = vand.u32 %v8513, 4294901760
      %v9269 = vsub.f32 %v8513, %v9268
      %v9270 = vand.u32 %v9269, 4294901760
      %9271 = vmatprep.mubr.f32.mxu0 %v9270
      %v9272 = vand.u32 %v8470, 4294901760
      %v9273 = vsub.f32 %v8470, %v9272
      %v9274 = vand.u32 %v9273, 4294901760
      %9275 = vmatmul.mubr.f32.gmra.mxu0 %v9274
      %v9276 = vpop.f32.mrf.mxu0
      %v9277 = vadd.f32 %v9113, %v9276
      %v9278 = vpop.f32.mrf.mxu0
      %v9279 = vand.u32 %v8516, 4294901760
      %v9280 = vsub.f32 %v8516, %v9279
      %v9281 = vand.u32 %v9280, 4294901760
      %9282 = vmatprep.mubr.f32.mxu0 %v9281
      %v9283 = vand.u32 %v8472, 4294901760
      %v9284 = vsub.f32 %v8472, %v9283
      %v9285 = vand.u32 %v9284, 4294901760
      %9286 = vmatmul.mubr.f32.gmra.mxu0 %v9285
      %v9287 = vpop.f32.mrf.mxu0
      %v9288 = vadd.f32 %v9122, %v9287
      %v9289 = vpop.f32.mrf.mxu0
      %v9290 = vand.u32 %v8519, 4294901760
      %v9291 = vsub.f32 %v8519, %v9290
      %v9292 = vand.u32 %v9291, 4294901760
      %9293 = vmatprep.mubr.f32.mxu0 %v9292
      %v9294 = vand.u32 %v8474, 4294901760
      %v9295 = vsub.f32 %v8474, %v9294
      %v9296 = vand.u32 %v9295, 4294901760
      %9297 = vmatmul.mubr.f32.gmra.mxu0 %v9296
      %v9298 = vpop.f32.mrf.mxu0
      %v9299 = vadd.f32 %v9131, %v9298
      %v9300 = vpop.f32.mrf.mxu0
      %v9301 = vand.u32 %v8522, 4294901760
      %v9302 = vsub.f32 %v8522, %v9301
      %v9303 = vand.u32 %v9302, 4294901760
      %9304 = vmatprep.mubr.f32.mxu0 %v9303
      %v9305 = vand.u32 %v8476, 4294901760
      %v9306 = vsub.f32 %v8476, %v9305
      %v9307 = vand.u32 %v9306, 4294901760
      %9308 = vmatmul.mubr.f32.gmra.mxu0 %v9307
      %v9309 = vpop.f32.mrf.mxu0
      %v9310 = vadd.f32 %v9140, %v9309
      %v9311 = vpop.f32.mrf.mxu0
      %v9312 = vand.u32 %v8525, 4294901760
      %v9313 = vsub.f32 %v8525, %v9312
      %v9314 = vand.u32 %v9313, 4294901760
      %9315 = vmatprep.mubr.f32.mxu0 %v9314
      %v9316 = vand.u32 %v8478, 4294901760
      %v9317 = vsub.f32 %v8478, %v9316
      %v9318 = vand.u32 %v9317, 4294901760
      %9319 = vmatmul.mubr.f32.gmra.mxu0 %v9318
      %v9320 = vpop.f32.mrf.mxu0
      %v9321 = vadd.f32 %v9149, %v9320
      %v9322 = vpop.f32.mrf.mxu0
      %v9323 = vand.u32 %v8528, 4294901760
      %v9324 = vsub.f32 %v8528, %v9323
      %v9325 = vand.u32 %v9324, 4294901760
      %9326 = vmatprep.mubr.f32.mxu0 %v9325
      %v9327 = vand.u32 %v8480, 4294901760
      %v9328 = vsub.f32 %v8480, %v9327
      %v9329 = vand.u32 %v9328, 4294901760
      %9330 = vmatmul.mubr.f32.gmra.mxu0 %v9329
      %v9331 = vpop.f32.mrf.mxu0
      %v9332 = vadd.f32 %v9158, %v9331
      %v9333 = vpop.f32.mrf.mxu0
      %v9334 = vand.u32 %v8531, 4294901760
      %v9335 = vsub.f32 %v8531, %v9334
      %v9336 = vand.u32 %v9335, 4294901760
      %9337 = vmatprep.mubr.f32.mxu0 %v9336
      %v9338 = vand.u32 %v8482, 4294901760
      %v9339 = vsub.f32 %v8482, %v9338
      %v9340 = vand.u32 %v9339, 4294901760
      %9341 = vmatmul.mubr.f32.gmra.mxu0 %v9340
      %v9342 = vpop.f32.mrf.mxu0
      %v9343 = vadd.f32 %v9167, %v9342
      %v9344 = vpop.f32.mrf.mxu0
      %v9345 = vand.u32 %v8534, 4294901760
      %v9346 = vsub.f32 %v8534, %v9345
      %v9347 = vand.u32 %v9346, 4294901760
      %9348 = vmatprep.mubr.f32.mxu0 %v9347
      %v9349 = vand.u32 %v8484, 4294901760
      %v9350 = vsub.f32 %v8484, %v9349
      %v9351 = vand.u32 %v9350, 4294901760
      %9352 = vmatmul.mubr.f32.gmra.mxu0 %v9351
      %v9353 = vpop.f32.mrf.mxu0
      %v9354 = vadd.f32 %v9176, %v9353
      %v9355 = vpop.f32.mrf.mxu0
      %9356 = vdwg.mxu0
      %9357 = vmatprep.subr.mxu0 0.0
      %v9358 = vand.u32 %v8502, 4294901760
      %v9359 = vsub.f32 %v8502, %v9358
      %v9360 = vand.u32 %v9359, 4294901760
      %9361 = vmatpush1.msra.mxu0 %v9360
      %9362 = vmatprep.subr.mxu0 0.0
      %v9363 = vand.u32 %v8501, 4294901760
      %v9364 = vsub.f32 %v8501, %v9363
      %v9365 = vand.u32 %v9364, 4294901760
      %9366 = vmatpush1.msra.mxu0 %v9365
      %9367 = vmatprep.subr.mxu0 0.0
      %v9368 = vand.u32 %v8500, 4294901760
      %v9369 = vsub.f32 %v8500, %v9368
      %v9370 = vand.u32 %v9369, 4294901760
      %9371 = vmatpush1.msra.mxu0 %v9370
      %9372 = vmatprep.subr.mxu0 0.0
      %v9373 = vand.u32 %v8499, 4294901760
      %v9374 = vsub.f32 %v8499, %v9373
      %v9375 = vand.u32 %v9374, 4294901760
      %9376 = vmatpush1.msra.mxu0 %v9375
      %9377 = vmatprep.subr.mxu0 0.0
      %v9378 = vand.u32 %v8498, 4294901760
      %v9379 = vsub.f32 %v8498, %v9378
      %v9380 = vand.u32 %v9379, 4294901760
      %9381 = vmatpush1.msra.mxu0 %v9380
      %9382 = vmatprep.subr.mxu0 0.0
      %v9383 = vand.u32 %v8497, 4294901760
      %v9384 = vsub.f32 %v8497, %v9383
      %v9385 = vand.u32 %v9384, 4294901760
      %9386 = vmatpush1.msra.mxu0 %v9385
      %9387 = vmatprep.subr.mxu0 0.0
      %v9388 = vand.u32 %v8496, 4294901760
      %v9389 = vsub.f32 %v8496, %v9388
      %v9390 = vand.u32 %v9389, 4294901760
      %9391 = vmatpush1.msra.mxu0 %v9390
      %9392 = vmatprep.subr.mxu0 0.0
      %v9393 = vand.u32 %v8495, 4294901760
      %v9394 = vsub.f32 %v8495, %v9393
      %v9395 = vand.u32 %v9394, 4294901760
      %9396 = vmatpush1.msra.mxu0 %v9395
      %9397 = vmatprep.subr.mxu0 0.0
      %v9398 = vand.u32 %v8494, 4294901760
      %v9399 = vsub.f32 %v8494, %v9398
      %v9400 = vand.u32 %v9399, 4294901760
      %9401 = vmatpush1.msra.mxu0 %v9400
      %9402 = vmatprep.subr.mxu0 0.0
      %v9403 = vand.u32 %v8493, 4294901760
      %v9404 = vsub.f32 %v8493, %v9403
      %v9405 = vand.u32 %v9404, 4294901760
      %9406 = vmatpush1.msra.mxu0 %v9405
      %9407 = vmatprep.subr.mxu0 0.0
      %v9408 = vand.u32 %v8492, 4294901760
      %v9409 = vsub.f32 %v8492, %v9408
      %v9410 = vand.u32 %v9409, 4294901760
      %9411 = vmatpush1.msra.mxu0 %v9410
      %9412 = vmatprep.subr.mxu0 0.0
      %v9413 = vand.u32 %v8491, 4294901760
      %v9414 = vsub.f32 %v8491, %v9413
      %v9415 = vand.u32 %v9414, 4294901760
      %9416 = vmatpush1.msra.mxu0 %v9415
      %9417 = vmatprep.subr.mxu0 0.0
      %v9418 = vand.u32 %v8490, 4294901760
      %v9419 = vsub.f32 %v8490, %v9418
      %v9420 = vand.u32 %v9419, 4294901760
      %9421 = vmatpush1.msra.mxu0 %v9420
      %9422 = vmatprep.subr.mxu0 0.0
      %v9423 = vand.u32 %v8489, 4294901760
      %v9424 = vsub.f32 %v8489, %v9423
      %v9425 = vand.u32 %v9424, 4294901760
      %9426 = vmatpush1.msra.mxu0 %v9425
      %9427 = vmatprep.subr.mxu0 0.0
      %v9428 = vand.u32 %v8488, 4294901760
      %v9429 = vsub.f32 %v8488, %v9428
      %v9430 = vand.u32 %v9429, 4294901760
      %9431 = vmatpush1.msra.mxu0 %v9430
      %9432 = vmatprep.subr.mxu0 0.0
      %v9433 = vand.u32 %v8487, 4294901760
      %v9434 = vsub.f32 %v8487, %v9433
      %v9435 = vand.u32 %v9434, 4294901760
      %9436 = vmatpush1.msra.mxu0 %v9435
      %9437 = vmatprep.subr.mxu0 0.0
      %9438 = vmatpush2.msra.mxu0 0.0
      %9439 = vmatprep.subr.mxu0 0.0
      %9440 = vmatpush2.msra.mxu0 0.0
      %9441 = vmatprep.subr.mxu0 0.0
      %9442 = vmatpush2.msra.mxu0 0.0
      %9443 = vmatprep.subr.mxu0 0.0
      %9444 = vmatpush2.msra.mxu0 0.0
      %9445 = vmatprep.subr.mxu0 0.0
      %9446 = vmatpush2.msra.mxu0 0.0
      %9447 = vmatprep.subr.mxu0 0.0
      %9448 = vmatpush2.msra.mxu0 0.0
      %9449 = vmatprep.subr.mxu0 0.0
      %9450 = vmatpush2.msra.mxu0 0.0
      %9451 = vmatprep.subr.mxu0 0.0
      %v9452 = vand.u32 %v8511, 4294901760
      %v9453 = vsub.f32 %v8511, %v9452
      %v9454 = vand.u32 %v9453, 4294901760
      %9455 = vmatpush2.msra.mxu0 %v9454
      %9456 = vmatprep.subr.mxu0 0.0
      %v9457 = vand.u32 %v8510, 4294901760
      %v9458 = vsub.f32 %v8510, %v9457
      %v9459 = vand.u32 %v9458, 4294901760
      %9460 = vmatpush2.msra.mxu0 %v9459
      %9461 = vmatprep.subr.mxu0 0.0
      %v9462 = vand.u32 %v8509, 4294901760
      %v9463 = vsub.f32 %v8509, %v9462
      %v9464 = vand.u32 %v9463, 4294901760
      %9465 = vmatpush2.msra.mxu0 %v9464
      %9466 = vmatprep.subr.mxu0 0.0
      %v9467 = vand.u32 %v8508, 4294901760
      %v9468 = vsub.f32 %v8508, %v9467
      %v9469 = vand.u32 %v9468, 4294901760
      %9470 = vmatpush2.msra.mxu0 %v9469
      %9471 = vmatprep.subr.mxu0 0.0
      %v9472 = vand.u32 %v8507, 4294901760
      %v9473 = vsub.f32 %v8507, %v9472
      %v9474 = vand.u32 %v9473, 4294901760
      %9475 = vmatpush2.msra.mxu0 %v9474
      %9476 = vmatprep.subr.mxu0 0.0
      %v9477 = vand.u32 %v8506, 4294901760
      %v9478 = vsub.f32 %v8506, %v9477
      %v9479 = vand.u32 %v9478, 4294901760
      %9480 = vmatpush2.msra.mxu0 %v9479
      %9481 = vmatprep.subr.mxu0 0.0
      %v9482 = vand.u32 %v8505, 4294901760
      %v9483 = vsub.f32 %v8505, %v9482
      %v9484 = vand.u32 %v9483, 4294901760
      %9485 = vmatpush2.msra.mxu0 %v9484
      %9486 = vmatprep.subr.mxu0 0.0
      %v9487 = vand.u32 %v8504, 4294901760
      %v9488 = vsub.f32 %v8504, %v9487
      %v9489 = vand.u32 %v9488, 4294901760
      %9490 = vmatpush2.msra.mxu0 %v9489
      %9491 = vmatprep.subr.mxu0 0.0
      %v9492 = vand.u32 %v8503, 4294901760
      %v9493 = vsub.f32 %v8503, %v9492
      %v9494 = vand.u32 %v9493, 4294901760
      %9495 = vmatpush2.msra.mxu0 %v9494
      %v9496 = vand.u32 %v8513, 4294901760
      %9497 = vmatprep.mubr.f32.mxu0 %v9496
      %v9498 = vand.u32 %v8470, 4294901760
      %9499 = vmatmul.mubr.f32.gmra.mxu0 %v9498
      %v9500 = vpop.f32.mrf.mxu0
      %v9501 = vadd.f32 %v9277, %v9500
      %v9502 = vpop.f32.mrf.mxu0
      %v9503 = vand.u32 %v8516, 4294901760
      %9504 = vmatprep.mubr.f32.mxu0 %v9503
      %v9505 = vand.u32 %v8472, 4294901760
      %9506 = vmatmul.mubr.f32.gmra.mxu0 %v9505
      %v9507 = vpop.f32.mrf.mxu0
      %v9508 = vadd.f32 %v9288, %v9507
      %v9509 = vpop.f32.mrf.mxu0
      %v9510 = vand.u32 %v8519, 4294901760
      %9511 = vmatprep.mubr.f32.mxu0 %v9510
      %v9512 = vand.u32 %v8474, 4294901760
      %9513 = vmatmul.mubr.f32.gmra.mxu0 %v9512
      %v9514 = vpop.f32.mrf.mxu0
      %v9515 = vadd.f32 %v9299, %v9514
      %v9516 = vpop.f32.mrf.mxu0
      %v9517 = vand.u32 %v8522, 4294901760
      %9518 = vmatprep.mubr.f32.mxu0 %v9517
      %v9519 = vand.u32 %v8476, 4294901760
      %9520 = vmatmul.mubr.f32.gmra.mxu0 %v9519
      %v9521 = vpop.f32.mrf.mxu0
      %v9522 = vadd.f32 %v9310, %v9521
      %v9523 = vpop.f32.mrf.mxu0
      %v9524 = vand.u32 %v8525, 4294901760
      %9525 = vmatprep.mubr.f32.mxu0 %v9524
      %v9526 = vand.u32 %v8478, 4294901760
      %9527 = vmatmul.mubr.f32.gmra.mxu0 %v9526
      %v9528 = vpop.f32.mrf.mxu0
      %v9529 = vadd.f32 %v9321, %v9528
      %v9530 = vpop.f32.mrf.mxu0
      %v9531 = vand.u32 %v8528, 4294901760
      %9532 = vmatprep.mubr.f32.mxu0 %v9531
      %v9533 = vand.u32 %v8480, 4294901760
      %9534 = vmatmul.mubr.f32.gmra.mxu0 %v9533
      %v9535 = vpop.f32.mrf.mxu0
      %v9536 = vadd.f32 %v9332, %v9535
      %v9537 = vpop.f32.mrf.mxu0
      %v9538 = vand.u32 %v8531, 4294901760
      %9539 = vmatprep.mubr.f32.mxu0 %v9538
      %v9540 = vand.u32 %v8482, 4294901760
      %9541 = vmatmul.mubr.f32.gmra.mxu0 %v9540
      %v9542 = vpop.f32.mrf.mxu0
      %v9543 = vadd.f32 %v9343, %v9542
      %v9544 = vpop.f32.mrf.mxu0
      %v9545 = vand.u32 %v8534, 4294901760
      %9546 = vmatprep.mubr.f32.mxu0 %v9545
      %v9547 = vand.u32 %v8484, 4294901760
      %9548 = vmatmul.mubr.f32.gmra.mxu0 %v9547
      %v9549 = vpop.f32.mrf.mxu0
      %v9550 = vadd.f32 %v9354, %v9549
      %v9551 = vpop.f32.mrf.mxu0
      %9552 = vdwg.mxu0
      %9553 = vmatprep.subr.mxu0 0.0
      %v9554 = vand.u32 %v8502, 4294901760
      %9555 = vmatpush1.msra.mxu0 %v9554
      %9556 = vmatprep.subr.mxu0 0.0
      %v9557 = vand.u32 %v8501, 4294901760
      %9558 = vmatpush1.msra.mxu0 %v9557
      %9559 = vmatprep.subr.mxu0 0.0
      %v9560 = vand.u32 %v8500, 4294901760
      %9561 = vmatpush1.msra.mxu0 %v9560
      %9562 = vmatprep.subr.mxu0 0.0
      %v9563 = vand.u32 %v8499, 4294901760
      %9564 = vmatpush1.msra.mxu0 %v9563
      %9565 = vmatprep.subr.mxu0 0.0
      %v9566 = vand.u32 %v8498, 4294901760
      %9567 = vmatpush1.msra.mxu0 %v9566
      %9568 = vmatprep.subr.mxu0 0.0
      %v9569 = vand.u32 %v8497, 4294901760
      %9570 = vmatpush1.msra.mxu0 %v9569
      %9571 = vmatprep.subr.mxu0 0.0
      %v9572 = vand.u32 %v8496, 4294901760
      %9573 = vmatpush1.msra.mxu0 %v9572
      %9574 = vmatprep.subr.mxu0 0.0
      %v9575 = vand.u32 %v8495, 4294901760
      %9576 = vmatpush1.msra.mxu0 %v9575
      %9577 = vmatprep.subr.mxu0 0.0
      %v9578 = vand.u32 %v8494, 4294901760
      %9579 = vmatpush1.msra.mxu0 %v9578
      %9580 = vmatprep.subr.mxu0 0.0
      %v9581 = vand.u32 %v8493, 4294901760
      %9582 = vmatpush1.msra.mxu0 %v9581
      %9583 = vmatprep.subr.mxu0 0.0
      %v9584 = vand.u32 %v8492, 4294901760
      %9585 = vmatpush1.msra.mxu0 %v9584
      %9586 = vmatprep.subr.mxu0 0.0
      %v9587 = vand.u32 %v8491, 4294901760
      %9588 = vmatpush1.msra.mxu0 %v9587
      %9589 = vmatprep.subr.mxu0 0.0
      %v9590 = vand.u32 %v8490, 4294901760
      %9591 = vmatpush1.msra.mxu0 %v9590
      %9592 = vmatprep.subr.mxu0 0.0
      %v9593 = vand.u32 %v8489, 4294901760
      %9594 = vmatpush1.msra.mxu0 %v9593
      %9595 = vmatprep.subr.mxu0 0.0
      %v9596 = vand.u32 %v8488, 4294901760
      %9597 = vmatpush1.msra.mxu0 %v9596
      %9598 = vmatprep.subr.mxu0 0.0
      %v9599 = vand.u32 %v8487, 4294901760
      %9600 = vmatpush1.msra.mxu0 %v9599
      %9601 = vmatprep.subr.mxu0 0.0
      %9602 = vmatpush2.msra.mxu0 0.0
      %9603 = vmatprep.subr.mxu0 0.0
      %9604 = vmatpush2.msra.mxu0 0.0
      %9605 = vmatprep.subr.mxu0 0.0
      %9606 = vmatpush2.msra.mxu0 0.0
      %9607 = vmatprep.subr.mxu0 0.0
      %9608 = vmatpush2.msra.mxu0 0.0
      %9609 = vmatprep.subr.mxu0 0.0
      %9610 = vmatpush2.msra.mxu0 0.0
      %9611 = vmatprep.subr.mxu0 0.0
      %9612 = vmatpush2.msra.mxu0 0.0
      %9613 = vmatprep.subr.mxu0 0.0
      %9614 = vmatpush2.msra.mxu0 0.0
      %9615 = vmatprep.subr.mxu0 0.0
      %v9616 = vand.u32 %v8511, 4294901760
      %9617 = vmatpush2.msra.mxu0 %v9616
      %9618 = vmatprep.subr.mxu0 0.0
      %v9619 = vand.u32 %v8510, 4294901760
      %9620 = vmatpush2.msra.mxu0 %v9619
      %9621 = vmatprep.subr.mxu0 0.0
      %v9622 = vand.u32 %v8509, 4294901760
      %9623 = vmatpush2.msra.mxu0 %v9622
      %9624 = vmatprep.subr.mxu0 0.0
      %v9625 = vand.u32 %v8508, 4294901760
      %9626 = vmatpush2.msra.mxu0 %v9625
      %9627 = vmatprep.subr.mxu0 0.0
      %v9628 = vand.u32 %v8507, 4294901760
      %9629 = vmatpush2.msra.mxu0 %v9628
      %9630 = vmatprep.subr.mxu0 0.0
      %v9631 = vand.u32 %v8506, 4294901760
      %9632 = vmatpush2.msra.mxu0 %v9631
      %9633 = vmatprep.subr.mxu0 0.0
      %v9634 = vand.u32 %v8505, 4294901760
      %9635 = vmatpush2.msra.mxu0 %v9634
      %9636 = vmatprep.subr.mxu0 0.0
      %v9637 = vand.u32 %v8504, 4294901760
      %9638 = vmatpush2.msra.mxu0 %v9637
      %9639 = vmatprep.subr.mxu0 0.0
      %v9640 = vand.u32 %v8503, 4294901760
      %9641 = vmatpush2.msra.mxu0 %v9640
      %v9642 = vand.u32 %v8513, 4294901760
      %9643 = vmatprep.mubr.f32.mxu0 %v9642
      %v9644 = vand.u32 %v8470, 4294901760
      %9645 = vmatmul.mubr.f32.gmra.mxu0 %v9644
      %v9646 = vpop.f32.mrf.mxu0
      %v9647 = vadd.f32 %v9501, %v9646
      %v9648 = vpop.f32.mrf.mxu0
      %v9649 = vand.u32 %v8516, 4294901760
      %9650 = vmatprep.mubr.f32.mxu0 %v9649
      %v9651 = vand.u32 %v8472, 4294901760
      %9652 = vmatmul.mubr.f32.gmra.mxu0 %v9651
      %v9653 = vpop.f32.mrf.mxu0
      %v9654 = vadd.f32 %v9508, %v9653
      %v9655 = vpop.f32.mrf.mxu0
      %v9656 = vand.u32 %v8519, 4294901760
      %9657 = vmatprep.mubr.f32.mxu0 %v9656
      %v9658 = vand.u32 %v8474, 4294901760
      %9659 = vmatmul.mubr.f32.gmra.mxu0 %v9658
      %v9660 = vpop.f32.mrf.mxu0
      %v9661 = vadd.f32 %v9515, %v9660
      %v9662 = vpop.f32.mrf.mxu0
      %v9663 = vand.u32 %v8522, 4294901760
      %9664 = vmatprep.mubr.f32.mxu0 %v9663
      %v9665 = vand.u32 %v8476, 4294901760
      %9666 = vmatmul.mubr.f32.gmra.mxu0 %v9665
      %v9667 = vpop.f32.mrf.mxu0
      %v9668 = vadd.f32 %v9522, %v9667
      %v9669 = vpop.f32.mrf.mxu0
      %v9670 = vand.u32 %v8525, 4294901760
      %9671 = vmatprep.mubr.f32.mxu0 %v9670
      %v9672 = vand.u32 %v8478, 4294901760
      %9673 = vmatmul.mubr.f32.gmra.mxu0 %v9672
      %v9674 = vpop.f32.mrf.mxu0
      %v9675 = vadd.f32 %v9529, %v9674
      %v9676 = vpop.f32.mrf.mxu0
      %v9677 = vand.u32 %v8528, 4294901760
      %9678 = vmatprep.mubr.f32.mxu0 %v9677
      %v9679 = vand.u32 %v8480, 4294901760
      %9680 = vmatmul.mubr.f32.gmra.mxu0 %v9679
      %v9681 = vpop.f32.mrf.mxu0
      %v9682 = vadd.f32 %v9536, %v9681
      %v9683 = vpop.f32.mrf.mxu0
      %v9684 = vand.u32 %v8531, 4294901760
      %9685 = vmatprep.mubr.f32.mxu0 %v9684
      %v9686 = vand.u32 %v8482, 4294901760
      %9687 = vmatmul.mubr.f32.gmra.mxu0 %v9686
      %v9688 = vpop.f32.mrf.mxu0
      %v9689 = vadd.f32 %v9543, %v9688
      %v9690 = vpop.f32.mrf.mxu0
      %v9691 = vand.u32 %v8534, 4294901760
      %9692 = vmatprep.mubr.f32.mxu0 %v9691
      %v9693 = vand.u32 %v8484, 4294901760
      %9694 = vmatmul.mubr.f32.gmra.mxu0 %v9693
      %v9695 = vpop.f32.mrf.mxu0
      %v9696 = vadd.f32 %v9550, %v9695
      %v9697 = vpop.f32.mrf.mxu0
      %9698 = vdwg.mxu0
      %v9699 = vlaneseq
      %v9700 = vshrl.u32 %v9699, 7
      %v9701 = vsub.s32 3, %v9700
      %v9702 = vrot.slane %v1562, %v9701
      %v9703 = vmul.f32 %v9647, %v9702
      %v9704 = vmul.f32 %v9654, %v9702
      %v9705 = vmul.f32 %v9661, %v9702
      %v9706 = vmul.f32 %v9668, %v9702
      %v9707 = vmul.f32 %v9675, %v9702
      %v9708 = vmul.f32 %v9682, %v9702
      %v9709 = vmul.f32 %v9689, %v9702
      %v9710 = vmul.f32 %v9696, %v9702
      %v9711 = vlaneseq
      %v9712 = vshrl.u32 %v9711, 7
      %v9713 = vsub.s32 3, %v9712
      %v9714 = vrot.slane %v1563, %v9713
      %v9715 = vadd.f32 %v9703, %v9714
      %v9716 = vadd.f32 %v9704, %v9714
      %v9717 = vadd.f32 %v9705, %v9714
      %v9718 = vadd.f32 %v9706, %v9714
      %v9719 = vadd.f32 %v9707, %v9714
      %v9720 = vadd.f32 %v9708, %v9714
      %v9721 = vadd.f32 %v9709, %v9714
      %v9722 = vadd.f32 %v9710, %v9714
      %9723 = vxpose.xlu0.b32.start [1/16] %v9715, 128
      %9724 = vxpose.xlu0.b32.cont [2/16] %v9716, 128
      %9725 = vxpose.xlu0.b32.cont [3/16] %v9717, 128
      %9726 = vxpose.xlu0.b32.cont [4/16] %v9718, 128
      %9727 = vxpose.xlu0.b32.cont [5/16] %v9719, 128
      %9728 = vxpose.xlu0.b32.cont [6/16] %v9720, 128
      %9729 = vxpose.xlu0.b32.cont [7/16] %v9721, 128
      %9730 = vxpose.xlu0.b32.cont [8/16] %v9722, 128
      %9731 = vxpose.xlu0.b32.cont [9/16] 0.0, 128
      %9732 = vxpose.xlu0.b32.cont [10/16] 0.0, 128
      %9733 = vxpose.xlu0.b32.cont [11/16] 0.0, 128
      %9734 = vxpose.xlu0.b32.cont [12/16] 0.0, 128
      %9735 = vxpose.xlu0.b32.cont [13/16] 0.0, 128
      %9736 = vxpose.xlu0.b32.cont [14/16] 0.0, 128
      %9737 = vxpose.xlu0.b32.cont [15/16] 0.0, 128
      %9738 = vxpose.xlu0.b32.end [16/16] 0.0, 128
      %v9739 = vpop.trf.xlu0
      %v9740 = vpop.trf.xlu0
      %v9741 = vpop.trf.xlu0
      %v9742 = vpop.trf.xlu0
      %v9743 = vpop.trf.xlu0
      %v9744 = vpop.trf.xlu0
      %v9745 = vpop.trf.xlu0
      %v9746 = vpop.trf.xlu0
      %v9747 = vpop.trf.xlu0
      %v9748 = vpop.trf.xlu0
      %v9749 = vpop.trf.xlu0
      %v9750 = vpop.trf.xlu0
      %v9751 = vpop.trf.xlu0
      %v9752 = vpop.trf.xlu0
      %v9753 = vpop.trf.xlu0
      %v9754 = vpop.trf.xlu0
      %9755 = vst.msk [vmem:[%s249] sm:$0xff] %vm387, %v9739
      %p9756 = scmp.lt.s32.totalorder %s17, 1
      %s9757 = scalar_select %p9756, %s17, 1
      %s9758 = smul.addr %s9757, 8
      %s9759 = scalar_lea.vmem %s6, %s9758
      // Predicated region
      $region45: #{gridnet_forward.1} parent=43 // pred_check
        %p9760 = pneg %p166
      $region46: #{gridnet_forward.1} parent=43 // pred_check_branch
        %9762 = sbr.rel (%p9760) target = $region48
      $region47: #{gridnet_forward.1} parent=43 // pred_region
        _
      $region48: #{gridnet_forward.1} parent=43 // pred_fallthru
        _
    $region44: #{gridnet_forward.1} parent=5 // pred_fallthru
      _
    %p9763 = scmp.le.s32.totalorder 2, %s12
    // Predicated region
    $region49: #{gridnet_forward.1} parent=5 // pred_check
      %p9764 = pneg %p9763
    $region50: #{gridnet_forward.1} parent=5 // pred_check_branch
      %9766 = sbr.rel (%p9764) target = $region52
    $region51: #{gridnet_forward.1} parent=5 // pred_region
      %s9767 = ssub.s32 %s12, 2
      // Predicated region
      $region53: #{gridnet_forward.1} parent=51 // pred_check
        %p9768 = pneg %p172
      $region54: #{gridnet_forward.1} parent=51 // pred_check_branch
        %9770 = sbr.rel (%p9768) target = $region56
      $region55: #{gridnet_forward.1} parent=51 // pred_region
        %p9771 = scmp.lt.s32.totalorder %s18, 1
        %s9772 = scalar_select %p9771, %s18, 1
        %s9773 = smul.addr %s9772, 8
        %s9774 = scalar_lea.vmem %s6, %s9773
      $region56: #{gridnet_forward.1} parent=51 // pred_fallthru
        _
    $region52: #{gridnet_forward.1} parent=5 // pred_fallthru
      _
  $region6: #{gridnet_forward.1} parent=0 // loop_footer
    %s16 = sadd.s32 1, %s12
  $region7: #{gridnet_forward.1} parent=0 // loop_footer_branch
    %11 = sbr.rel target = $region3
  $region8: #{gridnet_forward.1} parent=0 // loop_exit
    _

</llo_original>
